<compile_context>
chip_gen: v7x
topology: tpu7x:2x2x1
jax: 0.10.0
libtpu: 0.0.40
codegen_flags: <defaults>
</compile_context>

<pallas_src>
import jax
import jax.numpy as jnp
from jax.experimental import pallas as pl
from jax.experimental.pallas import tpu as pltpu


def _make_kernel(layer_dims):
    """layer_dims: tuple of (out_features, in_features) per layer (static)."""
    n_layers = len(layer_dims)

    def kernel(x_ref, w_ref, b_ref, o_ref):
        h = x_ref[...]                                  # [tb, input_dim] f32
        for l, (d_out, d_in) in enumerate(layer_dims):
            w = w_ref[l, :d_out, :d_in]                 # [out, in]   (static slice)
            b = b_ref[l, :, :d_out]                     # [1, out]
            # h @ W^T on the MXU: contract h's feature dim with W's `in` dim.
            z = jax.lax.dot_general(
                h, w,
                dimension_numbers=(((1,), (1,)), ((), ())),
                preferred_element_type=jnp.float32) + b
            if l < n_layers - 1:
                h = jnp.maximum(z, 0.0)                 # ReLU
            else:
                h = 0.5 * jnp.tanh(0.5 * z) + 0.5       # exact sigmoid, one EUP op
        o_ref[...] = h.astype(o_ref.dtype)

    return kernel


def _pick_tb(batch):
    """Batch tile: one grid step on single-TC chips, >=2 parallel steps on v7x."""
    b8 = ((batch + 7) // 8) * 8
    dual_tc = False
    try:
        kind = jax.devices()[0].device_kind.lower().replace(" ", "")
        dual_tc = ("v7" in kind) or ("7x" in kind)
    except Exception:
        pass
    if dual_tc and b8 >= 256:
        tb = ((b8 // 2 + 127) // 128) * 128   # 2 balanced steps across the 2 TCs
    else:
        tb = b8                               # grid of 1 on v5e / v6e
    return max(8, min(tb, 8192))              # cap per-step working set


def pack_params(params):
    """Pack per-layer (W [out, in], b [out]) into one weight slab + one bias slab."""
    layer_dims = tuple((int(w.shape[0]), int(w.shape[1])) for w, _ in params)
    dmax = max(max(o, i) for o, i in layer_dims)
    n = len(params)
    w_slab = jnp.zeros((n, dmax, dmax), jnp.float32)
    b_slab = jnp.zeros((n, 1, dmax), jnp.float32)
    for l, (w, b) in enumerate(params):
        o, i = layer_dims[l]
        w_slab = w_slab.at[l, :o, :i].set(w.astype(jnp.float32))
        b_slab = b_slab.at[l, 0, :o].set(b.reshape(-1).astype(jnp.float32))
    return w_slab, b_slab, layer_dims


def autoencoder_forward(x, params, *, tb=None):
    """x: [B, input_dim] float32.  params: list of (W [out, in], b [out])."""
    B, input_dim = x.shape
    w_slab, b_slab, layer_dims = pack_params(params)
    assert layer_dims[0][1] == input_dim and layer_dims[-1][0] == input_dim

    b8 = ((B + 7) // 8) * 8
    if tb is None:
        tb = _pick_tb(B)
    tb = min(((tb + 7) // 8) * 8, b8)

    n_tiles = pl.cdiv(B, tb)
    Bp = n_tiles * tb
    xp = x if Bp == B else jnp.pad(x, ((0, Bp - B), (0, 0)))

    n_layers, dmax = w_slab.shape[0], w_slab.shape[2]

    out = pl.pallas_call(
        _make_kernel(layer_dims),
        out_shape=jax.ShapeDtypeStruct((Bp, input_dim), jnp.float32),
        grid=(n_tiles,),
        in_specs=[
            # Streamed activation tile, batch-major, f32 (no wrapper preprocessing).
            pl.BlockSpec((tb, input_dim), lambda i: (i, 0)),
            # Constant-index blocks: weights/biases DMA'd once, VMEM-resident.
            pl.BlockSpec((n_layers, dmax, dmax), lambda i: (0, 0, 0)),
            pl.BlockSpec((n_layers, 1, dmax), lambda i: (0, 0, 0)),
        ],
        out_specs=pl.BlockSpec((tb, input_dim), lambda i: (i, 0)),
        compiler_params=pltpu.CompilerParams(
            dimension_semantics=("parallel",)),
    )(xp, w_slab, b_slab)

    return out if Bp == B else out[:B]


def make_params(key, input_dim, encoding_dim):
    """Deterministic init matching the PyTorch nn.Linear shapes (W [out,in], b [out])."""
    dims = [
        (input_dim, encoding_dim),
        (encoding_dim, encoding_dim // 2),
        (encoding_dim // 2, encoding_dim // 4),
        (encoding_dim // 4, encoding_dim // 2),
        (encoding_dim // 2, encoding_dim),
        (encoding_dim, input_dim),
    ]
    params = []
    for fan_in, fan_out in dims:
        key, kw, kb = jax.random.split(key, 3)
        bound = 1.0 / jnp.sqrt(fan_in)
        w = jax.random.uniform(kw, (fan_out, fan_in), jnp.float32, -bound, bound)
        b = jax.random.uniform(kb, (fan_out,), jnp.float32, -bound, bound)
        params.append((w, b))
    return params


def reference_forward(x, params):
    """Pure-JAX reference matching the PyTorch module."""
    h = x
    for i, (w, b) in enumerate(params):
        h = jnp.dot(h, w.T, precision=jax.lax.Precision.HIGHEST) + b[None, :]
        h = jnp.maximum(h, 0.0) if i < len(params) - 1 else jax.nn.sigmoid(h)
    return h


if __name__ == "__main__":
    key = jax.random.PRNGKey(0)
    batch, input_dim, encoding_dim = 1024, 16, 32

    key, kx = jax.random.split(key)
    x = jax.random.normal(kx, (batch, input_dim), jnp.float32)
    params = make_params(key, input_dim, encoding_dim)

    out = jax.block_until_ready(autoencoder_forward(x, params))
    ref = reference_forward(x, params)

    assert out.shape == (batch, input_dim)
    # f32 end-to-end typically matches to ~1e-5; the looser bound covers any
    # default bf16-pass matmul precision on either side of the comparison.
    assert jnp.max(jnp.abs(out - ref)) < 2e-2
    print("KERNEL_OK")
</pallas_src>

<mosaic_0001>
module attributes {stable_mosaic.version = 11 : i64} {
  func.func @kernel(%arg0: i32, %arg1: memref<1024x16xf32, #tpu.memory_space<vmem>>, %arg2: memref<6x32x32xf32, #tpu.memory_space<vmem>>, %arg3: memref<6x1x32xf32, #tpu.memory_space<vmem>>, %arg4: memref<1024x16xf32, #tpu.memory_space<vmem>>) attributes {dimension_semantics = [#tpu.dimension_semantics<parallel>], iteration_bounds = array<i64: 1>, scalar_prefetch = 0 : i64, scratch_operands = 0 : i64, tpu.core_type = #tpu.core_type<tc>, window_params = [{transform_indices = @transform_0, window_bounds = array<i64: 1024, 16>}, {pipeline_mode = #tpu.pipeline_mode<synchronous>, transform_indices = @transform_1, window_bounds = array<i64: 6, 32, 32>}, {pipeline_mode = #tpu.pipeline_mode<synchronous>, transform_indices = @transform_2, window_bounds = array<i64: 6, 1, 32>}, {transform_indices = @transform_3, window_bounds = array<i64: 1024, 16>}]} {
    %c0 = arith.constant 0 : index
    %c0_0 = arith.constant 0 : index
    %0 = vector.load %arg1[%c0, %c0_0] : memref<1024x16xf32, #tpu.memory_space<vmem>>, vector<1024x16xf32>
    %c0_1 = arith.constant 0 : index
    %c0_2 = arith.constant 0 : index
    %c0_3 = arith.constant 0 : index
    %1 = vector.load %arg2[%c0_1, %c0_2, %c0_3] : memref<6x32x32xf32, #tpu.memory_space<vmem>>, vector<1x32x16xf32>
    %2 = vector.shape_cast %1 : vector<1x32x16xf32> to vector<32x16xf32>
    %c0_4 = arith.constant 0 : index
    %c0_5 = arith.constant 0 : index
    %c0_6 = arith.constant 0 : index
    %3 = vector.load %arg3[%c0_4, %c0_5, %c0_6] : memref<6x1x32xf32, #tpu.memory_space<vmem>>, vector<1x1x32xf32>
    %4 = vector.shape_cast %3 : vector<1x1x32xf32> to vector<1x32xf32>
    %cst = arith.constant dense<0.000000e+00> : vector<1024x32xf32>
    %5 = tpu.matmul %0, %2, %cst {dimension_numbers = #tpu.dot_dimension_numbers<[1], [1], [0], [0], [0, 0, 1, 0], [], []>} : vector<1024x16xf32>, vector<32x16xf32>, vector<1024x32xf32> -> vector<1024x32xf32>
    %6 = vector.broadcast %4 : vector<1x32xf32> to vector<1024x32xf32>
    %7 = arith.addf %5, %6 : vector<1024x32xf32>
    %cst_7 = arith.constant 0.000000e+00 : f32
    %8 = vector.broadcast %cst_7 : f32 to vector<1024x32xf32>
    %9 = arith.maximumf %7, %8 : vector<1024x32xf32>
    %c1 = arith.constant 1 : index
    %c0_8 = arith.constant 0 : index
    %c0_9 = arith.constant 0 : index
    %10 = vector.load %arg2[%c1, %c0_8, %c0_9] : memref<6x32x32xf32, #tpu.memory_space<vmem>>, vector<1x16x32xf32>
    %11 = vector.shape_cast %10 : vector<1x16x32xf32> to vector<16x32xf32>
    %c1_10 = arith.constant 1 : index
    %c0_11 = arith.constant 0 : index
    %c0_12 = arith.constant 0 : index
    %12 = vector.load %arg3[%c1_10, %c0_11, %c0_12] : memref<6x1x32xf32, #tpu.memory_space<vmem>>, vector<1x1x16xf32>
    %13 = vector.shape_cast %12 : vector<1x1x16xf32> to vector<1x16xf32>
    %cst_13 = arith.constant dense<0.000000e+00> : vector<1024x16xf32>
    %14 = tpu.matmul %9, %11, %cst_13 {dimension_numbers = #tpu.dot_dimension_numbers<[1], [1], [0], [0], [0, 0, 1, 0], [], []>} : vector<1024x32xf32>, vector<16x32xf32>, vector<1024x16xf32> -> vector<1024x16xf32>
    %15 = vector.broadcast %13 : vector<1x16xf32> to vector<1024x16xf32>
    %16 = arith.addf %14, %15 : vector<1024x16xf32>
    %cst_14 = arith.constant 0.000000e+00 : f32
    %17 = vector.broadcast %cst_14 : f32 to vector<1024x16xf32>
    %18 = arith.maximumf %16, %17 : vector<1024x16xf32>
    %c2 = arith.constant 2 : index
    %c0_15 = arith.constant 0 : index
    %c0_16 = arith.constant 0 : index
    %19 = vector.load %arg2[%c2, %c0_15, %c0_16] : memref<6x32x32xf32, #tpu.memory_space<vmem>>, vector<1x8x16xf32>
    %20 = vector.shape_cast %19 : vector<1x8x16xf32> to vector<8x16xf32>
    %c2_17 = arith.constant 2 : index
    %c0_18 = arith.constant 0 : index
    %c0_19 = arith.constant 0 : index
    %21 = vector.load %arg3[%c2_17, %c0_18, %c0_19] : memref<6x1x32xf32, #tpu.memory_space<vmem>>, vector<1x1x8xf32>
    %22 = vector.shape_cast %21 : vector<1x1x8xf32> to vector<1x8xf32>
    %cst_20 = arith.constant dense<0.000000e+00> : vector<1024x8xf32>
    %23 = tpu.matmul %18, %20, %cst_20 {dimension_numbers = #tpu.dot_dimension_numbers<[1], [1], [0], [0], [0, 0, 1, 0], [], []>} : vector<1024x16xf32>, vector<8x16xf32>, vector<1024x8xf32> -> vector<1024x8xf32>
    %24 = vector.broadcast %22 : vector<1x8xf32> to vector<1024x8xf32>
    %25 = arith.addf %23, %24 : vector<1024x8xf32>
    %cst_21 = arith.constant 0.000000e+00 : f32
    %26 = vector.broadcast %cst_21 : f32 to vector<1024x8xf32>
    %27 = arith.maximumf %25, %26 : vector<1024x8xf32>
    %c3 = arith.constant 3 : index
    %c0_22 = arith.constant 0 : index
    %c0_23 = arith.constant 0 : index
    %28 = vector.load %arg2[%c3, %c0_22, %c0_23] : memref<6x32x32xf32, #tpu.memory_space<vmem>>, vector<1x16x8xf32>
    %29 = vector.shape_cast %28 : vector<1x16x8xf32> to vector<16x8xf32>
    %c3_24 = arith.constant 3 : index
    %c0_25 = arith.constant 0 : index
    %c0_26 = arith.constant 0 : index
    %30 = vector.load %arg3[%c3_24, %c0_25, %c0_26] : memref<6x1x32xf32, #tpu.memory_space<vmem>>, vector<1x1x16xf32>
    %31 = vector.shape_cast %30 : vector<1x1x16xf32> to vector<1x16xf32>
    %cst_27 = arith.constant dense<0.000000e+00> : vector<1024x16xf32>
    %32 = tpu.matmul %27, %29, %cst_27 {dimension_numbers = #tpu.dot_dimension_numbers<[1], [1], [0], [0], [0, 0, 1, 0], [], []>} : vector<1024x8xf32>, vector<16x8xf32>, vector<1024x16xf32> -> vector<1024x16xf32>
    %33 = vector.broadcast %31 : vector<1x16xf32> to vector<1024x16xf32>
    %34 = arith.addf %32, %33 : vector<1024x16xf32>
    %cst_28 = arith.constant 0.000000e+00 : f32
    %35 = vector.broadcast %cst_28 : f32 to vector<1024x16xf32>
    %36 = arith.maximumf %34, %35 : vector<1024x16xf32>
    %c4 = arith.constant 4 : index
    %c0_29 = arith.constant 0 : index
    %c0_30 = arith.constant 0 : index
    %37 = vector.load %arg2[%c4, %c0_29, %c0_30] : memref<6x32x32xf32, #tpu.memory_space<vmem>>, vector<1x32x16xf32>
    %38 = vector.shape_cast %37 : vector<1x32x16xf32> to vector<32x16xf32>
    %c4_31 = arith.constant 4 : index
    %c0_32 = arith.constant 0 : index
    %c0_33 = arith.constant 0 : index
    %39 = vector.load %arg3[%c4_31, %c0_32, %c0_33] : memref<6x1x32xf32, #tpu.memory_space<vmem>>, vector<1x1x32xf32>
    %40 = vector.shape_cast %39 : vector<1x1x32xf32> to vector<1x32xf32>
    %cst_34 = arith.constant dense<0.000000e+00> : vector<1024x32xf32>
    %41 = tpu.matmul %36, %38, %cst_34 {dimension_numbers = #tpu.dot_dimension_numbers<[1], [1], [0], [0], [0, 0, 1, 0], [], []>} : vector<1024x16xf32>, vector<32x16xf32>, vector<1024x32xf32> -> vector<1024x32xf32>
    %42 = vector.broadcast %40 : vector<1x32xf32> to vector<1024x32xf32>
    %43 = arith.addf %41, %42 : vector<1024x32xf32>
    %cst_35 = arith.constant 0.000000e+00 : f32
    %44 = vector.broadcast %cst_35 : f32 to vector<1024x32xf32>
    %45 = arith.maximumf %43, %44 : vector<1024x32xf32>
    %c5 = arith.constant 5 : index
    %c0_36 = arith.constant 0 : index
    %c0_37 = arith.constant 0 : index
    %46 = vector.load %arg2[%c5, %c0_36, %c0_37] : memref<6x32x32xf32, #tpu.memory_space<vmem>>, vector<1x16x32xf32>
    %47 = vector.shape_cast %46 : vector<1x16x32xf32> to vector<16x32xf32>
    %c5_38 = arith.constant 5 : index
    %c0_39 = arith.constant 0 : index
    %c0_40 = arith.constant 0 : index
    %48 = vector.load %arg3[%c5_38, %c0_39, %c0_40] : memref<6x1x32xf32, #tpu.memory_space<vmem>>, vector<1x1x16xf32>
    %49 = vector.shape_cast %48 : vector<1x1x16xf32> to vector<1x16xf32>
    %cst_41 = arith.constant dense<0.000000e+00> : vector<1024x16xf32>
    %50 = tpu.matmul %45, %47, %cst_41 {dimension_numbers = #tpu.dot_dimension_numbers<[1], [1], [0], [0], [0, 0, 1, 0], [], []>} : vector<1024x32xf32>, vector<16x32xf32>, vector<1024x16xf32> -> vector<1024x16xf32>
    %51 = vector.broadcast %49 : vector<1x16xf32> to vector<1024x16xf32>
    %52 = arith.addf %50, %51 : vector<1024x16xf32>
    %cst_42 = arith.constant 5.000000e-01 : f32
    %53 = vector.broadcast %cst_42 : f32 to vector<1024x16xf32>
    %54 = arith.mulf %53, %52 : vector<1024x16xf32>
    %55 = math.tanh %54 : vector<1024x16xf32>
    %cst_43 = arith.constant 5.000000e-01 : f32
    %56 = vector.broadcast %cst_43 : f32 to vector<1024x16xf32>
    %57 = arith.mulf %56, %55 : vector<1024x16xf32>
    %cst_44 = arith.constant 5.000000e-01 : f32
    %58 = vector.broadcast %cst_44 : f32 to vector<1024x16xf32>
    %59 = arith.addf %57, %58 : vector<1024x16xf32>
    %c0_45 = arith.constant 0 : index
    %c0_46 = arith.constant 0 : index
    %60 = vector.load %arg4[%c0_45, %c0_46] : memref<1024x16xf32, #tpu.memory_space<vmem>>, vector<1024x16xf32>
    tpu.vector_store %arg4[%c0_45, %c0_46], %59 {strides = array<i32>} : memref<1024x16xf32, #tpu.memory_space<vmem>>, vector<1024x16xf32>,
    return
  }
  func.func @transform_0(%arg0: i32) -> (i32, i32) {
    %c0_i32 = arith.constant 0 : i32
    %c0_i32_0 = arith.constant 0 : i32
    return %arg0, %c0_i32 : i32, i32
  }
  func.func @transform_1(%arg0: i32) -> (i32, i32, i32) {
    %c0_i32 = arith.constant 0 : i32
    %c0_i32_0 = arith.constant 0 : i32
    %c0_i32_1 = arith.constant 0 : i32
    %c0_i32_2 = arith.constant 0 : i32
    return %c0_i32, %c0_i32_0, %c0_i32_1 : i32, i32, i32
  }
  func.func @transform_2(%arg0: i32) -> (i32, i32, i32) {
    %c0_i32 = arith.constant 0 : i32
    %c0_i32_0 = arith.constant 0 : i32
    %c0_i32_1 = arith.constant 0 : i32
    %c0_i32_2 = arith.constant 0 : i32
    return %c0_i32, %c0_i32_0, %c0_i32_1 : i32, i32, i32
  }
  func.func @transform_3(%arg0: i32) -> (i32, i32) {
    %c0_i32 = arith.constant 0 : i32
    %c0_i32_0 = arith.constant 0 : i32
    return %arg0, %c0_i32 : i32, i32
  }
}

</mosaic_0001>

<llo_original>
// kernel: tpu_custom_call.1
$region0: #{tpu_custom_call.1}
  #allocation0 [shape = 'u32[]', space=smem, size = 0x4, offset = 0x4, fixed_abs, tag = 'smem constant byte address 0x4 - core index']
  #allocation1 [shape = 'u32[144,128]{1,0:T(1,128)}', space=vmem, size = 0x12000, scoped, tag = 'internal scratch']
  %s0 = inlined_call_operand.vmem [shape: f32[1024,16], index: 0, kind: input, shape index: {}]
  %s1 = inlined_call_operand.vmem [shape: f32[6,32,32], index: 1, kind: input, shape index: {}]
  %s2 = inlined_call_operand.vmem [shape: f32[6,1,32], index: 2, kind: input, shape index: {}]
  %s3 = inlined_call_operand.vmem [shape: f32[1024,16], index: 3, kind: output, shape index: {}]
  %s4 = sld [smem:[#allocation0]]
  $region22: #{tpu_custom_call.1} parent=0
    _
  %s6 = ssub.s32 1, %s4
  %s7 = scalar_select 0, %s6, %s4
  // Predicated region
  $region2: #{tpu_custom_call.1} parent=0 // pred_check
    _
  $region3: #{tpu_custom_call.1} parent=0 // pred_check_branch
    %9 = sbr.rel (0) target = $region5
  $region4: #{tpu_custom_call.1} parent=0 // pred_region
    _
  $region5: #{tpu_custom_call.1} parent=0 // pred_fallthru
    _
  // Predicated region
  $region6: #{tpu_custom_call.1} parent=0 // pred_check
    _
  $region7: #{tpu_custom_call.1} parent=0 // pred_check_branch
    %11 = sbr.rel (0) target = $region9
  $region8: #{tpu_custom_call.1} parent=0 // pred_region
    _
  $region9: #{tpu_custom_call.1} parent=0 // pred_fallthru
    _
  // Predicated region
  $region10: #{tpu_custom_call.1} parent=0 // pred_check
    _
  $region11: #{tpu_custom_call.1} parent=0 // pred_check_branch
    %13 = sbr.rel (0) target = $region13
  $region12: #{tpu_custom_call.1} parent=0 // pred_region
    _
  $region13: #{tpu_custom_call.1} parent=0 // pred_fallthru
    _
  %v14 = vld [vmem:[%s0] sm:$0xff]
  %v15 = vld [vmem:[%s0 + $0x8] sm:$0xff]
  %v16 = vld [vmem:[%s0 + $0x10] sm:$0xff]
  %v17 = vld [vmem:[%s0 + $0x18] sm:$0xff]
  %v18 = vld [vmem:[%s0 + $0x20] sm:$0xff]
  %v19 = vld [vmem:[%s0 + $0x28] sm:$0xff]
  %v20 = vld [vmem:[%s0 + $0x30] sm:$0xff]
  %v21 = vld [vmem:[%s0 + $0x38] sm:$0xff]
  %v22 = vld [vmem:[%s0 + $0x40] sm:$0xff]
  %v23 = vld [vmem:[%s0 + $0x48] sm:$0xff]
  %v24 = vld [vmem:[%s0 + $0x50] sm:$0xff]
  %v25 = vld [vmem:[%s0 + $0x58] sm:$0xff]
  %v26 = vld [vmem:[%s0 + $0x60] sm:$0xff]
  %v27 = vld [vmem:[%s0 + $0x68] sm:$0xff]
  %v28 = vld [vmem:[%s0 + $0x70] sm:$0xff]
  %v29 = vld [vmem:[%s0 + $0x78] sm:$0xff]
  %v30 = vld [vmem:[%s0 + $0x80] sm:$0xff]
  %v31 = vld [vmem:[%s0 + $0x88] sm:$0xff]
  %v32 = vld [vmem:[%s0 + $0x90] sm:$0xff]
  %v33 = vld [vmem:[%s0 + $0x98] sm:$0xff]
  %v34 = vld [vmem:[%s0 + $0xa0] sm:$0xff]
  %v35 = vld [vmem:[%s0 + $0xa8] sm:$0xff]
  %v36 = vld [vmem:[%s0 + $0xb0] sm:$0xff]
  %v37 = vld [vmem:[%s0 + $0xb8] sm:$0xff]
  %v38 = vld [vmem:[%s0 + $0xc0] sm:$0xff]
  %v39 = vld [vmem:[%s0 + $0xc8] sm:$0xff]
  %v40 = vld [vmem:[%s0 + $0xd0] sm:$0xff]
  %v41 = vld [vmem:[%s0 + $0xd8] sm:$0xff]
  %v42 = vld [vmem:[%s0 + $0xe0] sm:$0xff]
  %v43 = vld [vmem:[%s0 + $0xe8] sm:$0xff]
  %v44 = vld [vmem:[%s0 + $0xf0] sm:$0xff]
  %v45 = vld [vmem:[%s0 + $0xf8] sm:$0xff]
  %v46 = vld [vmem:[%s0 + $0x100] sm:$0xff]
  %v47 = vld [vmem:[%s0 + $0x108] sm:$0xff]
  %v48 = vld [vmem:[%s0 + $0x110] sm:$0xff]
  %v49 = vld [vmem:[%s0 + $0x118] sm:$0xff]
  %v50 = vld [vmem:[%s0 + $0x120] sm:$0xff]
  %v51 = vld [vmem:[%s0 + $0x128] sm:$0xff]
  %v52 = vld [vmem:[%s0 + $0x130] sm:$0xff]
  %v53 = vld [vmem:[%s0 + $0x138] sm:$0xff]
  %v54 = vld [vmem:[%s0 + $0x140] sm:$0xff]
  %v55 = vld [vmem:[%s0 + $0x148] sm:$0xff]
  %v56 = vld [vmem:[%s0 + $0x150] sm:$0xff]
  %v57 = vld [vmem:[%s0 + $0x158] sm:$0xff]
  %v58 = vld [vmem:[%s0 + $0x160] sm:$0xff]
  %v59 = vld [vmem:[%s0 + $0x168] sm:$0xff]
  %v60 = vld [vmem:[%s0 + $0x170] sm:$0xff]
  %v61 = vld [vmem:[%s0 + $0x178] sm:$0xff]
  %v62 = vld [vmem:[%s0 + $0x180] sm:$0xff]
  %v63 = vld [vmem:[%s0 + $0x188] sm:$0xff]
  %v64 = vld [vmem:[%s0 + $0x190] sm:$0xff]
  %v65 = vld [vmem:[%s0 + $0x198] sm:$0xff]
  %v66 = vld [vmem:[%s0 + $0x1a0] sm:$0xff]
  %v67 = vld [vmem:[%s0 + $0x1a8] sm:$0xff]
  %v68 = vld [vmem:[%s0 + $0x1b0] sm:$0xff]
  %v69 = vld [vmem:[%s0 + $0x1b8] sm:$0xff]
  %v70 = vld [vmem:[%s0 + $0x1c0] sm:$0xff]
  %v71 = vld [vmem:[%s0 + $0x1c8] sm:$0xff]
  %v72 = vld [vmem:[%s0 + $0x1d0] sm:$0xff]
  %v73 = vld [vmem:[%s0 + $0x1d8] sm:$0xff]
  %v74 = vld [vmem:[%s0 + $0x1e0] sm:$0xff]
  %v75 = vld [vmem:[%s0 + $0x1e8] sm:$0xff]
  %v76 = vld [vmem:[%s0 + $0x1f0] sm:$0xff]
  %v77 = vld [vmem:[%s0 + $0x1f8] sm:$0xff]
  %v78 = vld [vmem:[%s0 + $0x200] sm:$0xff]
  %v79 = vld [vmem:[%s0 + $0x208] sm:$0xff]
  %v80 = vld [vmem:[%s0 + $0x210] sm:$0xff]
  %v81 = vld [vmem:[%s0 + $0x218] sm:$0xff]
  %v82 = vld [vmem:[%s0 + $0x220] sm:$0xff]
  %v83 = vld [vmem:[%s0 + $0x228] sm:$0xff]
  %v84 = vld [vmem:[%s0 + $0x230] sm:$0xff]
  %v85 = vld [vmem:[%s0 + $0x238] sm:$0xff]
  %v86 = vld [vmem:[%s0 + $0x240] sm:$0xff]
  %v87 = vld [vmem:[%s0 + $0x248] sm:$0xff]
  %v88 = vld [vmem:[%s0 + $0x250] sm:$0xff]
  %v89 = vld [vmem:[%s0 + $0x258] sm:$0xff]
  %v90 = vld [vmem:[%s0 + $0x260] sm:$0xff]
  %v91 = vld [vmem:[%s0 + $0x268] sm:$0xff]
  %v92 = vld [vmem:[%s0 + $0x270] sm:$0xff]
  %v93 = vld [vmem:[%s0 + $0x278] sm:$0xff]
  %v94 = vld [vmem:[%s0 + $0x280] sm:$0xff]
  %v95 = vld [vmem:[%s0 + $0x288] sm:$0xff]
  %v96 = vld [vmem:[%s0 + $0x290] sm:$0xff]
  %v97 = vld [vmem:[%s0 + $0x298] sm:$0xff]
  %v98 = vld [vmem:[%s0 + $0x2a0] sm:$0xff]
  %v99 = vld [vmem:[%s0 + $0x2a8] sm:$0xff]
  %v100 = vld [vmem:[%s0 + $0x2b0] sm:$0xff]
  %v101 = vld [vmem:[%s0 + $0x2b8] sm:$0xff]
  %v102 = vld [vmem:[%s0 + $0x2c0] sm:$0xff]
  %v103 = vld [vmem:[%s0 + $0x2c8] sm:$0xff]
  %v104 = vld [vmem:[%s0 + $0x2d0] sm:$0xff]
  %v105 = vld [vmem:[%s0 + $0x2d8] sm:$0xff]
  %v106 = vld [vmem:[%s0 + $0x2e0] sm:$0xff]
  %v107 = vld [vmem:[%s0 + $0x2e8] sm:$0xff]
  %v108 = vld [vmem:[%s0 + $0x2f0] sm:$0xff]
  %v109 = vld [vmem:[%s0 + $0x2f8] sm:$0xff]
  %v110 = vld [vmem:[%s0 + $0x300] sm:$0xff]
  %v111 = vld [vmem:[%s0 + $0x308] sm:$0xff]
  %v112 = vld [vmem:[%s0 + $0x310] sm:$0xff]
  %v113 = vld [vmem:[%s0 + $0x318] sm:$0xff]
  %v114 = vld [vmem:[%s0 + $0x320] sm:$0xff]
  %v115 = vld [vmem:[%s0 + $0x328] sm:$0xff]
  %v116 = vld [vmem:[%s0 + $0x330] sm:$0xff]
  %v117 = vld [vmem:[%s0 + $0x338] sm:$0xff]
  %v118 = vld [vmem:[%s0 + $0x340] sm:$0xff]
  %v119 = vld [vmem:[%s0 + $0x348] sm:$0xff]
  %v120 = vld [vmem:[%s0 + $0x350] sm:$0xff]
  %v121 = vld [vmem:[%s0 + $0x358] sm:$0xff]
  %v122 = vld [vmem:[%s0 + $0x360] sm:$0xff]
  %v123 = vld [vmem:[%s0 + $0x368] sm:$0xff]
  %v124 = vld [vmem:[%s0 + $0x370] sm:$0xff]
  %v125 = vld [vmem:[%s0 + $0x378] sm:$0xff]
  %v126 = vld [vmem:[%s0 + $0x380] sm:$0xff]
  %v127 = vld [vmem:[%s0 + $0x388] sm:$0xff]
  %v128 = vld [vmem:[%s0 + $0x390] sm:$0xff]
  %v129 = vld [vmem:[%s0 + $0x398] sm:$0xff]
  %v130 = vld [vmem:[%s0 + $0x3a0] sm:$0xff]
  %v131 = vld [vmem:[%s0 + $0x3a8] sm:$0xff]
  %v132 = vld [vmem:[%s0 + $0x3b0] sm:$0xff]
  %v133 = vld [vmem:[%s0 + $0x3b8] sm:$0xff]
  %v134 = vld [vmem:[%s0 + $0x3c0] sm:$0xff]
  %v135 = vld [vmem:[%s0 + $0x3c8] sm:$0xff]
  %v136 = vld [vmem:[%s0 + $0x3d0] sm:$0xff]
  %v137 = vld [vmem:[%s0 + $0x3d8] sm:$0xff]
  %v138 = vld [vmem:[%s0 + $0x3e0] sm:$0xff]
  %v139 = vld [vmem:[%s0 + $0x3e8] sm:$0xff]
  %v140 = vld [vmem:[%s0 + $0x3f0] sm:$0xff]
  %v141 = vld [vmem:[%s0 + $0x3f8] sm:$0xff]
  %v142 = vld [vmem:[%s1] sm:$0xff]
  %v143 = vld [vmem:[%s1 + $0x8] sm:$0xff]
  %v144 = vld [vmem:[%s1 + $0x10] sm:$0xff]
  %v145 = vld [vmem:[%s1 + $0x18] sm:$0xff]
  %v146 = vld [vmem:[%s2] sm:$0x1]
  %v148 = vlaneseq
  %v149 = vshrl.u32 %v148, 7
  %v150 = vsub.s32 0, %v149
  %v151 = vrot.slane %v146, %v150
  %vm153 = vcmask 130048
  %v155 = vsel %vm153, %v14, 0
  %v158 = vsel %vm153, %v15, 0
  %v161 = vsel %vm153, %v16, 0
  %v164 = vsel %vm153, %v17, 0
  %v167 = vsel %vm153, %v18, 0
  %v170 = vsel %vm153, %v19, 0
  %v173 = vsel %vm153, %v20, 0
  %v176 = vsel %vm153, %v21, 0
  %v179 = vsel %vm153, %v22, 0
  %v182 = vsel %vm153, %v23, 0
  %v185 = vsel %vm153, %v24, 0
  %v188 = vsel %vm153, %v25, 0
  %v191 = vsel %vm153, %v26, 0
  %v194 = vsel %vm153, %v27, 0
  %v197 = vsel %vm153, %v28, 0
  %v200 = vsel %vm153, %v29, 0
  %v203 = vsel %vm153, %v30, 0
  %v206 = vsel %vm153, %v31, 0
  %v209 = vsel %vm153, %v32, 0
  %v212 = vsel %vm153, %v33, 0
  %v215 = vsel %vm153, %v34, 0
  %v218 = vsel %vm153, %v35, 0
  %v221 = vsel %vm153, %v36, 0
  %v224 = vsel %vm153, %v37, 0
  %v227 = vsel %vm153, %v38, 0
  %v230 = vsel %vm153, %v39, 0
  %v233 = vsel %vm153, %v40, 0
  %v236 = vsel %vm153, %v41, 0
  %v239 = vsel %vm153, %v42, 0
  %v242 = vsel %vm153, %v43, 0
  %v245 = vsel %vm153, %v44, 0
  %v248 = vsel %vm153, %v45, 0
  %v251 = vsel %vm153, %v46, 0
  %v254 = vsel %vm153, %v47, 0
  %v257 = vsel %vm153, %v48, 0
  %v260 = vsel %vm153, %v49, 0
  %v263 = vsel %vm153, %v50, 0
  %v266 = vsel %vm153, %v51, 0
  %v269 = vsel %vm153, %v52, 0
  %v272 = vsel %vm153, %v53, 0
  %v275 = vsel %vm153, %v54, 0
  %v278 = vsel %vm153, %v55, 0
  %v281 = vsel %vm153, %v56, 0
  %v284 = vsel %vm153, %v57, 0
  %v287 = vsel %vm153, %v58, 0
  %v290 = vsel %vm153, %v59, 0
  %v293 = vsel %vm153, %v60, 0
  %v296 = vsel %vm153, %v61, 0
  %v299 = vsel %vm153, %v62, 0
  %v302 = vsel %vm153, %v63, 0
  %v305 = vsel %vm153, %v64, 0
  %v308 = vsel %vm153, %v65, 0
  %v311 = vsel %vm153, %v66, 0
  %v314 = vsel %vm153, %v67, 0
  %v317 = vsel %vm153, %v68, 0
  %v320 = vsel %vm153, %v69, 0
  %v323 = vsel %vm153, %v70, 0
  %v326 = vsel %vm153, %v71, 0
  %v329 = vsel %vm153, %v72, 0
  %v332 = vsel %vm153, %v73, 0
  %v335 = vsel %vm153, %v74, 0
  %v338 = vsel %vm153, %v75, 0
  %v341 = vsel %vm153, %v76, 0
  %v344 = vsel %vm153, %v77, 0
  %v347 = vsel %vm153, %v78, 0
  %v350 = vsel %vm153, %v79, 0
  %v353 = vsel %vm153, %v80, 0
  %v356 = vsel %vm153, %v81, 0
  %v359 = vsel %vm153, %v82, 0
  %v362 = vsel %vm153, %v83, 0
  %v365 = vsel %vm153, %v84, 0
  %v368 = vsel %vm153, %v85, 0
  %v371 = vsel %vm153, %v86, 0
  %v374 = vsel %vm153, %v87, 0
  %v377 = vsel %vm153, %v88, 0
  %v380 = vsel %vm153, %v89, 0
  %v383 = vsel %vm153, %v90, 0
  %v386 = vsel %vm153, %v91, 0
  %v389 = vsel %vm153, %v92, 0
  %v392 = vsel %vm153, %v93, 0
  %v395 = vsel %vm153, %v94, 0
  %v398 = vsel %vm153, %v95, 0
  %v401 = vsel %vm153, %v96, 0
  %v404 = vsel %vm153, %v97, 0
  %v407 = vsel %vm153, %v98, 0
  %v410 = vsel %vm153, %v99, 0
  %v413 = vsel %vm153, %v100, 0
  %v416 = vsel %vm153, %v101, 0
  %v419 = vsel %vm153, %v102, 0
  %v422 = vsel %vm153, %v103, 0
  %v425 = vsel %vm153, %v104, 0
  %v428 = vsel %vm153, %v105, 0
  %v431 = vsel %vm153, %v106, 0
  %v434 = vsel %vm153, %v107, 0
  %v437 = vsel %vm153, %v108, 0
  %v440 = vsel %vm153, %v109, 0
  %v443 = vsel %vm153, %v110, 0
  %v446 = vsel %vm153, %v111, 0
  %v449 = vsel %vm153, %v112, 0
  %v452 = vsel %vm153, %v113, 0
  %v455 = vsel %vm153, %v114, 0
  %v458 = vsel %vm153, %v115, 0
  %v461 = vsel %vm153, %v116, 0
  %v464 = vsel %vm153, %v117, 0
  %v467 = vsel %vm153, %v118, 0
  %v470 = vsel %vm153, %v119, 0
  %v473 = vsel %vm153, %v120, 0
  %v476 = vsel %vm153, %v121, 0
  %v479 = vsel %vm153, %v122, 0
  %v482 = vsel %vm153, %v123, 0
  %v485 = vsel %vm153, %v124, 0
  %v488 = vsel %vm153, %v125, 0
  %v491 = vsel %vm153, %v126, 0
  %v494 = vsel %vm153, %v127, 0
  %v497 = vsel %vm153, %v128, 0
  %v500 = vsel %vm153, %v129, 0
  %v503 = vsel %vm153, %v130, 0
  %v506 = vsel %vm153, %v131, 0
  %v509 = vsel %vm153, %v132, 0
  %v512 = vsel %vm153, %v133, 0
  %v515 = vsel %vm153, %v134, 0
  %v518 = vsel %vm153, %v135, 0
  %v521 = vsel %vm153, %v136, 0
  %v524 = vsel %vm153, %v137, 0
  %v527 = vsel %vm153, %v138, 0
  %v530 = vsel %vm153, %v139, 0
  %v533 = vsel %vm153, %v140, 0
  %v536 = vsel %vm153, %v141, 0
  %v539 = vsel %vm153, %v142, 0
  %v542 = vsel %vm153, %v143, 0
  %v545 = vsel %vm153, %v144, 0
  %v548 = vsel %vm153, %v145, 0
  %550 = vmatprep.subr.mxu0 0.0
  %551 = vmatpush1.xpose.msra.mxu0 %v539
  %552 = vmatprep.subr.mxu0 0.0
  %553 = vmatpush1.xpose.msra.mxu0 %v542
  %554 = vmatprep.subr.mxu0 0.0
  %555 = vmatpush1.xpose.msra.mxu0 %v545
  %556 = vmatprep.subr.mxu0 0.0
  %557 = vmatpush1.xpose.msra.mxu0 %v548
  %558 = vmatprep.subr.mxu0 0.0
  %559 = vmatpush1.xpose.msra.mxu0 0.0
  %560 = vmatprep.subr.mxu0 0.0
  %561 = vmatpush1.xpose.msra.mxu0 0.0
  %562 = vmatprep.subr.mxu0 0.0
  %563 = vmatpush1.xpose.msra.mxu0 0.0
  %564 = vmatprep.subr.mxu0 0.0
  %565 = vmatpush1.xpose.msra.mxu0 0.0
  %566 = vmatprep.subr.mxu0 0.0
  %567 = vmatpush1.xpose.msra.mxu0 0.0
  %568 = vmatprep.subr.mxu0 0.0
  %569 = vmatpush1.xpose.msra.mxu0 0.0
  %570 = vmatprep.subr.mxu0 0.0
  %571 = vmatpush1.xpose.msra.mxu0 0.0
  %572 = vmatprep.subr.mxu0 0.0
  %573 = vmatpush1.xpose.msra.mxu0 0.0
  %574 = vmatprep.subr.mxu0 0.0
  %575 = vmatpush1.xpose.msra.mxu0 0.0
  %576 = vmatprep.subr.mxu0 0.0
  %577 = vmatpush1.xpose.msra.mxu0 0.0
  %578 = vmatprep.subr.mxu0 0.0
  %579 = vmatpush1.xpose.msra.mxu0 0.0
  %580 = vmatprep.subr.mxu0 0.0
  %581 = vmatpush1.xpose.msra.mxu0 0.0
  %582 = vmatprep.subr.mxu0 0.0
  %583 = vmatpush1.xpose.msra.mxu0 0.0
  %584 = vmatprep.subr.mxu0 0.0
  %585 = vmatpush1.xpose.msra.mxu0 0.0
  %586 = vmatprep.subr.mxu0 0.0
  %587 = vmatpush1.xpose.msra.mxu0 0.0
  %588 = vmatprep.subr.mxu0 0.0
  %589 = vmatpush1.xpose.msra.mxu0 0.0
  %590 = vmatprep.subr.mxu0 0.0
  %591 = vmatpush1.xpose.msra.mxu0 0.0
  %592 = vmatprep.subr.mxu0 0.0
  %593 = vmatpush1.xpose.msra.mxu0 0.0
  %594 = vmatprep.subr.mxu0 0.0
  %595 = vmatpush1.xpose.msra.mxu0 0.0
  %596 = vmatprep.subr.mxu0 0.0
  %597 = vmatpush1.xpose.msra.mxu0 0.0
  %598 = vmatprep.subr.mxu0 0.0
  %599 = vmatpush1.xpose.msra.mxu0 0.0
  %600 = vmatprep.subr.mxu0 0.0
  %601 = vmatpush1.xpose.msra.mxu0 0.0
  %602 = vmatprep.subr.mxu0 0.0
  %603 = vmatpush1.xpose.msra.mxu0 0.0
  %604 = vmatprep.subr.mxu0 0.0
  %605 = vmatpush1.xpose.msra.mxu0 0.0
  %606 = vmatprep.subr.mxu0 0.0
  %607 = vmatpush1.xpose.msra.mxu0 0.0
  %608 = vmatprep.subr.mxu0 0.0
  %609 = vmatpush1.xpose.msra.mxu0 0.0
  %610 = vmatprep.subr.mxu0 0.0
  %611 = vmatpush1.xpose.msra.mxu0 0.0
  %612 = vmatprep.subr.mxu0 0.0
  %613 = vmatpush1.xpose.msra.mxu0 0.0
  %614 = vmatprep.mubr.f32.mxu0 0.0
  %615 = vmatmul.mubr.f32.gmra.mrb[0].mxu0 %v155
  %v616 = vpop.f32.mrb[0].mxu0
  %v617 = vadd.f32 %v151, %v616
  %v618 = vpop.f32.mrb[0].mxu0
  %619 = vmatprep.mubr.f32.mxu0 0.0
  %620 = vmatmul.mubr.f32.gmra.mrb[0].mxu0 %v158
  %v621 = vpop.f32.mrb[0].mxu0
  %v622 = vadd.f32 %v151, %v621
  %v623 = vpop.f32.mrb[0].mxu0
  %624 = vmatprep.mubr.f32.mxu0 0.0
  %625 = vmatmul.mubr.f32.gmra.mrb[0].mxu0 %v161
  %v626 = vpop.f32.mrb[0].mxu0
  %v627 = vadd.f32 %v151, %v626
  %v628 = vpop.f32.mrb[0].mxu0
  %629 = vmatprep.mubr.f32.mxu0 0.0
  %630 = vmatmul.mubr.f32.gmra.mrb[0].mxu0 %v164
  %v631 = vpop.f32.mrb[0].mxu0
  %v632 = vadd.f32 %v151, %v631
  %v633 = vpop.f32.mrb[0].mxu0
  %634 = vmatprep.mubr.f32.mxu0 0.0
  %635 = vmatmul.mubr.f32.gmra.mrb[0].mxu0 %v167
  %v636 = vpop.f32.mrb[0].mxu0
  %v637 = vadd.f32 %v151, %v636
  %v638 = vpop.f32.mrb[0].mxu0
  %639 = vmatprep.mubr.f32.mxu0 0.0
  %640 = vmatmul.mubr.f32.gmra.mrb[0].mxu0 %v170
  %v641 = vpop.f32.mrb[0].mxu0
  %v642 = vadd.f32 %v151, %v641
  %v643 = vpop.f32.mrb[0].mxu0
  %644 = vmatprep.mubr.f32.mxu0 0.0
  %645 = vmatmul.mubr.f32.gmra.mrb[0].mxu0 %v173
  %v646 = vpop.f32.mrb[0].mxu0
  %v647 = vadd.f32 %v151, %v646
  %v648 = vpop.f32.mrb[0].mxu0
  %649 = vmatprep.mubr.f32.mxu0 0.0
  %650 = vmatmul.mubr.f32.gmra.mrb[0].mxu0 %v176
  %v651 = vpop.f32.mrb[0].mxu0
  %v652 = vadd.f32 %v151, %v651
  %v653 = vpop.f32.mrb[0].mxu0
  %654 = vmatprep.mubr.f32.mxu0 0.0
  %655 = vmatmul.mubr.f32.gmra.mrb[0].mxu0 %v179
  %v656 = vpop.f32.mrb[0].mxu0
  %v657 = vadd.f32 %v151, %v656
  %v658 = vpop.f32.mrb[0].mxu0
  %659 = vmatprep.mubr.f32.mxu0 0.0
  %660 = vmatmul.mubr.f32.gmra.mrb[0].mxu0 %v182
  %v661 = vpop.f32.mrb[0].mxu0
  %v662 = vadd.f32 %v151, %v661
  %v663 = vpop.f32.mrb[0].mxu0
  %664 = vmatprep.mubr.f32.mxu0 0.0
  %665 = vmatmul.mubr.f32.gmra.mrb[0].mxu0 %v185
  %v666 = vpop.f32.mrb[0].mxu0
  %v667 = vadd.f32 %v151, %v666
  %v668 = vpop.f32.mrb[0].mxu0
  %669 = vmatprep.mubr.f32.mxu0 0.0
  %670 = vmatmul.mubr.f32.gmra.mrb[0].mxu0 %v188
  %v671 = vpop.f32.mrb[0].mxu0
  %v672 = vadd.f32 %v151, %v671
  %v673 = vpop.f32.mrb[0].mxu0
  %674 = vmatprep.mubr.f32.mxu0 0.0
  %675 = vmatmul.mubr.f32.gmra.mrb[0].mxu0 %v191
  %v676 = vpop.f32.mrb[0].mxu0
  %v677 = vadd.f32 %v151, %v676
  %v678 = vpop.f32.mrb[0].mxu0
  %679 = vmatprep.mubr.f32.mxu0 0.0
  %680 = vmatmul.mubr.f32.gmra.mrb[0].mxu0 %v194
  %v681 = vpop.f32.mrb[0].mxu0
  %v682 = vadd.f32 %v151, %v681
  %v683 = vpop.f32.mrb[0].mxu0
  %684 = vmatprep.mubr.f32.mxu0 0.0
  %685 = vmatmul.mubr.f32.gmra.mrb[0].mxu0 %v197
  %v686 = vpop.f32.mrb[0].mxu0
  %v687 = vadd.f32 %v151, %v686
  %v688 = vpop.f32.mrb[0].mxu0
  %689 = vmatprep.mubr.f32.mxu0 0.0
  %690 = vmatmul.mubr.f32.gmra.mrb[0].mxu0 %v200
  %v691 = vpop.f32.mrb[0].mxu0
  %v692 = vadd.f32 %v151, %v691
  %v693 = vpop.f32.mrb[0].mxu0
  %694 = vmatprep.mubr.f32.mxu0 0.0
  %695 = vmatmul.mubr.f32.gmra.mrb[0].mxu0 %v203
  %v696 = vpop.f32.mrb[0].mxu0
  %v697 = vadd.f32 %v151, %v696
  %v698 = vpop.f32.mrb[0].mxu0
  %699 = vmatprep.mubr.f32.mxu0 0.0
  %700 = vmatmul.mubr.f32.gmra.mrb[0].mxu0 %v206
  %v701 = vpop.f32.mrb[0].mxu0
  %v702 = vadd.f32 %v151, %v701
  %v703 = vpop.f32.mrb[0].mxu0
  %704 = vmatprep.mubr.f32.mxu0 0.0
  %705 = vmatmul.mubr.f32.gmra.mrb[0].mxu0 %v209
  %v706 = vpop.f32.mrb[0].mxu0
  %v707 = vadd.f32 %v151, %v706
  %v708 = vpop.f32.mrb[0].mxu0
  %709 = vmatprep.mubr.f32.mxu0 0.0
  %710 = vmatmul.mubr.f32.gmra.mrb[0].mxu0 %v212
  %v711 = vpop.f32.mrb[0].mxu0
  %v712 = vadd.f32 %v151, %v711
  %v713 = vpop.f32.mrb[0].mxu0
  %714 = vmatprep.mubr.f32.mxu0 0.0
  %715 = vmatmul.mubr.f32.gmra.mrb[0].mxu0 %v215
  %v716 = vpop.f32.mrb[0].mxu0
  %v717 = vadd.f32 %v151, %v716
  %v718 = vpop.f32.mrb[0].mxu0
  %719 = vmatprep.mubr.f32.mxu0 0.0
  %720 = vmatmul.mubr.f32.gmra.mrb[0].mxu0 %v218
  %v721 = vpop.f32.mrb[0].mxu0
  %v722 = vadd.f32 %v151, %v721
  %v723 = vpop.f32.mrb[0].mxu0
  %724 = vmatprep.mubr.f32.mxu0 0.0
  %725 = vmatmul.mubr.f32.gmra.mrb[0].mxu0 %v221
  %v726 = vpop.f32.mrb[0].mxu0
  %v727 = vadd.f32 %v151, %v726
  %v728 = vpop.f32.mrb[0].mxu0
  %729 = vmatprep.mubr.f32.mxu0 0.0
  %730 = vmatmul.mubr.f32.gmra.mrb[0].mxu0 %v224
  %v731 = vpop.f32.mrb[0].mxu0
  %v732 = vadd.f32 %v151, %v731
  %v733 = vpop.f32.mrb[0].mxu0
  %734 = vmatprep.mubr.f32.mxu0 0.0
  %735 = vmatmul.mubr.f32.gmra.mrb[0].mxu0 %v227
  %v736 = vpop.f32.mrb[0].mxu0
  %v737 = vadd.f32 %v151, %v736
  %v738 = vpop.f32.mrb[0].mxu0
  %739 = vmatprep.mubr.f32.mxu0 0.0
  %740 = vmatmul.mubr.f32.gmra.mrb[0].mxu0 %v230
  %v741 = vpop.f32.mrb[0].mxu0
  %v742 = vadd.f32 %v151, %v741
  %v743 = vpop.f32.mrb[0].mxu0
  %744 = vmatprep.mubr.f32.mxu0 0.0
  %745 = vmatmul.mubr.f32.gmra.mrb[0].mxu0 %v233
  %v746 = vpop.f32.mrb[0].mxu0
  %v747 = vadd.f32 %v151, %v746
  %v748 = vpop.f32.mrb[0].mxu0
  %749 = vmatprep.mubr.f32.mxu0 0.0
  %750 = vmatmul.mubr.f32.gmra.mrb[0].mxu0 %v236
  %v751 = vpop.f32.mrb[0].mxu0
  %v752 = vadd.f32 %v151, %v751
  %v753 = vpop.f32.mrb[0].mxu0
  %754 = vmatprep.mubr.f32.mxu0 0.0
  %755 = vmatmul.mubr.f32.gmra.mrb[0].mxu0 %v239
  %v756 = vpop.f32.mrb[0].mxu0
  %v757 = vadd.f32 %v151, %v756
  %v758 = vpop.f32.mrb[0].mxu0
  %759 = vmatprep.mubr.f32.mxu0 0.0
  %760 = vmatmul.mubr.f32.gmra.mrb[0].mxu0 %v242
  %v761 = vpop.f32.mrb[0].mxu0
  %v762 = vadd.f32 %v151, %v761
  %v763 = vpop.f32.mrb[0].mxu0
  %764 = vmatprep.mubr.f32.mxu0 0.0
  %765 = vmatmul.mubr.f32.gmra.mrb[0].mxu0 %v245
  %v766 = vpop.f32.mrb[0].mxu0
  %v767 = vadd.f32 %v151, %v766
  %v768 = vpop.f32.mrb[0].mxu0
  %769 = vmatprep.mubr.f32.mxu0 0.0
  %770 = vmatmul.mubr.f32.gmra.mrb[0].mxu0 %v248
  %v771 = vpop.f32.mrb[0].mxu0
  %v772 = vadd.f32 %v151, %v771
  %v773 = vpop.f32.mrb[0].mxu0
  %774 = vmatprep.mubr.f32.mxu0 0.0
  %775 = vmatmul.mubr.f32.gmra.mrb[0].mxu0 %v251
  %v776 = vpop.f32.mrb[0].mxu0
  %v777 = vadd.f32 %v151, %v776
  %v778 = vpop.f32.mrb[0].mxu0
  %779 = vmatprep.mubr.f32.mxu0 0.0
  %780 = vmatmul.mubr.f32.gmra.mrb[0].mxu0 %v254
  %v781 = vpop.f32.mrb[0].mxu0
  %v782 = vadd.f32 %v151, %v781
  %v783 = vpop.f32.mrb[0].mxu0
  %784 = vmatprep.mubr.f32.mxu0 0.0
  %785 = vmatmul.mubr.f32.gmra.mrb[0].mxu0 %v257
  %v786 = vpop.f32.mrb[0].mxu0
  %v787 = vadd.f32 %v151, %v786
  %v788 = vpop.f32.mrb[0].mxu0
  %789 = vmatprep.mubr.f32.mxu0 0.0
  %790 = vmatmul.mubr.f32.gmra.mrb[0].mxu0 %v260
  %v791 = vpop.f32.mrb[0].mxu0
  %v792 = vadd.f32 %v151, %v791
  %v793 = vpop.f32.mrb[0].mxu0
  %794 = vmatprep.mubr.f32.mxu0 0.0
  %795 = vmatmul.mubr.f32.gmra.mrb[0].mxu0 %v263
  %v796 = vpop.f32.mrb[0].mxu0
  %v797 = vadd.f32 %v151, %v796
  %v798 = vpop.f32.mrb[0].mxu0
  %799 = vmatprep.mubr.f32.mxu0 0.0
  %800 = vmatmul.mubr.f32.gmra.mrb[0].mxu0 %v266
  %v801 = vpop.f32.mrb[0].mxu0
  %v802 = vadd.f32 %v151, %v801
  %v803 = vpop.f32.mrb[0].mxu0
  %804 = vmatprep.mubr.f32.mxu0 0.0
  %805 = vmatmul.mubr.f32.gmra.mrb[0].mxu0 %v269
  %v806 = vpop.f32.mrb[0].mxu0
  %v807 = vadd.f32 %v151, %v806
  %v808 = vpop.f32.mrb[0].mxu0
  %809 = vmatprep.mubr.f32.mxu0 0.0
  %810 = vmatmul.mubr.f32.gmra.mrb[0].mxu0 %v272
  %v811 = vpop.f32.mrb[0].mxu0
  %v812 = vadd.f32 %v151, %v811
  %v813 = vpop.f32.mrb[0].mxu0
  %814 = vmatprep.mubr.f32.mxu0 0.0
  %815 = vmatmul.mubr.f32.gmra.mrb[0].mxu0 %v275
  %v816 = vpop.f32.mrb[0].mxu0
  %v817 = vadd.f32 %v151, %v816
  %v818 = vpop.f32.mrb[0].mxu0
  %819 = vmatprep.mubr.f32.mxu0 0.0
  %820 = vmatmul.mubr.f32.gmra.mrb[0].mxu0 %v278
  %v821 = vpop.f32.mrb[0].mxu0
  %v822 = vadd.f32 %v151, %v821
  %v823 = vpop.f32.mrb[0].mxu0
  %824 = vmatprep.mubr.f32.mxu0 0.0
  %825 = vmatmul.mubr.f32.gmra.mrb[0].mxu0 %v281
  %v826 = vpop.f32.mrb[0].mxu0
  %v827 = vadd.f32 %v151, %v826
  %v828 = vpop.f32.mrb[0].mxu0
  %829 = vmatprep.mubr.f32.mxu0 0.0
  %830 = vmatmul.mubr.f32.gmra.mrb[0].mxu0 %v284
  %v831 = vpop.f32.mrb[0].mxu0
  %v832 = vadd.f32 %v151, %v831
  %v833 = vpop.f32.mrb[0].mxu0
  %834 = vmatprep.mubr.f32.mxu0 0.0
  %835 = vmatmul.mubr.f32.gmra.mrb[0].mxu0 %v287
  %v836 = vpop.f32.mrb[0].mxu0
  %v837 = vadd.f32 %v151, %v836
  %v838 = vpop.f32.mrb[0].mxu0
  %839 = vmatprep.mubr.f32.mxu0 0.0
  %840 = vmatmul.mubr.f32.gmra.mrb[0].mxu0 %v290
  %v841 = vpop.f32.mrb[0].mxu0
  %v842 = vadd.f32 %v151, %v841
  %v843 = vpop.f32.mrb[0].mxu0
  %844 = vmatprep.mubr.f32.mxu0 0.0
  %845 = vmatmul.mubr.f32.gmra.mrb[0].mxu0 %v293
  %v846 = vpop.f32.mrb[0].mxu0
  %v847 = vadd.f32 %v151, %v846
  %v848 = vpop.f32.mrb[0].mxu0
  %849 = vmatprep.mubr.f32.mxu0 0.0
  %850 = vmatmul.mubr.f32.gmra.mrb[0].mxu0 %v296
  %v851 = vpop.f32.mrb[0].mxu0
  %v852 = vadd.f32 %v151, %v851
  %v853 = vpop.f32.mrb[0].mxu0
  %854 = vmatprep.mubr.f32.mxu0 0.0
  %855 = vmatmul.mubr.f32.gmra.mrb[0].mxu0 %v299
  %v856 = vpop.f32.mrb[0].mxu0
  %v857 = vadd.f32 %v151, %v856
  %v858 = vpop.f32.mrb[0].mxu0
  %859 = vmatprep.mubr.f32.mxu0 0.0
  %860 = vmatmul.mubr.f32.gmra.mrb[0].mxu0 %v302
  %v861 = vpop.f32.mrb[0].mxu0
  %v862 = vadd.f32 %v151, %v861
  %v863 = vpop.f32.mrb[0].mxu0
  %864 = vmatprep.mubr.f32.mxu0 0.0
  %865 = vmatmul.mubr.f32.gmra.mrb[0].mxu0 %v305
  %v866 = vpop.f32.mrb[0].mxu0
  %v867 = vadd.f32 %v151, %v866
  %v868 = vpop.f32.mrb[0].mxu0
  %869 = vmatprep.mubr.f32.mxu0 0.0
  %870 = vmatmul.mubr.f32.gmra.mrb[0].mxu0 %v308
  %v871 = vpop.f32.mrb[0].mxu0
  %v872 = vadd.f32 %v151, %v871
  %v873 = vpop.f32.mrb[0].mxu0
  %874 = vmatprep.mubr.f32.mxu0 0.0
  %875 = vmatmul.mubr.f32.gmra.mrb[0].mxu0 %v311
  %v876 = vpop.f32.mrb[0].mxu0
  %v877 = vadd.f32 %v151, %v876
  %v878 = vpop.f32.mrb[0].mxu0
  %879 = vmatprep.mubr.f32.mxu0 0.0
  %880 = vmatmul.mubr.f32.gmra.mrb[0].mxu0 %v314
  %v881 = vpop.f32.mrb[0].mxu0
  %v882 = vadd.f32 %v151, %v881
  %v883 = vpop.f32.mrb[0].mxu0
  %884 = vmatprep.mubr.f32.mxu0 0.0
  %885 = vmatmul.mubr.f32.gmra.mrb[0].mxu0 %v317
  %v886 = vpop.f32.mrb[0].mxu0
  %v887 = vadd.f32 %v151, %v886
  %v888 = vpop.f32.mrb[0].mxu0
  %889 = vmatprep.mubr.f32.mxu0 0.0
  %890 = vmatmul.mubr.f32.gmra.mrb[0].mxu0 %v320
  %v891 = vpop.f32.mrb[0].mxu0
  %v892 = vadd.f32 %v151, %v891
  %v893 = vpop.f32.mrb[0].mxu0
  %894 = vmatprep.mubr.f32.mxu0 0.0
  %895 = vmatmul.mubr.f32.gmra.mrb[0].mxu0 %v323
  %v896 = vpop.f32.mrb[0].mxu0
  %v897 = vadd.f32 %v151, %v896
  %v898 = vpop.f32.mrb[0].mxu0
  %899 = vmatprep.mubr.f32.mxu0 0.0
  %900 = vmatmul.mubr.f32.gmra.mrb[0].mxu0 %v326
  %v901 = vpop.f32.mrb[0].mxu0
  %v902 = vadd.f32 %v151, %v901
  %v903 = vpop.f32.mrb[0].mxu0
  %904 = vmatprep.mubr.f32.mxu0 0.0
  %905 = vmatmul.mubr.f32.gmra.mrb[0].mxu0 %v329
  %v906 = vpop.f32.mrb[0].mxu0
  %v907 = vadd.f32 %v151, %v906
  %v908 = vpop.f32.mrb[0].mxu0
  %909 = vmatprep.mubr.f32.mxu0 0.0
  %910 = vmatmul.mubr.f32.gmra.mrb[0].mxu0 %v332
  %v911 = vpop.f32.mrb[0].mxu0
  %v912 = vadd.f32 %v151, %v911
  %v913 = vpop.f32.mrb[0].mxu0
  %914 = vmatprep.mubr.f32.mxu0 0.0
  %915 = vmatmul.mubr.f32.gmra.mrb[0].mxu0 %v335
  %v916 = vpop.f32.mrb[0].mxu0
  %v917 = vadd.f32 %v151, %v916
  %v918 = vpop.f32.mrb[0].mxu0
  %919 = vmatprep.mubr.f32.mxu0 0.0
  %920 = vmatmul.mubr.f32.gmra.mrb[0].mxu0 %v338
  %v921 = vpop.f32.mrb[0].mxu0
  %v922 = vadd.f32 %v151, %v921
  %v923 = vpop.f32.mrb[0].mxu0
  %924 = vmatprep.mubr.f32.mxu0 0.0
  %925 = vmatmul.mubr.f32.gmra.mrb[0].mxu0 %v341
  %v926 = vpop.f32.mrb[0].mxu0
  %v927 = vadd.f32 %v151, %v926
  %v928 = vpop.f32.mrb[0].mxu0
  %929 = vmatprep.mubr.f32.mxu0 0.0
  %930 = vmatmul.mubr.f32.gmra.mrb[0].mxu0 %v344
  %v931 = vpop.f32.mrb[0].mxu0
  %v932 = vadd.f32 %v151, %v931
  %v933 = vpop.f32.mrb[0].mxu0
  %934 = vmatprep.mubr.f32.mxu0 0.0
  %935 = vmatmul.mubr.f32.gmra.mrb[0].mxu0 %v347
  %v936 = vpop.f32.mrb[0].mxu0
  %v937 = vadd.f32 %v151, %v936
  %v938 = vpop.f32.mrb[0].mxu0
  %939 = vmatprep.mubr.f32.mxu0 0.0
  %940 = vmatmul.mubr.f32.gmra.mrb[0].mxu0 %v350
  %v941 = vpop.f32.mrb[0].mxu0
  %v942 = vadd.f32 %v151, %v941
  %v943 = vpop.f32.mrb[0].mxu0
  %944 = vmatprep.mubr.f32.mxu0 0.0
  %945 = vmatmul.mubr.f32.gmra.mrb[0].mxu0 %v353
  %v946 = vpop.f32.mrb[0].mxu0
  %v947 = vadd.f32 %v151, %v946
  %v948 = vpop.f32.mrb[0].mxu0
  %949 = vmatprep.mubr.f32.mxu0 0.0
  %950 = vmatmul.mubr.f32.gmra.mrb[0].mxu0 %v356
  %v951 = vpop.f32.mrb[0].mxu0
  %v952 = vadd.f32 %v151, %v951
  %v953 = vpop.f32.mrb[0].mxu0
  %954 = vmatprep.mubr.f32.mxu0 0.0
  %955 = vmatmul.mubr.f32.gmra.mrb[0].mxu0 %v359
  %v956 = vpop.f32.mrb[0].mxu0
  %v957 = vadd.f32 %v151, %v956
  %v958 = vpop.f32.mrb[0].mxu0
  %959 = vmatprep.mubr.f32.mxu0 0.0
  %960 = vmatmul.mubr.f32.gmra.mrb[0].mxu0 %v362
  %v961 = vpop.f32.mrb[0].mxu0
  %v962 = vadd.f32 %v151, %v961
  %v963 = vpop.f32.mrb[0].mxu0
  %964 = vmatprep.mubr.f32.mxu0 0.0
  %965 = vmatmul.mubr.f32.gmra.mrb[0].mxu0 %v365
  %v966 = vpop.f32.mrb[0].mxu0
  %v967 = vadd.f32 %v151, %v966
  %v968 = vpop.f32.mrb[0].mxu0
  %969 = vmatprep.mubr.f32.mxu0 0.0
  %970 = vmatmul.mubr.f32.gmra.mrb[0].mxu0 %v368
  %v971 = vpop.f32.mrb[0].mxu0
  %v972 = vadd.f32 %v151, %v971
  %v973 = vpop.f32.mrb[0].mxu0
  %974 = vmatprep.mubr.f32.mxu0 0.0
  %975 = vmatmul.mubr.f32.gmra.mrb[0].mxu0 %v371
  %v976 = vpop.f32.mrb[0].mxu0
  %v977 = vadd.f32 %v151, %v976
  %v978 = vpop.f32.mrb[0].mxu0
  %979 = vmatprep.mubr.f32.mxu0 0.0
  %980 = vmatmul.mubr.f32.gmra.mrb[0].mxu0 %v374
  %v981 = vpop.f32.mrb[0].mxu0
  %v982 = vadd.f32 %v151, %v981
  %v983 = vpop.f32.mrb[0].mxu0
  %984 = vmatprep.mubr.f32.mxu0 0.0
  %985 = vmatmul.mubr.f32.gmra.mrb[0].mxu0 %v377
  %v986 = vpop.f32.mrb[0].mxu0
  %v987 = vadd.f32 %v151, %v986
  %v988 = vpop.f32.mrb[0].mxu0
  %989 = vmatprep.mubr.f32.mxu0 0.0
  %990 = vmatmul.mubr.f32.gmra.mrb[0].mxu0 %v380
  %v991 = vpop.f32.mrb[0].mxu0
  %v992 = vadd.f32 %v151, %v991
  %v993 = vpop.f32.mrb[0].mxu0
  %994 = vmatprep.mubr.f32.mxu0 0.0
  %995 = vmatmul.mubr.f32.gmra.mrb[0].mxu0 %v383
  %v996 = vpop.f32.mrb[0].mxu0
  %v997 = vadd.f32 %v151, %v996
  %v998 = vpop.f32.mrb[0].mxu0
  %999 = vmatprep.mubr.f32.mxu0 0.0
  %1000 = vmatmul.mubr.f32.gmra.mrb[0].mxu0 %v386
  %v1001 = vpop.f32.mrb[0].mxu0
  %v1002 = vadd.f32 %v151, %v1001
  %v1003 = vpop.f32.mrb[0].mxu0
  %1004 = vmatprep.mubr.f32.mxu0 0.0
  %1005 = vmatmul.mubr.f32.gmra.mrb[0].mxu0 %v389
  %v1006 = vpop.f32.mrb[0].mxu0
  %v1007 = vadd.f32 %v151, %v1006
  %v1008 = vpop.f32.mrb[0].mxu0
  %1009 = vmatprep.mubr.f32.mxu0 0.0
  %1010 = vmatmul.mubr.f32.gmra.mrb[0].mxu0 %v392
  %v1011 = vpop.f32.mrb[0].mxu0
  %v1012 = vadd.f32 %v151, %v1011
  %v1013 = vpop.f32.mrb[0].mxu0
  %1014 = vmatprep.mubr.f32.mxu0 0.0
  %1015 = vmatmul.mubr.f32.gmra.mrb[0].mxu0 %v395
  %v1016 = vpop.f32.mrb[0].mxu0
  %v1017 = vadd.f32 %v151, %v1016
  %v1018 = vpop.f32.mrb[0].mxu0
  %1019 = vmatprep.mubr.f32.mxu0 0.0
  %1020 = vmatmul.mubr.f32.gmra.mrb[0].mxu0 %v398
  %v1021 = vpop.f32.mrb[0].mxu0
  %v1022 = vadd.f32 %v151, %v1021
  %v1023 = vpop.f32.mrb[0].mxu0
  %1024 = vmatprep.mubr.f32.mxu0 0.0
  %1025 = vmatmul.mubr.f32.gmra.mrb[0].mxu0 %v401
  %v1026 = vpop.f32.mrb[0].mxu0
  %v1027 = vadd.f32 %v151, %v1026
  %v1028 = vpop.f32.mrb[0].mxu0
  %1029 = vmatprep.mubr.f32.mxu0 0.0
  %1030 = vmatmul.mubr.f32.gmra.mrb[0].mxu0 %v404
  %v1031 = vpop.f32.mrb[0].mxu0
  %v1032 = vadd.f32 %v151, %v1031
  %v1033 = vpop.f32.mrb[0].mxu0
  %1034 = vmatprep.mubr.f32.mxu0 0.0
  %1035 = vmatmul.mubr.f32.gmra.mrb[0].mxu0 %v407
  %v1036 = vpop.f32.mrb[0].mxu0
  %v1037 = vadd.f32 %v151, %v1036
  %v1038 = vpop.f32.mrb[0].mxu0
  %1039 = vmatprep.mubr.f32.mxu0 0.0
  %1040 = vmatmul.mubr.f32.gmra.mrb[0].mxu0 %v410
  %v1041 = vpop.f32.mrb[0].mxu0
  %v1042 = vadd.f32 %v151, %v1041
  %v1043 = vpop.f32.mrb[0].mxu0
  %1044 = vmatprep.mubr.f32.mxu0 0.0
  %1045 = vmatmul.mubr.f32.gmra.mrb[0].mxu0 %v413
  %v1046 = vpop.f32.mrb[0].mxu0
  %v1047 = vadd.f32 %v151, %v1046
  %v1048 = vpop.f32.mrb[0].mxu0
  %1049 = vmatprep.mubr.f32.mxu0 0.0
  %1050 = vmatmul.mubr.f32.gmra.mrb[0].mxu0 %v416
  %v1051 = vpop.f32.mrb[0].mxu0
  %v1052 = vadd.f32 %v151, %v1051
  %v1053 = vpop.f32.mrb[0].mxu0
  %1054 = vmatprep.mubr.f32.mxu0 0.0
  %1055 = vmatmul.mubr.f32.gmra.mrb[0].mxu0 %v419
  %v1056 = vpop.f32.mrb[0].mxu0
  %v1057 = vadd.f32 %v151, %v1056
  %v1058 = vpop.f32.mrb[0].mxu0
  %1059 = vmatprep.mubr.f32.mxu0 0.0
  %1060 = vmatmul.mubr.f32.gmra.mrb[0].mxu0 %v422
  %v1061 = vpop.f32.mrb[0].mxu0
  %v1062 = vadd.f32 %v151, %v1061
  %v1063 = vpop.f32.mrb[0].mxu0
  %1064 = vmatprep.mubr.f32.mxu0 0.0
  %1065 = vmatmul.mubr.f32.gmra.mrb[0].mxu0 %v425
  %v1066 = vpop.f32.mrb[0].mxu0
  %v1067 = vadd.f32 %v151, %v1066
  %v1068 = vpop.f32.mrb[0].mxu0
  %1069 = vmatprep.mubr.f32.mxu0 0.0
  %1070 = vmatmul.mubr.f32.gmra.mrb[0].mxu0 %v428
  %v1071 = vpop.f32.mrb[0].mxu0
  %v1072 = vadd.f32 %v151, %v1071
  %v1073 = vpop.f32.mrb[0].mxu0
  %1074 = vmatprep.mubr.f32.mxu0 0.0
  %1075 = vmatmul.mubr.f32.gmra.mrb[0].mxu0 %v431
  %v1076 = vpop.f32.mrb[0].mxu0
  %v1077 = vadd.f32 %v151, %v1076
  %v1078 = vpop.f32.mrb[0].mxu0
  %1079 = vmatprep.mubr.f32.mxu0 0.0
  %1080 = vmatmul.mubr.f32.gmra.mrb[0].mxu0 %v434
  %v1081 = vpop.f32.mrb[0].mxu0
  %v1082 = vadd.f32 %v151, %v1081
  %v1083 = vpop.f32.mrb[0].mxu0
  %1084 = vmatprep.mubr.f32.mxu0 0.0
  %1085 = vmatmul.mubr.f32.gmra.mrb[0].mxu0 %v437
  %v1086 = vpop.f32.mrb[0].mxu0
  %v1087 = vadd.f32 %v151, %v1086
  %v1088 = vpop.f32.mrb[0].mxu0
  %1089 = vmatprep.mubr.f32.mxu0 0.0
  %1090 = vmatmul.mubr.f32.gmra.mrb[0].mxu0 %v440
  %v1091 = vpop.f32.mrb[0].mxu0
  %v1092 = vadd.f32 %v151, %v1091
  %v1093 = vpop.f32.mrb[0].mxu0
  %1094 = vmatprep.mubr.f32.mxu0 0.0
  %1095 = vmatmul.mubr.f32.gmra.mrb[0].mxu0 %v443
  %v1096 = vpop.f32.mrb[0].mxu0
  %v1097 = vadd.f32 %v151, %v1096
  %v1098 = vpop.f32.mrb[0].mxu0
  %1099 = vmatprep.mubr.f32.mxu0 0.0
  %1100 = vmatmul.mubr.f32.gmra.mrb[0].mxu0 %v446
  %v1101 = vpop.f32.mrb[0].mxu0
  %v1102 = vadd.f32 %v151, %v1101
  %v1103 = vpop.f32.mrb[0].mxu0
  %1104 = vmatprep.mubr.f32.mxu0 0.0
  %1105 = vmatmul.mubr.f32.gmra.mrb[0].mxu0 %v449
  %v1106 = vpop.f32.mrb[0].mxu0
  %v1107 = vadd.f32 %v151, %v1106
  %v1108 = vpop.f32.mrb[0].mxu0
  %1109 = vmatprep.mubr.f32.mxu0 0.0
  %1110 = vmatmul.mubr.f32.gmra.mrb[0].mxu0 %v452
  %v1111 = vpop.f32.mrb[0].mxu0
  %v1112 = vadd.f32 %v151, %v1111
  %v1113 = vpop.f32.mrb[0].mxu0
  %1114 = vmatprep.mubr.f32.mxu0 0.0
  %1115 = vmatmul.mubr.f32.gmra.mrb[0].mxu0 %v455
  %v1116 = vpop.f32.mrb[0].mxu0
  %v1117 = vadd.f32 %v151, %v1116
  %v1118 = vpop.f32.mrb[0].mxu0
  %1119 = vmatprep.mubr.f32.mxu0 0.0
  %1120 = vmatmul.mubr.f32.gmra.mrb[0].mxu0 %v458
  %v1121 = vpop.f32.mrb[0].mxu0
  %v1122 = vadd.f32 %v151, %v1121
  %v1123 = vpop.f32.mrb[0].mxu0
  %1124 = vmatprep.mubr.f32.mxu0 0.0
  %1125 = vmatmul.mubr.f32.gmra.mrb[0].mxu0 %v461
  %v1126 = vpop.f32.mrb[0].mxu0
  %v1127 = vadd.f32 %v151, %v1126
  %v1128 = vpop.f32.mrb[0].mxu0
  %1129 = vmatprep.mubr.f32.mxu0 0.0
  %1130 = vmatmul.mubr.f32.gmra.mrb[0].mxu0 %v464
  %v1131 = vpop.f32.mrb[0].mxu0
  %v1132 = vadd.f32 %v151, %v1131
  %v1133 = vpop.f32.mrb[0].mxu0
  %1134 = vmatprep.mubr.f32.mxu0 0.0
  %1135 = vmatmul.mubr.f32.gmra.mrb[0].mxu0 %v467
  %v1136 = vpop.f32.mrb[0].mxu0
  %v1137 = vadd.f32 %v151, %v1136
  %v1138 = vpop.f32.mrb[0].mxu0
  %1139 = vmatprep.mubr.f32.mxu0 0.0
  %1140 = vmatmul.mubr.f32.gmra.mrb[0].mxu0 %v470
  %v1141 = vpop.f32.mrb[0].mxu0
  %v1142 = vadd.f32 %v151, %v1141
  %v1143 = vpop.f32.mrb[0].mxu0
  %1144 = vmatprep.mubr.f32.mxu0 0.0
  %1145 = vmatmul.mubr.f32.gmra.mrb[0].mxu0 %v473
  %v1146 = vpop.f32.mrb[0].mxu0
  %v1147 = vadd.f32 %v151, %v1146
  %v1148 = vpop.f32.mrb[0].mxu0
  %1149 = vmatprep.mubr.f32.mxu0 0.0
  %1150 = vmatmul.mubr.f32.gmra.mrb[0].mxu0 %v476
  %v1151 = vpop.f32.mrb[0].mxu0
  %v1152 = vadd.f32 %v151, %v1151
  %v1153 = vpop.f32.mrb[0].mxu0
  %1154 = vmatprep.mubr.f32.mxu0 0.0
  %1155 = vmatmul.mubr.f32.gmra.mrb[0].mxu0 %v479
  %v1156 = vpop.f32.mrb[0].mxu0
  %v1157 = vadd.f32 %v151, %v1156
  %v1158 = vpop.f32.mrb[0].mxu0
  %1159 = vmatprep.mubr.f32.mxu0 0.0
  %1160 = vmatmul.mubr.f32.gmra.mrb[0].mxu0 %v482
  %v1161 = vpop.f32.mrb[0].mxu0
  %v1162 = vadd.f32 %v151, %v1161
  %v1163 = vpop.f32.mrb[0].mxu0
  %1164 = vmatprep.mubr.f32.mxu0 0.0
  %1165 = vmatmul.mubr.f32.gmra.mrb[0].mxu0 %v485
  %v1166 = vpop.f32.mrb[0].mxu0
  %v1167 = vadd.f32 %v151, %v1166
  %v1168 = vpop.f32.mrb[0].mxu0
  %1169 = vmatprep.mubr.f32.mxu0 0.0
  %1170 = vmatmul.mubr.f32.gmra.mrb[0].mxu0 %v488
  %v1171 = vpop.f32.mrb[0].mxu0
  %v1172 = vadd.f32 %v151, %v1171
  %v1173 = vpop.f32.mrb[0].mxu0
  %1174 = vmatprep.mubr.f32.mxu0 0.0
  %1175 = vmatmul.mubr.f32.gmra.mrb[0].mxu0 %v491
  %v1176 = vpop.f32.mrb[0].mxu0
  %v1177 = vadd.f32 %v151, %v1176
  %v1178 = vpop.f32.mrb[0].mxu0
  %1179 = vmatprep.mubr.f32.mxu0 0.0
  %1180 = vmatmul.mubr.f32.gmra.mrb[0].mxu0 %v494
  %v1181 = vpop.f32.mrb[0].mxu0
  %v1182 = vadd.f32 %v151, %v1181
  %v1183 = vpop.f32.mrb[0].mxu0
  %1184 = vmatprep.mubr.f32.mxu0 0.0
  %1185 = vmatmul.mubr.f32.gmra.mrb[0].mxu0 %v497
  %v1186 = vpop.f32.mrb[0].mxu0
  %v1187 = vadd.f32 %v151, %v1186
  %v1188 = vpop.f32.mrb[0].mxu0
  %1189 = vmatprep.mubr.f32.mxu0 0.0
  %1190 = vmatmul.mubr.f32.gmra.mrb[0].mxu0 %v500
  %v1191 = vpop.f32.mrb[0].mxu0
  %v1192 = vadd.f32 %v151, %v1191
  %v1193 = vpop.f32.mrb[0].mxu0
  %1194 = vmatprep.mubr.f32.mxu0 0.0
  %1195 = vmatmul.mubr.f32.gmra.mrb[0].mxu0 %v503
  %v1196 = vpop.f32.mrb[0].mxu0
  %v1197 = vadd.f32 %v151, %v1196
  %v1198 = vpop.f32.mrb[0].mxu0
  %1199 = vmatprep.mubr.f32.mxu0 0.0
  %1200 = vmatmul.mubr.f32.gmra.mrb[0].mxu0 %v506
  %v1201 = vpop.f32.mrb[0].mxu0
  %v1202 = vadd.f32 %v151, %v1201
  %v1203 = vpop.f32.mrb[0].mxu0
  %1204 = vmatprep.mubr.f32.mxu0 0.0
  %1205 = vmatmul.mubr.f32.gmra.mrb[0].mxu0 %v509
  %v1206 = vpop.f32.mrb[0].mxu0
  %v1207 = vadd.f32 %v151, %v1206
  %v1208 = vpop.f32.mrb[0].mxu0
  %1209 = vmatprep.mubr.f32.mxu0 0.0
  %1210 = vmatmul.mubr.f32.gmra.mrb[0].mxu0 %v512
  %v1211 = vpop.f32.mrb[0].mxu0
  %v1212 = vadd.f32 %v151, %v1211
  %v1213 = vpop.f32.mrb[0].mxu0
  %1214 = vmatprep.mubr.f32.mxu0 0.0
  %1215 = vmatmul.mubr.f32.gmra.mrb[0].mxu0 %v515
  %v1216 = vpop.f32.mrb[0].mxu0
  %v1217 = vadd.f32 %v151, %v1216
  %v1218 = vpop.f32.mrb[0].mxu0
  %1219 = vmatprep.mubr.f32.mxu0 0.0
  %1220 = vmatmul.mubr.f32.gmra.mrb[0].mxu0 %v518
  %v1221 = vpop.f32.mrb[0].mxu0
  %v1222 = vadd.f32 %v151, %v1221
  %v1223 = vpop.f32.mrb[0].mxu0
  %1224 = vmatprep.mubr.f32.mxu0 0.0
  %1225 = vmatmul.mubr.f32.gmra.mrb[0].mxu0 %v521
  %v1226 = vpop.f32.mrb[0].mxu0
  %v1227 = vadd.f32 %v151, %v1226
  %v1228 = vpop.f32.mrb[0].mxu0
  %1229 = vmatprep.mubr.f32.mxu0 0.0
  %1230 = vmatmul.mubr.f32.gmra.mrb[0].mxu0 %v524
  %v1231 = vpop.f32.mrb[0].mxu0
  %v1232 = vadd.f32 %v151, %v1231
  %v1233 = vpop.f32.mrb[0].mxu0
  %1234 = vmatprep.mubr.f32.mxu0 0.0
  %1235 = vmatmul.mubr.f32.gmra.mrb[0].mxu0 %v527
  %v1236 = vpop.f32.mrb[0].mxu0
  %v1237 = vadd.f32 %v151, %v1236
  %v1238 = vpop.f32.mrb[0].mxu0
  %1239 = vmatprep.mubr.f32.mxu0 0.0
  %1240 = vmatmul.mubr.f32.gmra.mrb[0].mxu0 %v530
  %v1241 = vpop.f32.mrb[0].mxu0
  %v1242 = vadd.f32 %v151, %v1241
  %v1243 = vpop.f32.mrb[0].mxu0
  %1244 = vmatprep.mubr.f32.mxu0 0.0
  %1245 = vmatmul.mubr.f32.gmra.mrb[0].mxu0 %v533
  %v1246 = vpop.f32.mrb[0].mxu0
  %v1247 = vadd.f32 %v151, %v1246
  %v1248 = vpop.f32.mrb[0].mxu0
  %1249 = vmatprep.mubr.f32.mxu0 0.0
  %1250 = vmatmul.mubr.f32.gmra.mrb[0].mxu0 %v536
  %v1251 = vpop.f32.mrb[0].mxu0
  %v1252 = vadd.f32 %v151, %v1251
  %v1253 = vpop.f32.mrb[0].mxu0
  %1254 = vdwg.mxu0
  %v1255 = vmax.f32 %v617, 0.0
  %v1256 = vmax.f32 %v622, 0.0
  %v1257 = vmax.f32 %v627, 0.0
  %v1258 = vmax.f32 %v632, 0.0
  %v1259 = vmax.f32 %v637, 0.0
  %v1260 = vmax.f32 %v642, 0.0
  %v1261 = vmax.f32 %v647, 0.0
  %v1262 = vmax.f32 %v652, 0.0
  %v1263 = vmax.f32 %v657, 0.0
  %v1264 = vmax.f32 %v662, 0.0
  %v1265 = vmax.f32 %v667, 0.0
  %v1266 = vmax.f32 %v672, 0.0
  %v1267 = vmax.f32 %v677, 0.0
  %v1268 = vmax.f32 %v682, 0.0
  %v1269 = vmax.f32 %v687, 0.0
  %v1270 = vmax.f32 %v692, 0.0
  %v1271 = vmax.f32 %v697, 0.0
  %v1272 = vmax.f32 %v702, 0.0
  %v1273 = vmax.f32 %v707, 0.0
  %v1274 = vmax.f32 %v712, 0.0
  %v1275 = vmax.f32 %v717, 0.0
  %v1276 = vmax.f32 %v722, 0.0
  %v1277 = vmax.f32 %v727, 0.0
  %v1278 = vmax.f32 %v732, 0.0
  %v1279 = vmax.f32 %v737, 0.0
  %v1280 = vmax.f32 %v742, 0.0
  %v1281 = vmax.f32 %v747, 0.0
  %v1282 = vmax.f32 %v752, 0.0
  %v1283 = vmax.f32 %v757, 0.0
  %v1284 = vmax.f32 %v762, 0.0
  %v1285 = vmax.f32 %v767, 0.0
  %v1286 = vmax.f32 %v772, 0.0
  %v1287 = vmax.f32 %v777, 0.0
  %v1288 = vmax.f32 %v782, 0.0
  %v1289 = vmax.f32 %v787, 0.0
  %v1290 = vmax.f32 %v792, 0.0
  %v1291 = vmax.f32 %v797, 0.0
  %v1292 = vmax.f32 %v802, 0.0
  %v1293 = vmax.f32 %v807, 0.0
  %v1294 = vmax.f32 %v812, 0.0
  %v1295 = vmax.f32 %v817, 0.0
  %v1296 = vmax.f32 %v822, 0.0
  %v1297 = vmax.f32 %v827, 0.0
  %v1298 = vmax.f32 %v832, 0.0
  %v1299 = vmax.f32 %v837, 0.0
  %v1300 = vmax.f32 %v842, 0.0
  %v1301 = vmax.f32 %v847, 0.0
  %v1302 = vmax.f32 %v852, 0.0
  %v1303 = vmax.f32 %v857, 0.0
  %v1304 = vmax.f32 %v862, 0.0
  %v1305 = vmax.f32 %v867, 0.0
  %v1306 = vmax.f32 %v872, 0.0
  %v1307 = vmax.f32 %v877, 0.0
  %v1308 = vmax.f32 %v882, 0.0
  %v1309 = vmax.f32 %v887, 0.0
  %v1310 = vmax.f32 %v892, 0.0
  %v1311 = vmax.f32 %v897, 0.0
  %v1312 = vmax.f32 %v902, 0.0
  %v1313 = vmax.f32 %v907, 0.0
  %v1314 = vmax.f32 %v912, 0.0
  %v1315 = vmax.f32 %v917, 0.0
  %v1316 = vmax.f32 %v922, 0.0
  %v1317 = vmax.f32 %v927, 0.0
  %v1318 = vmax.f32 %v932, 0.0
  %v1319 = vmax.f32 %v937, 0.0
  %v1320 = vmax.f32 %v942, 0.0
  %v1321 = vmax.f32 %v947, 0.0
  %v1322 = vmax.f32 %v952, 0.0
  %v1323 = vmax.f32 %v957, 0.0
  %v1324 = vmax.f32 %v962, 0.0
  %v1325 = vmax.f32 %v967, 0.0
  %v1326 = vmax.f32 %v972, 0.0
  %v1327 = vmax.f32 %v977, 0.0
  %v1328 = vmax.f32 %v982, 0.0
  %v1329 = vmax.f32 %v987, 0.0
  %v1330 = vmax.f32 %v992, 0.0
  %v1331 = vmax.f32 %v997, 0.0
  %v1332 = vmax.f32 %v1002, 0.0
  %v1333 = vmax.f32 %v1007, 0.0
  %v1334 = vmax.f32 %v1012, 0.0
  %v1335 = vmax.f32 %v1017, 0.0
  %v1336 = vmax.f32 %v1022, 0.0
  %v1337 = vmax.f32 %v1027, 0.0
  %v1338 = vmax.f32 %v1032, 0.0
  %v1339 = vmax.f32 %v1037, 0.0
  %v1340 = vmax.f32 %v1042, 0.0
  %v1341 = vmax.f32 %v1047, 0.0
  %v1342 = vmax.f32 %v1052, 0.0
  %v1343 = vmax.f32 %v1057, 0.0
  %v1344 = vmax.f32 %v1062, 0.0
  %v1345 = vmax.f32 %v1067, 0.0
  %v1346 = vmax.f32 %v1072, 0.0
  %v1347 = vmax.f32 %v1077, 0.0
  %v1348 = vmax.f32 %v1082, 0.0
  %v1349 = vmax.f32 %v1087, 0.0
  %v1350 = vmax.f32 %v1092, 0.0
  %v1351 = vmax.f32 %v1097, 0.0
  %v1352 = vmax.f32 %v1102, 0.0
  %v1353 = vmax.f32 %v1107, 0.0
  %v1354 = vmax.f32 %v1112, 0.0
  %v1355 = vmax.f32 %v1117, 0.0
  %v1356 = vmax.f32 %v1122, 0.0
  %v1357 = vmax.f32 %v1127, 0.0
  %v1358 = vmax.f32 %v1132, 0.0
  %v1359 = vmax.f32 %v1137, 0.0
  %v1360 = vmax.f32 %v1142, 0.0
  %v1361 = vmax.f32 %v1147, 0.0
  %v1362 = vmax.f32 %v1152, 0.0
  %v1363 = vmax.f32 %v1157, 0.0
  %v1364 = vmax.f32 %v1162, 0.0
  %v1365 = vmax.f32 %v1167, 0.0
  %v1366 = vmax.f32 %v1172, 0.0
  %v1367 = vmax.f32 %v1177, 0.0
  %v1368 = vmax.f32 %v1182, 0.0
  %v1369 = vmax.f32 %v1187, 0.0
  %v1370 = vmax.f32 %v1192, 0.0
  %v1371 = vmax.f32 %v1197, 0.0
  %v1372 = vmax.f32 %v1202, 0.0
  %v1373 = vmax.f32 %v1207, 0.0
  %v1374 = vmax.f32 %v1212, 0.0
  %v1375 = vmax.f32 %v1217, 0.0
  %v1376 = vmax.f32 %v1222, 0.0
  %v1377 = vmax.f32 %v1227, 0.0
  %v1378 = vmax.f32 %v1232, 0.0
  %v1379 = vmax.f32 %v1237, 0.0
  %v1380 = vmax.f32 %v1242, 0.0
  %v1381 = vmax.f32 %v1247, 0.0
  %v1382 = vmax.f32 %v1252, 0.0
  %s1383 = scalar_lea.vmem %s1, 32
  %v1384 = vld [vmem:[%s1383] sm:$0xff]
  %v1385 = vld [vmem:[%s1383 + $0x8] sm:$0xff]
  %s1386 = scalar_lea.vmem %s2, 1
  %v1387 = vld [vmem:[%s1386] sm:$0x1]
  %v1389 = vlaneseq
  %v1390 = vshrl.u32 %v1389, 7
  %v1391 = vsub.s32 0, %v1390
  %v1392 = vrot.slane %v1387, %v1391
  %vm1394 = vcmask 261120
  %v1396 = vsel %vm1394, %v1255, 0
  %v1399 = vsel %vm1394, %v1256, 0
  %v1402 = vsel %vm1394, %v1257, 0
  %v1405 = vsel %vm1394, %v1258, 0
  %v1408 = vsel %vm1394, %v1259, 0
  %v1411 = vsel %vm1394, %v1260, 0
  %v1414 = vsel %vm1394, %v1261, 0
  %v1417 = vsel %vm1394, %v1262, 0
  %v1420 = vsel %vm1394, %v1263, 0
  %v1423 = vsel %vm1394, %v1264, 0
  %v1426 = vsel %vm1394, %v1265, 0
  %v1429 = vsel %vm1394, %v1266, 0
  %v1432 = vsel %vm1394, %v1267, 0
  %v1435 = vsel %vm1394, %v1268, 0
  %v1438 = vsel %vm1394, %v1269, 0
  %v1441 = vsel %vm1394, %v1270, 0
  %v1444 = vsel %vm1394, %v1271, 0
  %v1447 = vsel %vm1394, %v1272, 0
  %v1450 = vsel %vm1394, %v1273, 0
  %v1453 = vsel %vm1394, %v1274, 0
  %v1456 = vsel %vm1394, %v1275, 0
  %v1459 = vsel %vm1394, %v1276, 0
  %v1462 = vsel %vm1394, %v1277, 0
  %v1465 = vsel %vm1394, %v1278, 0
  %v1468 = vsel %vm1394, %v1279, 0
  %v1471 = vsel %vm1394, %v1280, 0
  %v1474 = vsel %vm1394, %v1281, 0
  %v1477 = vsel %vm1394, %v1282, 0
  %v1480 = vsel %vm1394, %v1283, 0
  %v1483 = vsel %vm1394, %v1284, 0
  %v1486 = vsel %vm1394, %v1285, 0
  %v1489 = vsel %vm1394, %v1286, 0
  %v1492 = vsel %vm1394, %v1287, 0
  %v1495 = vsel %vm1394, %v1288, 0
  %v1498 = vsel %vm1394, %v1289, 0
  %v1501 = vsel %vm1394, %v1290, 0
  %v1504 = vsel %vm1394, %v1291, 0
  %v1507 = vsel %vm1394, %v1292, 0
  %v1510 = vsel %vm1394, %v1293, 0
  %v1513 = vsel %vm1394, %v1294, 0
  %v1516 = vsel %vm1394, %v1295, 0
  %v1519 = vsel %vm1394, %v1296, 0
  %v1522 = vsel %vm1394, %v1297, 0
  %v1525 = vsel %vm1394, %v1298, 0
  %v1528 = vsel %vm1394, %v1299, 0
  %v1531 = vsel %vm1394, %v1300, 0
  %v1534 = vsel %vm1394, %v1301, 0
  %v1537 = vsel %vm1394, %v1302, 0
  %v1540 = vsel %vm1394, %v1303, 0
  %v1543 = vsel %vm1394, %v1304, 0
  %v1546 = vsel %vm1394, %v1305, 0
  %v1549 = vsel %vm1394, %v1306, 0
  %v1552 = vsel %vm1394, %v1307, 0
  %v1555 = vsel %vm1394, %v1308, 0
  %v1558 = vsel %vm1394, %v1309, 0
  %v1561 = vsel %vm1394, %v1310, 0
  %v1564 = vsel %vm1394, %v1311, 0
  %v1567 = vsel %vm1394, %v1312, 0
  %v1570 = vsel %vm1394, %v1313, 0
  %v1573 = vsel %vm1394, %v1314, 0
  %v1576 = vsel %vm1394, %v1315, 0
  %v1579 = vsel %vm1394, %v1316, 0
  %v1582 = vsel %vm1394, %v1317, 0
  %v1585 = vsel %vm1394, %v1318, 0
  %v1588 = vsel %vm1394, %v1319, 0
  %v1591 = vsel %vm1394, %v1320, 0
  %v1594 = vsel %vm1394, %v1321, 0
  %v1597 = vsel %vm1394, %v1322, 0
  %v1600 = vsel %vm1394, %v1323, 0
  %v1603 = vsel %vm1394, %v1324, 0
  %v1606 = vsel %vm1394, %v1325, 0
  %v1609 = vsel %vm1394, %v1326, 0
  %v1612 = vsel %vm1394, %v1327, 0
  %v1615 = vsel %vm1394, %v1328, 0
  %v1618 = vsel %vm1394, %v1329, 0
  %v1621 = vsel %vm1394, %v1330, 0
  %v1624 = vsel %vm1394, %v1331, 0
  %v1627 = vsel %vm1394, %v1332, 0
  %v1630 = vsel %vm1394, %v1333, 0
  %v1633 = vsel %vm1394, %v1334, 0
  %v1636 = vsel %vm1394, %v1335, 0
  %v1639 = vsel %vm1394, %v1336, 0
  %v1642 = vsel %vm1394, %v1337, 0
  %v1645 = vsel %vm1394, %v1338, 0
  %v1648 = vsel %vm1394, %v1339, 0
  %v1651 = vsel %vm1394, %v1340, 0
  %v1654 = vsel %vm1394, %v1341, 0
  %v1657 = vsel %vm1394, %v1342, 0
  %v1660 = vsel %vm1394, %v1343, 0
  %v1663 = vsel %vm1394, %v1344, 0
  %v1666 = vsel %vm1394, %v1345, 0
  %v1669 = vsel %vm1394, %v1346, 0
  %v1672 = vsel %vm1394, %v1347, 0
  %v1675 = vsel %vm1394, %v1348, 0
  %v1678 = vsel %vm1394, %v1349, 0
  %v1681 = vsel %vm1394, %v1350, 0
  %v1684 = vsel %vm1394, %v1351, 0
  %v1687 = vsel %vm1394, %v1352, 0
  %v1690 = vsel %vm1394, %v1353, 0
  %v1693 = vsel %vm1394, %v1354, 0
  %v1696 = vsel %vm1394, %v1355, 0
  %v1699 = vsel %vm1394, %v1356, 0
  %v1702 = vsel %vm1394, %v1357, 0
  %v1705 = vsel %vm1394, %v1358, 0
  %v1708 = vsel %vm1394, %v1359, 0
  %v1711 = vsel %vm1394, %v1360, 0
  %v1714 = vsel %vm1394, %v1361, 0
  %v1717 = vsel %vm1394, %v1362, 0
  %v1720 = vsel %vm1394, %v1363, 0
  %v1723 = vsel %vm1394, %v1364, 0
  %v1726 = vsel %vm1394, %v1365, 0
  %v1729 = vsel %vm1394, %v1366, 0
  %v1732 = vsel %vm1394, %v1367, 0
  %v1735 = vsel %vm1394, %v1368, 0
  %v1738 = vsel %vm1394, %v1369, 0
  %v1741 = vsel %vm1394, %v1370, 0
  %v1744 = vsel %vm1394, %v1371, 0
  %v1747 = vsel %vm1394, %v1372, 0
  %v1750 = vsel %vm1394, %v1373, 0
  %v1753 = vsel %vm1394, %v1374, 0
  %v1756 = vsel %vm1394, %v1375, 0
  %v1759 = vsel %vm1394, %v1376, 0
  %v1762 = vsel %vm1394, %v1377, 0
  %v1765 = vsel %vm1394, %v1378, 0
  %v1768 = vsel %vm1394, %v1379, 0
  %v1771 = vsel %vm1394, %v1380, 0
  %v1774 = vsel %vm1394, %v1381, 0
  %v1777 = vsel %vm1394, %v1382, 0
  %v1780 = vsel %vm1394, %v1384, 0
  %v1783 = vsel %vm1394, %v1385, 0
  %1785 = vmatprep.subr.mxu0 0.0
  %1786 = vmatpush1.xpose.msra.mxu0 %v1780
  %1787 = vmatprep.subr.mxu0 0.0
  %1788 = vmatpush1.xpose.msra.mxu0 %v1783
  %1789 = vmatprep.subr.mxu0 0.0
  %1790 = vmatpush1.xpose.msra.mxu0 0.0
  %1791 = vmatprep.subr.mxu0 0.0
  %1792 = vmatpush1.xpose.msra.mxu0 0.0
  %1793 = vmatprep.subr.mxu0 0.0
  %1794 = vmatpush1.xpose.msra.mxu0 0.0
  %1795 = vmatprep.subr.mxu0 0.0
  %1796 = vmatpush1.xpose.msra.mxu0 0.0
  %1797 = vmatprep.subr.mxu0 0.0
  %1798 = vmatpush1.xpose.msra.mxu0 0.0
  %1799 = vmatprep.subr.mxu0 0.0
  %1800 = vmatpush1.xpose.msra.mxu0 0.0
  %1801 = vmatprep.subr.mxu0 0.0
  %1802 = vmatpush1.xpose.msra.mxu0 0.0
  %1803 = vmatprep.subr.mxu0 0.0
  %1804 = vmatpush1.xpose.msra.mxu0 0.0
  %1805 = vmatprep.subr.mxu0 0.0
  %1806 = vmatpush1.xpose.msra.mxu0 0.0
  %1807 = vmatprep.subr.mxu0 0.0
  %1808 = vmatpush1.xpose.msra.mxu0 0.0
  %1809 = vmatprep.subr.mxu0 0.0
  %1810 = vmatpush1.xpose.msra.mxu0 0.0
  %1811 = vmatprep.subr.mxu0 0.0
  %1812 = vmatpush1.xpose.msra.mxu0 0.0
  %1813 = vmatprep.subr.mxu0 0.0
  %1814 = vmatpush1.xpose.msra.mxu0 0.0
  %1815 = vmatprep.subr.mxu0 0.0
  %1816 = vmatpush1.xpose.msra.mxu0 0.0
  %1817 = vmatprep.subr.mxu0 0.0
  %1818 = vmatpush1.xpose.msra.mxu0 0.0
  %1819 = vmatprep.subr.mxu0 0.0
  %1820 = vmatpush1.xpose.msra.mxu0 0.0
  %1821 = vmatprep.subr.mxu0 0.0
  %1822 = vmatpush1.xpose.msra.mxu0 0.0
  %1823 = vmatprep.subr.mxu0 0.0
  %1824 = vmatpush1.xpose.msra.mxu0 0.0
  %1825 = vmatprep.subr.mxu0 0.0
  %1826 = vmatpush1.xpose.msra.mxu0 0.0
  %1827 = vmatprep.subr.mxu0 0.0
  %1828 = vmatpush1.xpose.msra.mxu0 0.0
  %1829 = vmatprep.subr.mxu0 0.0
  %1830 = vmatpush1.xpose.msra.mxu0 0.0
  %1831 = vmatprep.subr.mxu0 0.0
  %1832 = vmatpush1.xpose.msra.mxu0 0.0
  %1833 = vmatprep.subr.mxu0 0.0
  %1834 = vmatpush1.xpose.msra.mxu0 0.0
  %1835 = vmatprep.subr.mxu0 0.0
  %1836 = vmatpush1.xpose.msra.mxu0 0.0
  %1837 = vmatprep.subr.mxu0 0.0
  %1838 = vmatpush1.xpose.msra.mxu0 0.0
  %1839 = vmatprep.subr.mxu0 0.0
  %1840 = vmatpush1.xpose.msra.mxu0 0.0
  %1841 = vmatprep.subr.mxu0 0.0
  %1842 = vmatpush1.xpose.msra.mxu0 0.0
  %1843 = vmatprep.subr.mxu0 0.0
  %1844 = vmatpush1.xpose.msra.mxu0 0.0
  %1845 = vmatprep.subr.mxu0 0.0
  %1846 = vmatpush1.xpose.msra.mxu0 0.0
  %1847 = vmatprep.subr.mxu0 0.0
  %1848 = vmatpush1.xpose.msra.mxu0 0.0
  %1849 = vmatprep.mubr.f32.mxu0 0.0
  %1850 = vmatmul.mubr.f32.gmra.mrb[0].mxu0 %v1396
  %v1851 = vpop.f32.mrb[0].mxu0
  %v1852 = vadd.f32 %v1392, %v1851
  %v1853 = vpop.f32.mrb[0].mxu0
  %1854 = vmatprep.mubr.f32.mxu0 0.0
  %1855 = vmatmul.mubr.f32.gmra.mrb[0].mxu0 %v1399
  %v1856 = vpop.f32.mrb[0].mxu0
  %v1857 = vadd.f32 %v1392, %v1856
  %v1858 = vpop.f32.mrb[0].mxu0
  %1859 = vmatprep.mubr.f32.mxu0 0.0
  %1860 = vmatmul.mubr.f32.gmra.mrb[0].mxu0 %v1402
  %v1861 = vpop.f32.mrb[0].mxu0
  %v1862 = vadd.f32 %v1392, %v1861
  %v1863 = vpop.f32.mrb[0].mxu0
  %1864 = vmatprep.mubr.f32.mxu0 0.0
  %1865 = vmatmul.mubr.f32.gmra.mrb[0].mxu0 %v1405
  %v1866 = vpop.f32.mrb[0].mxu0
  %v1867 = vadd.f32 %v1392, %v1866
  %v1868 = vpop.f32.mrb[0].mxu0
  %1869 = vmatprep.mubr.f32.mxu0 0.0
  %1870 = vmatmul.mubr.f32.gmra.mrb[0].mxu0 %v1408
  %v1871 = vpop.f32.mrb[0].mxu0
  %v1872 = vadd.f32 %v1392, %v1871
  %v1873 = vpop.f32.mrb[0].mxu0
  %1874 = vmatprep.mubr.f32.mxu0 0.0
  %1875 = vmatmul.mubr.f32.gmra.mrb[0].mxu0 %v1411
  %v1876 = vpop.f32.mrb[0].mxu0
  %v1877 = vadd.f32 %v1392, %v1876
  %v1878 = vpop.f32.mrb[0].mxu0
  %1879 = vmatprep.mubr.f32.mxu0 0.0
  %1880 = vmatmul.mubr.f32.gmra.mrb[0].mxu0 %v1414
  %v1881 = vpop.f32.mrb[0].mxu0
  %v1882 = vadd.f32 %v1392, %v1881
  %v1883 = vpop.f32.mrb[0].mxu0
  %1884 = vmatprep.mubr.f32.mxu0 0.0
  %1885 = vmatmul.mubr.f32.gmra.mrb[0].mxu0 %v1417
  %v1886 = vpop.f32.mrb[0].mxu0
  %v1887 = vadd.f32 %v1392, %v1886
  %v1888 = vpop.f32.mrb[0].mxu0
  %1889 = vmatprep.mubr.f32.mxu0 0.0
  %1890 = vmatmul.mubr.f32.gmra.mrb[0].mxu0 %v1420
  %v1891 = vpop.f32.mrb[0].mxu0
  %v1892 = vadd.f32 %v1392, %v1891
  %v1893 = vpop.f32.mrb[0].mxu0
  %1894 = vmatprep.mubr.f32.mxu0 0.0
  %1895 = vmatmul.mubr.f32.gmra.mrb[0].mxu0 %v1423
  %v1896 = vpop.f32.mrb[0].mxu0
  %v1897 = vadd.f32 %v1392, %v1896
  %v1898 = vpop.f32.mrb[0].mxu0
  %1899 = vmatprep.mubr.f32.mxu0 0.0
  %1900 = vmatmul.mubr.f32.gmra.mrb[0].mxu0 %v1426
  %v1901 = vpop.f32.mrb[0].mxu0
  %v1902 = vadd.f32 %v1392, %v1901
  %v1903 = vpop.f32.mrb[0].mxu0
  %1904 = vmatprep.mubr.f32.mxu0 0.0
  %1905 = vmatmul.mubr.f32.gmra.mrb[0].mxu0 %v1429
  %v1906 = vpop.f32.mrb[0].mxu0
  %v1907 = vadd.f32 %v1392, %v1906
  %v1908 = vpop.f32.mrb[0].mxu0
  %1909 = vmatprep.mubr.f32.mxu0 0.0
  %1910 = vmatmul.mubr.f32.gmra.mrb[0].mxu0 %v1432
  %v1911 = vpop.f32.mrb[0].mxu0
  %v1912 = vadd.f32 %v1392, %v1911
  %v1913 = vpop.f32.mrb[0].mxu0
  %1914 = vmatprep.mubr.f32.mxu0 0.0
  %1915 = vmatmul.mubr.f32.gmra.mrb[0].mxu0 %v1435
  %v1916 = vpop.f32.mrb[0].mxu0
  %v1917 = vadd.f32 %v1392, %v1916
  %v1918 = vpop.f32.mrb[0].mxu0
  %1919 = vmatprep.mubr.f32.mxu0 0.0
  %1920 = vmatmul.mubr.f32.gmra.mrb[0].mxu0 %v1438
  %v1921 = vpop.f32.mrb[0].mxu0
  %v1922 = vadd.f32 %v1392, %v1921
  %v1923 = vpop.f32.mrb[0].mxu0
  %1924 = vmatprep.mubr.f32.mxu0 0.0
  %1925 = vmatmul.mubr.f32.gmra.mrb[0].mxu0 %v1441
  %v1926 = vpop.f32.mrb[0].mxu0
  %v1927 = vadd.f32 %v1392, %v1926
  %v1928 = vpop.f32.mrb[0].mxu0
  %1929 = vmatprep.mubr.f32.mxu0 0.0
  %1930 = vmatmul.mubr.f32.gmra.mrb[0].mxu0 %v1444
  %v1931 = vpop.f32.mrb[0].mxu0
  %v1932 = vadd.f32 %v1392, %v1931
  %v1933 = vpop.f32.mrb[0].mxu0
  %1934 = vmatprep.mubr.f32.mxu0 0.0
  %1935 = vmatmul.mubr.f32.gmra.mrb[0].mxu0 %v1447
  %v1936 = vpop.f32.mrb[0].mxu0
  %v1937 = vadd.f32 %v1392, %v1936
  %v1938 = vpop.f32.mrb[0].mxu0
  %1939 = vmatprep.mubr.f32.mxu0 0.0
  %1940 = vmatmul.mubr.f32.gmra.mrb[0].mxu0 %v1450
  %v1941 = vpop.f32.mrb[0].mxu0
  %v1942 = vadd.f32 %v1392, %v1941
  %v1943 = vpop.f32.mrb[0].mxu0
  %1944 = vmatprep.mubr.f32.mxu0 0.0
  %1945 = vmatmul.mubr.f32.gmra.mrb[0].mxu0 %v1453
  %v1946 = vpop.f32.mrb[0].mxu0
  %v1947 = vadd.f32 %v1392, %v1946
  %v1948 = vpop.f32.mrb[0].mxu0
  %1949 = vmatprep.mubr.f32.mxu0 0.0
  %1950 = vmatmul.mubr.f32.gmra.mrb[0].mxu0 %v1456
  %v1951 = vpop.f32.mrb[0].mxu0
  %v1952 = vadd.f32 %v1392, %v1951
  %v1953 = vpop.f32.mrb[0].mxu0
  %1954 = vmatprep.mubr.f32.mxu0 0.0
  %1955 = vmatmul.mubr.f32.gmra.mrb[0].mxu0 %v1459
  %v1956 = vpop.f32.mrb[0].mxu0
  %v1957 = vadd.f32 %v1392, %v1956
  %v1958 = vpop.f32.mrb[0].mxu0
  %1959 = vmatprep.mubr.f32.mxu0 0.0
  %1960 = vmatmul.mubr.f32.gmra.mrb[0].mxu0 %v1462
  %v1961 = vpop.f32.mrb[0].mxu0
  %v1962 = vadd.f32 %v1392, %v1961
  %v1963 = vpop.f32.mrb[0].mxu0
  %1964 = vmatprep.mubr.f32.mxu0 0.0
  %1965 = vmatmul.mubr.f32.gmra.mrb[0].mxu0 %v1465
  %v1966 = vpop.f32.mrb[0].mxu0
  %v1967 = vadd.f32 %v1392, %v1966
  %v1968 = vpop.f32.mrb[0].mxu0
  %1969 = vmatprep.mubr.f32.mxu0 0.0
  %1970 = vmatmul.mubr.f32.gmra.mrb[0].mxu0 %v1468
  %v1971 = vpop.f32.mrb[0].mxu0
  %v1972 = vadd.f32 %v1392, %v1971
  %v1973 = vpop.f32.mrb[0].mxu0
  %1974 = vmatprep.mubr.f32.mxu0 0.0
  %1975 = vmatmul.mubr.f32.gmra.mrb[0].mxu0 %v1471
  %v1976 = vpop.f32.mrb[0].mxu0
  %v1977 = vadd.f32 %v1392, %v1976
  %v1978 = vpop.f32.mrb[0].mxu0
  %1979 = vmatprep.mubr.f32.mxu0 0.0
  %1980 = vmatmul.mubr.f32.gmra.mrb[0].mxu0 %v1474
  %v1981 = vpop.f32.mrb[0].mxu0
  %v1982 = vadd.f32 %v1392, %v1981
  %v1983 = vpop.f32.mrb[0].mxu0
  %1984 = vmatprep.mubr.f32.mxu0 0.0
  %1985 = vmatmul.mubr.f32.gmra.mrb[0].mxu0 %v1477
  %v1986 = vpop.f32.mrb[0].mxu0
  %v1987 = vadd.f32 %v1392, %v1986
  %v1988 = vpop.f32.mrb[0].mxu0
  %1989 = vmatprep.mubr.f32.mxu0 0.0
  %1990 = vmatmul.mubr.f32.gmra.mrb[0].mxu0 %v1480
  %v1991 = vpop.f32.mrb[0].mxu0
  %v1992 = vadd.f32 %v1392, %v1991
  %v1993 = vpop.f32.mrb[0].mxu0
  %1994 = vmatprep.mubr.f32.mxu0 0.0
  %1995 = vmatmul.mubr.f32.gmra.mrb[0].mxu0 %v1483
  %v1996 = vpop.f32.mrb[0].mxu0
  %v1997 = vadd.f32 %v1392, %v1996
  %v1998 = vpop.f32.mrb[0].mxu0
  %1999 = vmatprep.mubr.f32.mxu0 0.0
  %2000 = vmatmul.mubr.f32.gmra.mrb[0].mxu0 %v1486
  %v2001 = vpop.f32.mrb[0].mxu0
  %v2002 = vadd.f32 %v1392, %v2001
  %v2003 = vpop.f32.mrb[0].mxu0
  %2004 = vmatprep.mubr.f32.mxu0 0.0
  %2005 = vmatmul.mubr.f32.gmra.mrb[0].mxu0 %v1489
  %v2006 = vpop.f32.mrb[0].mxu0
  %v2007 = vadd.f32 %v1392, %v2006
  %v2008 = vpop.f32.mrb[0].mxu0
  %2009 = vmatprep.mubr.f32.mxu0 0.0
  %2010 = vmatmul.mubr.f32.gmra.mrb[0].mxu0 %v1492
  %v2011 = vpop.f32.mrb[0].mxu0
  %v2012 = vadd.f32 %v1392, %v2011
  %v2013 = vpop.f32.mrb[0].mxu0
  %2014 = vmatprep.mubr.f32.mxu0 0.0
  %2015 = vmatmul.mubr.f32.gmra.mrb[0].mxu0 %v1495
  %v2016 = vpop.f32.mrb[0].mxu0
  %v2017 = vadd.f32 %v1392, %v2016
  %v2018 = vpop.f32.mrb[0].mxu0
  %2019 = vmatprep.mubr.f32.mxu0 0.0
  %2020 = vmatmul.mubr.f32.gmra.mrb[0].mxu0 %v1498
  %v2021 = vpop.f32.mrb[0].mxu0
  %v2022 = vadd.f32 %v1392, %v2021
  %v2023 = vpop.f32.mrb[0].mxu0
  %2024 = vmatprep.mubr.f32.mxu0 0.0
  %2025 = vmatmul.mubr.f32.gmra.mrb[0].mxu0 %v1501
  %v2026 = vpop.f32.mrb[0].mxu0
  %v2027 = vadd.f32 %v1392, %v2026
  %v2028 = vpop.f32.mrb[0].mxu0
  %2029 = vmatprep.mubr.f32.mxu0 0.0
  %2030 = vmatmul.mubr.f32.gmra.mrb[0].mxu0 %v1504
  %v2031 = vpop.f32.mrb[0].mxu0
  %v2032 = vadd.f32 %v1392, %v2031
  %v2033 = vpop.f32.mrb[0].mxu0
  %2034 = vmatprep.mubr.f32.mxu0 0.0
  %2035 = vmatmul.mubr.f32.gmra.mrb[0].mxu0 %v1507
  %v2036 = vpop.f32.mrb[0].mxu0
  %v2037 = vadd.f32 %v1392, %v2036
  %v2038 = vpop.f32.mrb[0].mxu0
  %2039 = vmatprep.mubr.f32.mxu0 0.0
  %2040 = vmatmul.mubr.f32.gmra.mrb[0].mxu0 %v1510
  %v2041 = vpop.f32.mrb[0].mxu0
  %v2042 = vadd.f32 %v1392, %v2041
  %v2043 = vpop.f32.mrb[0].mxu0
  %2044 = vmatprep.mubr.f32.mxu0 0.0
  %2045 = vmatmul.mubr.f32.gmra.mrb[0].mxu0 %v1513
  %v2046 = vpop.f32.mrb[0].mxu0
  %v2047 = vadd.f32 %v1392, %v2046
  %v2048 = vpop.f32.mrb[0].mxu0
  %2049 = vmatprep.mubr.f32.mxu0 0.0
  %2050 = vmatmul.mubr.f32.gmra.mrb[0].mxu0 %v1516
  %v2051 = vpop.f32.mrb[0].mxu0
  %v2052 = vadd.f32 %v1392, %v2051
  %v2053 = vpop.f32.mrb[0].mxu0
  %2054 = vmatprep.mubr.f32.mxu0 0.0
  %2055 = vmatmul.mubr.f32.gmra.mrb[0].mxu0 %v1519
  %v2056 = vpop.f32.mrb[0].mxu0
  %v2057 = vadd.f32 %v1392, %v2056
  %v2058 = vpop.f32.mrb[0].mxu0
  %2059 = vmatprep.mubr.f32.mxu0 0.0
  %2060 = vmatmul.mubr.f32.gmra.mrb[0].mxu0 %v1522
  %v2061 = vpop.f32.mrb[0].mxu0
  %v2062 = vadd.f32 %v1392, %v2061
  %v2063 = vpop.f32.mrb[0].mxu0
  %2064 = vmatprep.mubr.f32.mxu0 0.0
  %2065 = vmatmul.mubr.f32.gmra.mrb[0].mxu0 %v1525
  %v2066 = vpop.f32.mrb[0].mxu0
  %v2067 = vadd.f32 %v1392, %v2066
  %v2068 = vpop.f32.mrb[0].mxu0
  %2069 = vmatprep.mubr.f32.mxu0 0.0
  %2070 = vmatmul.mubr.f32.gmra.mrb[0].mxu0 %v1528
  %v2071 = vpop.f32.mrb[0].mxu0
  %v2072 = vadd.f32 %v1392, %v2071
  %v2073 = vpop.f32.mrb[0].mxu0
  %2074 = vmatprep.mubr.f32.mxu0 0.0
  %2075 = vmatmul.mubr.f32.gmra.mrb[0].mxu0 %v1531
  %v2076 = vpop.f32.mrb[0].mxu0
  %v2077 = vadd.f32 %v1392, %v2076
  %v2078 = vpop.f32.mrb[0].mxu0
  %2079 = vmatprep.mubr.f32.mxu0 0.0
  %2080 = vmatmul.mubr.f32.gmra.mrb[0].mxu0 %v1534
  %v2081 = vpop.f32.mrb[0].mxu0
  %v2082 = vadd.f32 %v1392, %v2081
  %v2083 = vpop.f32.mrb[0].mxu0
  %2084 = vmatprep.mubr.f32.mxu0 0.0
  %2085 = vmatmul.mubr.f32.gmra.mrb[0].mxu0 %v1537
  %v2086 = vpop.f32.mrb[0].mxu0
  %v2087 = vadd.f32 %v1392, %v2086
  %v2088 = vpop.f32.mrb[0].mxu0
  %2089 = vmatprep.mubr.f32.mxu0 0.0
  %2090 = vmatmul.mubr.f32.gmra.mrb[0].mxu0 %v1540
  %v2091 = vpop.f32.mrb[0].mxu0
  %v2092 = vadd.f32 %v1392, %v2091
  %v2093 = vpop.f32.mrb[0].mxu0
  %2094 = vmatprep.mubr.f32.mxu0 0.0
  %2095 = vmatmul.mubr.f32.gmra.mrb[0].mxu0 %v1543
  %v2096 = vpop.f32.mrb[0].mxu0
  %v2097 = vadd.f32 %v1392, %v2096
  %v2098 = vpop.f32.mrb[0].mxu0
  %2099 = vmatprep.mubr.f32.mxu0 0.0
  %2100 = vmatmul.mubr.f32.gmra.mrb[0].mxu0 %v1546
  %v2101 = vpop.f32.mrb[0].mxu0
  %v2102 = vadd.f32 %v1392, %v2101
  %v2103 = vpop.f32.mrb[0].mxu0
  %2104 = vmatprep.mubr.f32.mxu0 0.0
  %2105 = vmatmul.mubr.f32.gmra.mrb[0].mxu0 %v1549
  %v2106 = vpop.f32.mrb[0].mxu0
  %v2107 = vadd.f32 %v1392, %v2106
  %v2108 = vpop.f32.mrb[0].mxu0
  %2109 = vmatprep.mubr.f32.mxu0 0.0
  %2110 = vmatmul.mubr.f32.gmra.mrb[0].mxu0 %v1552
  %v2111 = vpop.f32.mrb[0].mxu0
  %v2112 = vadd.f32 %v1392, %v2111
  %v2113 = vpop.f32.mrb[0].mxu0
  %2114 = vmatprep.mubr.f32.mxu0 0.0
  %2115 = vmatmul.mubr.f32.gmra.mrb[0].mxu0 %v1555
  %v2116 = vpop.f32.mrb[0].mxu0
  %v2117 = vadd.f32 %v1392, %v2116
  %v2118 = vpop.f32.mrb[0].mxu0
  %2119 = vmatprep.mubr.f32.mxu0 0.0
  %2120 = vmatmul.mubr.f32.gmra.mrb[0].mxu0 %v1558
  %v2121 = vpop.f32.mrb[0].mxu0
  %v2122 = vadd.f32 %v1392, %v2121
  %v2123 = vpop.f32.mrb[0].mxu0
  %2124 = vmatprep.mubr.f32.mxu0 0.0
  %2125 = vmatmul.mubr.f32.gmra.mrb[0].mxu0 %v1561
  %v2126 = vpop.f32.mrb[0].mxu0
  %v2127 = vadd.f32 %v1392, %v2126
  %v2128 = vpop.f32.mrb[0].mxu0
  %2129 = vmatprep.mubr.f32.mxu0 0.0
  %2130 = vmatmul.mubr.f32.gmra.mrb[0].mxu0 %v1564
  %v2131 = vpop.f32.mrb[0].mxu0
  %v2132 = vadd.f32 %v1392, %v2131
  %v2133 = vpop.f32.mrb[0].mxu0
  %2134 = vmatprep.mubr.f32.mxu0 0.0
  %2135 = vmatmul.mubr.f32.gmra.mrb[0].mxu0 %v1567
  %v2136 = vpop.f32.mrb[0].mxu0
  %v2137 = vadd.f32 %v1392, %v2136
  %v2138 = vpop.f32.mrb[0].mxu0
  %2139 = vmatprep.mubr.f32.mxu0 0.0
  %2140 = vmatmul.mubr.f32.gmra.mrb[0].mxu0 %v1570
  %v2141 = vpop.f32.mrb[0].mxu0
  %v2142 = vadd.f32 %v1392, %v2141
  %v2143 = vpop.f32.mrb[0].mxu0
  %2144 = vmatprep.mubr.f32.mxu0 0.0
  %2145 = vmatmul.mubr.f32.gmra.mrb[0].mxu0 %v1573
  %v2146 = vpop.f32.mrb[0].mxu0
  %v2147 = vadd.f32 %v1392, %v2146
  %v2148 = vpop.f32.mrb[0].mxu0
  %2149 = vmatprep.mubr.f32.mxu0 0.0
  %2150 = vmatmul.mubr.f32.gmra.mrb[0].mxu0 %v1576
  %v2151 = vpop.f32.mrb[0].mxu0
  %v2152 = vadd.f32 %v1392, %v2151
  %v2153 = vpop.f32.mrb[0].mxu0
  %2154 = vmatprep.mubr.f32.mxu0 0.0
  %2155 = vmatmul.mubr.f32.gmra.mrb[0].mxu0 %v1579
  %v2156 = vpop.f32.mrb[0].mxu0
  %v2157 = vadd.f32 %v1392, %v2156
  %v2158 = vpop.f32.mrb[0].mxu0
  %2159 = vmatprep.mubr.f32.mxu0 0.0
  %2160 = vmatmul.mubr.f32.gmra.mrb[0].mxu0 %v1582
  %v2161 = vpop.f32.mrb[0].mxu0
  %v2162 = vadd.f32 %v1392, %v2161
  %v2163 = vpop.f32.mrb[0].mxu0
  %2164 = vmatprep.mubr.f32.mxu0 0.0
  %2165 = vmatmul.mubr.f32.gmra.mrb[0].mxu0 %v1585
  %v2166 = vpop.f32.mrb[0].mxu0
  %v2167 = vadd.f32 %v1392, %v2166
  %v2168 = vpop.f32.mrb[0].mxu0
  %2169 = vmatprep.mubr.f32.mxu0 0.0
  %2170 = vmatmul.mubr.f32.gmra.mrb[0].mxu0 %v1588
  %v2171 = vpop.f32.mrb[0].mxu0
  %v2172 = vadd.f32 %v1392, %v2171
  %v2173 = vpop.f32.mrb[0].mxu0
  %2174 = vmatprep.mubr.f32.mxu0 0.0
  %2175 = vmatmul.mubr.f32.gmra.mrb[0].mxu0 %v1591
  %v2176 = vpop.f32.mrb[0].mxu0
  %v2177 = vadd.f32 %v1392, %v2176
  %v2178 = vpop.f32.mrb[0].mxu0
  %2179 = vmatprep.mubr.f32.mxu0 0.0
  %2180 = vmatmul.mubr.f32.gmra.mrb[0].mxu0 %v1594
  %v2181 = vpop.f32.mrb[0].mxu0
  %v2182 = vadd.f32 %v1392, %v2181
  %v2183 = vpop.f32.mrb[0].mxu0
  %2184 = vmatprep.mubr.f32.mxu0 0.0
  %2185 = vmatmul.mubr.f32.gmra.mrb[0].mxu0 %v1597
  %v2186 = vpop.f32.mrb[0].mxu0
  %v2187 = vadd.f32 %v1392, %v2186
  %v2188 = vpop.f32.mrb[0].mxu0
  %2189 = vmatprep.mubr.f32.mxu0 0.0
  %2190 = vmatmul.mubr.f32.gmra.mrb[0].mxu0 %v1600
  %v2191 = vpop.f32.mrb[0].mxu0
  %v2192 = vadd.f32 %v1392, %v2191
  %v2193 = vpop.f32.mrb[0].mxu0
  %2194 = vmatprep.mubr.f32.mxu0 0.0
  %2195 = vmatmul.mubr.f32.gmra.mrb[0].mxu0 %v1603
  %v2196 = vpop.f32.mrb[0].mxu0
  %v2197 = vadd.f32 %v1392, %v2196
  %v2198 = vpop.f32.mrb[0].mxu0
  %2199 = vmatprep.mubr.f32.mxu0 0.0
  %2200 = vmatmul.mubr.f32.gmra.mrb[0].mxu0 %v1606
  %v2201 = vpop.f32.mrb[0].mxu0
  %v2202 = vadd.f32 %v1392, %v2201
  %v2203 = vpop.f32.mrb[0].mxu0
  %2204 = vmatprep.mubr.f32.mxu0 0.0
  %2205 = vmatmul.mubr.f32.gmra.mrb[0].mxu0 %v1609
  %v2206 = vpop.f32.mrb[0].mxu0
  %v2207 = vadd.f32 %v1392, %v2206
  %v2208 = vpop.f32.mrb[0].mxu0
  %2209 = vmatprep.mubr.f32.mxu0 0.0
  %2210 = vmatmul.mubr.f32.gmra.mrb[0].mxu0 %v1612
  %v2211 = vpop.f32.mrb[0].mxu0
  %v2212 = vadd.f32 %v1392, %v2211
  %v2213 = vpop.f32.mrb[0].mxu0
  %2214 = vmatprep.mubr.f32.mxu0 0.0
  %2215 = vmatmul.mubr.f32.gmra.mrb[0].mxu0 %v1615
  %v2216 = vpop.f32.mrb[0].mxu0
  %v2217 = vadd.f32 %v1392, %v2216
  %v2218 = vpop.f32.mrb[0].mxu0
  %2219 = vmatprep.mubr.f32.mxu0 0.0
  %2220 = vmatmul.mubr.f32.gmra.mrb[0].mxu0 %v1618
  %v2221 = vpop.f32.mrb[0].mxu0
  %v2222 = vadd.f32 %v1392, %v2221
  %v2223 = vpop.f32.mrb[0].mxu0
  %2224 = vmatprep.mubr.f32.mxu0 0.0
  %2225 = vmatmul.mubr.f32.gmra.mrb[0].mxu0 %v1621
  %v2226 = vpop.f32.mrb[0].mxu0
  %v2227 = vadd.f32 %v1392, %v2226
  %v2228 = vpop.f32.mrb[0].mxu0
  %2229 = vmatprep.mubr.f32.mxu0 0.0
  %2230 = vmatmul.mubr.f32.gmra.mrb[0].mxu0 %v1624
  %v2231 = vpop.f32.mrb[0].mxu0
  %v2232 = vadd.f32 %v1392, %v2231
  %v2233 = vpop.f32.mrb[0].mxu0
  %2234 = vmatprep.mubr.f32.mxu0 0.0
  %2235 = vmatmul.mubr.f32.gmra.mrb[0].mxu0 %v1627
  %v2236 = vpop.f32.mrb[0].mxu0
  %v2237 = vadd.f32 %v1392, %v2236
  %v2238 = vpop.f32.mrb[0].mxu0
  %2239 = vmatprep.mubr.f32.mxu0 0.0
  %2240 = vmatmul.mubr.f32.gmra.mrb[0].mxu0 %v1630
  %v2241 = vpop.f32.mrb[0].mxu0
  %v2242 = vadd.f32 %v1392, %v2241
  %v2243 = vpop.f32.mrb[0].mxu0
  %2244 = vmatprep.mubr.f32.mxu0 0.0
  %2245 = vmatmul.mubr.f32.gmra.mrb[0].mxu0 %v1633
  %v2246 = vpop.f32.mrb[0].mxu0
  %v2247 = vadd.f32 %v1392, %v2246
  %v2248 = vpop.f32.mrb[0].mxu0
  %2249 = vmatprep.mubr.f32.mxu0 0.0
  %2250 = vmatmul.mubr.f32.gmra.mrb[0].mxu0 %v1636
  %v2251 = vpop.f32.mrb[0].mxu0
  %v2252 = vadd.f32 %v1392, %v2251
  %v2253 = vpop.f32.mrb[0].mxu0
  %2254 = vmatprep.mubr.f32.mxu0 0.0
  %2255 = vmatmul.mubr.f32.gmra.mrb[0].mxu0 %v1639
  %v2256 = vpop.f32.mrb[0].mxu0
  %v2257 = vadd.f32 %v1392, %v2256
  %v2258 = vpop.f32.mrb[0].mxu0
  %2259 = vmatprep.mubr.f32.mxu0 0.0
  %2260 = vmatmul.mubr.f32.gmra.mrb[0].mxu0 %v1642
  %v2261 = vpop.f32.mrb[0].mxu0
  %v2262 = vadd.f32 %v1392, %v2261
  %v2263 = vpop.f32.mrb[0].mxu0
  %2264 = vmatprep.mubr.f32.mxu0 0.0
  %2265 = vmatmul.mubr.f32.gmra.mrb[0].mxu0 %v1645
  %v2266 = vpop.f32.mrb[0].mxu0
  %v2267 = vadd.f32 %v1392, %v2266
  %v2268 = vpop.f32.mrb[0].mxu0
  %2269 = vmatprep.mubr.f32.mxu0 0.0
  %2270 = vmatmul.mubr.f32.gmra.mrb[0].mxu0 %v1648
  %v2271 = vpop.f32.mrb[0].mxu0
  %v2272 = vadd.f32 %v1392, %v2271
  %v2273 = vpop.f32.mrb[0].mxu0
  %2274 = vmatprep.mubr.f32.mxu0 0.0
  %2275 = vmatmul.mubr.f32.gmra.mrb[0].mxu0 %v1651
  %v2276 = vpop.f32.mrb[0].mxu0
  %v2277 = vadd.f32 %v1392, %v2276
  %v2278 = vpop.f32.mrb[0].mxu0
  %2279 = vmatprep.mubr.f32.mxu0 0.0
  %2280 = vmatmul.mubr.f32.gmra.mrb[0].mxu0 %v1654
  %v2281 = vpop.f32.mrb[0].mxu0
  %v2282 = vadd.f32 %v1392, %v2281
  %v2283 = vpop.f32.mrb[0].mxu0
  %2284 = vmatprep.mubr.f32.mxu0 0.0
  %2285 = vmatmul.mubr.f32.gmra.mrb[0].mxu0 %v1657
  %v2286 = vpop.f32.mrb[0].mxu0
  %v2287 = vadd.f32 %v1392, %v2286
  %v2288 = vpop.f32.mrb[0].mxu0
  %2289 = vmatprep.mubr.f32.mxu0 0.0
  %2290 = vmatmul.mubr.f32.gmra.mrb[0].mxu0 %v1660
  %v2291 = vpop.f32.mrb[0].mxu0
  %v2292 = vadd.f32 %v1392, %v2291
  %v2293 = vpop.f32.mrb[0].mxu0
  %2294 = vmatprep.mubr.f32.mxu0 0.0
  %2295 = vmatmul.mubr.f32.gmra.mrb[0].mxu0 %v1663
  %v2296 = vpop.f32.mrb[0].mxu0
  %v2297 = vadd.f32 %v1392, %v2296
  %v2298 = vpop.f32.mrb[0].mxu0
  %2299 = vmatprep.mubr.f32.mxu0 0.0
  %2300 = vmatmul.mubr.f32.gmra.mrb[0].mxu0 %v1666
  %v2301 = vpop.f32.mrb[0].mxu0
  %v2302 = vadd.f32 %v1392, %v2301
  %v2303 = vpop.f32.mrb[0].mxu0
  %2304 = vmatprep.mubr.f32.mxu0 0.0
  %2305 = vmatmul.mubr.f32.gmra.mrb[0].mxu0 %v1669
  %v2306 = vpop.f32.mrb[0].mxu0
  %v2307 = vadd.f32 %v1392, %v2306
  %v2308 = vpop.f32.mrb[0].mxu0
  %2309 = vmatprep.mubr.f32.mxu0 0.0
  %2310 = vmatmul.mubr.f32.gmra.mrb[0].mxu0 %v1672
  %v2311 = vpop.f32.mrb[0].mxu0
  %v2312 = vadd.f32 %v1392, %v2311
  %v2313 = vpop.f32.mrb[0].mxu0
  %2314 = vmatprep.mubr.f32.mxu0 0.0
  %2315 = vmatmul.mubr.f32.gmra.mrb[0].mxu0 %v1675
  %v2316 = vpop.f32.mrb[0].mxu0
  %v2317 = vadd.f32 %v1392, %v2316
  %v2318 = vpop.f32.mrb[0].mxu0
  %2319 = vmatprep.mubr.f32.mxu0 0.0
  %2320 = vmatmul.mubr.f32.gmra.mrb[0].mxu0 %v1678
  %v2321 = vpop.f32.mrb[0].mxu0
  %v2322 = vadd.f32 %v1392, %v2321
  %v2323 = vpop.f32.mrb[0].mxu0
  %2324 = vmatprep.mubr.f32.mxu0 0.0
  %2325 = vmatmul.mubr.f32.gmra.mrb[0].mxu0 %v1681
  %v2326 = vpop.f32.mrb[0].mxu0
  %v2327 = vadd.f32 %v1392, %v2326
  %v2328 = vpop.f32.mrb[0].mxu0
  %2329 = vmatprep.mubr.f32.mxu0 0.0
  %2330 = vmatmul.mubr.f32.gmra.mrb[0].mxu0 %v1684
  %v2331 = vpop.f32.mrb[0].mxu0
  %v2332 = vadd.f32 %v1392, %v2331
  %v2333 = vpop.f32.mrb[0].mxu0
  %2334 = vmatprep.mubr.f32.mxu0 0.0
  %2335 = vmatmul.mubr.f32.gmra.mrb[0].mxu0 %v1687
  %v2336 = vpop.f32.mrb[0].mxu0
  %v2337 = vadd.f32 %v1392, %v2336
  %v2338 = vpop.f32.mrb[0].mxu0
  %2339 = vmatprep.mubr.f32.mxu0 0.0
  %2340 = vmatmul.mubr.f32.gmra.mrb[0].mxu0 %v1690
  %v2341 = vpop.f32.mrb[0].mxu0
  %v2342 = vadd.f32 %v1392, %v2341
  %v2343 = vpop.f32.mrb[0].mxu0
  %2344 = vmatprep.mubr.f32.mxu0 0.0
  %2345 = vmatmul.mubr.f32.gmra.mrb[0].mxu0 %v1693
  %v2346 = vpop.f32.mrb[0].mxu0
  %v2347 = vadd.f32 %v1392, %v2346
  %v2348 = vpop.f32.mrb[0].mxu0
  %2349 = vmatprep.mubr.f32.mxu0 0.0
  %2350 = vmatmul.mubr.f32.gmra.mrb[0].mxu0 %v1696
  %v2351 = vpop.f32.mrb[0].mxu0
  %v2352 = vadd.f32 %v1392, %v2351
  %v2353 = vpop.f32.mrb[0].mxu0
  %2354 = vmatprep.mubr.f32.mxu0 0.0
  %2355 = vmatmul.mubr.f32.gmra.mrb[0].mxu0 %v1699
  %v2356 = vpop.f32.mrb[0].mxu0
  %v2357 = vadd.f32 %v1392, %v2356
  %v2358 = vpop.f32.mrb[0].mxu0
  %2359 = vmatprep.mubr.f32.mxu0 0.0
  %2360 = vmatmul.mubr.f32.gmra.mrb[0].mxu0 %v1702
  %v2361 = vpop.f32.mrb[0].mxu0
  %v2362 = vadd.f32 %v1392, %v2361
  %v2363 = vpop.f32.mrb[0].mxu0
  %2364 = vmatprep.mubr.f32.mxu0 0.0
  %2365 = vmatmul.mubr.f32.gmra.mrb[0].mxu0 %v1705
  %v2366 = vpop.f32.mrb[0].mxu0
  %v2367 = vadd.f32 %v1392, %v2366
  %v2368 = vpop.f32.mrb[0].mxu0
  %2369 = vmatprep.mubr.f32.mxu0 0.0
  %2370 = vmatmul.mubr.f32.gmra.mrb[0].mxu0 %v1708
  %v2371 = vpop.f32.mrb[0].mxu0
  %v2372 = vadd.f32 %v1392, %v2371
  %v2373 = vpop.f32.mrb[0].mxu0
  %2374 = vmatprep.mubr.f32.mxu0 0.0
  %2375 = vmatmul.mubr.f32.gmra.mrb[0].mxu0 %v1711
  %v2376 = vpop.f32.mrb[0].mxu0
  %v2377 = vadd.f32 %v1392, %v2376
  %v2378 = vpop.f32.mrb[0].mxu0
  %2379 = vmatprep.mubr.f32.mxu0 0.0
  %2380 = vmatmul.mubr.f32.gmra.mrb[0].mxu0 %v1714
  %v2381 = vpop.f32.mrb[0].mxu0
  %v2382 = vadd.f32 %v1392, %v2381
  %v2383 = vpop.f32.mrb[0].mxu0
  %2384 = vmatprep.mubr.f32.mxu0 0.0
  %2385 = vmatmul.mubr.f32.gmra.mrb[0].mxu0 %v1717
  %v2386 = vpop.f32.mrb[0].mxu0
  %v2387 = vadd.f32 %v1392, %v2386
  %v2388 = vpop.f32.mrb[0].mxu0
  %2389 = vmatprep.mubr.f32.mxu0 0.0
  %2390 = vmatmul.mubr.f32.gmra.mrb[0].mxu0 %v1720
  %v2391 = vpop.f32.mrb[0].mxu0
  %v2392 = vadd.f32 %v1392, %v2391
  %v2393 = vpop.f32.mrb[0].mxu0
  %2394 = vmatprep.mubr.f32.mxu0 0.0
  %2395 = vmatmul.mubr.f32.gmra.mrb[0].mxu0 %v1723
  %v2396 = vpop.f32.mrb[0].mxu0
  %v2397 = vadd.f32 %v1392, %v2396
  %v2398 = vpop.f32.mrb[0].mxu0
  %2399 = vmatprep.mubr.f32.mxu0 0.0
  %2400 = vmatmul.mubr.f32.gmra.mrb[0].mxu0 %v1726
  %v2401 = vpop.f32.mrb[0].mxu0
  %v2402 = vadd.f32 %v1392, %v2401
  %v2403 = vpop.f32.mrb[0].mxu0
  %2404 = vmatprep.mubr.f32.mxu0 0.0
  %2405 = vmatmul.mubr.f32.gmra.mrb[0].mxu0 %v1729
  %v2406 = vpop.f32.mrb[0].mxu0
  %v2407 = vadd.f32 %v1392, %v2406
  %v2408 = vpop.f32.mrb[0].mxu0
  %2409 = vmatprep.mubr.f32.mxu0 0.0
  %2410 = vmatmul.mubr.f32.gmra.mrb[0].mxu0 %v1732
  %v2411 = vpop.f32.mrb[0].mxu0
  %v2412 = vadd.f32 %v1392, %v2411
  %v2413 = vpop.f32.mrb[0].mxu0
  %2414 = vmatprep.mubr.f32.mxu0 0.0
  %2415 = vmatmul.mubr.f32.gmra.mrb[0].mxu0 %v1735
  %v2416 = vpop.f32.mrb[0].mxu0
  %v2417 = vadd.f32 %v1392, %v2416
  %v2418 = vpop.f32.mrb[0].mxu0
  %2419 = vmatprep.mubr.f32.mxu0 0.0
  %2420 = vmatmul.mubr.f32.gmra.mrb[0].mxu0 %v1738
  %v2421 = vpop.f32.mrb[0].mxu0
  %v2422 = vadd.f32 %v1392, %v2421
  %v2423 = vpop.f32.mrb[0].mxu0
  %2424 = vmatprep.mubr.f32.mxu0 0.0
  %2425 = vmatmul.mubr.f32.gmra.mrb[0].mxu0 %v1741
  %v2426 = vpop.f32.mrb[0].mxu0
  %v2427 = vadd.f32 %v1392, %v2426
  %v2428 = vpop.f32.mrb[0].mxu0
  %2429 = vmatprep.mubr.f32.mxu0 0.0
  %2430 = vmatmul.mubr.f32.gmra.mrb[0].mxu0 %v1744
  %v2431 = vpop.f32.mrb[0].mxu0
  %v2432 = vadd.f32 %v1392, %v2431
  %v2433 = vpop.f32.mrb[0].mxu0
  %2434 = vmatprep.mubr.f32.mxu0 0.0
  %2435 = vmatmul.mubr.f32.gmra.mrb[0].mxu0 %v1747
  %v2436 = vpop.f32.mrb[0].mxu0
  %v2437 = vadd.f32 %v1392, %v2436
  %v2438 = vpop.f32.mrb[0].mxu0
  %2439 = vmatprep.mubr.f32.mxu0 0.0
  %2440 = vmatmul.mubr.f32.gmra.mrb[0].mxu0 %v1750
  %v2441 = vpop.f32.mrb[0].mxu0
  %v2442 = vadd.f32 %v1392, %v2441
  %v2443 = vpop.f32.mrb[0].mxu0
  %2444 = vmatprep.mubr.f32.mxu0 0.0
  %2445 = vmatmul.mubr.f32.gmra.mrb[0].mxu0 %v1753
  %v2446 = vpop.f32.mrb[0].mxu0
  %v2447 = vadd.f32 %v1392, %v2446
  %v2448 = vpop.f32.mrb[0].mxu0
  %2449 = vmatprep.mubr.f32.mxu0 0.0
  %2450 = vmatmul.mubr.f32.gmra.mrb[0].mxu0 %v1756
  %v2451 = vpop.f32.mrb[0].mxu0
  %v2452 = vadd.f32 %v1392, %v2451
  %v2453 = vpop.f32.mrb[0].mxu0
  %2454 = vmatprep.mubr.f32.mxu0 0.0
  %2455 = vmatmul.mubr.f32.gmra.mrb[0].mxu0 %v1759
  %v2456 = vpop.f32.mrb[0].mxu0
  %v2457 = vadd.f32 %v1392, %v2456
  %v2458 = vpop.f32.mrb[0].mxu0
  %2459 = vmatprep.mubr.f32.mxu0 0.0
  %2460 = vmatmul.mubr.f32.gmra.mrb[0].mxu0 %v1762
  %v2461 = vpop.f32.mrb[0].mxu0
  %v2462 = vadd.f32 %v1392, %v2461
  %v2463 = vpop.f32.mrb[0].mxu0
  %2464 = vmatprep.mubr.f32.mxu0 0.0
  %2465 = vmatmul.mubr.f32.gmra.mrb[0].mxu0 %v1765
  %v2466 = vpop.f32.mrb[0].mxu0
  %v2467 = vadd.f32 %v1392, %v2466
  %v2468 = vpop.f32.mrb[0].mxu0
  %2469 = vmatprep.mubr.f32.mxu0 0.0
  %2470 = vmatmul.mubr.f32.gmra.mrb[0].mxu0 %v1768
  %v2471 = vpop.f32.mrb[0].mxu0
  %v2472 = vadd.f32 %v1392, %v2471
  %v2473 = vpop.f32.mrb[0].mxu0
  %2474 = vmatprep.mubr.f32.mxu0 0.0
  %2475 = vmatmul.mubr.f32.gmra.mrb[0].mxu0 %v1771
  %v2476 = vpop.f32.mrb[0].mxu0
  %v2477 = vadd.f32 %v1392, %v2476
  %v2478 = vpop.f32.mrb[0].mxu0
  %2479 = vmatprep.mubr.f32.mxu0 0.0
  %2480 = vmatmul.mubr.f32.gmra.mrb[0].mxu0 %v1774
  %v2481 = vpop.f32.mrb[0].mxu0
  %v2482 = vadd.f32 %v1392, %v2481
  %v2483 = vpop.f32.mrb[0].mxu0
  %2484 = vmatprep.mubr.f32.mxu0 0.0
  %2485 = vmatmul.mubr.f32.gmra.mrb[0].mxu0 %v1777
  %v2486 = vpop.f32.mrb[0].mxu0
  %v2487 = vadd.f32 %v1392, %v2486
  %v2488 = vpop.f32.mrb[0].mxu0
  %2489 = vdwg.mxu0
  %v2490 = vmax.f32 %v1852, 0.0
  %v2491 = vmax.f32 %v1857, 0.0
  %v2492 = vmax.f32 %v1862, 0.0
  %v2493 = vmax.f32 %v1867, 0.0
  %v2494 = vmax.f32 %v1872, 0.0
  %v2495 = vmax.f32 %v1877, 0.0
  %v2496 = vmax.f32 %v1882, 0.0
  %v2497 = vmax.f32 %v1887, 0.0
  %v2498 = vmax.f32 %v1892, 0.0
  %v2499 = vmax.f32 %v1897, 0.0
  %v2500 = vmax.f32 %v1902, 0.0
  %v2501 = vmax.f32 %v1907, 0.0
  %v2502 = vmax.f32 %v1912, 0.0
  %v2503 = vmax.f32 %v1917, 0.0
  %v2504 = vmax.f32 %v1922, 0.0
  %v2505 = vmax.f32 %v1927, 0.0
  %v2506 = vmax.f32 %v1932, 0.0
  %v2507 = vmax.f32 %v1937, 0.0
  %v2508 = vmax.f32 %v1942, 0.0
  %v2509 = vmax.f32 %v1947, 0.0
  %v2510 = vmax.f32 %v1952, 0.0
  %v2511 = vmax.f32 %v1957, 0.0
  %v2512 = vmax.f32 %v1962, 0.0
  %v2513 = vmax.f32 %v1967, 0.0
  %v2514 = vmax.f32 %v1972, 0.0
  %v2515 = vmax.f32 %v1977, 0.0
  %v2516 = vmax.f32 %v1982, 0.0
  %v2517 = vmax.f32 %v1987, 0.0
  %v2518 = vmax.f32 %v1992, 0.0
  %v2519 = vmax.f32 %v1997, 0.0
  %v2520 = vmax.f32 %v2002, 0.0
  %v2521 = vmax.f32 %v2007, 0.0
  %v2522 = vmax.f32 %v2012, 0.0
  %v2523 = vmax.f32 %v2017, 0.0
  %v2524 = vmax.f32 %v2022, 0.0
  %v2525 = vmax.f32 %v2027, 0.0
  %v2526 = vmax.f32 %v2032, 0.0
  %v2527 = vmax.f32 %v2037, 0.0
  %v2528 = vmax.f32 %v2042, 0.0
  %v2529 = vmax.f32 %v2047, 0.0
  %v2530 = vmax.f32 %v2052, 0.0
  %v2531 = vmax.f32 %v2057, 0.0
  %v2532 = vmax.f32 %v2062, 0.0
  %v2533 = vmax.f32 %v2067, 0.0
  %v2534 = vmax.f32 %v2072, 0.0
  %v2535 = vmax.f32 %v2077, 0.0
  %v2536 = vmax.f32 %v2082, 0.0
  %v2537 = vmax.f32 %v2087, 0.0
  %v2538 = vmax.f32 %v2092, 0.0
  %v2539 = vmax.f32 %v2097, 0.0
  %v2540 = vmax.f32 %v2102, 0.0
  %v2541 = vmax.f32 %v2107, 0.0
  %v2542 = vmax.f32 %v2112, 0.0
  %v2543 = vmax.f32 %v2117, 0.0
  %v2544 = vmax.f32 %v2122, 0.0
  %v2545 = vmax.f32 %v2127, 0.0
  %v2546 = vmax.f32 %v2132, 0.0
  %v2547 = vmax.f32 %v2137, 0.0
  %v2548 = vmax.f32 %v2142, 0.0
  %v2549 = vmax.f32 %v2147, 0.0
  %v2550 = vmax.f32 %v2152, 0.0
  %v2551 = vmax.f32 %v2157, 0.0
  %v2552 = vmax.f32 %v2162, 0.0
  %v2553 = vmax.f32 %v2167, 0.0
  %v2554 = vmax.f32 %v2172, 0.0
  %v2555 = vmax.f32 %v2177, 0.0
  %v2556 = vmax.f32 %v2182, 0.0
  %v2557 = vmax.f32 %v2187, 0.0
  %v2558 = vmax.f32 %v2192, 0.0
  %v2559 = vmax.f32 %v2197, 0.0
  %v2560 = vmax.f32 %v2202, 0.0
  %v2561 = vmax.f32 %v2207, 0.0
  %v2562 = vmax.f32 %v2212, 0.0
  %v2563 = vmax.f32 %v2217, 0.0
  %v2564 = vmax.f32 %v2222, 0.0
  %v2565 = vmax.f32 %v2227, 0.0
  %v2566 = vmax.f32 %v2232, 0.0
  %v2567 = vmax.f32 %v2237, 0.0
  %v2568 = vmax.f32 %v2242, 0.0
  %v2569 = vmax.f32 %v2247, 0.0
  %v2570 = vmax.f32 %v2252, 0.0
  %v2571 = vmax.f32 %v2257, 0.0
  %v2572 = vmax.f32 %v2262, 0.0
  %v2573 = vmax.f32 %v2267, 0.0
  %v2574 = vmax.f32 %v2272, 0.0
  %v2575 = vmax.f32 %v2277, 0.0
  %v2576 = vmax.f32 %v2282, 0.0
  %v2577 = vmax.f32 %v2287, 0.0
  %v2578 = vmax.f32 %v2292, 0.0
  %v2579 = vmax.f32 %v2297, 0.0
  %v2580 = vmax.f32 %v2302, 0.0
  %v2581 = vmax.f32 %v2307, 0.0
  %v2582 = vmax.f32 %v2312, 0.0
  %v2583 = vmax.f32 %v2317, 0.0
  %v2584 = vmax.f32 %v2322, 0.0
  %v2585 = vmax.f32 %v2327, 0.0
  %v2586 = vmax.f32 %v2332, 0.0
  %v2587 = vmax.f32 %v2337, 0.0
  %v2588 = vmax.f32 %v2342, 0.0
  %v2589 = vmax.f32 %v2347, 0.0
  %v2590 = vmax.f32 %v2352, 0.0
  %v2591 = vmax.f32 %v2357, 0.0
  %v2592 = vmax.f32 %v2362, 0.0
  %v2593 = vmax.f32 %v2367, 0.0
  %v2594 = vmax.f32 %v2372, 0.0
  %v2595 = vmax.f32 %v2377, 0.0
  %v2596 = vmax.f32 %v2382, 0.0
  %v2597 = vmax.f32 %v2387, 0.0
  %v2598 = vmax.f32 %v2392, 0.0
  %v2599 = vmax.f32 %v2397, 0.0
  %v2600 = vmax.f32 %v2402, 0.0
  %v2601 = vmax.f32 %v2407, 0.0
  %v2602 = vmax.f32 %v2412, 0.0
  %v2603 = vmax.f32 %v2417, 0.0
  %v2604 = vmax.f32 %v2422, 0.0
  %v2605 = vmax.f32 %v2427, 0.0
  %v2606 = vmax.f32 %v2432, 0.0
  %v2607 = vmax.f32 %v2437, 0.0
  %v2608 = vmax.f32 %v2442, 0.0
  %v2609 = vmax.f32 %v2447, 0.0
  %v2610 = vmax.f32 %v2452, 0.0
  %v2611 = vmax.f32 %v2457, 0.0
  %v2612 = vmax.f32 %v2462, 0.0
  %v2613 = vmax.f32 %v2467, 0.0
  %v2614 = vmax.f32 %v2472, 0.0
  %v2615 = vmax.f32 %v2477, 0.0
  %v2616 = vmax.f32 %v2482, 0.0
  %v2617 = vmax.f32 %v2487, 0.0
  %s2618 = scalar_lea.vmem %s1, 64
  %v2619 = vld [vmem:[%s2618] sm:$0xff]
  %s2620 = scalar_lea.vmem %s2, 2
  %v2621 = vld [vmem:[%s2620] sm:$0x1]
  %v2623 = vlaneseq
  %v2624 = vshrl.u32 %v2623, 7
  %v2625 = vsub.s32 0, %v2624
  %v2626 = vrot.slane %v2621, %v2625
  %v2629 = vsel %vm153, %v2490, 0
  %v2632 = vsel %vm153, %v2491, 0
  %v2635 = vsel %vm153, %v2492, 0
  %v2638 = vsel %vm153, %v2493, 0
  %v2641 = vsel %vm153, %v2494, 0
  %v2644 = vsel %vm153, %v2495, 0
  %v2647 = vsel %vm153, %v2496, 0
  %v2650 = vsel %vm153, %v2497, 0
  %v2653 = vsel %vm153, %v2498, 0
  %v2656 = vsel %vm153, %v2499, 0
  %v2659 = vsel %vm153, %v2500, 0
  %v2662 = vsel %vm153, %v2501, 0
  %v2665 = vsel %vm153, %v2502, 0
  %v2668 = vsel %vm153, %v2503, 0
  %v2671 = vsel %vm153, %v2504, 0
  %v2674 = vsel %vm153, %v2505, 0
  %v2677 = vsel %vm153, %v2506, 0
  %v2680 = vsel %vm153, %v2507, 0
  %v2683 = vsel %vm153, %v2508, 0
  %v2686 = vsel %vm153, %v2509, 0
  %v2689 = vsel %vm153, %v2510, 0
  %v2692 = vsel %vm153, %v2511, 0
  %v2695 = vsel %vm153, %v2512, 0
  %v2698 = vsel %vm153, %v2513, 0
  %v2701 = vsel %vm153, %v2514, 0
  %v2704 = vsel %vm153, %v2515, 0
  %v2707 = vsel %vm153, %v2516, 0
  %v2710 = vsel %vm153, %v2517, 0
  %v2713 = vsel %vm153, %v2518, 0
  %v2716 = vsel %vm153, %v2519, 0
  %v2719 = vsel %vm153, %v2520, 0
  %v2722 = vsel %vm153, %v2521, 0
  %v2725 = vsel %vm153, %v2522, 0
  %v2728 = vsel %vm153, %v2523, 0
  %v2731 = vsel %vm153, %v2524, 0
  %v2734 = vsel %vm153, %v2525, 0
  %v2737 = vsel %vm153, %v2526, 0
  %v2740 = vsel %vm153, %v2527, 0
  %v2743 = vsel %vm153, %v2528, 0
  %v2746 = vsel %vm153, %v2529, 0
  %v2749 = vsel %vm153, %v2530, 0
  %v2752 = vsel %vm153, %v2531, 0
  %v2755 = vsel %vm153, %v2532, 0
  %v2758 = vsel %vm153, %v2533, 0
  %v2761 = vsel %vm153, %v2534, 0
  %v2764 = vsel %vm153, %v2535, 0
  %v2767 = vsel %vm153, %v2536, 0
  %v2770 = vsel %vm153, %v2537, 0
  %v2773 = vsel %vm153, %v2538, 0
  %v2776 = vsel %vm153, %v2539, 0
  %v2779 = vsel %vm153, %v2540, 0
  %v2782 = vsel %vm153, %v2541, 0
  %v2785 = vsel %vm153, %v2542, 0
  %v2788 = vsel %vm153, %v2543, 0
  %v2791 = vsel %vm153, %v2544, 0
  %v2794 = vsel %vm153, %v2545, 0
  %v2797 = vsel %vm153, %v2546, 0
  %v2800 = vsel %vm153, %v2547, 0
  %v2803 = vsel %vm153, %v2548, 0
  %v2806 = vsel %vm153, %v2549, 0
  %v2809 = vsel %vm153, %v2550, 0
  %v2812 = vsel %vm153, %v2551, 0
  %v2815 = vsel %vm153, %v2552, 0
  %v2818 = vsel %vm153, %v2553, 0
  %v2821 = vsel %vm153, %v2554, 0
  %v2824 = vsel %vm153, %v2555, 0
  %v2827 = vsel %vm153, %v2556, 0
  %v2830 = vsel %vm153, %v2557, 0
  %v2833 = vsel %vm153, %v2558, 0
  %v2836 = vsel %vm153, %v2559, 0
  %v2839 = vsel %vm153, %v2560, 0
  %v2842 = vsel %vm153, %v2561, 0
  %v2845 = vsel %vm153, %v2562, 0
  %v2848 = vsel %vm153, %v2563, 0
  %v2851 = vsel %vm153, %v2564, 0
  %v2854 = vsel %vm153, %v2565, 0
  %v2857 = vsel %vm153, %v2566, 0
  %v2860 = vsel %vm153, %v2567, 0
  %v2863 = vsel %vm153, %v2568, 0
  %v2866 = vsel %vm153, %v2569, 0
  %v2869 = vsel %vm153, %v2570, 0
  %v2872 = vsel %vm153, %v2571, 0
  %v2875 = vsel %vm153, %v2572, 0
  %v2878 = vsel %vm153, %v2573, 0
  %v2881 = vsel %vm153, %v2574, 0
  %v2884 = vsel %vm153, %v2575, 0
  %v2887 = vsel %vm153, %v2576, 0
  %v2890 = vsel %vm153, %v2577, 0
  %v2893 = vsel %vm153, %v2578, 0
  %v2896 = vsel %vm153, %v2579, 0
  %v2899 = vsel %vm153, %v2580, 0
  %v2902 = vsel %vm153, %v2581, 0
  %v2905 = vsel %vm153, %v2582, 0
  %v2908 = vsel %vm153, %v2583, 0
  %v2911 = vsel %vm153, %v2584, 0
  %v2914 = vsel %vm153, %v2585, 0
  %v2917 = vsel %vm153, %v2586, 0
  %v2920 = vsel %vm153, %v2587, 0
  %v2923 = vsel %vm153, %v2588, 0
  %v2926 = vsel %vm153, %v2589, 0
  %v2929 = vsel %vm153, %v2590, 0
  %v2932 = vsel %vm153, %v2591, 0
  %v2935 = vsel %vm153, %v2592, 0
  %v2938 = vsel %vm153, %v2593, 0
  %v2941 = vsel %vm153, %v2594, 0
  %v2944 = vsel %vm153, %v2595, 0
  %v2947 = vsel %vm153, %v2596, 0
  %v2950 = vsel %vm153, %v2597, 0
  %v2953 = vsel %vm153, %v2598, 0
  %v2956 = vsel %vm153, %v2599, 0
  %v2959 = vsel %vm153, %v2600, 0
  %v2962 = vsel %vm153, %v2601, 0
  %v2965 = vsel %vm153, %v2602, 0
  %v2968 = vsel %vm153, %v2603, 0
  %v2971 = vsel %vm153, %v2604, 0
  %v2974 = vsel %vm153, %v2605, 0
  %v2977 = vsel %vm153, %v2606, 0
  %v2980 = vsel %vm153, %v2607, 0
  %v2983 = vsel %vm153, %v2608, 0
  %v2986 = vsel %vm153, %v2609, 0
  %v2989 = vsel %vm153, %v2610, 0
  %v2992 = vsel %vm153, %v2611, 0
  %v2995 = vsel %vm153, %v2612, 0
  %v2998 = vsel %vm153, %v2613, 0
  %v3001 = vsel %vm153, %v2614, 0
  %v3004 = vsel %vm153, %v2615, 0
  %v3007 = vsel %vm153, %v2616, 0
  %v3010 = vsel %vm153, %v2617, 0
  %v3013 = vsel %vm153, %v2619, 0
  %3015 = vmatprep.subr.mxu0 0.0
  %3016 = vmatpush1.xpose.msra.mxu0 %v3013
  %3017 = vmatprep.subr.mxu0 0.0
  %3018 = vmatpush1.xpose.msra.mxu0 0.0
  %3019 = vmatprep.subr.mxu0 0.0
  %3020 = vmatpush1.xpose.msra.mxu0 0.0
  %3021 = vmatprep.subr.mxu0 0.0
  %3022 = vmatpush1.xpose.msra.mxu0 0.0
  %3023 = vmatprep.subr.mxu0 0.0
  %3024 = vmatpush1.xpose.msra.mxu0 0.0
  %3025 = vmatprep.subr.mxu0 0.0
  %3026 = vmatpush1.xpose.msra.mxu0 0.0
  %3027 = vmatprep.subr.mxu0 0.0
  %3028 = vmatpush1.xpose.msra.mxu0 0.0
  %3029 = vmatprep.subr.mxu0 0.0
  %3030 = vmatpush1.xpose.msra.mxu0 0.0
  %3031 = vmatprep.subr.mxu0 0.0
  %3032 = vmatpush1.xpose.msra.mxu0 0.0
  %3033 = vmatprep.subr.mxu0 0.0
  %3034 = vmatpush1.xpose.msra.mxu0 0.0
  %3035 = vmatprep.subr.mxu0 0.0
  %3036 = vmatpush1.xpose.msra.mxu0 0.0
  %3037 = vmatprep.subr.mxu0 0.0
  %3038 = vmatpush1.xpose.msra.mxu0 0.0
  %3039 = vmatprep.subr.mxu0 0.0
  %3040 = vmatpush1.xpose.msra.mxu0 0.0
  %3041 = vmatprep.subr.mxu0 0.0
  %3042 = vmatpush1.xpose.msra.mxu0 0.0
  %3043 = vmatprep.subr.mxu0 0.0
  %3044 = vmatpush1.xpose.msra.mxu0 0.0
  %3045 = vmatprep.subr.mxu0 0.0
  %3046 = vmatpush1.xpose.msra.mxu0 0.0
  %3047 = vmatprep.subr.mxu0 0.0
  %3048 = vmatpush1.xpose.msra.mxu0 0.0
  %3049 = vmatprep.subr.mxu0 0.0
  %3050 = vmatpush1.xpose.msra.mxu0 0.0
  %3051 = vmatprep.subr.mxu0 0.0
  %3052 = vmatpush1.xpose.msra.mxu0 0.0
  %3053 = vmatprep.subr.mxu0 0.0
  %3054 = vmatpush1.xpose.msra.mxu0 0.0
  %3055 = vmatprep.subr.mxu0 0.0
  %3056 = vmatpush1.xpose.msra.mxu0 0.0
  %3057 = vmatprep.subr.mxu0 0.0
  %3058 = vmatpush1.xpose.msra.mxu0 0.0
  %3059 = vmatprep.subr.mxu0 0.0
  %3060 = vmatpush1.xpose.msra.mxu0 0.0
  %3061 = vmatprep.subr.mxu0 0.0
  %3062 = vmatpush1.xpose.msra.mxu0 0.0
  %3063 = vmatprep.subr.mxu0 0.0
  %3064 = vmatpush1.xpose.msra.mxu0 0.0
  %3065 = vmatprep.subr.mxu0 0.0
  %3066 = vmatpush1.xpose.msra.mxu0 0.0
  %3067 = vmatprep.subr.mxu0 0.0
  %3068 = vmatpush1.xpose.msra.mxu0 0.0
  %3069 = vmatprep.subr.mxu0 0.0
  %3070 = vmatpush1.xpose.msra.mxu0 0.0
  %3071 = vmatprep.subr.mxu0 0.0
  %3072 = vmatpush1.xpose.msra.mxu0 0.0
  %3073 = vmatprep.subr.mxu0 0.0
  %3074 = vmatpush1.xpose.msra.mxu0 0.0
  %3075 = vmatprep.subr.mxu0 0.0
  %3076 = vmatpush1.xpose.msra.mxu0 0.0
  %3077 = vmatprep.subr.mxu0 0.0
  %3078 = vmatpush1.xpose.msra.mxu0 0.0
  %3079 = vmatprep.mubr.f32.mxu0 0.0
  %3080 = vmatmul.mubr.f32.gmra.mrb[0].mxu0 %v2629
  %v3081 = vpop.f32.mrb[0].mxu0
  %v3082 = vadd.f32 %v2626, %v3081
  %v3083 = vpop.f32.mrb[0].mxu0
  %3084 = vmatprep.mubr.f32.mxu0 0.0
  %3085 = vmatmul.mubr.f32.gmra.mrb[0].mxu0 %v2632
  %v3086 = vpop.f32.mrb[0].mxu0
  %v3087 = vadd.f32 %v2626, %v3086
  %v3088 = vpop.f32.mrb[0].mxu0
  %3089 = vmatprep.mubr.f32.mxu0 0.0
  %3090 = vmatmul.mubr.f32.gmra.mrb[0].mxu0 %v2635
  %v3091 = vpop.f32.mrb[0].mxu0
  %v3092 = vadd.f32 %v2626, %v3091
  %v3093 = vpop.f32.mrb[0].mxu0
  %3094 = vmatprep.mubr.f32.mxu0 0.0
  %3095 = vmatmul.mubr.f32.gmra.mrb[0].mxu0 %v2638
  %v3096 = vpop.f32.mrb[0].mxu0
  %v3097 = vadd.f32 %v2626, %v3096
  %v3098 = vpop.f32.mrb[0].mxu0
  %3099 = vmatprep.mubr.f32.mxu0 0.0
  %3100 = vmatmul.mubr.f32.gmra.mrb[0].mxu0 %v2641
  %v3101 = vpop.f32.mrb[0].mxu0
  %v3102 = vadd.f32 %v2626, %v3101
  %v3103 = vpop.f32.mrb[0].mxu0
  %3104 = vmatprep.mubr.f32.mxu0 0.0
  %3105 = vmatmul.mubr.f32.gmra.mrb[0].mxu0 %v2644
  %v3106 = vpop.f32.mrb[0].mxu0
  %v3107 = vadd.f32 %v2626, %v3106
  %v3108 = vpop.f32.mrb[0].mxu0
  %3109 = vmatprep.mubr.f32.mxu0 0.0
  %3110 = vmatmul.mubr.f32.gmra.mrb[0].mxu0 %v2647
  %v3111 = vpop.f32.mrb[0].mxu0
  %v3112 = vadd.f32 %v2626, %v3111
  %v3113 = vpop.f32.mrb[0].mxu0
  %3114 = vmatprep.mubr.f32.mxu0 0.0
  %3115 = vmatmul.mubr.f32.gmra.mrb[0].mxu0 %v2650
  %v3116 = vpop.f32.mrb[0].mxu0
  %v3117 = vadd.f32 %v2626, %v3116
  %v3118 = vpop.f32.mrb[0].mxu0
  %3119 = vmatprep.mubr.f32.mxu0 0.0
  %3120 = vmatmul.mubr.f32.gmra.mrb[0].mxu0 %v2653
  %v3121 = vpop.f32.mrb[0].mxu0
  %v3122 = vadd.f32 %v2626, %v3121
  %v3123 = vpop.f32.mrb[0].mxu0
  %3124 = vmatprep.mubr.f32.mxu0 0.0
  %3125 = vmatmul.mubr.f32.gmra.mrb[0].mxu0 %v2656
  %v3126 = vpop.f32.mrb[0].mxu0
  %v3127 = vadd.f32 %v2626, %v3126
  %v3128 = vpop.f32.mrb[0].mxu0
  %3129 = vmatprep.mubr.f32.mxu0 0.0
  %3130 = vmatmul.mubr.f32.gmra.mrb[0].mxu0 %v2659
  %v3131 = vpop.f32.mrb[0].mxu0
  %v3132 = vadd.f32 %v2626, %v3131
  %v3133 = vpop.f32.mrb[0].mxu0
  %3134 = vmatprep.mubr.f32.mxu0 0.0
  %3135 = vmatmul.mubr.f32.gmra.mrb[0].mxu0 %v2662
  %v3136 = vpop.f32.mrb[0].mxu0
  %v3137 = vadd.f32 %v2626, %v3136
  %v3138 = vpop.f32.mrb[0].mxu0
  %3139 = vmatprep.mubr.f32.mxu0 0.0
  %3140 = vmatmul.mubr.f32.gmra.mrb[0].mxu0 %v2665
  %v3141 = vpop.f32.mrb[0].mxu0
  %v3142 = vadd.f32 %v2626, %v3141
  %v3143 = vpop.f32.mrb[0].mxu0
  %3144 = vmatprep.mubr.f32.mxu0 0.0
  %3145 = vmatmul.mubr.f32.gmra.mrb[0].mxu0 %v2668
  %v3146 = vpop.f32.mrb[0].mxu0
  %v3147 = vadd.f32 %v2626, %v3146
  %v3148 = vpop.f32.mrb[0].mxu0
  %3149 = vmatprep.mubr.f32.mxu0 0.0
  %3150 = vmatmul.mubr.f32.gmra.mrb[0].mxu0 %v2671
  %v3151 = vpop.f32.mrb[0].mxu0
  %v3152 = vadd.f32 %v2626, %v3151
  %v3153 = vpop.f32.mrb[0].mxu0
  %3154 = vmatprep.mubr.f32.mxu0 0.0
  %3155 = vmatmul.mubr.f32.gmra.mrb[0].mxu0 %v2674
  %v3156 = vpop.f32.mrb[0].mxu0
  %v3157 = vadd.f32 %v2626, %v3156
  %v3158 = vpop.f32.mrb[0].mxu0
  %3159 = vmatprep.mubr.f32.mxu0 0.0
  %3160 = vmatmul.mubr.f32.gmra.mrb[0].mxu0 %v2677
  %v3161 = vpop.f32.mrb[0].mxu0
  %v3162 = vadd.f32 %v2626, %v3161
  %v3163 = vpop.f32.mrb[0].mxu0
  %3164 = vmatprep.mubr.f32.mxu0 0.0
  %3165 = vmatmul.mubr.f32.gmra.mrb[0].mxu0 %v2680
  %v3166 = vpop.f32.mrb[0].mxu0
  %v3167 = vadd.f32 %v2626, %v3166
  %v3168 = vpop.f32.mrb[0].mxu0
  %3169 = vmatprep.mubr.f32.mxu0 0.0
  %3170 = vmatmul.mubr.f32.gmra.mrb[0].mxu0 %v2683
  %v3171 = vpop.f32.mrb[0].mxu0
  %v3172 = vadd.f32 %v2626, %v3171
  %v3173 = vpop.f32.mrb[0].mxu0
  %3174 = vmatprep.mubr.f32.mxu0 0.0
  %3175 = vmatmul.mubr.f32.gmra.mrb[0].mxu0 %v2686
  %v3176 = vpop.f32.mrb[0].mxu0
  %v3177 = vadd.f32 %v2626, %v3176
  %v3178 = vpop.f32.mrb[0].mxu0
  %3179 = vmatprep.mubr.f32.mxu0 0.0
  %3180 = vmatmul.mubr.f32.gmra.mrb[0].mxu0 %v2689
  %v3181 = vpop.f32.mrb[0].mxu0
  %v3182 = vadd.f32 %v2626, %v3181
  %v3183 = vpop.f32.mrb[0].mxu0
  %3184 = vmatprep.mubr.f32.mxu0 0.0
  %3185 = vmatmul.mubr.f32.gmra.mrb[0].mxu0 %v2692
  %v3186 = vpop.f32.mrb[0].mxu0
  %v3187 = vadd.f32 %v2626, %v3186
  %v3188 = vpop.f32.mrb[0].mxu0
  %3189 = vmatprep.mubr.f32.mxu0 0.0
  %3190 = vmatmul.mubr.f32.gmra.mrb[0].mxu0 %v2695
  %v3191 = vpop.f32.mrb[0].mxu0
  %v3192 = vadd.f32 %v2626, %v3191
  %v3193 = vpop.f32.mrb[0].mxu0
  %3194 = vmatprep.mubr.f32.mxu0 0.0
  %3195 = vmatmul.mubr.f32.gmra.mrb[0].mxu0 %v2698
  %v3196 = vpop.f32.mrb[0].mxu0
  %v3197 = vadd.f32 %v2626, %v3196
  %v3198 = vpop.f32.mrb[0].mxu0
  %3199 = vmatprep.mubr.f32.mxu0 0.0
  %3200 = vmatmul.mubr.f32.gmra.mrb[0].mxu0 %v2701
  %v3201 = vpop.f32.mrb[0].mxu0
  %v3202 = vadd.f32 %v2626, %v3201
  %v3203 = vpop.f32.mrb[0].mxu0
  %3204 = vmatprep.mubr.f32.mxu0 0.0
  %3205 = vmatmul.mubr.f32.gmra.mrb[0].mxu0 %v2704
  %v3206 = vpop.f32.mrb[0].mxu0
  %v3207 = vadd.f32 %v2626, %v3206
  %v3208 = vpop.f32.mrb[0].mxu0
  %3209 = vmatprep.mubr.f32.mxu0 0.0
  %3210 = vmatmul.mubr.f32.gmra.mrb[0].mxu0 %v2707
  %v3211 = vpop.f32.mrb[0].mxu0
  %v3212 = vadd.f32 %v2626, %v3211
  %v3213 = vpop.f32.mrb[0].mxu0
  %3214 = vmatprep.mubr.f32.mxu0 0.0
  %3215 = vmatmul.mubr.f32.gmra.mrb[0].mxu0 %v2710
  %v3216 = vpop.f32.mrb[0].mxu0
  %v3217 = vadd.f32 %v2626, %v3216
  %v3218 = vpop.f32.mrb[0].mxu0
  %3219 = vmatprep.mubr.f32.mxu0 0.0
  %3220 = vmatmul.mubr.f32.gmra.mrb[0].mxu0 %v2713
  %v3221 = vpop.f32.mrb[0].mxu0
  %v3222 = vadd.f32 %v2626, %v3221
  %v3223 = vpop.f32.mrb[0].mxu0
  %3224 = vmatprep.mubr.f32.mxu0 0.0
  %3225 = vmatmul.mubr.f32.gmra.mrb[0].mxu0 %v2716
  %v3226 = vpop.f32.mrb[0].mxu0
  %v3227 = vadd.f32 %v2626, %v3226
  %v3228 = vpop.f32.mrb[0].mxu0
  %3229 = vmatprep.mubr.f32.mxu0 0.0
  %3230 = vmatmul.mubr.f32.gmra.mrb[0].mxu0 %v2719
  %v3231 = vpop.f32.mrb[0].mxu0
  %v3232 = vadd.f32 %v2626, %v3231
  %v3233 = vpop.f32.mrb[0].mxu0
  %3234 = vmatprep.mubr.f32.mxu0 0.0
  %3235 = vmatmul.mubr.f32.gmra.mrb[0].mxu0 %v2722
  %v3236 = vpop.f32.mrb[0].mxu0
  %v3237 = vadd.f32 %v2626, %v3236
  %v3238 = vpop.f32.mrb[0].mxu0
  %3239 = vmatprep.mubr.f32.mxu0 0.0
  %3240 = vmatmul.mubr.f32.gmra.mrb[0].mxu0 %v2725
  %v3241 = vpop.f32.mrb[0].mxu0
  %v3242 = vadd.f32 %v2626, %v3241
  %v3243 = vpop.f32.mrb[0].mxu0
  %3244 = vmatprep.mubr.f32.mxu0 0.0
  %3245 = vmatmul.mubr.f32.gmra.mrb[0].mxu0 %v2728
  %v3246 = vpop.f32.mrb[0].mxu0
  %v3247 = vadd.f32 %v2626, %v3246
  %v3248 = vpop.f32.mrb[0].mxu0
  %3249 = vmatprep.mubr.f32.mxu0 0.0
  %3250 = vmatmul.mubr.f32.gmra.mrb[0].mxu0 %v2731
  %v3251 = vpop.f32.mrb[0].mxu0
  %v3252 = vadd.f32 %v2626, %v3251
  %v3253 = vpop.f32.mrb[0].mxu0
  %3254 = vmatprep.mubr.f32.mxu0 0.0
  %3255 = vmatmul.mubr.f32.gmra.mrb[0].mxu0 %v2734
  %v3256 = vpop.f32.mrb[0].mxu0
  %v3257 = vadd.f32 %v2626, %v3256
  %v3258 = vpop.f32.mrb[0].mxu0
  %3259 = vmatprep.mubr.f32.mxu0 0.0
  %3260 = vmatmul.mubr.f32.gmra.mrb[0].mxu0 %v2737
  %v3261 = vpop.f32.mrb[0].mxu0
  %v3262 = vadd.f32 %v2626, %v3261
  %v3263 = vpop.f32.mrb[0].mxu0
  %3264 = vmatprep.mubr.f32.mxu0 0.0
  %3265 = vmatmul.mubr.f32.gmra.mrb[0].mxu0 %v2740
  %v3266 = vpop.f32.mrb[0].mxu0
  %v3267 = vadd.f32 %v2626, %v3266
  %v3268 = vpop.f32.mrb[0].mxu0
  %3269 = vmatprep.mubr.f32.mxu0 0.0
  %3270 = vmatmul.mubr.f32.gmra.mrb[0].mxu0 %v2743
  %v3271 = vpop.f32.mrb[0].mxu0
  %v3272 = vadd.f32 %v2626, %v3271
  %v3273 = vpop.f32.mrb[0].mxu0
  %3274 = vmatprep.mubr.f32.mxu0 0.0
  %3275 = vmatmul.mubr.f32.gmra.mrb[0].mxu0 %v2746
  %v3276 = vpop.f32.mrb[0].mxu0
  %v3277 = vadd.f32 %v2626, %v3276
  %v3278 = vpop.f32.mrb[0].mxu0
  %3279 = vmatprep.mubr.f32.mxu0 0.0
  %3280 = vmatmul.mubr.f32.gmra.mrb[0].mxu0 %v2749
  %v3281 = vpop.f32.mrb[0].mxu0
  %v3282 = vadd.f32 %v2626, %v3281
  %v3283 = vpop.f32.mrb[0].mxu0
  %3284 = vmatprep.mubr.f32.mxu0 0.0
  %3285 = vmatmul.mubr.f32.gmra.mrb[0].mxu0 %v2752
  %v3286 = vpop.f32.mrb[0].mxu0
  %v3287 = vadd.f32 %v2626, %v3286
  %v3288 = vpop.f32.mrb[0].mxu0
  %3289 = vmatprep.mubr.f32.mxu0 0.0
  %3290 = vmatmul.mubr.f32.gmra.mrb[0].mxu0 %v2755
  %v3291 = vpop.f32.mrb[0].mxu0
  %v3292 = vadd.f32 %v2626, %v3291
  %v3293 = vpop.f32.mrb[0].mxu0
  %3294 = vmatprep.mubr.f32.mxu0 0.0
  %3295 = vmatmul.mubr.f32.gmra.mrb[0].mxu0 %v2758
  %v3296 = vpop.f32.mrb[0].mxu0
  %v3297 = vadd.f32 %v2626, %v3296
  %v3298 = vpop.f32.mrb[0].mxu0
  %3299 = vmatprep.mubr.f32.mxu0 0.0
  %3300 = vmatmul.mubr.f32.gmra.mrb[0].mxu0 %v2761
  %v3301 = vpop.f32.mrb[0].mxu0
  %v3302 = vadd.f32 %v2626, %v3301
  %v3303 = vpop.f32.mrb[0].mxu0
  %3304 = vmatprep.mubr.f32.mxu0 0.0
  %3305 = vmatmul.mubr.f32.gmra.mrb[0].mxu0 %v2764
  %v3306 = vpop.f32.mrb[0].mxu0
  %v3307 = vadd.f32 %v2626, %v3306
  %v3308 = vpop.f32.mrb[0].mxu0
  %3309 = vmatprep.mubr.f32.mxu0 0.0
  %3310 = vmatmul.mubr.f32.gmra.mrb[0].mxu0 %v2767
  %v3311 = vpop.f32.mrb[0].mxu0
  %v3312 = vadd.f32 %v2626, %v3311
  %v3313 = vpop.f32.mrb[0].mxu0
  %3314 = vmatprep.mubr.f32.mxu0 0.0
  %3315 = vmatmul.mubr.f32.gmra.mrb[0].mxu0 %v2770
  %v3316 = vpop.f32.mrb[0].mxu0
  %v3317 = vadd.f32 %v2626, %v3316
  %v3318 = vpop.f32.mrb[0].mxu0
  %3319 = vmatprep.mubr.f32.mxu0 0.0
  %3320 = vmatmul.mubr.f32.gmra.mrb[0].mxu0 %v2773
  %v3321 = vpop.f32.mrb[0].mxu0
  %v3322 = vadd.f32 %v2626, %v3321
  %v3323 = vpop.f32.mrb[0].mxu0
  %3324 = vmatprep.mubr.f32.mxu0 0.0
  %3325 = vmatmul.mubr.f32.gmra.mrb[0].mxu0 %v2776
  %v3326 = vpop.f32.mrb[0].mxu0
  %v3327 = vadd.f32 %v2626, %v3326
  %v3328 = vpop.f32.mrb[0].mxu0
  %3329 = vmatprep.mubr.f32.mxu0 0.0
  %3330 = vmatmul.mubr.f32.gmra.mrb[0].mxu0 %v2779
  %v3331 = vpop.f32.mrb[0].mxu0
  %v3332 = vadd.f32 %v2626, %v3331
  %v3333 = vpop.f32.mrb[0].mxu0
  %3334 = vmatprep.mubr.f32.mxu0 0.0
  %3335 = vmatmul.mubr.f32.gmra.mrb[0].mxu0 %v2782
  %v3336 = vpop.f32.mrb[0].mxu0
  %v3337 = vadd.f32 %v2626, %v3336
  %v3338 = vpop.f32.mrb[0].mxu0
  %3339 = vmatprep.mubr.f32.mxu0 0.0
  %3340 = vmatmul.mubr.f32.gmra.mrb[0].mxu0 %v2785
  %v3341 = vpop.f32.mrb[0].mxu0
  %v3342 = vadd.f32 %v2626, %v3341
  %v3343 = vpop.f32.mrb[0].mxu0
  %3344 = vmatprep.mubr.f32.mxu0 0.0
  %3345 = vmatmul.mubr.f32.gmra.mrb[0].mxu0 %v2788
  %v3346 = vpop.f32.mrb[0].mxu0
  %v3347 = vadd.f32 %v2626, %v3346
  %v3348 = vpop.f32.mrb[0].mxu0
  %3349 = vmatprep.mubr.f32.mxu0 0.0
  %3350 = vmatmul.mubr.f32.gmra.mrb[0].mxu0 %v2791
  %v3351 = vpop.f32.mrb[0].mxu0
  %v3352 = vadd.f32 %v2626, %v3351
  %v3353 = vpop.f32.mrb[0].mxu0
  %3354 = vmatprep.mubr.f32.mxu0 0.0
  %3355 = vmatmul.mubr.f32.gmra.mrb[0].mxu0 %v2794
  %v3356 = vpop.f32.mrb[0].mxu0
  %v3357 = vadd.f32 %v2626, %v3356
  %v3358 = vpop.f32.mrb[0].mxu0
  %3359 = vmatprep.mubr.f32.mxu0 0.0
  %3360 = vmatmul.mubr.f32.gmra.mrb[0].mxu0 %v2797
  %v3361 = vpop.f32.mrb[0].mxu0
  %v3362 = vadd.f32 %v2626, %v3361
  %v3363 = vpop.f32.mrb[0].mxu0
  %3364 = vmatprep.mubr.f32.mxu0 0.0
  %3365 = vmatmul.mubr.f32.gmra.mrb[0].mxu0 %v2800
  %v3366 = vpop.f32.mrb[0].mxu0
  %v3367 = vadd.f32 %v2626, %v3366
  %v3368 = vpop.f32.mrb[0].mxu0
  %3369 = vmatprep.mubr.f32.mxu0 0.0
  %3370 = vmatmul.mubr.f32.gmra.mrb[0].mxu0 %v2803
  %v3371 = vpop.f32.mrb[0].mxu0
  %v3372 = vadd.f32 %v2626, %v3371
  %v3373 = vpop.f32.mrb[0].mxu0
  %3374 = vmatprep.mubr.f32.mxu0 0.0
  %3375 = vmatmul.mubr.f32.gmra.mrb[0].mxu0 %v2806
  %v3376 = vpop.f32.mrb[0].mxu0
  %v3377 = vadd.f32 %v2626, %v3376
  %v3378 = vpop.f32.mrb[0].mxu0
  %3379 = vmatprep.mubr.f32.mxu0 0.0
  %3380 = vmatmul.mubr.f32.gmra.mrb[0].mxu0 %v2809
  %v3381 = vpop.f32.mrb[0].mxu0
  %v3382 = vadd.f32 %v2626, %v3381
  %v3383 = vpop.f32.mrb[0].mxu0
  %3384 = vmatprep.mubr.f32.mxu0 0.0
  %3385 = vmatmul.mubr.f32.gmra.mrb[0].mxu0 %v2812
  %v3386 = vpop.f32.mrb[0].mxu0
  %v3387 = vadd.f32 %v2626, %v3386
  %v3388 = vpop.f32.mrb[0].mxu0
  %3389 = vmatprep.mubr.f32.mxu0 0.0
  %3390 = vmatmul.mubr.f32.gmra.mrb[0].mxu0 %v2815
  %v3391 = vpop.f32.mrb[0].mxu0
  %v3392 = vadd.f32 %v2626, %v3391
  %v3393 = vpop.f32.mrb[0].mxu0
  %3394 = vmatprep.mubr.f32.mxu0 0.0
  %3395 = vmatmul.mubr.f32.gmra.mrb[0].mxu0 %v2818
  %v3396 = vpop.f32.mrb[0].mxu0
  %v3397 = vadd.f32 %v2626, %v3396
  %v3398 = vpop.f32.mrb[0].mxu0
  %3399 = vmatprep.mubr.f32.mxu0 0.0
  %3400 = vmatmul.mubr.f32.gmra.mrb[0].mxu0 %v2821
  %v3401 = vpop.f32.mrb[0].mxu0
  %v3402 = vadd.f32 %v2626, %v3401
  %v3403 = vpop.f32.mrb[0].mxu0
  %3404 = vmatprep.mubr.f32.mxu0 0.0
  %3405 = vmatmul.mubr.f32.gmra.mrb[0].mxu0 %v2824
  %v3406 = vpop.f32.mrb[0].mxu0
  %v3407 = vadd.f32 %v2626, %v3406
  %v3408 = vpop.f32.mrb[0].mxu0
  %3409 = vmatprep.mubr.f32.mxu0 0.0
  %3410 = vmatmul.mubr.f32.gmra.mrb[0].mxu0 %v2827
  %v3411 = vpop.f32.mrb[0].mxu0
  %v3412 = vadd.f32 %v2626, %v3411
  %v3413 = vpop.f32.mrb[0].mxu0
  %3414 = vmatprep.mubr.f32.mxu0 0.0
  %3415 = vmatmul.mubr.f32.gmra.mrb[0].mxu0 %v2830
  %v3416 = vpop.f32.mrb[0].mxu0
  %v3417 = vadd.f32 %v2626, %v3416
  %v3418 = vpop.f32.mrb[0].mxu0
  %3419 = vmatprep.mubr.f32.mxu0 0.0
  %3420 = vmatmul.mubr.f32.gmra.mrb[0].mxu0 %v2833
  %v3421 = vpop.f32.mrb[0].mxu0
  %v3422 = vadd.f32 %v2626, %v3421
  %v3423 = vpop.f32.mrb[0].mxu0
  %3424 = vmatprep.mubr.f32.mxu0 0.0
  %3425 = vmatmul.mubr.f32.gmra.mrb[0].mxu0 %v2836
  %v3426 = vpop.f32.mrb[0].mxu0
  %v3427 = vadd.f32 %v2626, %v3426
  %v3428 = vpop.f32.mrb[0].mxu0
  %3429 = vmatprep.mubr.f32.mxu0 0.0
  %3430 = vmatmul.mubr.f32.gmra.mrb[0].mxu0 %v2839
  %v3431 = vpop.f32.mrb[0].mxu0
  %v3432 = vadd.f32 %v2626, %v3431
  %v3433 = vpop.f32.mrb[0].mxu0
  %3434 = vmatprep.mubr.f32.mxu0 0.0
  %3435 = vmatmul.mubr.f32.gmra.mrb[0].mxu0 %v2842
  %v3436 = vpop.f32.mrb[0].mxu0
  %v3437 = vadd.f32 %v2626, %v3436
  %v3438 = vpop.f32.mrb[0].mxu0
  %3439 = vmatprep.mubr.f32.mxu0 0.0
  %3440 = vmatmul.mubr.f32.gmra.mrb[0].mxu0 %v2845
  %v3441 = vpop.f32.mrb[0].mxu0
  %v3442 = vadd.f32 %v2626, %v3441
  %v3443 = vpop.f32.mrb[0].mxu0
  %3444 = vmatprep.mubr.f32.mxu0 0.0
  %3445 = vmatmul.mubr.f32.gmra.mrb[0].mxu0 %v2848
  %v3446 = vpop.f32.mrb[0].mxu0
  %v3447 = vadd.f32 %v2626, %v3446
  %v3448 = vpop.f32.mrb[0].mxu0
  %3449 = vmatprep.mubr.f32.mxu0 0.0
  %3450 = vmatmul.mubr.f32.gmra.mrb[0].mxu0 %v2851
  %v3451 = vpop.f32.mrb[0].mxu0
  %v3452 = vadd.f32 %v2626, %v3451
  %v3453 = vpop.f32.mrb[0].mxu0
  %3454 = vmatprep.mubr.f32.mxu0 0.0
  %3455 = vmatmul.mubr.f32.gmra.mrb[0].mxu0 %v2854
  %v3456 = vpop.f32.mrb[0].mxu0
  %v3457 = vadd.f32 %v2626, %v3456
  %v3458 = vpop.f32.mrb[0].mxu0
  %3459 = vmatprep.mubr.f32.mxu0 0.0
  %3460 = vmatmul.mubr.f32.gmra.mrb[0].mxu0 %v2857
  %v3461 = vpop.f32.mrb[0].mxu0
  %v3462 = vadd.f32 %v2626, %v3461
  %v3463 = vpop.f32.mrb[0].mxu0
  %3464 = vmatprep.mubr.f32.mxu0 0.0
  %3465 = vmatmul.mubr.f32.gmra.mrb[0].mxu0 %v2860
  %v3466 = vpop.f32.mrb[0].mxu0
  %v3467 = vadd.f32 %v2626, %v3466
  %v3468 = vpop.f32.mrb[0].mxu0
  %3469 = vmatprep.mubr.f32.mxu0 0.0
  %3470 = vmatmul.mubr.f32.gmra.mrb[0].mxu0 %v2863
  %v3471 = vpop.f32.mrb[0].mxu0
  %v3472 = vadd.f32 %v2626, %v3471
  %v3473 = vpop.f32.mrb[0].mxu0
  %3474 = vmatprep.mubr.f32.mxu0 0.0
  %3475 = vmatmul.mubr.f32.gmra.mrb[0].mxu0 %v2866
  %v3476 = vpop.f32.mrb[0].mxu0
  %v3477 = vadd.f32 %v2626, %v3476
  %v3478 = vpop.f32.mrb[0].mxu0
  %3479 = vmatprep.mubr.f32.mxu0 0.0
  %3480 = vmatmul.mubr.f32.gmra.mrb[0].mxu0 %v2869
  %v3481 = vpop.f32.mrb[0].mxu0
  %v3482 = vadd.f32 %v2626, %v3481
  %v3483 = vpop.f32.mrb[0].mxu0
  %3484 = vmatprep.mubr.f32.mxu0 0.0
  %3485 = vmatmul.mubr.f32.gmra.mrb[0].mxu0 %v2872
  %v3486 = vpop.f32.mrb[0].mxu0
  %v3487 = vadd.f32 %v2626, %v3486
  %v3488 = vpop.f32.mrb[0].mxu0
  %3489 = vmatprep.mubr.f32.mxu0 0.0
  %3490 = vmatmul.mubr.f32.gmra.mrb[0].mxu0 %v2875
  %v3491 = vpop.f32.mrb[0].mxu0
  %v3492 = vadd.f32 %v2626, %v3491
  %v3493 = vpop.f32.mrb[0].mxu0
  %3494 = vmatprep.mubr.f32.mxu0 0.0
  %3495 = vmatmul.mubr.f32.gmra.mrb[0].mxu0 %v2878
  %v3496 = vpop.f32.mrb[0].mxu0
  %v3497 = vadd.f32 %v2626, %v3496
  %v3498 = vpop.f32.mrb[0].mxu0
  %3499 = vmatprep.mubr.f32.mxu0 0.0
  %3500 = vmatmul.mubr.f32.gmra.mrb[0].mxu0 %v2881
  %v3501 = vpop.f32.mrb[0].mxu0
  %v3502 = vadd.f32 %v2626, %v3501
  %v3503 = vpop.f32.mrb[0].mxu0
  %3504 = vmatprep.mubr.f32.mxu0 0.0
  %3505 = vmatmul.mubr.f32.gmra.mrb[0].mxu0 %v2884
  %v3506 = vpop.f32.mrb[0].mxu0
  %v3507 = vadd.f32 %v2626, %v3506
  %v3508 = vpop.f32.mrb[0].mxu0
  %3509 = vmatprep.mubr.f32.mxu0 0.0
  %3510 = vmatmul.mubr.f32.gmra.mrb[0].mxu0 %v2887
  %v3511 = vpop.f32.mrb[0].mxu0
  %v3512 = vadd.f32 %v2626, %v3511
  %v3513 = vpop.f32.mrb[0].mxu0
  %3514 = vmatprep.mubr.f32.mxu0 0.0
  %3515 = vmatmul.mubr.f32.gmra.mrb[0].mxu0 %v2890
  %v3516 = vpop.f32.mrb[0].mxu0
  %v3517 = vadd.f32 %v2626, %v3516
  %v3518 = vpop.f32.mrb[0].mxu0
  %3519 = vmatprep.mubr.f32.mxu0 0.0
  %3520 = vmatmul.mubr.f32.gmra.mrb[0].mxu0 %v2893
  %v3521 = vpop.f32.mrb[0].mxu0
  %v3522 = vadd.f32 %v2626, %v3521
  %v3523 = vpop.f32.mrb[0].mxu0
  %3524 = vmatprep.mubr.f32.mxu0 0.0
  %3525 = vmatmul.mubr.f32.gmra.mrb[0].mxu0 %v2896
  %v3526 = vpop.f32.mrb[0].mxu0
  %v3527 = vadd.f32 %v2626, %v3526
  %v3528 = vpop.f32.mrb[0].mxu0
  %3529 = vmatprep.mubr.f32.mxu0 0.0
  %3530 = vmatmul.mubr.f32.gmra.mrb[0].mxu0 %v2899
  %v3531 = vpop.f32.mrb[0].mxu0
  %v3532 = vadd.f32 %v2626, %v3531
  %v3533 = vpop.f32.mrb[0].mxu0
  %3534 = vmatprep.mubr.f32.mxu0 0.0
  %3535 = vmatmul.mubr.f32.gmra.mrb[0].mxu0 %v2902
  %v3536 = vpop.f32.mrb[0].mxu0
  %v3537 = vadd.f32 %v2626, %v3536
  %v3538 = vpop.f32.mrb[0].mxu0
  %3539 = vmatprep.mubr.f32.mxu0 0.0
  %3540 = vmatmul.mubr.f32.gmra.mrb[0].mxu0 %v2905
  %v3541 = vpop.f32.mrb[0].mxu0
  %v3542 = vadd.f32 %v2626, %v3541
  %v3543 = vpop.f32.mrb[0].mxu0
  %3544 = vmatprep.mubr.f32.mxu0 0.0
  %3545 = vmatmul.mubr.f32.gmra.mrb[0].mxu0 %v2908
  %v3546 = vpop.f32.mrb[0].mxu0
  %v3547 = vadd.f32 %v2626, %v3546
  %v3548 = vpop.f32.mrb[0].mxu0
  %3549 = vmatprep.mubr.f32.mxu0 0.0
  %3550 = vmatmul.mubr.f32.gmra.mrb[0].mxu0 %v2911
  %v3551 = vpop.f32.mrb[0].mxu0
  %v3552 = vadd.f32 %v2626, %v3551
  %v3553 = vpop.f32.mrb[0].mxu0
  %3554 = vmatprep.mubr.f32.mxu0 0.0
  %3555 = vmatmul.mubr.f32.gmra.mrb[0].mxu0 %v2914
  %v3556 = vpop.f32.mrb[0].mxu0
  %v3557 = vadd.f32 %v2626, %v3556
  %v3558 = vpop.f32.mrb[0].mxu0
  %3559 = vmatprep.mubr.f32.mxu0 0.0
  %3560 = vmatmul.mubr.f32.gmra.mrb[0].mxu0 %v2917
  %v3561 = vpop.f32.mrb[0].mxu0
  %v3562 = vadd.f32 %v2626, %v3561
  %v3563 = vpop.f32.mrb[0].mxu0
  %3564 = vmatprep.mubr.f32.mxu0 0.0
  %3565 = vmatmul.mubr.f32.gmra.mrb[0].mxu0 %v2920
  %v3566 = vpop.f32.mrb[0].mxu0
  %v3567 = vadd.f32 %v2626, %v3566
  %v3568 = vpop.f32.mrb[0].mxu0
  %3569 = vmatprep.mubr.f32.mxu0 0.0
  %3570 = vmatmul.mubr.f32.gmra.mrb[0].mxu0 %v2923
  %v3571 = vpop.f32.mrb[0].mxu0
  %v3572 = vadd.f32 %v2626, %v3571
  %v3573 = vpop.f32.mrb[0].mxu0
  %3574 = vmatprep.mubr.f32.mxu0 0.0
  %3575 = vmatmul.mubr.f32.gmra.mrb[0].mxu0 %v2926
  %v3576 = vpop.f32.mrb[0].mxu0
  %v3577 = vadd.f32 %v2626, %v3576
  %v3578 = vpop.f32.mrb[0].mxu0
  %3579 = vmatprep.mubr.f32.mxu0 0.0
  %3580 = vmatmul.mubr.f32.gmra.mrb[0].mxu0 %v2929
  %v3581 = vpop.f32.mrb[0].mxu0
  %v3582 = vadd.f32 %v2626, %v3581
  %v3583 = vpop.f32.mrb[0].mxu0
  %3584 = vmatprep.mubr.f32.mxu0 0.0
  %3585 = vmatmul.mubr.f32.gmra.mrb[0].mxu0 %v2932
  %v3586 = vpop.f32.mrb[0].mxu0
  %v3587 = vadd.f32 %v2626, %v3586
  %v3588 = vpop.f32.mrb[0].mxu0
  %3589 = vmatprep.mubr.f32.mxu0 0.0
  %3590 = vmatmul.mubr.f32.gmra.mrb[0].mxu0 %v2935
  %v3591 = vpop.f32.mrb[0].mxu0
  %v3592 = vadd.f32 %v2626, %v3591
  %v3593 = vpop.f32.mrb[0].mxu0
  %3594 = vmatprep.mubr.f32.mxu0 0.0
  %3595 = vmatmul.mubr.f32.gmra.mrb[0].mxu0 %v2938
  %v3596 = vpop.f32.mrb[0].mxu0
  %v3597 = vadd.f32 %v2626, %v3596
  %v3598 = vpop.f32.mrb[0].mxu0
  %3599 = vmatprep.mubr.f32.mxu0 0.0
  %3600 = vmatmul.mubr.f32.gmra.mrb[0].mxu0 %v2941
  %v3601 = vpop.f32.mrb[0].mxu0
  %v3602 = vadd.f32 %v2626, %v3601
  %v3603 = vpop.f32.mrb[0].mxu0
  %3604 = vmatprep.mubr.f32.mxu0 0.0
  %3605 = vmatmul.mubr.f32.gmra.mrb[0].mxu0 %v2944
  %v3606 = vpop.f32.mrb[0].mxu0
  %v3607 = vadd.f32 %v2626, %v3606
  %v3608 = vpop.f32.mrb[0].mxu0
  %3609 = vmatprep.mubr.f32.mxu0 0.0
  %3610 = vmatmul.mubr.f32.gmra.mrb[0].mxu0 %v2947
  %v3611 = vpop.f32.mrb[0].mxu0
  %v3612 = vadd.f32 %v2626, %v3611
  %v3613 = vpop.f32.mrb[0].mxu0
  %3614 = vmatprep.mubr.f32.mxu0 0.0
  %3615 = vmatmul.mubr.f32.gmra.mrb[0].mxu0 %v2950
  %v3616 = vpop.f32.mrb[0].mxu0
  %v3617 = vadd.f32 %v2626, %v3616
  %v3618 = vpop.f32.mrb[0].mxu0
  %3619 = vmatprep.mubr.f32.mxu0 0.0
  %3620 = vmatmul.mubr.f32.gmra.mrb[0].mxu0 %v2953
  %v3621 = vpop.f32.mrb[0].mxu0
  %v3622 = vadd.f32 %v2626, %v3621
  %v3623 = vpop.f32.mrb[0].mxu0
  %3624 = vmatprep.mubr.f32.mxu0 0.0
  %3625 = vmatmul.mubr.f32.gmra.mrb[0].mxu0 %v2956
  %v3626 = vpop.f32.mrb[0].mxu0
  %v3627 = vadd.f32 %v2626, %v3626
  %v3628 = vpop.f32.mrb[0].mxu0
  %3629 = vmatprep.mubr.f32.mxu0 0.0
  %3630 = vmatmul.mubr.f32.gmra.mrb[0].mxu0 %v2959
  %v3631 = vpop.f32.mrb[0].mxu0
  %v3632 = vadd.f32 %v2626, %v3631
  %v3633 = vpop.f32.mrb[0].mxu0
  %3634 = vmatprep.mubr.f32.mxu0 0.0
  %3635 = vmatmul.mubr.f32.gmra.mrb[0].mxu0 %v2962
  %v3636 = vpop.f32.mrb[0].mxu0
  %v3637 = vadd.f32 %v2626, %v3636
  %v3638 = vpop.f32.mrb[0].mxu0
  %3639 = vmatprep.mubr.f32.mxu0 0.0
  %3640 = vmatmul.mubr.f32.gmra.mrb[0].mxu0 %v2965
  %v3641 = vpop.f32.mrb[0].mxu0
  %v3642 = vadd.f32 %v2626, %v3641
  %v3643 = vpop.f32.mrb[0].mxu0
  %3644 = vmatprep.mubr.f32.mxu0 0.0
  %3645 = vmatmul.mubr.f32.gmra.mrb[0].mxu0 %v2968
  %v3646 = vpop.f32.mrb[0].mxu0
  %v3647 = vadd.f32 %v2626, %v3646
  %v3648 = vpop.f32.mrb[0].mxu0
  %3649 = vmatprep.mubr.f32.mxu0 0.0
  %3650 = vmatmul.mubr.f32.gmra.mrb[0].mxu0 %v2971
  %v3651 = vpop.f32.mrb[0].mxu0
  %v3652 = vadd.f32 %v2626, %v3651
  %v3653 = vpop.f32.mrb[0].mxu0
  %3654 = vmatprep.mubr.f32.mxu0 0.0
  %3655 = vmatmul.mubr.f32.gmra.mrb[0].mxu0 %v2974
  %v3656 = vpop.f32.mrb[0].mxu0
  %v3657 = vadd.f32 %v2626, %v3656
  %v3658 = vpop.f32.mrb[0].mxu0
  %3659 = vmatprep.mubr.f32.mxu0 0.0
  %3660 = vmatmul.mubr.f32.gmra.mrb[0].mxu0 %v2977
  %v3661 = vpop.f32.mrb[0].mxu0
  %v3662 = vadd.f32 %v2626, %v3661
  %v3663 = vpop.f32.mrb[0].mxu0
  %3664 = vmatprep.mubr.f32.mxu0 0.0
  %3665 = vmatmul.mubr.f32.gmra.mrb[0].mxu0 %v2980
  %v3666 = vpop.f32.mrb[0].mxu0
  %v3667 = vadd.f32 %v2626, %v3666
  %v3668 = vpop.f32.mrb[0].mxu0
  %3669 = vmatprep.mubr.f32.mxu0 0.0
  %3670 = vmatmul.mubr.f32.gmra.mrb[0].mxu0 %v2983
  %v3671 = vpop.f32.mrb[0].mxu0
  %v3672 = vadd.f32 %v2626, %v3671
  %v3673 = vpop.f32.mrb[0].mxu0
  %3674 = vmatprep.mubr.f32.mxu0 0.0
  %3675 = vmatmul.mubr.f32.gmra.mrb[0].mxu0 %v2986
  %v3676 = vpop.f32.mrb[0].mxu0
  %v3677 = vadd.f32 %v2626, %v3676
  %v3678 = vpop.f32.mrb[0].mxu0
  %3679 = vmatprep.mubr.f32.mxu0 0.0
  %3680 = vmatmul.mubr.f32.gmra.mrb[0].mxu0 %v2989
  %v3681 = vpop.f32.mrb[0].mxu0
  %v3682 = vadd.f32 %v2626, %v3681
  %v3683 = vpop.f32.mrb[0].mxu0
  %3684 = vmatprep.mubr.f32.mxu0 0.0
  %3685 = vmatmul.mubr.f32.gmra.mrb[0].mxu0 %v2992
  %v3686 = vpop.f32.mrb[0].mxu0
  %v3687 = vadd.f32 %v2626, %v3686
  %v3688 = vpop.f32.mrb[0].mxu0
  %3689 = vmatprep.mubr.f32.mxu0 0.0
  %3690 = vmatmul.mubr.f32.gmra.mrb[0].mxu0 %v2995
  %v3691 = vpop.f32.mrb[0].mxu0
  %v3692 = vadd.f32 %v2626, %v3691
  %v3693 = vpop.f32.mrb[0].mxu0
  %3694 = vmatprep.mubr.f32.mxu0 0.0
  %3695 = vmatmul.mubr.f32.gmra.mrb[0].mxu0 %v2998
  %v3696 = vpop.f32.mrb[0].mxu0
  %v3697 = vadd.f32 %v2626, %v3696
  %v3698 = vpop.f32.mrb[0].mxu0
  %3699 = vmatprep.mubr.f32.mxu0 0.0
  %3700 = vmatmul.mubr.f32.gmra.mrb[0].mxu0 %v3001
  %v3701 = vpop.f32.mrb[0].mxu0
  %v3702 = vadd.f32 %v2626, %v3701
  %v3703 = vpop.f32.mrb[0].mxu0
  %3704 = vmatprep.mubr.f32.mxu0 0.0
  %3705 = vmatmul.mubr.f32.gmra.mrb[0].mxu0 %v3004
  %v3706 = vpop.f32.mrb[0].mxu0
  %v3707 = vadd.f32 %v2626, %v3706
  %v3708 = vpop.f32.mrb[0].mxu0
  %3709 = vmatprep.mubr.f32.mxu0 0.0
  %3710 = vmatmul.mubr.f32.gmra.mrb[0].mxu0 %v3007
  %v3711 = vpop.f32.mrb[0].mxu0
  %v3712 = vadd.f32 %v2626, %v3711
  %v3713 = vpop.f32.mrb[0].mxu0
  %3714 = vmatprep.mubr.f32.mxu0 0.0
  %3715 = vmatmul.mubr.f32.gmra.mrb[0].mxu0 %v3010
  %v3716 = vpop.f32.mrb[0].mxu0
  %v3717 = vadd.f32 %v2626, %v3716
  %v3718 = vpop.f32.mrb[0].mxu0
  %3719 = vdwg.mxu0
  %v3720 = vmax.f32 %v3082, 0.0
  %v3721 = vmax.f32 %v3087, 0.0
  %v3722 = vmax.f32 %v3092, 0.0
  %v3723 = vmax.f32 %v3097, 0.0
  %v3724 = vmax.f32 %v3102, 0.0
  %v3725 = vmax.f32 %v3107, 0.0
  %v3726 = vmax.f32 %v3112, 0.0
  %v3727 = vmax.f32 %v3117, 0.0
  %v3728 = vmax.f32 %v3122, 0.0
  %v3729 = vmax.f32 %v3127, 0.0
  %v3730 = vmax.f32 %v3132, 0.0
  %v3731 = vmax.f32 %v3137, 0.0
  %v3732 = vmax.f32 %v3142, 0.0
  %v3733 = vmax.f32 %v3147, 0.0
  %v3734 = vmax.f32 %v3152, 0.0
  %v3735 = vmax.f32 %v3157, 0.0
  %v3736 = vmax.f32 %v3162, 0.0
  %v3737 = vmax.f32 %v3167, 0.0
  %v3738 = vmax.f32 %v3172, 0.0
  %v3739 = vmax.f32 %v3177, 0.0
  %v3740 = vmax.f32 %v3182, 0.0
  %v3741 = vmax.f32 %v3187, 0.0
  %v3742 = vmax.f32 %v3192, 0.0
  %v3743 = vmax.f32 %v3197, 0.0
  %v3744 = vmax.f32 %v3202, 0.0
  %v3745 = vmax.f32 %v3207, 0.0
  %v3746 = vmax.f32 %v3212, 0.0
  %v3747 = vmax.f32 %v3217, 0.0
  %v3748 = vmax.f32 %v3222, 0.0
  %v3749 = vmax.f32 %v3227, 0.0
  %v3750 = vmax.f32 %v3232, 0.0
  %v3751 = vmax.f32 %v3237, 0.0
  %v3752 = vmax.f32 %v3242, 0.0
  %v3753 = vmax.f32 %v3247, 0.0
  %v3754 = vmax.f32 %v3252, 0.0
  %v3755 = vmax.f32 %v3257, 0.0
  %v3756 = vmax.f32 %v3262, 0.0
  %v3757 = vmax.f32 %v3267, 0.0
  %v3758 = vmax.f32 %v3272, 0.0
  %v3759 = vmax.f32 %v3277, 0.0
  %v3760 = vmax.f32 %v3282, 0.0
  %v3761 = vmax.f32 %v3287, 0.0
  %v3762 = vmax.f32 %v3292, 0.0
  %v3763 = vmax.f32 %v3297, 0.0
  %v3764 = vmax.f32 %v3302, 0.0
  %v3765 = vmax.f32 %v3307, 0.0
  %v3766 = vmax.f32 %v3312, 0.0
  %v3767 = vmax.f32 %v3317, 0.0
  %v3768 = vmax.f32 %v3322, 0.0
  %v3769 = vmax.f32 %v3327, 0.0
  %v3770 = vmax.f32 %v3332, 0.0
  %v3771 = vmax.f32 %v3337, 0.0
  %v3772 = vmax.f32 %v3342, 0.0
  %v3773 = vmax.f32 %v3347, 0.0
  %v3774 = vmax.f32 %v3352, 0.0
  %v3775 = vmax.f32 %v3357, 0.0
  %v3776 = vmax.f32 %v3362, 0.0
  %v3777 = vmax.f32 %v3367, 0.0
  %v3778 = vmax.f32 %v3372, 0.0
  %v3779 = vmax.f32 %v3377, 0.0
  %v3780 = vmax.f32 %v3382, 0.0
  %v3781 = vmax.f32 %v3387, 0.0
  %v3782 = vmax.f32 %v3392, 0.0
  %v3783 = vmax.f32 %v3397, 0.0
  %v3784 = vmax.f32 %v3402, 0.0
  %v3785 = vmax.f32 %v3407, 0.0
  %v3786 = vmax.f32 %v3412, 0.0
  %v3787 = vmax.f32 %v3417, 0.0
  %v3788 = vmax.f32 %v3422, 0.0
  %v3789 = vmax.f32 %v3427, 0.0
  %v3790 = vmax.f32 %v3432, 0.0
  %v3791 = vmax.f32 %v3437, 0.0
  %v3792 = vmax.f32 %v3442, 0.0
  %v3793 = vmax.f32 %v3447, 0.0
  %v3794 = vmax.f32 %v3452, 0.0
  %v3795 = vmax.f32 %v3457, 0.0
  %v3796 = vmax.f32 %v3462, 0.0
  %v3797 = vmax.f32 %v3467, 0.0
  %v3798 = vmax.f32 %v3472, 0.0
  %v3799 = vmax.f32 %v3477, 0.0
  %v3800 = vmax.f32 %v3482, 0.0
  %v3801 = vmax.f32 %v3487, 0.0
  %v3802 = vmax.f32 %v3492, 0.0
  %v3803 = vmax.f32 %v3497, 0.0
  %v3804 = vmax.f32 %v3502, 0.0
  %v3805 = vmax.f32 %v3507, 0.0
  %v3806 = vmax.f32 %v3512, 0.0
  %v3807 = vmax.f32 %v3517, 0.0
  %v3808 = vmax.f32 %v3522, 0.0
  %v3809 = vmax.f32 %v3527, 0.0
  %v3810 = vmax.f32 %v3532, 0.0
  %v3811 = vmax.f32 %v3537, 0.0
  %v3812 = vmax.f32 %v3542, 0.0
  %v3813 = vmax.f32 %v3547, 0.0
  %v3814 = vmax.f32 %v3552, 0.0
  %v3815 = vmax.f32 %v3557, 0.0
  %v3816 = vmax.f32 %v3562, 0.0
  %v3817 = vmax.f32 %v3567, 0.0
  %v3818 = vmax.f32 %v3572, 0.0
  %v3819 = vmax.f32 %v3577, 0.0
  %v3820 = vmax.f32 %v3582, 0.0
  %v3821 = vmax.f32 %v3587, 0.0
  %v3822 = vmax.f32 %v3592, 0.0
  %v3823 = vmax.f32 %v3597, 0.0
  %v3824 = vmax.f32 %v3602, 0.0
  %v3825 = vmax.f32 %v3607, 0.0
  %v3826 = vmax.f32 %v3612, 0.0
  %v3827 = vmax.f32 %v3617, 0.0
  %v3828 = vmax.f32 %v3622, 0.0
  %v3829 = vmax.f32 %v3627, 0.0
  %v3830 = vmax.f32 %v3632, 0.0
  %v3831 = vmax.f32 %v3637, 0.0
  %v3832 = vmax.f32 %v3642, 0.0
  %v3833 = vmax.f32 %v3647, 0.0
  %v3834 = vmax.f32 %v3652, 0.0
  %v3835 = vmax.f32 %v3657, 0.0
  %v3836 = vmax.f32 %v3662, 0.0
  %v3837 = vmax.f32 %v3667, 0.0
  %v3838 = vmax.f32 %v3672, 0.0
  %v3839 = vmax.f32 %v3677, 0.0
  %v3840 = vmax.f32 %v3682, 0.0
  %v3841 = vmax.f32 %v3687, 0.0
  %v3842 = vmax.f32 %v3692, 0.0
  %v3843 = vmax.f32 %v3697, 0.0
  %v3844 = vmax.f32 %v3702, 0.0
  %v3845 = vmax.f32 %v3707, 0.0
  %v3846 = vmax.f32 %v3712, 0.0
  %v3847 = vmax.f32 %v3717, 0.0
  %s3848 = scalar_lea.vmem %s1, 96
  %v3849 = vld [vmem:[%s3848] sm:$0xff]
  %v3850 = vld [vmem:[%s3848 + $0x8] sm:$0xff]
  %s3851 = scalar_lea.vmem %s2, 3
  %v3852 = vld [vmem:[%s3851] sm:$0x1]
  %v3854 = vlaneseq
  %v3855 = vshrl.u32 %v3854, 7
  %v3856 = vsub.s32 0, %v3855
  %v3857 = vrot.slane %v3852, %v3856
  %vm3859 = vcmask 64512
  %v3861 = vsel %vm3859, %v3720, 0
  %v3864 = vsel %vm3859, %v3721, 0
  %v3867 = vsel %vm3859, %v3722, 0
  %v3870 = vsel %vm3859, %v3723, 0
  %v3873 = vsel %vm3859, %v3724, 0
  %v3876 = vsel %vm3859, %v3725, 0
  %v3879 = vsel %vm3859, %v3726, 0
  %v3882 = vsel %vm3859, %v3727, 0
  %v3885 = vsel %vm3859, %v3728, 0
  %v3888 = vsel %vm3859, %v3729, 0
  %v3891 = vsel %vm3859, %v3730, 0
  %v3894 = vsel %vm3859, %v3731, 0
  %v3897 = vsel %vm3859, %v3732, 0
  %v3900 = vsel %vm3859, %v3733, 0
  %v3903 = vsel %vm3859, %v3734, 0
  %v3906 = vsel %vm3859, %v3735, 0
  %v3909 = vsel %vm3859, %v3736, 0
  %v3912 = vsel %vm3859, %v3737, 0
  %v3915 = vsel %vm3859, %v3738, 0
  %v3918 = vsel %vm3859, %v3739, 0
  %v3921 = vsel %vm3859, %v3740, 0
  %v3924 = vsel %vm3859, %v3741, 0
  %v3927 = vsel %vm3859, %v3742, 0
  %v3930 = vsel %vm3859, %v3743, 0
  %v3933 = vsel %vm3859, %v3744, 0
  %v3936 = vsel %vm3859, %v3745, 0
  %v3939 = vsel %vm3859, %v3746, 0
  %v3942 = vsel %vm3859, %v3747, 0
  %v3945 = vsel %vm3859, %v3748, 0
  %v3948 = vsel %vm3859, %v3749, 0
  %v3951 = vsel %vm3859, %v3750, 0
  %v3954 = vsel %vm3859, %v3751, 0
  %v3957 = vsel %vm3859, %v3752, 0
  %v3960 = vsel %vm3859, %v3753, 0
  %v3963 = vsel %vm3859, %v3754, 0
  %v3966 = vsel %vm3859, %v3755, 0
  %v3969 = vsel %vm3859, %v3756, 0
  %v3972 = vsel %vm3859, %v3757, 0
  %v3975 = vsel %vm3859, %v3758, 0
  %v3978 = vsel %vm3859, %v3759, 0
  %v3981 = vsel %vm3859, %v3760, 0
  %v3984 = vsel %vm3859, %v3761, 0
  %v3987 = vsel %vm3859, %v3762, 0
  %v3990 = vsel %vm3859, %v3763, 0
  %v3993 = vsel %vm3859, %v3764, 0
  %v3996 = vsel %vm3859, %v3765, 0
  %v3999 = vsel %vm3859, %v3766, 0
  %v4002 = vsel %vm3859, %v3767, 0
  %v4005 = vsel %vm3859, %v3768, 0
  %v4008 = vsel %vm3859, %v3769, 0
  %v4011 = vsel %vm3859, %v3770, 0
  %v4014 = vsel %vm3859, %v3771, 0
  %v4017 = vsel %vm3859, %v3772, 0
  %v4020 = vsel %vm3859, %v3773, 0
  %v4023 = vsel %vm3859, %v3774, 0
  %v4026 = vsel %vm3859, %v3775, 0
  %v4029 = vsel %vm3859, %v3776, 0
  %v4032 = vsel %vm3859, %v3777, 0
  %v4035 = vsel %vm3859, %v3778, 0
  %v4038 = vsel %vm3859, %v3779, 0
  %v4041 = vsel %vm3859, %v3780, 0
  %v4044 = vsel %vm3859, %v3781, 0
  %v4047 = vsel %vm3859, %v3782, 0
  %v4050 = vsel %vm3859, %v3783, 0
  %v4053 = vsel %vm3859, %v3784, 0
  %v4056 = vsel %vm3859, %v3785, 0
  %v4059 = vsel %vm3859, %v3786, 0
  %v4062 = vsel %vm3859, %v3787, 0
  %v4065 = vsel %vm3859, %v3788, 0
  %v4068 = vsel %vm3859, %v3789, 0
  %v4071 = vsel %vm3859, %v3790, 0
  %v4074 = vsel %vm3859, %v3791, 0
  %v4077 = vsel %vm3859, %v3792, 0
  %v4080 = vsel %vm3859, %v3793, 0
  %v4083 = vsel %vm3859, %v3794, 0
  %v4086 = vsel %vm3859, %v3795, 0
  %v4089 = vsel %vm3859, %v3796, 0
  %v4092 = vsel %vm3859, %v3797, 0
  %v4095 = vsel %vm3859, %v3798, 0
  %v4098 = vsel %vm3859, %v3799, 0
  %v4101 = vsel %vm3859, %v3800, 0
  %v4104 = vsel %vm3859, %v3801, 0
  %v4107 = vsel %vm3859, %v3802, 0
  %v4110 = vsel %vm3859, %v3803, 0
  %v4113 = vsel %vm3859, %v3804, 0
  %v4116 = vsel %vm3859, %v3805, 0
  %v4119 = vsel %vm3859, %v3806, 0
  %v4122 = vsel %vm3859, %v3807, 0
  %v4125 = vsel %vm3859, %v3808, 0
  %v4128 = vsel %vm3859, %v3809, 0
  %v4131 = vsel %vm3859, %v3810, 0
  %v4134 = vsel %vm3859, %v3811, 0
  %v4137 = vsel %vm3859, %v3812, 0
  %v4140 = vsel %vm3859, %v3813, 0
  %v4143 = vsel %vm3859, %v3814, 0
  %v4146 = vsel %vm3859, %v3815, 0
  %v4149 = vsel %vm3859, %v3816, 0
  %v4152 = vsel %vm3859, %v3817, 0
  %v4155 = vsel %vm3859, %v3818, 0
  %v4158 = vsel %vm3859, %v3819, 0
  %v4161 = vsel %vm3859, %v3820, 0
  %v4164 = vsel %vm3859, %v3821, 0
  %v4167 = vsel %vm3859, %v3822, 0
  %v4170 = vsel %vm3859, %v3823, 0
  %v4173 = vsel %vm3859, %v3824, 0
  %v4176 = vsel %vm3859, %v3825, 0
  %v4179 = vsel %vm3859, %v3826, 0
  %v4182 = vsel %vm3859, %v3827, 0
  %v4185 = vsel %vm3859, %v3828, 0
  %v4188 = vsel %vm3859, %v3829, 0
  %v4191 = vsel %vm3859, %v3830, 0
  %v4194 = vsel %vm3859, %v3831, 0
  %v4197 = vsel %vm3859, %v3832, 0
  %v4200 = vsel %vm3859, %v3833, 0
  %v4203 = vsel %vm3859, %v3834, 0
  %v4206 = vsel %vm3859, %v3835, 0
  %v4209 = vsel %vm3859, %v3836, 0
  %v4212 = vsel %vm3859, %v3837, 0
  %v4215 = vsel %vm3859, %v3838, 0
  %v4218 = vsel %vm3859, %v3839, 0
  %v4221 = vsel %vm3859, %v3840, 0
  %v4224 = vsel %vm3859, %v3841, 0
  %v4227 = vsel %vm3859, %v3842, 0
  %v4230 = vsel %vm3859, %v3843, 0
  %v4233 = vsel %vm3859, %v3844, 0
  %v4236 = vsel %vm3859, %v3845, 0
  %v4239 = vsel %vm3859, %v3846, 0
  %v4242 = vsel %vm3859, %v3847, 0
  %v4245 = vsel %vm3859, %v3849, 0
  %v4248 = vsel %vm3859, %v3850, 0
  %4250 = vmatprep.subr.mxu0 0.0
  %4251 = vmatpush1.xpose.msra.mxu0 %v4245
  %4252 = vmatprep.subr.mxu0 0.0
  %4253 = vmatpush1.xpose.msra.mxu0 %v4248
  %4254 = vmatprep.subr.mxu0 0.0
  %4255 = vmatpush1.xpose.msra.mxu0 0.0
  %4256 = vmatprep.subr.mxu0 0.0
  %4257 = vmatpush1.xpose.msra.mxu0 0.0
  %4258 = vmatprep.subr.mxu0 0.0
  %4259 = vmatpush1.xpose.msra.mxu0 0.0
  %4260 = vmatprep.subr.mxu0 0.0
  %4261 = vmatpush1.xpose.msra.mxu0 0.0
  %4262 = vmatprep.subr.mxu0 0.0
  %4263 = vmatpush1.xpose.msra.mxu0 0.0
  %4264 = vmatprep.subr.mxu0 0.0
  %4265 = vmatpush1.xpose.msra.mxu0 0.0
  %4266 = vmatprep.subr.mxu0 0.0
  %4267 = vmatpush1.xpose.msra.mxu0 0.0
  %4268 = vmatprep.subr.mxu0 0.0
  %4269 = vmatpush1.xpose.msra.mxu0 0.0
  %4270 = vmatprep.subr.mxu0 0.0
  %4271 = vmatpush1.xpose.msra.mxu0 0.0
  %4272 = vmatprep.subr.mxu0 0.0
  %4273 = vmatpush1.xpose.msra.mxu0 0.0
  %4274 = vmatprep.subr.mxu0 0.0
  %4275 = vmatpush1.xpose.msra.mxu0 0.0
  %4276 = vmatprep.subr.mxu0 0.0
  %4277 = vmatpush1.xpose.msra.mxu0 0.0
  %4278 = vmatprep.subr.mxu0 0.0
  %4279 = vmatpush1.xpose.msra.mxu0 0.0
  %4280 = vmatprep.subr.mxu0 0.0
  %4281 = vmatpush1.xpose.msra.mxu0 0.0
  %4282 = vmatprep.subr.mxu0 0.0
  %4283 = vmatpush1.xpose.msra.mxu0 0.0
  %4284 = vmatprep.subr.mxu0 0.0
  %4285 = vmatpush1.xpose.msra.mxu0 0.0
  %4286 = vmatprep.subr.mxu0 0.0
  %4287 = vmatpush1.xpose.msra.mxu0 0.0
  %4288 = vmatprep.subr.mxu0 0.0
  %4289 = vmatpush1.xpose.msra.mxu0 0.0
  %4290 = vmatprep.subr.mxu0 0.0
  %4291 = vmatpush1.xpose.msra.mxu0 0.0
  %4292 = vmatprep.subr.mxu0 0.0
  %4293 = vmatpush1.xpose.msra.mxu0 0.0
  %4294 = vmatprep.subr.mxu0 0.0
  %4295 = vmatpush1.xpose.msra.mxu0 0.0
  %4296 = vmatprep.subr.mxu0 0.0
  %4297 = vmatpush1.xpose.msra.mxu0 0.0
  %4298 = vmatprep.subr.mxu0 0.0
  %4299 = vmatpush1.xpose.msra.mxu0 0.0
  %4300 = vmatprep.subr.mxu0 0.0
  %4301 = vmatpush1.xpose.msra.mxu0 0.0
  %4302 = vmatprep.subr.mxu0 0.0
  %4303 = vmatpush1.xpose.msra.mxu0 0.0
  %4304 = vmatprep.subr.mxu0 0.0
  %4305 = vmatpush1.xpose.msra.mxu0 0.0
  %4306 = vmatprep.subr.mxu0 0.0
  %4307 = vmatpush1.xpose.msra.mxu0 0.0
  %4308 = vmatprep.subr.mxu0 0.0
  %4309 = vmatpush1.xpose.msra.mxu0 0.0
  %4310 = vmatprep.subr.mxu0 0.0
  %4311 = vmatpush1.xpose.msra.mxu0 0.0
  %4312 = vmatprep.subr.mxu0 0.0
  %4313 = vmatpush1.xpose.msra.mxu0 0.0
  %4314 = vmatprep.mubr.f32.mxu0 0.0
  %4315 = vmatmul.mubr.f32.gmra.mrb[0].mxu0 %v3861
  %v4316 = vpop.f32.mrb[0].mxu0
  %v4317 = vadd.f32 %v3857, %v4316
  %v4318 = vpop.f32.mrb[0].mxu0
  %4319 = vmatprep.mubr.f32.mxu0 0.0
  %4320 = vmatmul.mubr.f32.gmra.mrb[0].mxu0 %v3864
  %v4321 = vpop.f32.mrb[0].mxu0
  %v4322 = vadd.f32 %v3857, %v4321
  %v4323 = vpop.f32.mrb[0].mxu0
  %4324 = vmatprep.mubr.f32.mxu0 0.0
  %4325 = vmatmul.mubr.f32.gmra.mrb[0].mxu0 %v3867
  %v4326 = vpop.f32.mrb[0].mxu0
  %v4327 = vadd.f32 %v3857, %v4326
  %v4328 = vpop.f32.mrb[0].mxu0
  %4329 = vmatprep.mubr.f32.mxu0 0.0
  %4330 = vmatmul.mubr.f32.gmra.mrb[0].mxu0 %v3870
  %v4331 = vpop.f32.mrb[0].mxu0
  %v4332 = vadd.f32 %v3857, %v4331
  %v4333 = vpop.f32.mrb[0].mxu0
  %4334 = vmatprep.mubr.f32.mxu0 0.0
  %4335 = vmatmul.mubr.f32.gmra.mrb[0].mxu0 %v3873
  %v4336 = vpop.f32.mrb[0].mxu0
  %v4337 = vadd.f32 %v3857, %v4336
  %v4338 = vpop.f32.mrb[0].mxu0
  %4339 = vmatprep.mubr.f32.mxu0 0.0
  %4340 = vmatmul.mubr.f32.gmra.mrb[0].mxu0 %v3876
  %v4341 = vpop.f32.mrb[0].mxu0
  %v4342 = vadd.f32 %v3857, %v4341
  %v4343 = vpop.f32.mrb[0].mxu0
  %4344 = vmatprep.mubr.f32.mxu0 0.0
  %4345 = vmatmul.mubr.f32.gmra.mrb[0].mxu0 %v3879
  %v4346 = vpop.f32.mrb[0].mxu0
  %v4347 = vadd.f32 %v3857, %v4346
  %v4348 = vpop.f32.mrb[0].mxu0
  %4349 = vmatprep.mubr.f32.mxu0 0.0
  %4350 = vmatmul.mubr.f32.gmra.mrb[0].mxu0 %v3882
  %v4351 = vpop.f32.mrb[0].mxu0
  %v4352 = vadd.f32 %v3857, %v4351
  %v4353 = vpop.f32.mrb[0].mxu0
  %4354 = vmatprep.mubr.f32.mxu0 0.0
  %4355 = vmatmul.mubr.f32.gmra.mrb[0].mxu0 %v3885
  %v4356 = vpop.f32.mrb[0].mxu0
  %v4357 = vadd.f32 %v3857, %v4356
  %v4358 = vpop.f32.mrb[0].mxu0
  %4359 = vmatprep.mubr.f32.mxu0 0.0
  %4360 = vmatmul.mubr.f32.gmra.mrb[0].mxu0 %v3888
  %v4361 = vpop.f32.mrb[0].mxu0
  %v4362 = vadd.f32 %v3857, %v4361
  %v4363 = vpop.f32.mrb[0].mxu0
  %4364 = vmatprep.mubr.f32.mxu0 0.0
  %4365 = vmatmul.mubr.f32.gmra.mrb[0].mxu0 %v3891
  %v4366 = vpop.f32.mrb[0].mxu0
  %v4367 = vadd.f32 %v3857, %v4366
  %v4368 = vpop.f32.mrb[0].mxu0
  %4369 = vmatprep.mubr.f32.mxu0 0.0
  %4370 = vmatmul.mubr.f32.gmra.mrb[0].mxu0 %v3894
  %v4371 = vpop.f32.mrb[0].mxu0
  %v4372 = vadd.f32 %v3857, %v4371
  %v4373 = vpop.f32.mrb[0].mxu0
  %4374 = vmatprep.mubr.f32.mxu0 0.0
  %4375 = vmatmul.mubr.f32.gmra.mrb[0].mxu0 %v3897
  %v4376 = vpop.f32.mrb[0].mxu0
  %v4377 = vadd.f32 %v3857, %v4376
  %v4378 = vpop.f32.mrb[0].mxu0
  %4379 = vmatprep.mubr.f32.mxu0 0.0
  %4380 = vmatmul.mubr.f32.gmra.mrb[0].mxu0 %v3900
  %v4381 = vpop.f32.mrb[0].mxu0
  %v4382 = vadd.f32 %v3857, %v4381
  %v4383 = vpop.f32.mrb[0].mxu0
  %4384 = vmatprep.mubr.f32.mxu0 0.0
  %4385 = vmatmul.mubr.f32.gmra.mrb[0].mxu0 %v3903
  %v4386 = vpop.f32.mrb[0].mxu0
  %v4387 = vadd.f32 %v3857, %v4386
  %v4388 = vpop.f32.mrb[0].mxu0
  %4389 = vmatprep.mubr.f32.mxu0 0.0
  %4390 = vmatmul.mubr.f32.gmra.mrb[0].mxu0 %v3906
  %v4391 = vpop.f32.mrb[0].mxu0
  %v4392 = vadd.f32 %v3857, %v4391
  %v4393 = vpop.f32.mrb[0].mxu0
  %4394 = vmatprep.mubr.f32.mxu0 0.0
  %4395 = vmatmul.mubr.f32.gmra.mrb[0].mxu0 %v3909
  %v4396 = vpop.f32.mrb[0].mxu0
  %v4397 = vadd.f32 %v3857, %v4396
  %v4398 = vpop.f32.mrb[0].mxu0
  %4399 = vmatprep.mubr.f32.mxu0 0.0
  %4400 = vmatmul.mubr.f32.gmra.mrb[0].mxu0 %v3912
  %v4401 = vpop.f32.mrb[0].mxu0
  %v4402 = vadd.f32 %v3857, %v4401
  %v4403 = vpop.f32.mrb[0].mxu0
  %4404 = vmatprep.mubr.f32.mxu0 0.0
  %4405 = vmatmul.mubr.f32.gmra.mrb[0].mxu0 %v3915
  %v4406 = vpop.f32.mrb[0].mxu0
  %v4407 = vadd.f32 %v3857, %v4406
  %v4408 = vpop.f32.mrb[0].mxu0
  %4409 = vmatprep.mubr.f32.mxu0 0.0
  %4410 = vmatmul.mubr.f32.gmra.mrb[0].mxu0 %v3918
  %v4411 = vpop.f32.mrb[0].mxu0
  %v4412 = vadd.f32 %v3857, %v4411
  %v4413 = vpop.f32.mrb[0].mxu0
  %4414 = vmatprep.mubr.f32.mxu0 0.0
  %4415 = vmatmul.mubr.f32.gmra.mrb[0].mxu0 %v3921
  %v4416 = vpop.f32.mrb[0].mxu0
  %v4417 = vadd.f32 %v3857, %v4416
  %v4418 = vpop.f32.mrb[0].mxu0
  %4419 = vmatprep.mubr.f32.mxu0 0.0
  %4420 = vmatmul.mubr.f32.gmra.mrb[0].mxu0 %v3924
  %v4421 = vpop.f32.mrb[0].mxu0
  %v4422 = vadd.f32 %v3857, %v4421
  %v4423 = vpop.f32.mrb[0].mxu0
  %4424 = vmatprep.mubr.f32.mxu0 0.0
  %4425 = vmatmul.mubr.f32.gmra.mrb[0].mxu0 %v3927
  %v4426 = vpop.f32.mrb[0].mxu0
  %v4427 = vadd.f32 %v3857, %v4426
  %v4428 = vpop.f32.mrb[0].mxu0
  %4429 = vmatprep.mubr.f32.mxu0 0.0
  %4430 = vmatmul.mubr.f32.gmra.mrb[0].mxu0 %v3930
  %v4431 = vpop.f32.mrb[0].mxu0
  %v4432 = vadd.f32 %v3857, %v4431
  %v4433 = vpop.f32.mrb[0].mxu0
  %4434 = vmatprep.mubr.f32.mxu0 0.0
  %4435 = vmatmul.mubr.f32.gmra.mrb[0].mxu0 %v3933
  %v4436 = vpop.f32.mrb[0].mxu0
  %v4437 = vadd.f32 %v3857, %v4436
  %v4438 = vpop.f32.mrb[0].mxu0
  %4439 = vmatprep.mubr.f32.mxu0 0.0
  %4440 = vmatmul.mubr.f32.gmra.mrb[0].mxu0 %v3936
  %v4441 = vpop.f32.mrb[0].mxu0
  %v4442 = vadd.f32 %v3857, %v4441
  %v4443 = vpop.f32.mrb[0].mxu0
  %4444 = vmatprep.mubr.f32.mxu0 0.0
  %4445 = vmatmul.mubr.f32.gmra.mrb[0].mxu0 %v3939
  %v4446 = vpop.f32.mrb[0].mxu0
  %v4447 = vadd.f32 %v3857, %v4446
  %v4448 = vpop.f32.mrb[0].mxu0
  %4449 = vmatprep.mubr.f32.mxu0 0.0
  %4450 = vmatmul.mubr.f32.gmra.mrb[0].mxu0 %v3942
  %v4451 = vpop.f32.mrb[0].mxu0
  %v4452 = vadd.f32 %v3857, %v4451
  %v4453 = vpop.f32.mrb[0].mxu0
  %4454 = vmatprep.mubr.f32.mxu0 0.0
  %4455 = vmatmul.mubr.f32.gmra.mrb[0].mxu0 %v3945
  %v4456 = vpop.f32.mrb[0].mxu0
  %v4457 = vadd.f32 %v3857, %v4456
  %v4458 = vpop.f32.mrb[0].mxu0
  %4459 = vmatprep.mubr.f32.mxu0 0.0
  %4460 = vmatmul.mubr.f32.gmra.mrb[0].mxu0 %v3948
  %v4461 = vpop.f32.mrb[0].mxu0
  %v4462 = vadd.f32 %v3857, %v4461
  %v4463 = vpop.f32.mrb[0].mxu0
  %4464 = vmatprep.mubr.f32.mxu0 0.0
  %4465 = vmatmul.mubr.f32.gmra.mrb[0].mxu0 %v3951
  %v4466 = vpop.f32.mrb[0].mxu0
  %v4467 = vadd.f32 %v3857, %v4466
  %v4468 = vpop.f32.mrb[0].mxu0
  %4469 = vmatprep.mubr.f32.mxu0 0.0
  %4470 = vmatmul.mubr.f32.gmra.mrb[0].mxu0 %v3954
  %v4471 = vpop.f32.mrb[0].mxu0
  %v4472 = vadd.f32 %v3857, %v4471
  %v4473 = vpop.f32.mrb[0].mxu0
  %4474 = vmatprep.mubr.f32.mxu0 0.0
  %4475 = vmatmul.mubr.f32.gmra.mrb[0].mxu0 %v3957
  %v4476 = vpop.f32.mrb[0].mxu0
  %v4477 = vadd.f32 %v3857, %v4476
  %v4478 = vpop.f32.mrb[0].mxu0
  %4479 = vmatprep.mubr.f32.mxu0 0.0
  %4480 = vmatmul.mubr.f32.gmra.mrb[0].mxu0 %v3960
  %v4481 = vpop.f32.mrb[0].mxu0
  %v4482 = vadd.f32 %v3857, %v4481
  %v4483 = vpop.f32.mrb[0].mxu0
  %4484 = vmatprep.mubr.f32.mxu0 0.0
  %4485 = vmatmul.mubr.f32.gmra.mrb[0].mxu0 %v3963
  %v4486 = vpop.f32.mrb[0].mxu0
  %v4487 = vadd.f32 %v3857, %v4486
  %v4488 = vpop.f32.mrb[0].mxu0
  %4489 = vmatprep.mubr.f32.mxu0 0.0
  %4490 = vmatmul.mubr.f32.gmra.mrb[0].mxu0 %v3966
  %v4491 = vpop.f32.mrb[0].mxu0
  %v4492 = vadd.f32 %v3857, %v4491
  %v4493 = vpop.f32.mrb[0].mxu0
  %4494 = vmatprep.mubr.f32.mxu0 0.0
  %4495 = vmatmul.mubr.f32.gmra.mrb[0].mxu0 %v3969
  %v4496 = vpop.f32.mrb[0].mxu0
  %v4497 = vadd.f32 %v3857, %v4496
  %v4498 = vpop.f32.mrb[0].mxu0
  %4499 = vmatprep.mubr.f32.mxu0 0.0
  %4500 = vmatmul.mubr.f32.gmra.mrb[0].mxu0 %v3972
  %v4501 = vpop.f32.mrb[0].mxu0
  %v4502 = vadd.f32 %v3857, %v4501
  %v4503 = vpop.f32.mrb[0].mxu0
  %4504 = vmatprep.mubr.f32.mxu0 0.0
  %4505 = vmatmul.mubr.f32.gmra.mrb[0].mxu0 %v3975
  %v4506 = vpop.f32.mrb[0].mxu0
  %v4507 = vadd.f32 %v3857, %v4506
  %v4508 = vpop.f32.mrb[0].mxu0
  %4509 = vmatprep.mubr.f32.mxu0 0.0
  %4510 = vmatmul.mubr.f32.gmra.mrb[0].mxu0 %v3978
  %v4511 = vpop.f32.mrb[0].mxu0
  %v4512 = vadd.f32 %v3857, %v4511
  %v4513 = vpop.f32.mrb[0].mxu0
  %4514 = vmatprep.mubr.f32.mxu0 0.0
  %4515 = vmatmul.mubr.f32.gmra.mrb[0].mxu0 %v3981
  %v4516 = vpop.f32.mrb[0].mxu0
  %v4517 = vadd.f32 %v3857, %v4516
  %v4518 = vpop.f32.mrb[0].mxu0
  %4519 = vmatprep.mubr.f32.mxu0 0.0
  %4520 = vmatmul.mubr.f32.gmra.mrb[0].mxu0 %v3984
  %v4521 = vpop.f32.mrb[0].mxu0
  %v4522 = vadd.f32 %v3857, %v4521
  %v4523 = vpop.f32.mrb[0].mxu0
  %4524 = vmatprep.mubr.f32.mxu0 0.0
  %4525 = vmatmul.mubr.f32.gmra.mrb[0].mxu0 %v3987
  %v4526 = vpop.f32.mrb[0].mxu0
  %v4527 = vadd.f32 %v3857, %v4526
  %v4528 = vpop.f32.mrb[0].mxu0
  %4529 = vmatprep.mubr.f32.mxu0 0.0
  %4530 = vmatmul.mubr.f32.gmra.mrb[0].mxu0 %v3990
  %v4531 = vpop.f32.mrb[0].mxu0
  %v4532 = vadd.f32 %v3857, %v4531
  %v4533 = vpop.f32.mrb[0].mxu0
  %4534 = vmatprep.mubr.f32.mxu0 0.0
  %4535 = vmatmul.mubr.f32.gmra.mrb[0].mxu0 %v3993
  %v4536 = vpop.f32.mrb[0].mxu0
  %v4537 = vadd.f32 %v3857, %v4536
  %v4538 = vpop.f32.mrb[0].mxu0
  %4539 = vmatprep.mubr.f32.mxu0 0.0
  %4540 = vmatmul.mubr.f32.gmra.mrb[0].mxu0 %v3996
  %v4541 = vpop.f32.mrb[0].mxu0
  %v4542 = vadd.f32 %v3857, %v4541
  %v4543 = vpop.f32.mrb[0].mxu0
  %4544 = vmatprep.mubr.f32.mxu0 0.0
  %4545 = vmatmul.mubr.f32.gmra.mrb[0].mxu0 %v3999
  %v4546 = vpop.f32.mrb[0].mxu0
  %v4547 = vadd.f32 %v3857, %v4546
  %v4548 = vpop.f32.mrb[0].mxu0
  %4549 = vmatprep.mubr.f32.mxu0 0.0
  %4550 = vmatmul.mubr.f32.gmra.mrb[0].mxu0 %v4002
  %v4551 = vpop.f32.mrb[0].mxu0
  %v4552 = vadd.f32 %v3857, %v4551
  %v4553 = vpop.f32.mrb[0].mxu0
  %4554 = vmatprep.mubr.f32.mxu0 0.0
  %4555 = vmatmul.mubr.f32.gmra.mrb[0].mxu0 %v4005
  %v4556 = vpop.f32.mrb[0].mxu0
  %v4557 = vadd.f32 %v3857, %v4556
  %v4558 = vpop.f32.mrb[0].mxu0
  %4559 = vmatprep.mubr.f32.mxu0 0.0
  %4560 = vmatmul.mubr.f32.gmra.mrb[0].mxu0 %v4008
  %v4561 = vpop.f32.mrb[0].mxu0
  %v4562 = vadd.f32 %v3857, %v4561
  %v4563 = vpop.f32.mrb[0].mxu0
  %4564 = vmatprep.mubr.f32.mxu0 0.0
  %4565 = vmatmul.mubr.f32.gmra.mrb[0].mxu0 %v4011
  %v4566 = vpop.f32.mrb[0].mxu0
  %v4567 = vadd.f32 %v3857, %v4566
  %v4568 = vpop.f32.mrb[0].mxu0
  %4569 = vmatprep.mubr.f32.mxu0 0.0
  %4570 = vmatmul.mubr.f32.gmra.mrb[0].mxu0 %v4014
  %v4571 = vpop.f32.mrb[0].mxu0
  %v4572 = vadd.f32 %v3857, %v4571
  %v4573 = vpop.f32.mrb[0].mxu0
  %4574 = vmatprep.mubr.f32.mxu0 0.0
  %4575 = vmatmul.mubr.f32.gmra.mrb[0].mxu0 %v4017
  %v4576 = vpop.f32.mrb[0].mxu0
  %v4577 = vadd.f32 %v3857, %v4576
  %v4578 = vpop.f32.mrb[0].mxu0
  %4579 = vmatprep.mubr.f32.mxu0 0.0
  %4580 = vmatmul.mubr.f32.gmra.mrb[0].mxu0 %v4020
  %v4581 = vpop.f32.mrb[0].mxu0
  %v4582 = vadd.f32 %v3857, %v4581
  %v4583 = vpop.f32.mrb[0].mxu0
  %4584 = vmatprep.mubr.f32.mxu0 0.0
  %4585 = vmatmul.mubr.f32.gmra.mrb[0].mxu0 %v4023
  %v4586 = vpop.f32.mrb[0].mxu0
  %v4587 = vadd.f32 %v3857, %v4586
  %v4588 = vpop.f32.mrb[0].mxu0
  %4589 = vmatprep.mubr.f32.mxu0 0.0
  %4590 = vmatmul.mubr.f32.gmra.mrb[0].mxu0 %v4026
  %v4591 = vpop.f32.mrb[0].mxu0
  %v4592 = vadd.f32 %v3857, %v4591
  %v4593 = vpop.f32.mrb[0].mxu0
  %4594 = vmatprep.mubr.f32.mxu0 0.0
  %4595 = vmatmul.mubr.f32.gmra.mrb[0].mxu0 %v4029
  %v4596 = vpop.f32.mrb[0].mxu0
  %v4597 = vadd.f32 %v3857, %v4596
  %v4598 = vpop.f32.mrb[0].mxu0
  %4599 = vmatprep.mubr.f32.mxu0 0.0
  %4600 = vmatmul.mubr.f32.gmra.mrb[0].mxu0 %v4032
  %v4601 = vpop.f32.mrb[0].mxu0
  %v4602 = vadd.f32 %v3857, %v4601
  %v4603 = vpop.f32.mrb[0].mxu0
  %4604 = vmatprep.mubr.f32.mxu0 0.0
  %4605 = vmatmul.mubr.f32.gmra.mrb[0].mxu0 %v4035
  %v4606 = vpop.f32.mrb[0].mxu0
  %v4607 = vadd.f32 %v3857, %v4606
  %v4608 = vpop.f32.mrb[0].mxu0
  %4609 = vmatprep.mubr.f32.mxu0 0.0
  %4610 = vmatmul.mubr.f32.gmra.mrb[0].mxu0 %v4038
  %v4611 = vpop.f32.mrb[0].mxu0
  %v4612 = vadd.f32 %v3857, %v4611
  %v4613 = vpop.f32.mrb[0].mxu0
  %4614 = vmatprep.mubr.f32.mxu0 0.0
  %4615 = vmatmul.mubr.f32.gmra.mrb[0].mxu0 %v4041
  %v4616 = vpop.f32.mrb[0].mxu0
  %v4617 = vadd.f32 %v3857, %v4616
  %v4618 = vpop.f32.mrb[0].mxu0
  %4619 = vmatprep.mubr.f32.mxu0 0.0
  %4620 = vmatmul.mubr.f32.gmra.mrb[0].mxu0 %v4044
  %v4621 = vpop.f32.mrb[0].mxu0
  %v4622 = vadd.f32 %v3857, %v4621
  %v4623 = vpop.f32.mrb[0].mxu0
  %4624 = vmatprep.mubr.f32.mxu0 0.0
  %4625 = vmatmul.mubr.f32.gmra.mrb[0].mxu0 %v4047
  %v4626 = vpop.f32.mrb[0].mxu0
  %v4627 = vadd.f32 %v3857, %v4626
  %v4628 = vpop.f32.mrb[0].mxu0
  %4629 = vmatprep.mubr.f32.mxu0 0.0
  %4630 = vmatmul.mubr.f32.gmra.mrb[0].mxu0 %v4050
  %v4631 = vpop.f32.mrb[0].mxu0
  %v4632 = vadd.f32 %v3857, %v4631
  %v4633 = vpop.f32.mrb[0].mxu0
  %4634 = vmatprep.mubr.f32.mxu0 0.0
  %4635 = vmatmul.mubr.f32.gmra.mrb[0].mxu0 %v4053
  %v4636 = vpop.f32.mrb[0].mxu0
  %v4637 = vadd.f32 %v3857, %v4636
  %v4638 = vpop.f32.mrb[0].mxu0
  %4639 = vmatprep.mubr.f32.mxu0 0.0
  %4640 = vmatmul.mubr.f32.gmra.mrb[0].mxu0 %v4056
  %v4641 = vpop.f32.mrb[0].mxu0
  %v4642 = vadd.f32 %v3857, %v4641
  %v4643 = vpop.f32.mrb[0].mxu0
  %4644 = vmatprep.mubr.f32.mxu0 0.0
  %4645 = vmatmul.mubr.f32.gmra.mrb[0].mxu0 %v4059
  %v4646 = vpop.f32.mrb[0].mxu0
  %v4647 = vadd.f32 %v3857, %v4646
  %v4648 = vpop.f32.mrb[0].mxu0
  %4649 = vmatprep.mubr.f32.mxu0 0.0
  %4650 = vmatmul.mubr.f32.gmra.mrb[0].mxu0 %v4062
  %v4651 = vpop.f32.mrb[0].mxu0
  %v4652 = vadd.f32 %v3857, %v4651
  %v4653 = vpop.f32.mrb[0].mxu0
  %4654 = vmatprep.mubr.f32.mxu0 0.0
  %4655 = vmatmul.mubr.f32.gmra.mrb[0].mxu0 %v4065
  %v4656 = vpop.f32.mrb[0].mxu0
  %v4657 = vadd.f32 %v3857, %v4656
  %v4658 = vpop.f32.mrb[0].mxu0
  %4659 = vmatprep.mubr.f32.mxu0 0.0
  %4660 = vmatmul.mubr.f32.gmra.mrb[0].mxu0 %v4068
  %v4661 = vpop.f32.mrb[0].mxu0
  %v4662 = vadd.f32 %v3857, %v4661
  %v4663 = vpop.f32.mrb[0].mxu0
  %4664 = vmatprep.mubr.f32.mxu0 0.0
  %4665 = vmatmul.mubr.f32.gmra.mrb[0].mxu0 %v4071
  %v4666 = vpop.f32.mrb[0].mxu0
  %v4667 = vadd.f32 %v3857, %v4666
  %v4668 = vpop.f32.mrb[0].mxu0
  %4669 = vmatprep.mubr.f32.mxu0 0.0
  %4670 = vmatmul.mubr.f32.gmra.mrb[0].mxu0 %v4074
  %v4671 = vpop.f32.mrb[0].mxu0
  %v4672 = vadd.f32 %v3857, %v4671
  %v4673 = vpop.f32.mrb[0].mxu0
  %4674 = vmatprep.mubr.f32.mxu0 0.0
  %4675 = vmatmul.mubr.f32.gmra.mrb[0].mxu0 %v4077
  %v4676 = vpop.f32.mrb[0].mxu0
  %v4677 = vadd.f32 %v3857, %v4676
  %v4678 = vpop.f32.mrb[0].mxu0
  %4679 = vmatprep.mubr.f32.mxu0 0.0
  %4680 = vmatmul.mubr.f32.gmra.mrb[0].mxu0 %v4080
  %v4681 = vpop.f32.mrb[0].mxu0
  %v4682 = vadd.f32 %v3857, %v4681
  %v4683 = vpop.f32.mrb[0].mxu0
  %4684 = vmatprep.mubr.f32.mxu0 0.0
  %4685 = vmatmul.mubr.f32.gmra.mrb[0].mxu0 %v4083
  %v4686 = vpop.f32.mrb[0].mxu0
  %v4687 = vadd.f32 %v3857, %v4686
  %v4688 = vpop.f32.mrb[0].mxu0
  %4689 = vmatprep.mubr.f32.mxu0 0.0
  %4690 = vmatmul.mubr.f32.gmra.mrb[0].mxu0 %v4086
  %v4691 = vpop.f32.mrb[0].mxu0
  %v4692 = vadd.f32 %v3857, %v4691
  %v4693 = vpop.f32.mrb[0].mxu0
  %4694 = vmatprep.mubr.f32.mxu0 0.0
  %4695 = vmatmul.mubr.f32.gmra.mrb[0].mxu0 %v4089
  %v4696 = vpop.f32.mrb[0].mxu0
  %v4697 = vadd.f32 %v3857, %v4696
  %v4698 = vpop.f32.mrb[0].mxu0
  %4699 = vmatprep.mubr.f32.mxu0 0.0
  %4700 = vmatmul.mubr.f32.gmra.mrb[0].mxu0 %v4092
  %v4701 = vpop.f32.mrb[0].mxu0
  %v4702 = vadd.f32 %v3857, %v4701
  %v4703 = vpop.f32.mrb[0].mxu0
  %4704 = vmatprep.mubr.f32.mxu0 0.0
  %4705 = vmatmul.mubr.f32.gmra.mrb[0].mxu0 %v4095
  %v4706 = vpop.f32.mrb[0].mxu0
  %v4707 = vadd.f32 %v3857, %v4706
  %v4708 = vpop.f32.mrb[0].mxu0
  %4709 = vmatprep.mubr.f32.mxu0 0.0
  %4710 = vmatmul.mubr.f32.gmra.mrb[0].mxu0 %v4098
  %v4711 = vpop.f32.mrb[0].mxu0
  %v4712 = vadd.f32 %v3857, %v4711
  %v4713 = vpop.f32.mrb[0].mxu0
  %4714 = vmatprep.mubr.f32.mxu0 0.0
  %4715 = vmatmul.mubr.f32.gmra.mrb[0].mxu0 %v4101
  %v4716 = vpop.f32.mrb[0].mxu0
  %v4717 = vadd.f32 %v3857, %v4716
  %v4718 = vpop.f32.mrb[0].mxu0
  %4719 = vmatprep.mubr.f32.mxu0 0.0
  %4720 = vmatmul.mubr.f32.gmra.mrb[0].mxu0 %v4104
  %v4721 = vpop.f32.mrb[0].mxu0
  %v4722 = vadd.f32 %v3857, %v4721
  %v4723 = vpop.f32.mrb[0].mxu0
  %4724 = vmatprep.mubr.f32.mxu0 0.0
  %4725 = vmatmul.mubr.f32.gmra.mrb[0].mxu0 %v4107
  %v4726 = vpop.f32.mrb[0].mxu0
  %v4727 = vadd.f32 %v3857, %v4726
  %v4728 = vpop.f32.mrb[0].mxu0
  %4729 = vmatprep.mubr.f32.mxu0 0.0
  %4730 = vmatmul.mubr.f32.gmra.mrb[0].mxu0 %v4110
  %v4731 = vpop.f32.mrb[0].mxu0
  %v4732 = vadd.f32 %v3857, %v4731
  %v4733 = vpop.f32.mrb[0].mxu0
  %4734 = vmatprep.mubr.f32.mxu0 0.0
  %4735 = vmatmul.mubr.f32.gmra.mrb[0].mxu0 %v4113
  %v4736 = vpop.f32.mrb[0].mxu0
  %v4737 = vadd.f32 %v3857, %v4736
  %v4738 = vpop.f32.mrb[0].mxu0
  %4739 = vmatprep.mubr.f32.mxu0 0.0
  %4740 = vmatmul.mubr.f32.gmra.mrb[0].mxu0 %v4116
  %v4741 = vpop.f32.mrb[0].mxu0
  %v4742 = vadd.f32 %v3857, %v4741
  %v4743 = vpop.f32.mrb[0].mxu0
  %4744 = vmatprep.mubr.f32.mxu0 0.0
  %4745 = vmatmul.mubr.f32.gmra.mrb[0].mxu0 %v4119
  %v4746 = vpop.f32.mrb[0].mxu0
  %v4747 = vadd.f32 %v3857, %v4746
  %v4748 = vpop.f32.mrb[0].mxu0
  %4749 = vmatprep.mubr.f32.mxu0 0.0
  %4750 = vmatmul.mubr.f32.gmra.mrb[0].mxu0 %v4122
  %v4751 = vpop.f32.mrb[0].mxu0
  %v4752 = vadd.f32 %v3857, %v4751
  %v4753 = vpop.f32.mrb[0].mxu0
  %4754 = vmatprep.mubr.f32.mxu0 0.0
  %4755 = vmatmul.mubr.f32.gmra.mrb[0].mxu0 %v4125
  %v4756 = vpop.f32.mrb[0].mxu0
  %v4757 = vadd.f32 %v3857, %v4756
  %v4758 = vpop.f32.mrb[0].mxu0
  %4759 = vmatprep.mubr.f32.mxu0 0.0
  %4760 = vmatmul.mubr.f32.gmra.mrb[0].mxu0 %v4128
  %v4761 = vpop.f32.mrb[0].mxu0
  %v4762 = vadd.f32 %v3857, %v4761
  %v4763 = vpop.f32.mrb[0].mxu0
  %4764 = vmatprep.mubr.f32.mxu0 0.0
  %4765 = vmatmul.mubr.f32.gmra.mrb[0].mxu0 %v4131
  %v4766 = vpop.f32.mrb[0].mxu0
  %v4767 = vadd.f32 %v3857, %v4766
  %v4768 = vpop.f32.mrb[0].mxu0
  %4769 = vmatprep.mubr.f32.mxu0 0.0
  %4770 = vmatmul.mubr.f32.gmra.mrb[0].mxu0 %v4134
  %v4771 = vpop.f32.mrb[0].mxu0
  %v4772 = vadd.f32 %v3857, %v4771
  %v4773 = vpop.f32.mrb[0].mxu0
  %4774 = vmatprep.mubr.f32.mxu0 0.0
  %4775 = vmatmul.mubr.f32.gmra.mrb[0].mxu0 %v4137
  %v4776 = vpop.f32.mrb[0].mxu0
  %v4777 = vadd.f32 %v3857, %v4776
  %v4778 = vpop.f32.mrb[0].mxu0
  %4779 = vmatprep.mubr.f32.mxu0 0.0
  %4780 = vmatmul.mubr.f32.gmra.mrb[0].mxu0 %v4140
  %v4781 = vpop.f32.mrb[0].mxu0
  %v4782 = vadd.f32 %v3857, %v4781
  %v4783 = vpop.f32.mrb[0].mxu0
  %4784 = vmatprep.mubr.f32.mxu0 0.0
  %4785 = vmatmul.mubr.f32.gmra.mrb[0].mxu0 %v4143
  %v4786 = vpop.f32.mrb[0].mxu0
  %v4787 = vadd.f32 %v3857, %v4786
  %v4788 = vpop.f32.mrb[0].mxu0
  %4789 = vmatprep.mubr.f32.mxu0 0.0
  %4790 = vmatmul.mubr.f32.gmra.mrb[0].mxu0 %v4146
  %v4791 = vpop.f32.mrb[0].mxu0
  %v4792 = vadd.f32 %v3857, %v4791
  %v4793 = vpop.f32.mrb[0].mxu0
  %4794 = vmatprep.mubr.f32.mxu0 0.0
  %4795 = vmatmul.mubr.f32.gmra.mrb[0].mxu0 %v4149
  %v4796 = vpop.f32.mrb[0].mxu0
  %v4797 = vadd.f32 %v3857, %v4796
  %v4798 = vpop.f32.mrb[0].mxu0
  %4799 = vmatprep.mubr.f32.mxu0 0.0
  %4800 = vmatmul.mubr.f32.gmra.mrb[0].mxu0 %v4152
  %v4801 = vpop.f32.mrb[0].mxu0
  %v4802 = vadd.f32 %v3857, %v4801
  %v4803 = vpop.f32.mrb[0].mxu0
  %4804 = vmatprep.mubr.f32.mxu0 0.0
  %4805 = vmatmul.mubr.f32.gmra.mrb[0].mxu0 %v4155
  %v4806 = vpop.f32.mrb[0].mxu0
  %v4807 = vadd.f32 %v3857, %v4806
  %v4808 = vpop.f32.mrb[0].mxu0
  %4809 = vmatprep.mubr.f32.mxu0 0.0
  %4810 = vmatmul.mubr.f32.gmra.mrb[0].mxu0 %v4158
  %v4811 = vpop.f32.mrb[0].mxu0
  %v4812 = vadd.f32 %v3857, %v4811
  %v4813 = vpop.f32.mrb[0].mxu0
  %4814 = vmatprep.mubr.f32.mxu0 0.0
  %4815 = vmatmul.mubr.f32.gmra.mrb[0].mxu0 %v4161
  %v4816 = vpop.f32.mrb[0].mxu0
  %v4817 = vadd.f32 %v3857, %v4816
  %v4818 = vpop.f32.mrb[0].mxu0
  %4819 = vmatprep.mubr.f32.mxu0 0.0
  %4820 = vmatmul.mubr.f32.gmra.mrb[0].mxu0 %v4164
  %v4821 = vpop.f32.mrb[0].mxu0
  %v4822 = vadd.f32 %v3857, %v4821
  %v4823 = vpop.f32.mrb[0].mxu0
  %4824 = vmatprep.mubr.f32.mxu0 0.0
  %4825 = vmatmul.mubr.f32.gmra.mrb[0].mxu0 %v4167
  %v4826 = vpop.f32.mrb[0].mxu0
  %v4827 = vadd.f32 %v3857, %v4826
  %v4828 = vpop.f32.mrb[0].mxu0
  %4829 = vmatprep.mubr.f32.mxu0 0.0
  %4830 = vmatmul.mubr.f32.gmra.mrb[0].mxu0 %v4170
  %v4831 = vpop.f32.mrb[0].mxu0
  %v4832 = vadd.f32 %v3857, %v4831
  %v4833 = vpop.f32.mrb[0].mxu0
  %4834 = vmatprep.mubr.f32.mxu0 0.0
  %4835 = vmatmul.mubr.f32.gmra.mrb[0].mxu0 %v4173
  %v4836 = vpop.f32.mrb[0].mxu0
  %v4837 = vadd.f32 %v3857, %v4836
  %v4838 = vpop.f32.mrb[0].mxu0
  %4839 = vmatprep.mubr.f32.mxu0 0.0
  %4840 = vmatmul.mubr.f32.gmra.mrb[0].mxu0 %v4176
  %v4841 = vpop.f32.mrb[0].mxu0
  %v4842 = vadd.f32 %v3857, %v4841
  %v4843 = vpop.f32.mrb[0].mxu0
  %4844 = vmatprep.mubr.f32.mxu0 0.0
  %4845 = vmatmul.mubr.f32.gmra.mrb[0].mxu0 %v4179
  %v4846 = vpop.f32.mrb[0].mxu0
  %v4847 = vadd.f32 %v3857, %v4846
  %v4848 = vpop.f32.mrb[0].mxu0
  %4849 = vmatprep.mubr.f32.mxu0 0.0
  %4850 = vmatmul.mubr.f32.gmra.mrb[0].mxu0 %v4182
  %v4851 = vpop.f32.mrb[0].mxu0
  %v4852 = vadd.f32 %v3857, %v4851
  %v4853 = vpop.f32.mrb[0].mxu0
  %4854 = vmatprep.mubr.f32.mxu0 0.0
  %4855 = vmatmul.mubr.f32.gmra.mrb[0].mxu0 %v4185
  %v4856 = vpop.f32.mrb[0].mxu0
  %v4857 = vadd.f32 %v3857, %v4856
  %v4858 = vpop.f32.mrb[0].mxu0
  %4859 = vmatprep.mubr.f32.mxu0 0.0
  %4860 = vmatmul.mubr.f32.gmra.mrb[0].mxu0 %v4188
  %v4861 = vpop.f32.mrb[0].mxu0
  %v4862 = vadd.f32 %v3857, %v4861
  %v4863 = vpop.f32.mrb[0].mxu0
  %4864 = vmatprep.mubr.f32.mxu0 0.0
  %4865 = vmatmul.mubr.f32.gmra.mrb[0].mxu0 %v4191
  %v4866 = vpop.f32.mrb[0].mxu0
  %v4867 = vadd.f32 %v3857, %v4866
  %v4868 = vpop.f32.mrb[0].mxu0
  %4869 = vmatprep.mubr.f32.mxu0 0.0
  %4870 = vmatmul.mubr.f32.gmra.mrb[0].mxu0 %v4194
  %v4871 = vpop.f32.mrb[0].mxu0
  %v4872 = vadd.f32 %v3857, %v4871
  %v4873 = vpop.f32.mrb[0].mxu0
  %4874 = vmatprep.mubr.f32.mxu0 0.0
  %4875 = vmatmul.mubr.f32.gmra.mrb[0].mxu0 %v4197
  %v4876 = vpop.f32.mrb[0].mxu0
  %v4877 = vadd.f32 %v3857, %v4876
  %v4878 = vpop.f32.mrb[0].mxu0
  %4879 = vmatprep.mubr.f32.mxu0 0.0
  %4880 = vmatmul.mubr.f32.gmra.mrb[0].mxu0 %v4200
  %v4881 = vpop.f32.mrb[0].mxu0
  %v4882 = vadd.f32 %v3857, %v4881
  %v4883 = vpop.f32.mrb[0].mxu0
  %4884 = vmatprep.mubr.f32.mxu0 0.0
  %4885 = vmatmul.mubr.f32.gmra.mrb[0].mxu0 %v4203
  %v4886 = vpop.f32.mrb[0].mxu0
  %v4887 = vadd.f32 %v3857, %v4886
  %v4888 = vpop.f32.mrb[0].mxu0
  %4889 = vmatprep.mubr.f32.mxu0 0.0
  %4890 = vmatmul.mubr.f32.gmra.mrb[0].mxu0 %v4206
  %v4891 = vpop.f32.mrb[0].mxu0
  %v4892 = vadd.f32 %v3857, %v4891
  %v4893 = vpop.f32.mrb[0].mxu0
  %4894 = vmatprep.mubr.f32.mxu0 0.0
  %4895 = vmatmul.mubr.f32.gmra.mrb[0].mxu0 %v4209
  %v4896 = vpop.f32.mrb[0].mxu0
  %v4897 = vadd.f32 %v3857, %v4896
  %v4898 = vpop.f32.mrb[0].mxu0
  %4899 = vmatprep.mubr.f32.mxu0 0.0
  %4900 = vmatmul.mubr.f32.gmra.mrb[0].mxu0 %v4212
  %v4901 = vpop.f32.mrb[0].mxu0
  %v4902 = vadd.f32 %v3857, %v4901
  %v4903 = vpop.f32.mrb[0].mxu0
  %4904 = vmatprep.mubr.f32.mxu0 0.0
  %4905 = vmatmul.mubr.f32.gmra.mrb[0].mxu0 %v4215
  %v4906 = vpop.f32.mrb[0].mxu0
  %v4907 = vadd.f32 %v3857, %v4906
  %v4908 = vpop.f32.mrb[0].mxu0
  %4909 = vmatprep.mubr.f32.mxu0 0.0
  %4910 = vmatmul.mubr.f32.gmra.mrb[0].mxu0 %v4218
  %v4911 = vpop.f32.mrb[0].mxu0
  %v4912 = vadd.f32 %v3857, %v4911
  %v4913 = vpop.f32.mrb[0].mxu0
  %4914 = vmatprep.mubr.f32.mxu0 0.0
  %4915 = vmatmul.mubr.f32.gmra.mrb[0].mxu0 %v4221
  %v4916 = vpop.f32.mrb[0].mxu0
  %v4917 = vadd.f32 %v3857, %v4916
  %v4918 = vpop.f32.mrb[0].mxu0
  %4919 = vmatprep.mubr.f32.mxu0 0.0
  %4920 = vmatmul.mubr.f32.gmra.mrb[0].mxu0 %v4224
  %v4921 = vpop.f32.mrb[0].mxu0
  %v4922 = vadd.f32 %v3857, %v4921
  %v4923 = vpop.f32.mrb[0].mxu0
  %4924 = vmatprep.mubr.f32.mxu0 0.0
  %4925 = vmatmul.mubr.f32.gmra.mrb[0].mxu0 %v4227
  %v4926 = vpop.f32.mrb[0].mxu0
  %v4927 = vadd.f32 %v3857, %v4926
  %v4928 = vpop.f32.mrb[0].mxu0
  %4929 = vmatprep.mubr.f32.mxu0 0.0
  %4930 = vmatmul.mubr.f32.gmra.mrb[0].mxu0 %v4230
  %v4931 = vpop.f32.mrb[0].mxu0
  %v4932 = vadd.f32 %v3857, %v4931
  %v4933 = vpop.f32.mrb[0].mxu0
  %4934 = vmatprep.mubr.f32.mxu0 0.0
  %4935 = vmatmul.mubr.f32.gmra.mrb[0].mxu0 %v4233
  %v4936 = vpop.f32.mrb[0].mxu0
  %v4937 = vadd.f32 %v3857, %v4936
  %v4938 = vpop.f32.mrb[0].mxu0
  %4939 = vmatprep.mubr.f32.mxu0 0.0
  %4940 = vmatmul.mubr.f32.gmra.mrb[0].mxu0 %v4236
  %v4941 = vpop.f32.mrb[0].mxu0
  %v4942 = vadd.f32 %v3857, %v4941
  %v4943 = vpop.f32.mrb[0].mxu0
  %4944 = vmatprep.mubr.f32.mxu0 0.0
  %4945 = vmatmul.mubr.f32.gmra.mrb[0].mxu0 %v4239
  %v4946 = vpop.f32.mrb[0].mxu0
  %v4947 = vadd.f32 %v3857, %v4946
  %v4948 = vpop.f32.mrb[0].mxu0
  %4949 = vmatprep.mubr.f32.mxu0 0.0
  %4950 = vmatmul.mubr.f32.gmra.mrb[0].mxu0 %v4242
  %v4951 = vpop.f32.mrb[0].mxu0
  %v4952 = vadd.f32 %v3857, %v4951
  %v4953 = vpop.f32.mrb[0].mxu0
  %4954 = vdwg.mxu0
  %v4955 = vmax.f32 %v4317, 0.0
  %v4956 = vmax.f32 %v4322, 0.0
  %v4957 = vmax.f32 %v4327, 0.0
  %v4958 = vmax.f32 %v4332, 0.0
  %v4959 = vmax.f32 %v4337, 0.0
  %v4960 = vmax.f32 %v4342, 0.0
  %v4961 = vmax.f32 %v4347, 0.0
  %v4962 = vmax.f32 %v4352, 0.0
  %v4963 = vmax.f32 %v4357, 0.0
  %v4964 = vmax.f32 %v4362, 0.0
  %v4965 = vmax.f32 %v4367, 0.0
  %v4966 = vmax.f32 %v4372, 0.0
  %v4967 = vmax.f32 %v4377, 0.0
  %v4968 = vmax.f32 %v4382, 0.0
  %v4969 = vmax.f32 %v4387, 0.0
  %v4970 = vmax.f32 %v4392, 0.0
  %v4971 = vmax.f32 %v4397, 0.0
  %v4972 = vmax.f32 %v4402, 0.0
  %v4973 = vmax.f32 %v4407, 0.0
  %v4974 = vmax.f32 %v4412, 0.0
  %v4975 = vmax.f32 %v4417, 0.0
  %v4976 = vmax.f32 %v4422, 0.0
  %v4977 = vmax.f32 %v4427, 0.0
  %v4978 = vmax.f32 %v4432, 0.0
  %v4979 = vmax.f32 %v4437, 0.0
  %v4980 = vmax.f32 %v4442, 0.0
  %v4981 = vmax.f32 %v4447, 0.0
  %v4982 = vmax.f32 %v4452, 0.0
  %v4983 = vmax.f32 %v4457, 0.0
  %v4984 = vmax.f32 %v4462, 0.0
  %v4985 = vmax.f32 %v4467, 0.0
  %v4986 = vmax.f32 %v4472, 0.0
  %v4987 = vmax.f32 %v4477, 0.0
  %v4988 = vmax.f32 %v4482, 0.0
  %v4989 = vmax.f32 %v4487, 0.0
  %v4990 = vmax.f32 %v4492, 0.0
  %v4991 = vmax.f32 %v4497, 0.0
  %v4992 = vmax.f32 %v4502, 0.0
  %v4993 = vmax.f32 %v4507, 0.0
  %v4994 = vmax.f32 %v4512, 0.0
  %v4995 = vmax.f32 %v4517, 0.0
  %v4996 = vmax.f32 %v4522, 0.0
  %v4997 = vmax.f32 %v4527, 0.0
  %v4998 = vmax.f32 %v4532, 0.0
  %v4999 = vmax.f32 %v4537, 0.0
  %v5000 = vmax.f32 %v4542, 0.0
  %v5001 = vmax.f32 %v4547, 0.0
  %v5002 = vmax.f32 %v4552, 0.0
  %v5003 = vmax.f32 %v4557, 0.0
  %v5004 = vmax.f32 %v4562, 0.0
  %v5005 = vmax.f32 %v4567, 0.0
  %v5006 = vmax.f32 %v4572, 0.0
  %v5007 = vmax.f32 %v4577, 0.0
  %v5008 = vmax.f32 %v4582, 0.0
  %v5009 = vmax.f32 %v4587, 0.0
  %v5010 = vmax.f32 %v4592, 0.0
  %v5011 = vmax.f32 %v4597, 0.0
  %v5012 = vmax.f32 %v4602, 0.0
  %v5013 = vmax.f32 %v4607, 0.0
  %v5014 = vmax.f32 %v4612, 0.0
  %v5015 = vmax.f32 %v4617, 0.0
  %v5016 = vmax.f32 %v4622, 0.0
  %v5017 = vmax.f32 %v4627, 0.0
  %v5018 = vmax.f32 %v4632, 0.0
  %v5019 = vmax.f32 %v4637, 0.0
  %v5020 = vmax.f32 %v4642, 0.0
  %v5021 = vmax.f32 %v4647, 0.0
  %v5022 = vmax.f32 %v4652, 0.0
  %v5023 = vmax.f32 %v4657, 0.0
  %v5024 = vmax.f32 %v4662, 0.0
  %v5025 = vmax.f32 %v4667, 0.0
  %v5026 = vmax.f32 %v4672, 0.0
  %v5027 = vmax.f32 %v4677, 0.0
  %v5028 = vmax.f32 %v4682, 0.0
  %v5029 = vmax.f32 %v4687, 0.0
  %v5030 = vmax.f32 %v4692, 0.0
  %v5031 = vmax.f32 %v4697, 0.0
  %v5032 = vmax.f32 %v4702, 0.0
  %v5033 = vmax.f32 %v4707, 0.0
  %v5034 = vmax.f32 %v4712, 0.0
  %v5035 = vmax.f32 %v4717, 0.0
  %v5036 = vmax.f32 %v4722, 0.0
  %v5037 = vmax.f32 %v4727, 0.0
  %v5038 = vmax.f32 %v4732, 0.0
  %v5039 = vmax.f32 %v4737, 0.0
  %v5040 = vmax.f32 %v4742, 0.0
  %v5041 = vmax.f32 %v4747, 0.0
  %v5042 = vmax.f32 %v4752, 0.0
  %v5043 = vmax.f32 %v4757, 0.0
  %v5044 = vmax.f32 %v4762, 0.0
  %v5045 = vmax.f32 %v4767, 0.0
  %v5046 = vmax.f32 %v4772, 0.0
  %v5047 = vmax.f32 %v4777, 0.0
  %v5048 = vmax.f32 %v4782, 0.0
  %v5049 = vmax.f32 %v4787, 0.0
  %v5050 = vmax.f32 %v4792, 0.0
  %v5051 = vmax.f32 %v4797, 0.0
  %v5052 = vmax.f32 %v4802, 0.0
  %v5053 = vmax.f32 %v4807, 0.0
  %v5054 = vmax.f32 %v4812, 0.0
  %v5055 = vmax.f32 %v4817, 0.0
  %v5056 = vmax.f32 %v4822, 0.0
  %v5057 = vmax.f32 %v4827, 0.0
  %v5058 = vmax.f32 %v4832, 0.0
  %v5059 = vmax.f32 %v4837, 0.0
  %v5060 = vmax.f32 %v4842, 0.0
  %v5061 = vmax.f32 %v4847, 0.0
  %v5062 = vmax.f32 %v4852, 0.0
  %v5063 = vmax.f32 %v4857, 0.0
  %v5064 = vmax.f32 %v4862, 0.0
  %v5065 = vmax.f32 %v4867, 0.0
  %v5066 = vmax.f32 %v4872, 0.0
  %v5067 = vmax.f32 %v4877, 0.0
  %v5068 = vmax.f32 %v4882, 0.0
  %v5069 = vmax.f32 %v4887, 0.0
  %v5070 = vmax.f32 %v4892, 0.0
  %v5071 = vmax.f32 %v4897, 0.0
  %v5072 = vmax.f32 %v4902, 0.0
  %v5073 = vmax.f32 %v4907, 0.0
  %v5074 = vmax.f32 %v4912, 0.0
  %v5075 = vmax.f32 %v4917, 0.0
  %v5076 = vmax.f32 %v4922, 0.0
  %v5077 = vmax.f32 %v4927, 0.0
  %v5078 = vmax.f32 %v4932, 0.0
  %v5079 = vmax.f32 %v4937, 0.0
  %v5080 = vmax.f32 %v4942, 0.0
  %v5081 = vmax.f32 %v4947, 0.0
  %v5082 = vmax.f32 %v4952, 0.0
  %s5083 = scalar_lea.vmem %s1, 128
  %v5084 = vld [vmem:[%s5083] sm:$0xff]
  %v5085 = vld [vmem:[%s5083 + $0x8] sm:$0xff]
  %v5086 = vld [vmem:[%s5083 + $0x10] sm:$0xff]
  %v5087 = vld [vmem:[%s5083 + $0x18] sm:$0xff]
  %s5088 = scalar_lea.vmem %s2, 4
  %v5089 = vld [vmem:[%s5088] sm:$0x1]
  %v5091 = vlaneseq
  %v5092 = vshrl.u32 %v5091, 7
  %v5093 = vsub.s32 0, %v5092
  %v5094 = vrot.slane %v5089, %v5093
  %v5097 = vsel %vm153, %v4955, 0
  %v5100 = vsel %vm153, %v4956, 0
  %v5103 = vsel %vm153, %v4957, 0
  %v5106 = vsel %vm153, %v4958, 0
  %v5109 = vsel %vm153, %v4959, 0
  %v5112 = vsel %vm153, %v4960, 0
  %v5115 = vsel %vm153, %v4961, 0
  %v5118 = vsel %vm153, %v4962, 0
  %v5121 = vsel %vm153, %v4963, 0
  %v5124 = vsel %vm153, %v4964, 0
  %v5127 = vsel %vm153, %v4965, 0
  %v5130 = vsel %vm153, %v4966, 0
  %v5133 = vsel %vm153, %v4967, 0
  %v5136 = vsel %vm153, %v4968, 0
  %v5139 = vsel %vm153, %v4969, 0
  %v5142 = vsel %vm153, %v4970, 0
  %v5145 = vsel %vm153, %v4971, 0
  %v5148 = vsel %vm153, %v4972, 0
  %v5151 = vsel %vm153, %v4973, 0
  %v5154 = vsel %vm153, %v4974, 0
  %v5157 = vsel %vm153, %v4975, 0
  %v5160 = vsel %vm153, %v4976, 0
  %v5163 = vsel %vm153, %v4977, 0
  %v5166 = vsel %vm153, %v4978, 0
  %v5169 = vsel %vm153, %v4979, 0
  %v5172 = vsel %vm153, %v4980, 0
  %v5175 = vsel %vm153, %v4981, 0
  %v5178 = vsel %vm153, %v4982, 0
  %v5181 = vsel %vm153, %v4983, 0
  %v5184 = vsel %vm153, %v4984, 0
  %v5187 = vsel %vm153, %v4985, 0
  %v5190 = vsel %vm153, %v4986, 0
  %v5193 = vsel %vm153, %v4987, 0
  %v5196 = vsel %vm153, %v4988, 0
  %v5199 = vsel %vm153, %v4989, 0
  %v5202 = vsel %vm153, %v4990, 0
  %v5205 = vsel %vm153, %v4991, 0
  %v5208 = vsel %vm153, %v4992, 0
  %v5211 = vsel %vm153, %v4993, 0
  %v5214 = vsel %vm153, %v4994, 0
  %v5217 = vsel %vm153, %v4995, 0
  %v5220 = vsel %vm153, %v4996, 0
  %v5223 = vsel %vm153, %v4997, 0
  %v5226 = vsel %vm153, %v4998, 0
  %v5229 = vsel %vm153, %v4999, 0
  %v5232 = vsel %vm153, %v5000, 0
  %v5235 = vsel %vm153, %v5001, 0
  %v5238 = vsel %vm153, %v5002, 0
  %v5241 = vsel %vm153, %v5003, 0
  %v5244 = vsel %vm153, %v5004, 0
  %v5247 = vsel %vm153, %v5005, 0
  %v5250 = vsel %vm153, %v5006, 0
  %v5253 = vsel %vm153, %v5007, 0
  %v5256 = vsel %vm153, %v5008, 0
  %v5259 = vsel %vm153, %v5009, 0
  %v5262 = vsel %vm153, %v5010, 0
  %v5265 = vsel %vm153, %v5011, 0
  %v5268 = vsel %vm153, %v5012, 0
  %v5271 = vsel %vm153, %v5013, 0
  %v5274 = vsel %vm153, %v5014, 0
  %v5277 = vsel %vm153, %v5015, 0
  %v5280 = vsel %vm153, %v5016, 0
  %v5283 = vsel %vm153, %v5017, 0
  %v5286 = vsel %vm153, %v5018, 0
  %v5289 = vsel %vm153, %v5019, 0
  %v5292 = vsel %vm153, %v5020, 0
  %v5295 = vsel %vm153, %v5021, 0
  %v5298 = vsel %vm153, %v5022, 0
  %v5301 = vsel %vm153, %v5023, 0
  %v5304 = vsel %vm153, %v5024, 0
  %v5307 = vsel %vm153, %v5025, 0
  %v5310 = vsel %vm153, %v5026, 0
  %v5313 = vsel %vm153, %v5027, 0
  %v5316 = vsel %vm153, %v5028, 0
  %v5319 = vsel %vm153, %v5029, 0
  %v5322 = vsel %vm153, %v5030, 0
  %v5325 = vsel %vm153, %v5031, 0
  %v5328 = vsel %vm153, %v5032, 0
  %v5331 = vsel %vm153, %v5033, 0
  %v5334 = vsel %vm153, %v5034, 0
  %v5337 = vsel %vm153, %v5035, 0
  %v5340 = vsel %vm153, %v5036, 0
  %v5343 = vsel %vm153, %v5037, 0
  %v5346 = vsel %vm153, %v5038, 0
  %v5349 = vsel %vm153, %v5039, 0
  %v5352 = vsel %vm153, %v5040, 0
  %v5355 = vsel %vm153, %v5041, 0
  %v5358 = vsel %vm153, %v5042, 0
  %v5361 = vsel %vm153, %v5043, 0
  %v5364 = vsel %vm153, %v5044, 0
  %v5367 = vsel %vm153, %v5045, 0
  %v5370 = vsel %vm153, %v5046, 0
  %v5373 = vsel %vm153, %v5047, 0
  %v5376 = vsel %vm153, %v5048, 0
  %v5379 = vsel %vm153, %v5049, 0
  %v5382 = vsel %vm153, %v5050, 0
  %v5385 = vsel %vm153, %v5051, 0
  %v5388 = vsel %vm153, %v5052, 0
  %v5391 = vsel %vm153, %v5053, 0
  %v5394 = vsel %vm153, %v5054, 0
  %v5397 = vsel %vm153, %v5055, 0
  %v5400 = vsel %vm153, %v5056, 0
  %v5403 = vsel %vm153, %v5057, 0
  %v5406 = vsel %vm153, %v5058, 0
  %v5409 = vsel %vm153, %v5059, 0
  %v5412 = vsel %vm153, %v5060, 0
  %v5415 = vsel %vm153, %v5061, 0
  %v5418 = vsel %vm153, %v5062, 0
  %v5421 = vsel %vm153, %v5063, 0
  %v5424 = vsel %vm153, %v5064, 0
  %v5427 = vsel %vm153, %v5065, 0
  %v5430 = vsel %vm153, %v5066, 0
  %v5433 = vsel %vm153, %v5067, 0
  %v5436 = vsel %vm153, %v5068, 0
  %v5439 = vsel %vm153, %v5069, 0
  %v5442 = vsel %vm153, %v5070, 0
  %v5445 = vsel %vm153, %v5071, 0
  %v5448 = vsel %vm153, %v5072, 0
  %v5451 = vsel %vm153, %v5073, 0
  %v5454 = vsel %vm153, %v5074, 0
  %v5457 = vsel %vm153, %v5075, 0
  %v5460 = vsel %vm153, %v5076, 0
  %v5463 = vsel %vm153, %v5077, 0
  %v5466 = vsel %vm153, %v5078, 0
  %v5469 = vsel %vm153, %v5079, 0
  %v5472 = vsel %vm153, %v5080, 0
  %v5475 = vsel %vm153, %v5081, 0
  %v5478 = vsel %vm153, %v5082, 0
  %v5481 = vsel %vm153, %v5084, 0
  %v5484 = vsel %vm153, %v5085, 0
  %v5487 = vsel %vm153, %v5086, 0
  %v5490 = vsel %vm153, %v5087, 0
  %5492 = vmatprep.subr.mxu0 0.0
  %5493 = vmatpush1.xpose.msra.mxu0 %v5481
  %5494 = vmatprep.subr.mxu0 0.0
  %5495 = vmatpush1.xpose.msra.mxu0 %v5484
  %5496 = vmatprep.subr.mxu0 0.0
  %5497 = vmatpush1.xpose.msra.mxu0 %v5487
  %5498 = vmatprep.subr.mxu0 0.0
  %5499 = vmatpush1.xpose.msra.mxu0 %v5490
  %5500 = vmatprep.subr.mxu0 0.0
  %5501 = vmatpush1.xpose.msra.mxu0 0.0
  %5502 = vmatprep.subr.mxu0 0.0
  %5503 = vmatpush1.xpose.msra.mxu0 0.0
  %5504 = vmatprep.subr.mxu0 0.0
  %5505 = vmatpush1.xpose.msra.mxu0 0.0
  %5506 = vmatprep.subr.mxu0 0.0
  %5507 = vmatpush1.xpose.msra.mxu0 0.0
  %5508 = vmatprep.subr.mxu0 0.0
  %5509 = vmatpush1.xpose.msra.mxu0 0.0
  %5510 = vmatprep.subr.mxu0 0.0
  %5511 = vmatpush1.xpose.msra.mxu0 0.0
  %5512 = vmatprep.subr.mxu0 0.0
  %5513 = vmatpush1.xpose.msra.mxu0 0.0
  %5514 = vmatprep.subr.mxu0 0.0
  %5515 = vmatpush1.xpose.msra.mxu0 0.0
  %5516 = vmatprep.subr.mxu0 0.0
  %5517 = vmatpush1.xpose.msra.mxu0 0.0
  %5518 = vmatprep.subr.mxu0 0.0
  %5519 = vmatpush1.xpose.msra.mxu0 0.0
  %5520 = vmatprep.subr.mxu0 0.0
  %5521 = vmatpush1.xpose.msra.mxu0 0.0
  %5522 = vmatprep.subr.mxu0 0.0
  %5523 = vmatpush1.xpose.msra.mxu0 0.0
  %5524 = vmatprep.subr.mxu0 0.0
  %5525 = vmatpush1.xpose.msra.mxu0 0.0
  %5526 = vmatprep.subr.mxu0 0.0
  %5527 = vmatpush1.xpose.msra.mxu0 0.0
  %5528 = vmatprep.subr.mxu0 0.0
  %5529 = vmatpush1.xpose.msra.mxu0 0.0
  %5530 = vmatprep.subr.mxu0 0.0
  %5531 = vmatpush1.xpose.msra.mxu0 0.0
  %5532 = vmatprep.subr.mxu0 0.0
  %5533 = vmatpush1.xpose.msra.mxu0 0.0
  %5534 = vmatprep.subr.mxu0 0.0
  %5535 = vmatpush1.xpose.msra.mxu0 0.0
  %5536 = vmatprep.subr.mxu0 0.0
  %5537 = vmatpush1.xpose.msra.mxu0 0.0
  %5538 = vmatprep.subr.mxu0 0.0
  %5539 = vmatpush1.xpose.msra.mxu0 0.0
  %5540 = vmatprep.subr.mxu0 0.0
  %5541 = vmatpush1.xpose.msra.mxu0 0.0
  %5542 = vmatprep.subr.mxu0 0.0
  %5543 = vmatpush1.xpose.msra.mxu0 0.0
  %5544 = vmatprep.subr.mxu0 0.0
  %5545 = vmatpush1.xpose.msra.mxu0 0.0
  %5546 = vmatprep.subr.mxu0 0.0
  %5547 = vmatpush1.xpose.msra.mxu0 0.0
  %5548 = vmatprep.subr.mxu0 0.0
  %5549 = vmatpush1.xpose.msra.mxu0 0.0
  %5550 = vmatprep.subr.mxu0 0.0
  %5551 = vmatpush1.xpose.msra.mxu0 0.0
  %5552 = vmatprep.subr.mxu0 0.0
  %5553 = vmatpush1.xpose.msra.mxu0 0.0
  %5554 = vmatprep.subr.mxu0 0.0
  %5555 = vmatpush1.xpose.msra.mxu0 0.0
  %5556 = vmatprep.mubr.f32.mxu0 0.0
  %5557 = vmatmul.mubr.f32.gmra.mrb[0].mxu0 %v5097
  %v5558 = vpop.f32.mrb[0].mxu0
  %v5559 = vadd.f32 %v5094, %v5558
  %v5560 = vpop.f32.mrb[0].mxu0
  %5561 = vmatprep.mubr.f32.mxu0 0.0
  %5562 = vmatmul.mubr.f32.gmra.mrb[0].mxu0 %v5100
  %v5563 = vpop.f32.mrb[0].mxu0
  %v5564 = vadd.f32 %v5094, %v5563
  %v5565 = vpop.f32.mrb[0].mxu0
  %5566 = vmatprep.mubr.f32.mxu0 0.0
  %5567 = vmatmul.mubr.f32.gmra.mrb[0].mxu0 %v5103
  %v5568 = vpop.f32.mrb[0].mxu0
  %v5569 = vadd.f32 %v5094, %v5568
  %v5570 = vpop.f32.mrb[0].mxu0
  %5571 = vmatprep.mubr.f32.mxu0 0.0
  %5572 = vmatmul.mubr.f32.gmra.mrb[0].mxu0 %v5106
  %v5573 = vpop.f32.mrb[0].mxu0
  %v5574 = vadd.f32 %v5094, %v5573
  %v5575 = vpop.f32.mrb[0].mxu0
  %5576 = vmatprep.mubr.f32.mxu0 0.0
  %5577 = vmatmul.mubr.f32.gmra.mrb[0].mxu0 %v5109
  %v5578 = vpop.f32.mrb[0].mxu0
  %v5579 = vadd.f32 %v5094, %v5578
  %v5580 = vpop.f32.mrb[0].mxu0
  %5581 = vmatprep.mubr.f32.mxu0 0.0
  %5582 = vmatmul.mubr.f32.gmra.mrb[0].mxu0 %v5112
  %v5583 = vpop.f32.mrb[0].mxu0
  %v5584 = vadd.f32 %v5094, %v5583
  %v5585 = vpop.f32.mrb[0].mxu0
  %5586 = vmatprep.mubr.f32.mxu0 0.0
  %5587 = vmatmul.mubr.f32.gmra.mrb[0].mxu0 %v5115
  %v5588 = vpop.f32.mrb[0].mxu0
  %v5589 = vadd.f32 %v5094, %v5588
  %v5590 = vpop.f32.mrb[0].mxu0
  %5591 = vmatprep.mubr.f32.mxu0 0.0
  %5592 = vmatmul.mubr.f32.gmra.mrb[0].mxu0 %v5118
  %v5593 = vpop.f32.mrb[0].mxu0
  %v5594 = vadd.f32 %v5094, %v5593
  %v5595 = vpop.f32.mrb[0].mxu0
  %5596 = vmatprep.mubr.f32.mxu0 0.0
  %5597 = vmatmul.mubr.f32.gmra.mrb[0].mxu0 %v5121
  %v5598 = vpop.f32.mrb[0].mxu0
  %v5599 = vadd.f32 %v5094, %v5598
  %v5600 = vpop.f32.mrb[0].mxu0
  %5601 = vmatprep.mubr.f32.mxu0 0.0
  %5602 = vmatmul.mubr.f32.gmra.mrb[0].mxu0 %v5124
  %v5603 = vpop.f32.mrb[0].mxu0
  %v5604 = vadd.f32 %v5094, %v5603
  %v5605 = vpop.f32.mrb[0].mxu0
  %5606 = vmatprep.mubr.f32.mxu0 0.0
  %5607 = vmatmul.mubr.f32.gmra.mrb[0].mxu0 %v5127
  %v5608 = vpop.f32.mrb[0].mxu0
  %v5609 = vadd.f32 %v5094, %v5608
  %v5610 = vpop.f32.mrb[0].mxu0
  %5611 = vmatprep.mubr.f32.mxu0 0.0
  %5612 = vmatmul.mubr.f32.gmra.mrb[0].mxu0 %v5130
  %v5613 = vpop.f32.mrb[0].mxu0
  %v5614 = vadd.f32 %v5094, %v5613
  %v5615 = vpop.f32.mrb[0].mxu0
  %5616 = vmatprep.mubr.f32.mxu0 0.0
  %5617 = vmatmul.mubr.f32.gmra.mrb[0].mxu0 %v5133
  %v5618 = vpop.f32.mrb[0].mxu0
  %v5619 = vadd.f32 %v5094, %v5618
  %v5620 = vpop.f32.mrb[0].mxu0
  %5621 = vmatprep.mubr.f32.mxu0 0.0
  %5622 = vmatmul.mubr.f32.gmra.mrb[0].mxu0 %v5136
  %v5623 = vpop.f32.mrb[0].mxu0
  %v5624 = vadd.f32 %v5094, %v5623
  %v5625 = vpop.f32.mrb[0].mxu0
  %5626 = vmatprep.mubr.f32.mxu0 0.0
  %5627 = vmatmul.mubr.f32.gmra.mrb[0].mxu0 %v5139
  %v5628 = vpop.f32.mrb[0].mxu0
  %v5629 = vadd.f32 %v5094, %v5628
  %v5630 = vpop.f32.mrb[0].mxu0
  %5631 = vmatprep.mubr.f32.mxu0 0.0
  %5632 = vmatmul.mubr.f32.gmra.mrb[0].mxu0 %v5142
  %v5633 = vpop.f32.mrb[0].mxu0
  %v5634 = vadd.f32 %v5094, %v5633
  %v5635 = vpop.f32.mrb[0].mxu0
  %5636 = vmatprep.mubr.f32.mxu0 0.0
  %5637 = vmatmul.mubr.f32.gmra.mrb[0].mxu0 %v5145
  %v5638 = vpop.f32.mrb[0].mxu0
  %v5639 = vadd.f32 %v5094, %v5638
  %v5640 = vpop.f32.mrb[0].mxu0
  %5641 = vmatprep.mubr.f32.mxu0 0.0
  %5642 = vmatmul.mubr.f32.gmra.mrb[0].mxu0 %v5148
  %v5643 = vpop.f32.mrb[0].mxu0
  %v5644 = vadd.f32 %v5094, %v5643
  %v5645 = vpop.f32.mrb[0].mxu0
  %5646 = vmatprep.mubr.f32.mxu0 0.0
  %5647 = vmatmul.mubr.f32.gmra.mrb[0].mxu0 %v5151
  %v5648 = vpop.f32.mrb[0].mxu0
  %v5649 = vadd.f32 %v5094, %v5648
  %v5650 = vpop.f32.mrb[0].mxu0
  %5651 = vmatprep.mubr.f32.mxu0 0.0
  %5652 = vmatmul.mubr.f32.gmra.mrb[0].mxu0 %v5154
  %v5653 = vpop.f32.mrb[0].mxu0
  %v5654 = vadd.f32 %v5094, %v5653
  %v5655 = vpop.f32.mrb[0].mxu0
  %5656 = vmatprep.mubr.f32.mxu0 0.0
  %5657 = vmatmul.mubr.f32.gmra.mrb[0].mxu0 %v5157
  %v5658 = vpop.f32.mrb[0].mxu0
  %v5659 = vadd.f32 %v5094, %v5658
  %v5660 = vpop.f32.mrb[0].mxu0
  %5661 = vmatprep.mubr.f32.mxu0 0.0
  %5662 = vmatmul.mubr.f32.gmra.mrb[0].mxu0 %v5160
  %v5663 = vpop.f32.mrb[0].mxu0
  %v5664 = vadd.f32 %v5094, %v5663
  %v5665 = vpop.f32.mrb[0].mxu0
  %5666 = vmatprep.mubr.f32.mxu0 0.0
  %5667 = vmatmul.mubr.f32.gmra.mrb[0].mxu0 %v5163
  %v5668 = vpop.f32.mrb[0].mxu0
  %v5669 = vadd.f32 %v5094, %v5668
  %v5670 = vpop.f32.mrb[0].mxu0
  %5671 = vmatprep.mubr.f32.mxu0 0.0
  %5672 = vmatmul.mubr.f32.gmra.mrb[0].mxu0 %v5166
  %v5673 = vpop.f32.mrb[0].mxu0
  %v5674 = vadd.f32 %v5094, %v5673
  %v5675 = vpop.f32.mrb[0].mxu0
  %5676 = vmatprep.mubr.f32.mxu0 0.0
  %5677 = vmatmul.mubr.f32.gmra.mrb[0].mxu0 %v5169
  %v5678 = vpop.f32.mrb[0].mxu0
  %v5679 = vadd.f32 %v5094, %v5678
  %v5680 = vpop.f32.mrb[0].mxu0
  %5681 = vmatprep.mubr.f32.mxu0 0.0
  %5682 = vmatmul.mubr.f32.gmra.mrb[0].mxu0 %v5172
  %v5683 = vpop.f32.mrb[0].mxu0
  %v5684 = vadd.f32 %v5094, %v5683
  %v5685 = vpop.f32.mrb[0].mxu0
  %5686 = vmatprep.mubr.f32.mxu0 0.0
  %5687 = vmatmul.mubr.f32.gmra.mrb[0].mxu0 %v5175
  %v5688 = vpop.f32.mrb[0].mxu0
  %v5689 = vadd.f32 %v5094, %v5688
  %v5690 = vpop.f32.mrb[0].mxu0
  %5691 = vmatprep.mubr.f32.mxu0 0.0
  %5692 = vmatmul.mubr.f32.gmra.mrb[0].mxu0 %v5178
  %v5693 = vpop.f32.mrb[0].mxu0
  %v5694 = vadd.f32 %v5094, %v5693
  %v5695 = vpop.f32.mrb[0].mxu0
  %5696 = vmatprep.mubr.f32.mxu0 0.0
  %5697 = vmatmul.mubr.f32.gmra.mrb[0].mxu0 %v5181
  %v5698 = vpop.f32.mrb[0].mxu0
  %v5699 = vadd.f32 %v5094, %v5698
  %v5700 = vpop.f32.mrb[0].mxu0
  %5701 = vmatprep.mubr.f32.mxu0 0.0
  %5702 = vmatmul.mubr.f32.gmra.mrb[0].mxu0 %v5184
  %v5703 = vpop.f32.mrb[0].mxu0
  %v5704 = vadd.f32 %v5094, %v5703
  %v5705 = vpop.f32.mrb[0].mxu0
  %5706 = vmatprep.mubr.f32.mxu0 0.0
  %5707 = vmatmul.mubr.f32.gmra.mrb[0].mxu0 %v5187
  %v5708 = vpop.f32.mrb[0].mxu0
  %v5709 = vadd.f32 %v5094, %v5708
  %v5710 = vpop.f32.mrb[0].mxu0
  %5711 = vmatprep.mubr.f32.mxu0 0.0
  %5712 = vmatmul.mubr.f32.gmra.mrb[0].mxu0 %v5190
  %v5713 = vpop.f32.mrb[0].mxu0
  %v5714 = vadd.f32 %v5094, %v5713
  %v5715 = vpop.f32.mrb[0].mxu0
  %5716 = vmatprep.mubr.f32.mxu0 0.0
  %5717 = vmatmul.mubr.f32.gmra.mrb[0].mxu0 %v5193
  %v5718 = vpop.f32.mrb[0].mxu0
  %v5719 = vadd.f32 %v5094, %v5718
  %v5720 = vpop.f32.mrb[0].mxu0
  %5721 = vmatprep.mubr.f32.mxu0 0.0
  %5722 = vmatmul.mubr.f32.gmra.mrb[0].mxu0 %v5196
  %v5723 = vpop.f32.mrb[0].mxu0
  %v5724 = vadd.f32 %v5094, %v5723
  %v5725 = vpop.f32.mrb[0].mxu0
  %5726 = vmatprep.mubr.f32.mxu0 0.0
  %5727 = vmatmul.mubr.f32.gmra.mrb[0].mxu0 %v5199
  %v5728 = vpop.f32.mrb[0].mxu0
  %v5729 = vadd.f32 %v5094, %v5728
  %v5730 = vpop.f32.mrb[0].mxu0
  %5731 = vmatprep.mubr.f32.mxu0 0.0
  %5732 = vmatmul.mubr.f32.gmra.mrb[0].mxu0 %v5202
  %v5733 = vpop.f32.mrb[0].mxu0
  %v5734 = vadd.f32 %v5094, %v5733
  %v5735 = vpop.f32.mrb[0].mxu0
  %5736 = vmatprep.mubr.f32.mxu0 0.0
  %5737 = vmatmul.mubr.f32.gmra.mrb[0].mxu0 %v5205
  %v5738 = vpop.f32.mrb[0].mxu0
  %v5739 = vadd.f32 %v5094, %v5738
  %v5740 = vpop.f32.mrb[0].mxu0
  %5741 = vmatprep.mubr.f32.mxu0 0.0
  %5742 = vmatmul.mubr.f32.gmra.mrb[0].mxu0 %v5208
  %v5743 = vpop.f32.mrb[0].mxu0
  %v5744 = vadd.f32 %v5094, %v5743
  %v5745 = vpop.f32.mrb[0].mxu0
  %5746 = vmatprep.mubr.f32.mxu0 0.0
  %5747 = vmatmul.mubr.f32.gmra.mrb[0].mxu0 %v5211
  %v5748 = vpop.f32.mrb[0].mxu0
  %v5749 = vadd.f32 %v5094, %v5748
  %v5750 = vpop.f32.mrb[0].mxu0
  %5751 = vmatprep.mubr.f32.mxu0 0.0
  %5752 = vmatmul.mubr.f32.gmra.mrb[0].mxu0 %v5214
  %v5753 = vpop.f32.mrb[0].mxu0
  %v5754 = vadd.f32 %v5094, %v5753
  %v5755 = vpop.f32.mrb[0].mxu0
  %5756 = vmatprep.mubr.f32.mxu0 0.0
  %5757 = vmatmul.mubr.f32.gmra.mrb[0].mxu0 %v5217
  %v5758 = vpop.f32.mrb[0].mxu0
  %v5759 = vadd.f32 %v5094, %v5758
  %v5760 = vpop.f32.mrb[0].mxu0
  %5761 = vmatprep.mubr.f32.mxu0 0.0
  %5762 = vmatmul.mubr.f32.gmra.mrb[0].mxu0 %v5220
  %v5763 = vpop.f32.mrb[0].mxu0
  %v5764 = vadd.f32 %v5094, %v5763
  %v5765 = vpop.f32.mrb[0].mxu0
  %5766 = vmatprep.mubr.f32.mxu0 0.0
  %5767 = vmatmul.mubr.f32.gmra.mrb[0].mxu0 %v5223
  %v5768 = vpop.f32.mrb[0].mxu0
  %v5769 = vadd.f32 %v5094, %v5768
  %v5770 = vpop.f32.mrb[0].mxu0
  %5771 = vmatprep.mubr.f32.mxu0 0.0
  %5772 = vmatmul.mubr.f32.gmra.mrb[0].mxu0 %v5226
  %v5773 = vpop.f32.mrb[0].mxu0
  %v5774 = vadd.f32 %v5094, %v5773
  %v5775 = vpop.f32.mrb[0].mxu0
  %5776 = vmatprep.mubr.f32.mxu0 0.0
  %5777 = vmatmul.mubr.f32.gmra.mrb[0].mxu0 %v5229
  %v5778 = vpop.f32.mrb[0].mxu0
  %v5779 = vadd.f32 %v5094, %v5778
  %v5780 = vpop.f32.mrb[0].mxu0
  %5781 = vmatprep.mubr.f32.mxu0 0.0
  %5782 = vmatmul.mubr.f32.gmra.mrb[0].mxu0 %v5232
  %v5783 = vpop.f32.mrb[0].mxu0
  %v5784 = vadd.f32 %v5094, %v5783
  %v5785 = vpop.f32.mrb[0].mxu0
  %5786 = vmatprep.mubr.f32.mxu0 0.0
  %5787 = vmatmul.mubr.f32.gmra.mrb[0].mxu0 %v5235
  %v5788 = vpop.f32.mrb[0].mxu0
  %v5789 = vadd.f32 %v5094, %v5788
  %v5790 = vpop.f32.mrb[0].mxu0
  %5791 = vmatprep.mubr.f32.mxu0 0.0
  %5792 = vmatmul.mubr.f32.gmra.mrb[0].mxu0 %v5238
  %v5793 = vpop.f32.mrb[0].mxu0
  %v5794 = vadd.f32 %v5094, %v5793
  %v5795 = vpop.f32.mrb[0].mxu0
  %5796 = vmatprep.mubr.f32.mxu0 0.0
  %5797 = vmatmul.mubr.f32.gmra.mrb[0].mxu0 %v5241
  %v5798 = vpop.f32.mrb[0].mxu0
  %v5799 = vadd.f32 %v5094, %v5798
  %v5800 = vpop.f32.mrb[0].mxu0
  %5801 = vmatprep.mubr.f32.mxu0 0.0
  %5802 = vmatmul.mubr.f32.gmra.mrb[0].mxu0 %v5244
  %v5803 = vpop.f32.mrb[0].mxu0
  %v5804 = vadd.f32 %v5094, %v5803
  %v5805 = vpop.f32.mrb[0].mxu0
  %5806 = vmatprep.mubr.f32.mxu0 0.0
  %5807 = vmatmul.mubr.f32.gmra.mrb[0].mxu0 %v5247
  %v5808 = vpop.f32.mrb[0].mxu0
  %v5809 = vadd.f32 %v5094, %v5808
  %v5810 = vpop.f32.mrb[0].mxu0
  %5811 = vmatprep.mubr.f32.mxu0 0.0
  %5812 = vmatmul.mubr.f32.gmra.mrb[0].mxu0 %v5250
  %v5813 = vpop.f32.mrb[0].mxu0
  %v5814 = vadd.f32 %v5094, %v5813
  %v5815 = vpop.f32.mrb[0].mxu0
  %5816 = vmatprep.mubr.f32.mxu0 0.0
  %5817 = vmatmul.mubr.f32.gmra.mrb[0].mxu0 %v5253
  %v5818 = vpop.f32.mrb[0].mxu0
  %v5819 = vadd.f32 %v5094, %v5818
  %v5820 = vpop.f32.mrb[0].mxu0
  %5821 = vmatprep.mubr.f32.mxu0 0.0
  %5822 = vmatmul.mubr.f32.gmra.mrb[0].mxu0 %v5256
  %v5823 = vpop.f32.mrb[0].mxu0
  %v5824 = vadd.f32 %v5094, %v5823
  %v5825 = vpop.f32.mrb[0].mxu0
  %5826 = vmatprep.mubr.f32.mxu0 0.0
  %5827 = vmatmul.mubr.f32.gmra.mrb[0].mxu0 %v5259
  %v5828 = vpop.f32.mrb[0].mxu0
  %v5829 = vadd.f32 %v5094, %v5828
  %v5830 = vpop.f32.mrb[0].mxu0
  %5831 = vmatprep.mubr.f32.mxu0 0.0
  %5832 = vmatmul.mubr.f32.gmra.mrb[0].mxu0 %v5262
  %v5833 = vpop.f32.mrb[0].mxu0
  %v5834 = vadd.f32 %v5094, %v5833
  %v5835 = vpop.f32.mrb[0].mxu0
  %5836 = vmatprep.mubr.f32.mxu0 0.0
  %5837 = vmatmul.mubr.f32.gmra.mrb[0].mxu0 %v5265
  %v5838 = vpop.f32.mrb[0].mxu0
  %v5839 = vadd.f32 %v5094, %v5838
  %v5840 = vpop.f32.mrb[0].mxu0
  %5841 = vmatprep.mubr.f32.mxu0 0.0
  %5842 = vmatmul.mubr.f32.gmra.mrb[0].mxu0 %v5268
  %v5843 = vpop.f32.mrb[0].mxu0
  %v5844 = vadd.f32 %v5094, %v5843
  %v5845 = vpop.f32.mrb[0].mxu0
  %5846 = vmatprep.mubr.f32.mxu0 0.0
  %5847 = vmatmul.mubr.f32.gmra.mrb[0].mxu0 %v5271
  %v5848 = vpop.f32.mrb[0].mxu0
  %v5849 = vadd.f32 %v5094, %v5848
  %v5850 = vpop.f32.mrb[0].mxu0
  %5851 = vmatprep.mubr.f32.mxu0 0.0
  %5852 = vmatmul.mubr.f32.gmra.mrb[0].mxu0 %v5274
  %v5853 = vpop.f32.mrb[0].mxu0
  %v5854 = vadd.f32 %v5094, %v5853
  %v5855 = vpop.f32.mrb[0].mxu0
  %5856 = vmatprep.mubr.f32.mxu0 0.0
  %5857 = vmatmul.mubr.f32.gmra.mrb[0].mxu0 %v5277
  %v5858 = vpop.f32.mrb[0].mxu0
  %v5859 = vadd.f32 %v5094, %v5858
  %v5860 = vpop.f32.mrb[0].mxu0
  %5861 = vmatprep.mubr.f32.mxu0 0.0
  %5862 = vmatmul.mubr.f32.gmra.mrb[0].mxu0 %v5280
  %v5863 = vpop.f32.mrb[0].mxu0
  %v5864 = vadd.f32 %v5094, %v5863
  %v5865 = vpop.f32.mrb[0].mxu0
  %5866 = vmatprep.mubr.f32.mxu0 0.0
  %5867 = vmatmul.mubr.f32.gmra.mrb[0].mxu0 %v5283
  %v5868 = vpop.f32.mrb[0].mxu0
  %v5869 = vadd.f32 %v5094, %v5868
  %v5870 = vpop.f32.mrb[0].mxu0
  %5871 = vmatprep.mubr.f32.mxu0 0.0
  %5872 = vmatmul.mubr.f32.gmra.mrb[0].mxu0 %v5286
  %v5873 = vpop.f32.mrb[0].mxu0
  %v5874 = vadd.f32 %v5094, %v5873
  %v5875 = vpop.f32.mrb[0].mxu0
  %5876 = vmatprep.mubr.f32.mxu0 0.0
  %5877 = vmatmul.mubr.f32.gmra.mrb[0].mxu0 %v5289
  %v5878 = vpop.f32.mrb[0].mxu0
  %v5879 = vadd.f32 %v5094, %v5878
  %v5880 = vpop.f32.mrb[0].mxu0
  %5881 = vmatprep.mubr.f32.mxu0 0.0
  %5882 = vmatmul.mubr.f32.gmra.mrb[0].mxu0 %v5292
  %v5883 = vpop.f32.mrb[0].mxu0
  %v5884 = vadd.f32 %v5094, %v5883
  %v5885 = vpop.f32.mrb[0].mxu0
  %5886 = vmatprep.mubr.f32.mxu0 0.0
  %5887 = vmatmul.mubr.f32.gmra.mrb[0].mxu0 %v5295
  %v5888 = vpop.f32.mrb[0].mxu0
  %v5889 = vadd.f32 %v5094, %v5888
  %v5890 = vpop.f32.mrb[0].mxu0
  %5891 = vmatprep.mubr.f32.mxu0 0.0
  %5892 = vmatmul.mubr.f32.gmra.mrb[0].mxu0 %v5298
  %v5893 = vpop.f32.mrb[0].mxu0
  %v5894 = vadd.f32 %v5094, %v5893
  %v5895 = vpop.f32.mrb[0].mxu0
  %5896 = vmatprep.mubr.f32.mxu0 0.0
  %5897 = vmatmul.mubr.f32.gmra.mrb[0].mxu0 %v5301
  %v5898 = vpop.f32.mrb[0].mxu0
  %v5899 = vadd.f32 %v5094, %v5898
  %v5900 = vpop.f32.mrb[0].mxu0
  %5901 = vmatprep.mubr.f32.mxu0 0.0
  %5902 = vmatmul.mubr.f32.gmra.mrb[0].mxu0 %v5304
  %v5903 = vpop.f32.mrb[0].mxu0
  %v5904 = vadd.f32 %v5094, %v5903
  %v5905 = vpop.f32.mrb[0].mxu0
  %5906 = vmatprep.mubr.f32.mxu0 0.0
  %5907 = vmatmul.mubr.f32.gmra.mrb[0].mxu0 %v5307
  %v5908 = vpop.f32.mrb[0].mxu0
  %v5909 = vadd.f32 %v5094, %v5908
  %v5910 = vpop.f32.mrb[0].mxu0
  %5911 = vmatprep.mubr.f32.mxu0 0.0
  %5912 = vmatmul.mubr.f32.gmra.mrb[0].mxu0 %v5310
  %v5913 = vpop.f32.mrb[0].mxu0
  %v5914 = vadd.f32 %v5094, %v5913
  %v5915 = vpop.f32.mrb[0].mxu0
  %5916 = vmatprep.mubr.f32.mxu0 0.0
  %5917 = vmatmul.mubr.f32.gmra.mrb[0].mxu0 %v5313
  %v5918 = vpop.f32.mrb[0].mxu0
  %v5919 = vadd.f32 %v5094, %v5918
  %v5920 = vpop.f32.mrb[0].mxu0
  %5921 = vmatprep.mubr.f32.mxu0 0.0
  %5922 = vmatmul.mubr.f32.gmra.mrb[0].mxu0 %v5316
  %v5923 = vpop.f32.mrb[0].mxu0
  %v5924 = vadd.f32 %v5094, %v5923
  %v5925 = vpop.f32.mrb[0].mxu0
  %5926 = vmatprep.mubr.f32.mxu0 0.0
  %5927 = vmatmul.mubr.f32.gmra.mrb[0].mxu0 %v5319
  %v5928 = vpop.f32.mrb[0].mxu0
  %v5929 = vadd.f32 %v5094, %v5928
  %v5930 = vpop.f32.mrb[0].mxu0
  %5931 = vmatprep.mubr.f32.mxu0 0.0
  %5932 = vmatmul.mubr.f32.gmra.mrb[0].mxu0 %v5322
  %v5933 = vpop.f32.mrb[0].mxu0
  %v5934 = vadd.f32 %v5094, %v5933
  %v5935 = vpop.f32.mrb[0].mxu0
  %5936 = vmatprep.mubr.f32.mxu0 0.0
  %5937 = vmatmul.mubr.f32.gmra.mrb[0].mxu0 %v5325
  %v5938 = vpop.f32.mrb[0].mxu0
  %v5939 = vadd.f32 %v5094, %v5938
  %v5940 = vpop.f32.mrb[0].mxu0
  %5941 = vmatprep.mubr.f32.mxu0 0.0
  %5942 = vmatmul.mubr.f32.gmra.mrb[0].mxu0 %v5328
  %v5943 = vpop.f32.mrb[0].mxu0
  %v5944 = vadd.f32 %v5094, %v5943
  %v5945 = vpop.f32.mrb[0].mxu0
  %5946 = vmatprep.mubr.f32.mxu0 0.0
  %5947 = vmatmul.mubr.f32.gmra.mrb[0].mxu0 %v5331
  %v5948 = vpop.f32.mrb[0].mxu0
  %v5949 = vadd.f32 %v5094, %v5948
  %v5950 = vpop.f32.mrb[0].mxu0
  %5951 = vmatprep.mubr.f32.mxu0 0.0
  %5952 = vmatmul.mubr.f32.gmra.mrb[0].mxu0 %v5334
  %v5953 = vpop.f32.mrb[0].mxu0
  %v5954 = vadd.f32 %v5094, %v5953
  %v5955 = vpop.f32.mrb[0].mxu0
  %5956 = vmatprep.mubr.f32.mxu0 0.0
  %5957 = vmatmul.mubr.f32.gmra.mrb[0].mxu0 %v5337
  %v5958 = vpop.f32.mrb[0].mxu0
  %v5959 = vadd.f32 %v5094, %v5958
  %v5960 = vpop.f32.mrb[0].mxu0
  %5961 = vmatprep.mubr.f32.mxu0 0.0
  %5962 = vmatmul.mubr.f32.gmra.mrb[0].mxu0 %v5340
  %v5963 = vpop.f32.mrb[0].mxu0
  %v5964 = vadd.f32 %v5094, %v5963
  %v5965 = vpop.f32.mrb[0].mxu0
  %5966 = vmatprep.mubr.f32.mxu0 0.0
  %5967 = vmatmul.mubr.f32.gmra.mrb[0].mxu0 %v5343
  %v5968 = vpop.f32.mrb[0].mxu0
  %v5969 = vadd.f32 %v5094, %v5968
  %v5970 = vpop.f32.mrb[0].mxu0
  %5971 = vmatprep.mubr.f32.mxu0 0.0
  %5972 = vmatmul.mubr.f32.gmra.mrb[0].mxu0 %v5346
  %v5973 = vpop.f32.mrb[0].mxu0
  %v5974 = vadd.f32 %v5094, %v5973
  %v5975 = vpop.f32.mrb[0].mxu0
  %5976 = vmatprep.mubr.f32.mxu0 0.0
  %5977 = vmatmul.mubr.f32.gmra.mrb[0].mxu0 %v5349
  %v5978 = vpop.f32.mrb[0].mxu0
  %v5979 = vadd.f32 %v5094, %v5978
  %v5980 = vpop.f32.mrb[0].mxu0
  %5981 = vmatprep.mubr.f32.mxu0 0.0
  %5982 = vmatmul.mubr.f32.gmra.mrb[0].mxu0 %v5352
  %v5983 = vpop.f32.mrb[0].mxu0
  %v5984 = vadd.f32 %v5094, %v5983
  %v5985 = vpop.f32.mrb[0].mxu0
  %5986 = vmatprep.mubr.f32.mxu0 0.0
  %5987 = vmatmul.mubr.f32.gmra.mrb[0].mxu0 %v5355
  %v5988 = vpop.f32.mrb[0].mxu0
  %v5989 = vadd.f32 %v5094, %v5988
  %v5990 = vpop.f32.mrb[0].mxu0
  %5991 = vmatprep.mubr.f32.mxu0 0.0
  %5992 = vmatmul.mubr.f32.gmra.mrb[0].mxu0 %v5358
  %v5993 = vpop.f32.mrb[0].mxu0
  %v5994 = vadd.f32 %v5094, %v5993
  %v5995 = vpop.f32.mrb[0].mxu0
  %5996 = vmatprep.mubr.f32.mxu0 0.0
  %5997 = vmatmul.mubr.f32.gmra.mrb[0].mxu0 %v5361
  %v5998 = vpop.f32.mrb[0].mxu0
  %v5999 = vadd.f32 %v5094, %v5998
  %v6000 = vpop.f32.mrb[0].mxu0
  %6001 = vmatprep.mubr.f32.mxu0 0.0
  %6002 = vmatmul.mubr.f32.gmra.mrb[0].mxu0 %v5364
  %v6003 = vpop.f32.mrb[0].mxu0
  %v6004 = vadd.f32 %v5094, %v6003
  %v6005 = vpop.f32.mrb[0].mxu0
  %6006 = vmatprep.mubr.f32.mxu0 0.0
  %6007 = vmatmul.mubr.f32.gmra.mrb[0].mxu0 %v5367
  %v6008 = vpop.f32.mrb[0].mxu0
  %v6009 = vadd.f32 %v5094, %v6008
  %v6010 = vpop.f32.mrb[0].mxu0
  %6011 = vmatprep.mubr.f32.mxu0 0.0
  %6012 = vmatmul.mubr.f32.gmra.mrb[0].mxu0 %v5370
  %v6013 = vpop.f32.mrb[0].mxu0
  %v6014 = vadd.f32 %v5094, %v6013
  %v6015 = vpop.f32.mrb[0].mxu0
  %6016 = vmatprep.mubr.f32.mxu0 0.0
  %6017 = vmatmul.mubr.f32.gmra.mrb[0].mxu0 %v5373
  %v6018 = vpop.f32.mrb[0].mxu0
  %v6019 = vadd.f32 %v5094, %v6018
  %v6020 = vpop.f32.mrb[0].mxu0
  %6021 = vmatprep.mubr.f32.mxu0 0.0
  %6022 = vmatmul.mubr.f32.gmra.mrb[0].mxu0 %v5376
  %v6023 = vpop.f32.mrb[0].mxu0
  %v6024 = vadd.f32 %v5094, %v6023
  %v6025 = vpop.f32.mrb[0].mxu0
  %6026 = vmatprep.mubr.f32.mxu0 0.0
  %6027 = vmatmul.mubr.f32.gmra.mrb[0].mxu0 %v5379
  %v6028 = vpop.f32.mrb[0].mxu0
  %v6029 = vadd.f32 %v5094, %v6028
  %v6030 = vpop.f32.mrb[0].mxu0
  %6031 = vmatprep.mubr.f32.mxu0 0.0
  %6032 = vmatmul.mubr.f32.gmra.mrb[0].mxu0 %v5382
  %v6033 = vpop.f32.mrb[0].mxu0
  %v6034 = vadd.f32 %v5094, %v6033
  %v6035 = vpop.f32.mrb[0].mxu0
  %6036 = vmatprep.mubr.f32.mxu0 0.0
  %6037 = vmatmul.mubr.f32.gmra.mrb[0].mxu0 %v5385
  %v6038 = vpop.f32.mrb[0].mxu0
  %v6039 = vadd.f32 %v5094, %v6038
  %v6040 = vpop.f32.mrb[0].mxu0
  %6041 = vmatprep.mubr.f32.mxu0 0.0
  %6042 = vmatmul.mubr.f32.gmra.mrb[0].mxu0 %v5388
  %v6043 = vpop.f32.mrb[0].mxu0
  %v6044 = vadd.f32 %v5094, %v6043
  %v6045 = vpop.f32.mrb[0].mxu0
  %6046 = vmatprep.mubr.f32.mxu0 0.0
  %6047 = vmatmul.mubr.f32.gmra.mrb[0].mxu0 %v5391
  %v6048 = vpop.f32.mrb[0].mxu0
  %v6049 = vadd.f32 %v5094, %v6048
  %v6050 = vpop.f32.mrb[0].mxu0
  %6051 = vmatprep.mubr.f32.mxu0 0.0
  %6052 = vmatmul.mubr.f32.gmra.mrb[0].mxu0 %v5394
  %v6053 = vpop.f32.mrb[0].mxu0
  %v6054 = vadd.f32 %v5094, %v6053
  %v6055 = vpop.f32.mrb[0].mxu0
  %6056 = vmatprep.mubr.f32.mxu0 0.0
  %6057 = vmatmul.mubr.f32.gmra.mrb[0].mxu0 %v5397
  %v6058 = vpop.f32.mrb[0].mxu0
  %v6059 = vadd.f32 %v5094, %v6058
  %v6060 = vpop.f32.mrb[0].mxu0
  %6061 = vmatprep.mubr.f32.mxu0 0.0
  %6062 = vmatmul.mubr.f32.gmra.mrb[0].mxu0 %v5400
  %v6063 = vpop.f32.mrb[0].mxu0
  %v6064 = vadd.f32 %v5094, %v6063
  %v6065 = vpop.f32.mrb[0].mxu0
  %6066 = vmatprep.mubr.f32.mxu0 0.0
  %6067 = vmatmul.mubr.f32.gmra.mrb[0].mxu0 %v5403
  %v6068 = vpop.f32.mrb[0].mxu0
  %v6069 = vadd.f32 %v5094, %v6068
  %v6070 = vpop.f32.mrb[0].mxu0
  %6071 = vmatprep.mubr.f32.mxu0 0.0
  %6072 = vmatmul.mubr.f32.gmra.mrb[0].mxu0 %v5406
  %v6073 = vpop.f32.mrb[0].mxu0
  %v6074 = vadd.f32 %v5094, %v6073
  %v6075 = vpop.f32.mrb[0].mxu0
  %6076 = vmatprep.mubr.f32.mxu0 0.0
  %6077 = vmatmul.mubr.f32.gmra.mrb[0].mxu0 %v5409
  %v6078 = vpop.f32.mrb[0].mxu0
  %v6079 = vadd.f32 %v5094, %v6078
  %v6080 = vpop.f32.mrb[0].mxu0
  %6081 = vmatprep.mubr.f32.mxu0 0.0
  %6082 = vmatmul.mubr.f32.gmra.mrb[0].mxu0 %v5412
  %v6083 = vpop.f32.mrb[0].mxu0
  %v6084 = vadd.f32 %v5094, %v6083
  %v6085 = vpop.f32.mrb[0].mxu0
  %6086 = vmatprep.mubr.f32.mxu0 0.0
  %6087 = vmatmul.mubr.f32.gmra.mrb[0].mxu0 %v5415
  %v6088 = vpop.f32.mrb[0].mxu0
  %v6089 = vadd.f32 %v5094, %v6088
  %v6090 = vpop.f32.mrb[0].mxu0
  %6091 = vmatprep.mubr.f32.mxu0 0.0
  %6092 = vmatmul.mubr.f32.gmra.mrb[0].mxu0 %v5418
  %v6093 = vpop.f32.mrb[0].mxu0
  %v6094 = vadd.f32 %v5094, %v6093
  %v6095 = vpop.f32.mrb[0].mxu0
  %6096 = vmatprep.mubr.f32.mxu0 0.0
  %6097 = vmatmul.mubr.f32.gmra.mrb[0].mxu0 %v5421
  %v6098 = vpop.f32.mrb[0].mxu0
  %v6099 = vadd.f32 %v5094, %v6098
  %v6100 = vpop.f32.mrb[0].mxu0
  %6101 = vmatprep.mubr.f32.mxu0 0.0
  %6102 = vmatmul.mubr.f32.gmra.mrb[0].mxu0 %v5424
  %v6103 = vpop.f32.mrb[0].mxu0
  %v6104 = vadd.f32 %v5094, %v6103
  %v6105 = vpop.f32.mrb[0].mxu0
  %6106 = vmatprep.mubr.f32.mxu0 0.0
  %6107 = vmatmul.mubr.f32.gmra.mrb[0].mxu0 %v5427
  %v6108 = vpop.f32.mrb[0].mxu0
  %v6109 = vadd.f32 %v5094, %v6108
  %v6110 = vpop.f32.mrb[0].mxu0
  %6111 = vmatprep.mubr.f32.mxu0 0.0
  %6112 = vmatmul.mubr.f32.gmra.mrb[0].mxu0 %v5430
  %v6113 = vpop.f32.mrb[0].mxu0
  %v6114 = vadd.f32 %v5094, %v6113
  %v6115 = vpop.f32.mrb[0].mxu0
  %6116 = vmatprep.mubr.f32.mxu0 0.0
  %6117 = vmatmul.mubr.f32.gmra.mrb[0].mxu0 %v5433
  %v6118 = vpop.f32.mrb[0].mxu0
  %v6119 = vadd.f32 %v5094, %v6118
  %v6120 = vpop.f32.mrb[0].mxu0
  %6121 = vmatprep.mubr.f32.mxu0 0.0
  %6122 = vmatmul.mubr.f32.gmra.mrb[0].mxu0 %v5436
  %v6123 = vpop.f32.mrb[0].mxu0
  %v6124 = vadd.f32 %v5094, %v6123
  %v6125 = vpop.f32.mrb[0].mxu0
  %6126 = vmatprep.mubr.f32.mxu0 0.0
  %6127 = vmatmul.mubr.f32.gmra.mrb[0].mxu0 %v5439
  %v6128 = vpop.f32.mrb[0].mxu0
  %v6129 = vadd.f32 %v5094, %v6128
  %v6130 = vpop.f32.mrb[0].mxu0
  %6131 = vmatprep.mubr.f32.mxu0 0.0
  %6132 = vmatmul.mubr.f32.gmra.mrb[0].mxu0 %v5442
  %v6133 = vpop.f32.mrb[0].mxu0
  %v6134 = vadd.f32 %v5094, %v6133
  %v6135 = vpop.f32.mrb[0].mxu0
  %6136 = vmatprep.mubr.f32.mxu0 0.0
  %6137 = vmatmul.mubr.f32.gmra.mrb[0].mxu0 %v5445
  %v6138 = vpop.f32.mrb[0].mxu0
  %v6139 = vadd.f32 %v5094, %v6138
  %v6140 = vpop.f32.mrb[0].mxu0
  %6141 = vmatprep.mubr.f32.mxu0 0.0
  %6142 = vmatmul.mubr.f32.gmra.mrb[0].mxu0 %v5448
  %v6143 = vpop.f32.mrb[0].mxu0
  %v6144 = vadd.f32 %v5094, %v6143
  %v6145 = vpop.f32.mrb[0].mxu0
  %6146 = vmatprep.mubr.f32.mxu0 0.0
  %6147 = vmatmul.mubr.f32.gmra.mrb[0].mxu0 %v5451
  %v6148 = vpop.f32.mrb[0].mxu0
  %v6149 = vadd.f32 %v5094, %v6148
  %v6150 = vpop.f32.mrb[0].mxu0
  %6151 = vmatprep.mubr.f32.mxu0 0.0
  %6152 = vmatmul.mubr.f32.gmra.mrb[0].mxu0 %v5454
  %v6153 = vpop.f32.mrb[0].mxu0
  %v6154 = vadd.f32 %v5094, %v6153
  %v6155 = vpop.f32.mrb[0].mxu0
  %6156 = vmatprep.mubr.f32.mxu0 0.0
  %6157 = vmatmul.mubr.f32.gmra.mrb[0].mxu0 %v5457
  %v6158 = vpop.f32.mrb[0].mxu0
  %v6159 = vadd.f32 %v5094, %v6158
  %v6160 = vpop.f32.mrb[0].mxu0
  %6161 = vmatprep.mubr.f32.mxu0 0.0
  %6162 = vmatmul.mubr.f32.gmra.mrb[0].mxu0 %v5460
  %v6163 = vpop.f32.mrb[0].mxu0
  %v6164 = vadd.f32 %v5094, %v6163
  %v6165 = vpop.f32.mrb[0].mxu0
  %6166 = vmatprep.mubr.f32.mxu0 0.0
  %6167 = vmatmul.mubr.f32.gmra.mrb[0].mxu0 %v5463
  %v6168 = vpop.f32.mrb[0].mxu0
  %v6169 = vadd.f32 %v5094, %v6168
  %v6170 = vpop.f32.mrb[0].mxu0
  %6171 = vmatprep.mubr.f32.mxu0 0.0
  %6172 = vmatmul.mubr.f32.gmra.mrb[0].mxu0 %v5466
  %v6173 = vpop.f32.mrb[0].mxu0
  %v6174 = vadd.f32 %v5094, %v6173
  %v6175 = vpop.f32.mrb[0].mxu0
  %6176 = vmatprep.mubr.f32.mxu0 0.0
  %6177 = vmatmul.mubr.f32.gmra.mrb[0].mxu0 %v5469
  %v6178 = vpop.f32.mrb[0].mxu0
  %v6179 = vadd.f32 %v5094, %v6178
  %v6180 = vpop.f32.mrb[0].mxu0
  %6181 = vmatprep.mubr.f32.mxu0 0.0
  %6182 = vmatmul.mubr.f32.gmra.mrb[0].mxu0 %v5472
  %v6183 = vpop.f32.mrb[0].mxu0
  %v6184 = vadd.f32 %v5094, %v6183
  %v6185 = vpop.f32.mrb[0].mxu0
  %6186 = vmatprep.mubr.f32.mxu0 0.0
  %6187 = vmatmul.mubr.f32.gmra.mrb[0].mxu0 %v5475
  %v6188 = vpop.f32.mrb[0].mxu0
  %v6189 = vadd.f32 %v5094, %v6188
  %v6190 = vpop.f32.mrb[0].mxu0
  %6191 = vmatprep.mubr.f32.mxu0 0.0
  %6192 = vmatmul.mubr.f32.gmra.mrb[0].mxu0 %v5478
  %v6193 = vpop.f32.mrb[0].mxu0
  %v6194 = vadd.f32 %v5094, %v6193
  %v6195 = vpop.f32.mrb[0].mxu0
  %6196 = vdwg.mxu0
  %v6197 = vmax.f32 %v5559, 0.0
  %v6198 = vmax.f32 %v5564, 0.0
  %v6199 = vmax.f32 %v5569, 0.0
  %v6200 = vmax.f32 %v5574, 0.0
  %v6201 = vmax.f32 %v5579, 0.0
  %v6202 = vmax.f32 %v5584, 0.0
  %v6203 = vmax.f32 %v5589, 0.0
  %v6204 = vmax.f32 %v5594, 0.0
  %v6205 = vmax.f32 %v5599, 0.0
  %v6206 = vmax.f32 %v5604, 0.0
  %v6207 = vmax.f32 %v5609, 0.0
  %v6208 = vmax.f32 %v5614, 0.0
  %v6209 = vmax.f32 %v5619, 0.0
  %v6210 = vmax.f32 %v5624, 0.0
  %v6211 = vmax.f32 %v5629, 0.0
  %v6212 = vmax.f32 %v5634, 0.0
  %v6213 = vmax.f32 %v5639, 0.0
  %v6214 = vmax.f32 %v5644, 0.0
  %v6215 = vmax.f32 %v5649, 0.0
  %v6216 = vmax.f32 %v5654, 0.0
  %v6217 = vmax.f32 %v5659, 0.0
  %v6218 = vmax.f32 %v5664, 0.0
  %v6219 = vmax.f32 %v5669, 0.0
  %v6220 = vmax.f32 %v5674, 0.0
  %v6221 = vmax.f32 %v5679, 0.0
  %v6222 = vmax.f32 %v5684, 0.0
  %v6223 = vmax.f32 %v5689, 0.0
  %v6224 = vmax.f32 %v5694, 0.0
  %v6225 = vmax.f32 %v5699, 0.0
  %v6226 = vmax.f32 %v5704, 0.0
  %v6227 = vmax.f32 %v5709, 0.0
  %v6228 = vmax.f32 %v5714, 0.0
  %v6229 = vmax.f32 %v5719, 0.0
  %v6230 = vmax.f32 %v5724, 0.0
  %v6231 = vmax.f32 %v5729, 0.0
  %v6232 = vmax.f32 %v5734, 0.0
  %v6233 = vmax.f32 %v5739, 0.0
  %v6234 = vmax.f32 %v5744, 0.0
  %v6235 = vmax.f32 %v5749, 0.0
  %v6236 = vmax.f32 %v5754, 0.0
  %v6237 = vmax.f32 %v5759, 0.0
  %v6238 = vmax.f32 %v5764, 0.0
  %v6239 = vmax.f32 %v5769, 0.0
  %v6240 = vmax.f32 %v5774, 0.0
  %v6241 = vmax.f32 %v5779, 0.0
  %v6242 = vmax.f32 %v5784, 0.0
  %v6243 = vmax.f32 %v5789, 0.0
  %v6244 = vmax.f32 %v5794, 0.0
  %v6245 = vmax.f32 %v5799, 0.0
  %v6246 = vmax.f32 %v5804, 0.0
  %v6247 = vmax.f32 %v5809, 0.0
  %v6248 = vmax.f32 %v5814, 0.0
  %v6249 = vmax.f32 %v5819, 0.0
  %v6250 = vmax.f32 %v5824, 0.0
  %v6251 = vmax.f32 %v5829, 0.0
  %v6252 = vmax.f32 %v5834, 0.0
  %v6253 = vmax.f32 %v5839, 0.0
  %v6254 = vmax.f32 %v5844, 0.0
  %v6255 = vmax.f32 %v5849, 0.0
  %v6256 = vmax.f32 %v5854, 0.0
  %v6257 = vmax.f32 %v5859, 0.0
  %v6258 = vmax.f32 %v5864, 0.0
  %v6259 = vmax.f32 %v5869, 0.0
  %v6260 = vmax.f32 %v5874, 0.0
  %v6261 = vmax.f32 %v5879, 0.0
  %v6262 = vmax.f32 %v5884, 0.0
  %v6263 = vmax.f32 %v5889, 0.0
  %v6264 = vmax.f32 %v5894, 0.0
  %v6265 = vmax.f32 %v5899, 0.0
  %v6266 = vmax.f32 %v5904, 0.0
  %v6267 = vmax.f32 %v5909, 0.0
  %v6268 = vmax.f32 %v5914, 0.0
  %v6269 = vmax.f32 %v5919, 0.0
  %v6270 = vmax.f32 %v5924, 0.0
  %v6271 = vmax.f32 %v5929, 0.0
  %v6272 = vmax.f32 %v5934, 0.0
  %v6273 = vmax.f32 %v5939, 0.0
  %v6274 = vmax.f32 %v5944, 0.0
  %v6275 = vmax.f32 %v5949, 0.0
  %v6276 = vmax.f32 %v5954, 0.0
  %v6277 = vmax.f32 %v5959, 0.0
  %v6278 = vmax.f32 %v5964, 0.0
  %v6279 = vmax.f32 %v5969, 0.0
  %v6280 = vmax.f32 %v5974, 0.0
  %v6281 = vmax.f32 %v5979, 0.0
  %v6282 = vmax.f32 %v5984, 0.0
  %v6283 = vmax.f32 %v5989, 0.0
  %v6284 = vmax.f32 %v5994, 0.0
  %v6285 = vmax.f32 %v5999, 0.0
  %v6286 = vmax.f32 %v6004, 0.0
  %v6287 = vmax.f32 %v6009, 0.0
  %v6288 = vmax.f32 %v6014, 0.0
  %v6289 = vmax.f32 %v6019, 0.0
  %v6290 = vmax.f32 %v6024, 0.0
  %v6291 = vmax.f32 %v6029, 0.0
  %v6292 = vmax.f32 %v6034, 0.0
  %v6293 = vmax.f32 %v6039, 0.0
  %v6294 = vmax.f32 %v6044, 0.0
  %v6295 = vmax.f32 %v6049, 0.0
  %v6296 = vmax.f32 %v6054, 0.0
  %v6297 = vmax.f32 %v6059, 0.0
  %v6298 = vmax.f32 %v6064, 0.0
  %v6299 = vmax.f32 %v6069, 0.0
  %v6300 = vmax.f32 %v6074, 0.0
  %v6301 = vmax.f32 %v6079, 0.0
  %v6302 = vmax.f32 %v6084, 0.0
  %v6303 = vmax.f32 %v6089, 0.0
  %v6304 = vmax.f32 %v6094, 0.0
  %v6305 = vmax.f32 %v6099, 0.0
  %v6306 = vmax.f32 %v6104, 0.0
  %v6307 = vmax.f32 %v6109, 0.0
  %v6308 = vmax.f32 %v6114, 0.0
  %v6309 = vmax.f32 %v6119, 0.0
  %v6310 = vmax.f32 %v6124, 0.0
  %v6311 = vmax.f32 %v6129, 0.0
  %v6312 = vmax.f32 %v6134, 0.0
  %v6313 = vmax.f32 %v6139, 0.0
  %v6314 = vmax.f32 %v6144, 0.0
  %v6315 = vmax.f32 %v6149, 0.0
  %v6316 = vmax.f32 %v6154, 0.0
  %v6317 = vmax.f32 %v6159, 0.0
  %v6318 = vmax.f32 %v6164, 0.0
  %v6319 = vmax.f32 %v6169, 0.0
  %v6320 = vmax.f32 %v6174, 0.0
  %v6321 = vmax.f32 %v6179, 0.0
  %v6322 = vmax.f32 %v6184, 0.0
  %v6323 = vmax.f32 %v6189, 0.0
  %v6324 = vmax.f32 %v6194, 0.0
  %s6325 = scalar_lea.vmem %s1, 160
  %v6326 = vld [vmem:[%s6325] sm:$0xff]
  %v6327 = vld [vmem:[%s6325 + $0x8] sm:$0xff]
  %s6328 = scalar_lea.vmem %s2, 5
  %v6329 = vld [vmem:[%s6328] sm:$0x1]
  %v6331 = vlaneseq
  %v6332 = vshrl.u32 %v6331, 7
  %v6333 = vsub.s32 0, %v6332
  %v6334 = vrot.slane %v6329, %v6333
  %v6337 = vsel %vm1394, %v6197, 0
  %v6340 = vsel %vm1394, %v6198, 0
  %v6343 = vsel %vm1394, %v6199, 0
  %v6346 = vsel %vm1394, %v6200, 0
  %v6349 = vsel %vm1394, %v6201, 0
  %v6352 = vsel %vm1394, %v6202, 0
  %v6355 = vsel %vm1394, %v6203, 0
  %v6358 = vsel %vm1394, %v6204, 0
  %v6361 = vsel %vm1394, %v6205, 0
  %v6364 = vsel %vm1394, %v6206, 0
  %v6367 = vsel %vm1394, %v6207, 0
  %v6370 = vsel %vm1394, %v6208, 0
  %v6373 = vsel %vm1394, %v6209, 0
  %v6376 = vsel %vm1394, %v6210, 0
  %v6379 = vsel %vm1394, %v6211, 0
  %v6382 = vsel %vm1394, %v6212, 0
  %v6385 = vsel %vm1394, %v6213, 0
  %v6388 = vsel %vm1394, %v6214, 0
  %v6391 = vsel %vm1394, %v6215, 0
  %v6394 = vsel %vm1394, %v6216, 0
  %v6397 = vsel %vm1394, %v6217, 0
  %v6400 = vsel %vm1394, %v6218, 0
  %v6403 = vsel %vm1394, %v6219, 0
  %v6406 = vsel %vm1394, %v6220, 0
  %v6409 = vsel %vm1394, %v6221, 0
  %v6412 = vsel %vm1394, %v6222, 0
  %v6415 = vsel %vm1394, %v6223, 0
  %v6418 = vsel %vm1394, %v6224, 0
  %v6421 = vsel %vm1394, %v6225, 0
  %v6424 = vsel %vm1394, %v6226, 0
  %v6427 = vsel %vm1394, %v6227, 0
  %v6430 = vsel %vm1394, %v6228, 0
  %v6433 = vsel %vm1394, %v6229, 0
  %v6436 = vsel %vm1394, %v6230, 0
  %v6439 = vsel %vm1394, %v6231, 0
  %v6442 = vsel %vm1394, %v6232, 0
  %v6445 = vsel %vm1394, %v6233, 0
  %v6448 = vsel %vm1394, %v6234, 0
  %v6451 = vsel %vm1394, %v6235, 0
  %v6454 = vsel %vm1394, %v6236, 0
  %v6457 = vsel %vm1394, %v6237, 0
  %v6460 = vsel %vm1394, %v6238, 0
  %v6463 = vsel %vm1394, %v6239, 0
  %v6466 = vsel %vm1394, %v6240, 0
  %v6469 = vsel %vm1394, %v6241, 0
  %v6472 = vsel %vm1394, %v6242, 0
  %v6475 = vsel %vm1394, %v6243, 0
  %v6478 = vsel %vm1394, %v6244, 0
  %v6481 = vsel %vm1394, %v6245, 0
  %v6484 = vsel %vm1394, %v6246, 0
  %v6487 = vsel %vm1394, %v6247, 0
  %v6490 = vsel %vm1394, %v6248, 0
  %v6493 = vsel %vm1394, %v6249, 0
  %v6496 = vsel %vm1394, %v6250, 0
  %v6499 = vsel %vm1394, %v6251, 0
  %v6502 = vsel %vm1394, %v6252, 0
  %v6505 = vsel %vm1394, %v6253, 0
  %v6508 = vsel %vm1394, %v6254, 0
  %v6511 = vsel %vm1394, %v6255, 0
  %v6514 = vsel %vm1394, %v6256, 0
  %v6517 = vsel %vm1394, %v6257, 0
  %v6520 = vsel %vm1394, %v6258, 0
  %v6523 = vsel %vm1394, %v6259, 0
  %v6526 = vsel %vm1394, %v6260, 0
  %v6529 = vsel %vm1394, %v6261, 0
  %v6532 = vsel %vm1394, %v6262, 0
  %v6535 = vsel %vm1394, %v6263, 0
  %v6538 = vsel %vm1394, %v6264, 0
  %v6541 = vsel %vm1394, %v6265, 0
  %v6544 = vsel %vm1394, %v6266, 0
  %v6547 = vsel %vm1394, %v6267, 0
  %v6550 = vsel %vm1394, %v6268, 0
  %v6553 = vsel %vm1394, %v6269, 0
  %v6556 = vsel %vm1394, %v6270, 0
  %v6559 = vsel %vm1394, %v6271, 0
  %v6562 = vsel %vm1394, %v6272, 0
  %v6565 = vsel %vm1394, %v6273, 0
  %v6568 = vsel %vm1394, %v6274, 0
  %v6571 = vsel %vm1394, %v6275, 0
  %v6574 = vsel %vm1394, %v6276, 0
  %v6577 = vsel %vm1394, %v6277, 0
  %v6580 = vsel %vm1394, %v6278, 0
  %v6583 = vsel %vm1394, %v6279, 0
  %v6586 = vsel %vm1394, %v6280, 0
  %v6589 = vsel %vm1394, %v6281, 0
  %v6592 = vsel %vm1394, %v6282, 0
  %v6595 = vsel %vm1394, %v6283, 0
  %v6598 = vsel %vm1394, %v6284, 0
  %v6601 = vsel %vm1394, %v6285, 0
  %v6604 = vsel %vm1394, %v6286, 0
  %v6607 = vsel %vm1394, %v6287, 0
  %v6610 = vsel %vm1394, %v6288, 0
  %v6613 = vsel %vm1394, %v6289, 0
  %v6616 = vsel %vm1394, %v6290, 0
  %v6619 = vsel %vm1394, %v6291, 0
  %v6622 = vsel %vm1394, %v6292, 0
  %v6625 = vsel %vm1394, %v6293, 0
  %v6628 = vsel %vm1394, %v6294, 0
  %v6631 = vsel %vm1394, %v6295, 0
  %v6634 = vsel %vm1394, %v6296, 0
  %v6637 = vsel %vm1394, %v6297, 0
  %v6640 = vsel %vm1394, %v6298, 0
  %v6643 = vsel %vm1394, %v6299, 0
  %v6646 = vsel %vm1394, %v6300, 0
  %v6649 = vsel %vm1394, %v6301, 0
  %v6652 = vsel %vm1394, %v6302, 0
  %v6655 = vsel %vm1394, %v6303, 0
  %v6658 = vsel %vm1394, %v6304, 0
  %v6661 = vsel %vm1394, %v6305, 0
  %v6664 = vsel %vm1394, %v6306, 0
  %v6667 = vsel %vm1394, %v6307, 0
  %v6670 = vsel %vm1394, %v6308, 0
  %v6673 = vsel %vm1394, %v6309, 0
  %v6676 = vsel %vm1394, %v6310, 0
  %v6679 = vsel %vm1394, %v6311, 0
  %v6682 = vsel %vm1394, %v6312, 0
  %v6685 = vsel %vm1394, %v6313, 0
  %v6688 = vsel %vm1394, %v6314, 0
  %v6691 = vsel %vm1394, %v6315, 0
  %v6694 = vsel %vm1394, %v6316, 0
  %v6697 = vsel %vm1394, %v6317, 0
  %v6700 = vsel %vm1394, %v6318, 0
  %v6703 = vsel %vm1394, %v6319, 0
  %v6706 = vsel %vm1394, %v6320, 0
  %v6709 = vsel %vm1394, %v6321, 0
  %v6712 = vsel %vm1394, %v6322, 0
  %v6715 = vsel %vm1394, %v6323, 0
  %v6718 = vsel %vm1394, %v6324, 0
  %v6721 = vsel %vm1394, %v6326, 0
  %v6724 = vsel %vm1394, %v6327, 0
  %6726 = vmatprep.subr.mxu0 0.0
  %6727 = vmatpush1.xpose.msra.mxu0 %v6721
  %6728 = vmatprep.subr.mxu0 0.0
  %6729 = vmatpush1.xpose.msra.mxu0 %v6724
  %6730 = vmatprep.subr.mxu0 0.0
  %6731 = vmatpush1.xpose.msra.mxu0 0.0
  %6732 = vmatprep.subr.mxu0 0.0
  %6733 = vmatpush1.xpose.msra.mxu0 0.0
  %6734 = vmatprep.subr.mxu0 0.0
  %6735 = vmatpush1.xpose.msra.mxu0 0.0
  %6736 = vmatprep.subr.mxu0 0.0
  %6737 = vmatpush1.xpose.msra.mxu0 0.0
  %6738 = vmatprep.subr.mxu0 0.0
  %6739 = vmatpush1.xpose.msra.mxu0 0.0
  %6740 = vmatprep.subr.mxu0 0.0
  %6741 = vmatpush1.xpose.msra.mxu0 0.0
  %6742 = vmatprep.subr.mxu0 0.0
  %6743 = vmatpush1.xpose.msra.mxu0 0.0
  %6744 = vmatprep.subr.mxu0 0.0
  %6745 = vmatpush1.xpose.msra.mxu0 0.0
  %6746 = vmatprep.subr.mxu0 0.0
  %6747 = vmatpush1.xpose.msra.mxu0 0.0
  %6748 = vmatprep.subr.mxu0 0.0
  %6749 = vmatpush1.xpose.msra.mxu0 0.0
  %6750 = vmatprep.subr.mxu0 0.0
  %6751 = vmatpush1.xpose.msra.mxu0 0.0
  %6752 = vmatprep.subr.mxu0 0.0
  %6753 = vmatpush1.xpose.msra.mxu0 0.0
  %6754 = vmatprep.subr.mxu0 0.0
  %6755 = vmatpush1.xpose.msra.mxu0 0.0
  %6756 = vmatprep.subr.mxu0 0.0
  %6757 = vmatpush1.xpose.msra.mxu0 0.0
  %6758 = vmatprep.subr.mxu0 0.0
  %6759 = vmatpush1.xpose.msra.mxu0 0.0
  %6760 = vmatprep.subr.mxu0 0.0
  %6761 = vmatpush1.xpose.msra.mxu0 0.0
  %6762 = vmatprep.subr.mxu0 0.0
  %6763 = vmatpush1.xpose.msra.mxu0 0.0
  %6764 = vmatprep.subr.mxu0 0.0
  %6765 = vmatpush1.xpose.msra.mxu0 0.0
  %6766 = vmatprep.subr.mxu0 0.0
  %6767 = vmatpush1.xpose.msra.mxu0 0.0
  %6768 = vmatprep.subr.mxu0 0.0
  %6769 = vmatpush1.xpose.msra.mxu0 0.0
  %6770 = vmatprep.subr.mxu0 0.0
  %6771 = vmatpush1.xpose.msra.mxu0 0.0
  %6772 = vmatprep.subr.mxu0 0.0
  %6773 = vmatpush1.xpose.msra.mxu0 0.0
  %6774 = vmatprep.subr.mxu0 0.0
  %6775 = vmatpush1.xpose.msra.mxu0 0.0
  %6776 = vmatprep.subr.mxu0 0.0
  %6777 = vmatpush1.xpose.msra.mxu0 0.0
  %6778 = vmatprep.subr.mxu0 0.0
  %6779 = vmatpush1.xpose.msra.mxu0 0.0
  %6780 = vmatprep.subr.mxu0 0.0
  %6781 = vmatpush1.xpose.msra.mxu0 0.0
  %6782 = vmatprep.subr.mxu0 0.0
  %6783 = vmatpush1.xpose.msra.mxu0 0.0
  %6784 = vmatprep.subr.mxu0 0.0
  %6785 = vmatpush1.xpose.msra.mxu0 0.0
  %6786 = vmatprep.subr.mxu0 0.0
  %6787 = vmatpush1.xpose.msra.mxu0 0.0
  %6788 = vmatprep.subr.mxu0 0.0
  %6789 = vmatpush1.xpose.msra.mxu0 0.0
  %6790 = vmatprep.mubr.f32.mxu0 0.0
  %6791 = vmatmul.mubr.f32.gmra.mrb[0].mxu0 %v6337
  %v6792 = vpop.f32.mrb[0].mxu0
  %v6793 = vadd.f32 %v6334, %v6792
  %v6794 = vpop.f32.mrb[0].mxu0
  %6795 = vmatprep.mubr.f32.mxu0 0.0
  %6796 = vmatmul.mubr.f32.gmra.mrb[0].mxu0 %v6340
  %v6797 = vpop.f32.mrb[0].mxu0
  %v6798 = vadd.f32 %v6334, %v6797
  %v6799 = vpop.f32.mrb[0].mxu0
  %6800 = vmatprep.mubr.f32.mxu0 0.0
  %6801 = vmatmul.mubr.f32.gmra.mrb[0].mxu0 %v6343
  %v6802 = vpop.f32.mrb[0].mxu0
  %v6803 = vadd.f32 %v6334, %v6802
  %v6804 = vpop.f32.mrb[0].mxu0
  %6805 = vmatprep.mubr.f32.mxu0 0.0
  %6806 = vmatmul.mubr.f32.gmra.mrb[0].mxu0 %v6346
  %v6807 = vpop.f32.mrb[0].mxu0
  %v6808 = vadd.f32 %v6334, %v6807
  %v6809 = vpop.f32.mrb[0].mxu0
  %6810 = vmatprep.mubr.f32.mxu0 0.0
  %6811 = vmatmul.mubr.f32.gmra.mrb[0].mxu0 %v6349
  %v6812 = vpop.f32.mrb[0].mxu0
  %v6813 = vadd.f32 %v6334, %v6812
  %v6814 = vpop.f32.mrb[0].mxu0
  %6815 = vmatprep.mubr.f32.mxu0 0.0
  %6816 = vmatmul.mubr.f32.gmra.mrb[0].mxu0 %v6352
  %v6817 = vpop.f32.mrb[0].mxu0
  %v6818 = vadd.f32 %v6334, %v6817
  %v6819 = vpop.f32.mrb[0].mxu0
  %6820 = vmatprep.mubr.f32.mxu0 0.0
  %6821 = vmatmul.mubr.f32.gmra.mrb[0].mxu0 %v6355
  %v6822 = vpop.f32.mrb[0].mxu0
  %v6823 = vadd.f32 %v6334, %v6822
  %v6824 = vpop.f32.mrb[0].mxu0
  %6825 = vmatprep.mubr.f32.mxu0 0.0
  %6826 = vmatmul.mubr.f32.gmra.mrb[0].mxu0 %v6358
  %v6827 = vpop.f32.mrb[0].mxu0
  %v6828 = vadd.f32 %v6334, %v6827
  %v6829 = vpop.f32.mrb[0].mxu0
  %6830 = vmatprep.mubr.f32.mxu0 0.0
  %6831 = vmatmul.mubr.f32.gmra.mrb[0].mxu0 %v6361
  %v6832 = vpop.f32.mrb[0].mxu0
  %v6833 = vadd.f32 %v6334, %v6832
  %v6834 = vpop.f32.mrb[0].mxu0
  %6835 = vmatprep.mubr.f32.mxu0 0.0
  %6836 = vmatmul.mubr.f32.gmra.mrb[0].mxu0 %v6364
  %v6837 = vpop.f32.mrb[0].mxu0
  %v6838 = vadd.f32 %v6334, %v6837
  %v6839 = vpop.f32.mrb[0].mxu0
  %6840 = vmatprep.mubr.f32.mxu0 0.0
  %6841 = vmatmul.mubr.f32.gmra.mrb[0].mxu0 %v6367
  %v6842 = vpop.f32.mrb[0].mxu0
  %v6843 = vadd.f32 %v6334, %v6842
  %v6844 = vpop.f32.mrb[0].mxu0
  %6845 = vmatprep.mubr.f32.mxu0 0.0
  %6846 = vmatmul.mubr.f32.gmra.mrb[0].mxu0 %v6370
  %v6847 = vpop.f32.mrb[0].mxu0
  %v6848 = vadd.f32 %v6334, %v6847
  %v6849 = vpop.f32.mrb[0].mxu0
  %6850 = vmatprep.mubr.f32.mxu0 0.0
  %6851 = vmatmul.mubr.f32.gmra.mrb[0].mxu0 %v6373
  %v6852 = vpop.f32.mrb[0].mxu0
  %v6853 = vadd.f32 %v6334, %v6852
  %v6854 = vpop.f32.mrb[0].mxu0
  %6855 = vmatprep.mubr.f32.mxu0 0.0
  %6856 = vmatmul.mubr.f32.gmra.mrb[0].mxu0 %v6376
  %v6857 = vpop.f32.mrb[0].mxu0
  %v6858 = vadd.f32 %v6334, %v6857
  %v6859 = vpop.f32.mrb[0].mxu0
  %6860 = vmatprep.mubr.f32.mxu0 0.0
  %6861 = vmatmul.mubr.f32.gmra.mrb[0].mxu0 %v6379
  %v6862 = vpop.f32.mrb[0].mxu0
  %v6863 = vadd.f32 %v6334, %v6862
  %v6864 = vpop.f32.mrb[0].mxu0
  %6865 = vmatprep.mubr.f32.mxu0 0.0
  %6866 = vmatmul.mubr.f32.gmra.mrb[0].mxu0 %v6382
  %v6867 = vpop.f32.mrb[0].mxu0
  %v6868 = vadd.f32 %v6334, %v6867
  %v6869 = vpop.f32.mrb[0].mxu0
  %6870 = vmatprep.mubr.f32.mxu0 0.0
  %6871 = vmatmul.mubr.f32.gmra.mrb[0].mxu0 %v6385
  %v6872 = vpop.f32.mrb[0].mxu0
  %v6873 = vadd.f32 %v6334, %v6872
  %v6874 = vpop.f32.mrb[0].mxu0
  %6875 = vmatprep.mubr.f32.mxu0 0.0
  %6876 = vmatmul.mubr.f32.gmra.mrb[0].mxu0 %v6388
  %v6877 = vpop.f32.mrb[0].mxu0
  %v6878 = vadd.f32 %v6334, %v6877
  %v6879 = vpop.f32.mrb[0].mxu0
  %6880 = vmatprep.mubr.f32.mxu0 0.0
  %6881 = vmatmul.mubr.f32.gmra.mrb[0].mxu0 %v6391
  %v6882 = vpop.f32.mrb[0].mxu0
  %v6883 = vadd.f32 %v6334, %v6882
  %v6884 = vpop.f32.mrb[0].mxu0
  %6885 = vmatprep.mubr.f32.mxu0 0.0
  %6886 = vmatmul.mubr.f32.gmra.mrb[0].mxu0 %v6394
  %v6887 = vpop.f32.mrb[0].mxu0
  %v6888 = vadd.f32 %v6334, %v6887
  %v6889 = vpop.f32.mrb[0].mxu0
  %6890 = vmatprep.mubr.f32.mxu0 0.0
  %6891 = vmatmul.mubr.f32.gmra.mrb[0].mxu0 %v6397
  %v6892 = vpop.f32.mrb[0].mxu0
  %v6893 = vadd.f32 %v6334, %v6892
  %v6894 = vpop.f32.mrb[0].mxu0
  %6895 = vmatprep.mubr.f32.mxu0 0.0
  %6896 = vmatmul.mubr.f32.gmra.mrb[0].mxu0 %v6400
  %v6897 = vpop.f32.mrb[0].mxu0
  %v6898 = vadd.f32 %v6334, %v6897
  %v6899 = vpop.f32.mrb[0].mxu0
  %6900 = vmatprep.mubr.f32.mxu0 0.0
  %6901 = vmatmul.mubr.f32.gmra.mrb[0].mxu0 %v6403
  %v6902 = vpop.f32.mrb[0].mxu0
  %v6903 = vadd.f32 %v6334, %v6902
  %v6904 = vpop.f32.mrb[0].mxu0
  %6905 = vmatprep.mubr.f32.mxu0 0.0
  %6906 = vmatmul.mubr.f32.gmra.mrb[0].mxu0 %v6406
  %v6907 = vpop.f32.mrb[0].mxu0
  %v6908 = vadd.f32 %v6334, %v6907
  %v6909 = vpop.f32.mrb[0].mxu0
  %6910 = vmatprep.mubr.f32.mxu0 0.0
  %6911 = vmatmul.mubr.f32.gmra.mrb[0].mxu0 %v6409
  %v6912 = vpop.f32.mrb[0].mxu0
  %v6913 = vadd.f32 %v6334, %v6912
  %v6914 = vpop.f32.mrb[0].mxu0
  %6915 = vmatprep.mubr.f32.mxu0 0.0
  %6916 = vmatmul.mubr.f32.gmra.mrb[0].mxu0 %v6412
  %v6917 = vpop.f32.mrb[0].mxu0
  %v6918 = vadd.f32 %v6334, %v6917
  %v6919 = vpop.f32.mrb[0].mxu0
  %6920 = vmatprep.mubr.f32.mxu0 0.0
  %6921 = vmatmul.mubr.f32.gmra.mrb[0].mxu0 %v6415
  %v6922 = vpop.f32.mrb[0].mxu0
  %v6923 = vadd.f32 %v6334, %v6922
  %v6924 = vpop.f32.mrb[0].mxu0
  %6925 = vmatprep.mubr.f32.mxu0 0.0
  %6926 = vmatmul.mubr.f32.gmra.mrb[0].mxu0 %v6418
  %v6927 = vpop.f32.mrb[0].mxu0
  %v6928 = vadd.f32 %v6334, %v6927
  %v6929 = vpop.f32.mrb[0].mxu0
  %6930 = vmatprep.mubr.f32.mxu0 0.0
  %6931 = vmatmul.mubr.f32.gmra.mrb[0].mxu0 %v6421
  %v6932 = vpop.f32.mrb[0].mxu0
  %v6933 = vadd.f32 %v6334, %v6932
  %v6934 = vpop.f32.mrb[0].mxu0
  %6935 = vmatprep.mubr.f32.mxu0 0.0
  %6936 = vmatmul.mubr.f32.gmra.mrb[0].mxu0 %v6424
  %v6937 = vpop.f32.mrb[0].mxu0
  %v6938 = vadd.f32 %v6334, %v6937
  %v6939 = vpop.f32.mrb[0].mxu0
  %6940 = vmatprep.mubr.f32.mxu0 0.0
  %6941 = vmatmul.mubr.f32.gmra.mrb[0].mxu0 %v6427
  %v6942 = vpop.f32.mrb[0].mxu0
  %v6943 = vadd.f32 %v6334, %v6942
  %v6944 = vpop.f32.mrb[0].mxu0
  %6945 = vmatprep.mubr.f32.mxu0 0.0
  %6946 = vmatmul.mubr.f32.gmra.mrb[0].mxu0 %v6430
  %v6947 = vpop.f32.mrb[0].mxu0
  %v6948 = vadd.f32 %v6334, %v6947
  %v6949 = vpop.f32.mrb[0].mxu0
  %6950 = vmatprep.mubr.f32.mxu0 0.0
  %6951 = vmatmul.mubr.f32.gmra.mrb[0].mxu0 %v6433
  %v6952 = vpop.f32.mrb[0].mxu0
  %v6953 = vadd.f32 %v6334, %v6952
  %v6954 = vpop.f32.mrb[0].mxu0
  %6955 = vmatprep.mubr.f32.mxu0 0.0
  %6956 = vmatmul.mubr.f32.gmra.mrb[0].mxu0 %v6436
  %v6957 = vpop.f32.mrb[0].mxu0
  %v6958 = vadd.f32 %v6334, %v6957
  %v6959 = vpop.f32.mrb[0].mxu0
  %6960 = vmatprep.mubr.f32.mxu0 0.0
  %6961 = vmatmul.mubr.f32.gmra.mrb[0].mxu0 %v6439
  %v6962 = vpop.f32.mrb[0].mxu0
  %v6963 = vadd.f32 %v6334, %v6962
  %v6964 = vpop.f32.mrb[0].mxu0
  %6965 = vmatprep.mubr.f32.mxu0 0.0
  %6966 = vmatmul.mubr.f32.gmra.mrb[0].mxu0 %v6442
  %v6967 = vpop.f32.mrb[0].mxu0
  %v6968 = vadd.f32 %v6334, %v6967
  %v6969 = vpop.f32.mrb[0].mxu0
  %6970 = vmatprep.mubr.f32.mxu0 0.0
  %6971 = vmatmul.mubr.f32.gmra.mrb[0].mxu0 %v6445
  %v6972 = vpop.f32.mrb[0].mxu0
  %v6973 = vadd.f32 %v6334, %v6972
  %v6974 = vpop.f32.mrb[0].mxu0
  %6975 = vmatprep.mubr.f32.mxu0 0.0
  %6976 = vmatmul.mubr.f32.gmra.mrb[0].mxu0 %v6448
  %v6977 = vpop.f32.mrb[0].mxu0
  %v6978 = vadd.f32 %v6334, %v6977
  %v6979 = vpop.f32.mrb[0].mxu0
  %6980 = vmatprep.mubr.f32.mxu0 0.0
  %6981 = vmatmul.mubr.f32.gmra.mrb[0].mxu0 %v6451
  %v6982 = vpop.f32.mrb[0].mxu0
  %v6983 = vadd.f32 %v6334, %v6982
  %v6984 = vpop.f32.mrb[0].mxu0
  %6985 = vmatprep.mubr.f32.mxu0 0.0
  %6986 = vmatmul.mubr.f32.gmra.mrb[0].mxu0 %v6454
  %v6987 = vpop.f32.mrb[0].mxu0
  %v6988 = vadd.f32 %v6334, %v6987
  %v6989 = vpop.f32.mrb[0].mxu0
  %6990 = vmatprep.mubr.f32.mxu0 0.0
  %6991 = vmatmul.mubr.f32.gmra.mrb[0].mxu0 %v6457
  %v6992 = vpop.f32.mrb[0].mxu0
  %v6993 = vadd.f32 %v6334, %v6992
  %v6994 = vpop.f32.mrb[0].mxu0
  %6995 = vmatprep.mubr.f32.mxu0 0.0
  %6996 = vmatmul.mubr.f32.gmra.mrb[0].mxu0 %v6460
  %v6997 = vpop.f32.mrb[0].mxu0
  %v6998 = vadd.f32 %v6334, %v6997
  %v6999 = vpop.f32.mrb[0].mxu0
  %7000 = vmatprep.mubr.f32.mxu0 0.0
  %7001 = vmatmul.mubr.f32.gmra.mrb[0].mxu0 %v6463
  %v7002 = vpop.f32.mrb[0].mxu0
  %v7003 = vadd.f32 %v6334, %v7002
  %v7004 = vpop.f32.mrb[0].mxu0
  %7005 = vmatprep.mubr.f32.mxu0 0.0
  %7006 = vmatmul.mubr.f32.gmra.mrb[0].mxu0 %v6466
  %v7007 = vpop.f32.mrb[0].mxu0
  %v7008 = vadd.f32 %v6334, %v7007
  %v7009 = vpop.f32.mrb[0].mxu0
  %7010 = vmatprep.mubr.f32.mxu0 0.0
  %7011 = vmatmul.mubr.f32.gmra.mrb[0].mxu0 %v6469
  %v7012 = vpop.f32.mrb[0].mxu0
  %v7013 = vadd.f32 %v6334, %v7012
  %v7014 = vpop.f32.mrb[0].mxu0
  %7015 = vmatprep.mubr.f32.mxu0 0.0
  %7016 = vmatmul.mubr.f32.gmra.mrb[0].mxu0 %v6472
  %v7017 = vpop.f32.mrb[0].mxu0
  %v7018 = vadd.f32 %v6334, %v7017
  %v7019 = vpop.f32.mrb[0].mxu0
  %7020 = vmatprep.mubr.f32.mxu0 0.0
  %7021 = vmatmul.mubr.f32.gmra.mrb[0].mxu0 %v6475
  %v7022 = vpop.f32.mrb[0].mxu0
  %v7023 = vadd.f32 %v6334, %v7022
  %v7024 = vpop.f32.mrb[0].mxu0
  %7025 = vmatprep.mubr.f32.mxu0 0.0
  %7026 = vmatmul.mubr.f32.gmra.mrb[0].mxu0 %v6478
  %v7027 = vpop.f32.mrb[0].mxu0
  %v7028 = vadd.f32 %v6334, %v7027
  %v7029 = vpop.f32.mrb[0].mxu0
  %7030 = vmatprep.mubr.f32.mxu0 0.0
  %7031 = vmatmul.mubr.f32.gmra.mrb[0].mxu0 %v6481
  %v7032 = vpop.f32.mrb[0].mxu0
  %v7033 = vadd.f32 %v6334, %v7032
  %v7034 = vpop.f32.mrb[0].mxu0
  %7035 = vmatprep.mubr.f32.mxu0 0.0
  %7036 = vmatmul.mubr.f32.gmra.mrb[0].mxu0 %v6484
  %v7037 = vpop.f32.mrb[0].mxu0
  %v7038 = vadd.f32 %v6334, %v7037
  %v7039 = vpop.f32.mrb[0].mxu0
  %7040 = vmatprep.mubr.f32.mxu0 0.0
  %7041 = vmatmul.mubr.f32.gmra.mrb[0].mxu0 %v6487
  %v7042 = vpop.f32.mrb[0].mxu0
  %v7043 = vadd.f32 %v6334, %v7042
  %v7044 = vpop.f32.mrb[0].mxu0
  %7045 = vmatprep.mubr.f32.mxu0 0.0
  %7046 = vmatmul.mubr.f32.gmra.mrb[0].mxu0 %v6490
  %v7047 = vpop.f32.mrb[0].mxu0
  %v7048 = vadd.f32 %v6334, %v7047
  %v7049 = vpop.f32.mrb[0].mxu0
  %7050 = vmatprep.mubr.f32.mxu0 0.0
  %7051 = vmatmul.mubr.f32.gmra.mrb[0].mxu0 %v6493
  %v7052 = vpop.f32.mrb[0].mxu0
  %v7053 = vadd.f32 %v6334, %v7052
  %v7054 = vpop.f32.mrb[0].mxu0
  %7055 = vmatprep.mubr.f32.mxu0 0.0
  %7056 = vmatmul.mubr.f32.gmra.mrb[0].mxu0 %v6496
  %v7057 = vpop.f32.mrb[0].mxu0
  %v7058 = vadd.f32 %v6334, %v7057
  %v7059 = vpop.f32.mrb[0].mxu0
  %7060 = vmatprep.mubr.f32.mxu0 0.0
  %7061 = vmatmul.mubr.f32.gmra.mrb[0].mxu0 %v6499
  %v7062 = vpop.f32.mrb[0].mxu0
  %v7063 = vadd.f32 %v6334, %v7062
  %v7064 = vpop.f32.mrb[0].mxu0
  %7065 = vmatprep.mubr.f32.mxu0 0.0
  %7066 = vmatmul.mubr.f32.gmra.mrb[0].mxu0 %v6502
  %v7067 = vpop.f32.mrb[0].mxu0
  %v7068 = vadd.f32 %v6334, %v7067
  %v7069 = vpop.f32.mrb[0].mxu0
  %7070 = vmatprep.mubr.f32.mxu0 0.0
  %7071 = vmatmul.mubr.f32.gmra.mrb[0].mxu0 %v6505
  %v7072 = vpop.f32.mrb[0].mxu0
  %v7073 = vadd.f32 %v6334, %v7072
  %v7074 = vpop.f32.mrb[0].mxu0
  %7075 = vmatprep.mubr.f32.mxu0 0.0
  %7076 = vmatmul.mubr.f32.gmra.mrb[0].mxu0 %v6508
  %v7077 = vpop.f32.mrb[0].mxu0
  %v7078 = vadd.f32 %v6334, %v7077
  %v7079 = vpop.f32.mrb[0].mxu0
  %7080 = vmatprep.mubr.f32.mxu0 0.0
  %7081 = vmatmul.mubr.f32.gmra.mrb[0].mxu0 %v6511
  %v7082 = vpop.f32.mrb[0].mxu0
  %v7083 = vadd.f32 %v6334, %v7082
  %v7084 = vpop.f32.mrb[0].mxu0
  %7085 = vmatprep.mubr.f32.mxu0 0.0
  %7086 = vmatmul.mubr.f32.gmra.mrb[0].mxu0 %v6514
  %v7087 = vpop.f32.mrb[0].mxu0
  %v7088 = vadd.f32 %v6334, %v7087
  %v7089 = vpop.f32.mrb[0].mxu0
  %7090 = vmatprep.mubr.f32.mxu0 0.0
  %7091 = vmatmul.mubr.f32.gmra.mrb[0].mxu0 %v6517
  %v7092 = vpop.f32.mrb[0].mxu0
  %v7093 = vadd.f32 %v6334, %v7092
  %v7094 = vpop.f32.mrb[0].mxu0
  %7095 = vmatprep.mubr.f32.mxu0 0.0
  %7096 = vmatmul.mubr.f32.gmra.mrb[0].mxu0 %v6520
  %v7097 = vpop.f32.mrb[0].mxu0
  %v7098 = vadd.f32 %v6334, %v7097
  %v7099 = vpop.f32.mrb[0].mxu0
  %7100 = vmatprep.mubr.f32.mxu0 0.0
  %7101 = vmatmul.mubr.f32.gmra.mrb[0].mxu0 %v6523
  %v7102 = vpop.f32.mrb[0].mxu0
  %v7103 = vadd.f32 %v6334, %v7102
  %v7104 = vpop.f32.mrb[0].mxu0
  %7105 = vmatprep.mubr.f32.mxu0 0.0
  %7106 = vmatmul.mubr.f32.gmra.mrb[0].mxu0 %v6526
  %v7107 = vpop.f32.mrb[0].mxu0
  %v7108 = vadd.f32 %v6334, %v7107
  %v7109 = vpop.f32.mrb[0].mxu0
  %7110 = vmatprep.mubr.f32.mxu0 0.0
  %7111 = vmatmul.mubr.f32.gmra.mrb[0].mxu0 %v6529
  %v7112 = vpop.f32.mrb[0].mxu0
  %v7113 = vadd.f32 %v6334, %v7112
  %v7114 = vpop.f32.mrb[0].mxu0
  %7115 = vmatprep.mubr.f32.mxu0 0.0
  %7116 = vmatmul.mubr.f32.gmra.mrb[0].mxu0 %v6532
  %v7117 = vpop.f32.mrb[0].mxu0
  %v7118 = vadd.f32 %v6334, %v7117
  %v7119 = vpop.f32.mrb[0].mxu0
  %7120 = vmatprep.mubr.f32.mxu0 0.0
  %7121 = vmatmul.mubr.f32.gmra.mrb[0].mxu0 %v6535
  %v7122 = vpop.f32.mrb[0].mxu0
  %v7123 = vadd.f32 %v6334, %v7122
  %v7124 = vpop.f32.mrb[0].mxu0
  %7125 = vmatprep.mubr.f32.mxu0 0.0
  %7126 = vmatmul.mubr.f32.gmra.mrb[0].mxu0 %v6538
  %v7127 = vpop.f32.mrb[0].mxu0
  %v7128 = vadd.f32 %v6334, %v7127
  %v7129 = vpop.f32.mrb[0].mxu0
  %7130 = vmatprep.mubr.f32.mxu0 0.0
  %7131 = vmatmul.mubr.f32.gmra.mrb[0].mxu0 %v6541
  %v7132 = vpop.f32.mrb[0].mxu0
  %v7133 = vadd.f32 %v6334, %v7132
  %v7134 = vpop.f32.mrb[0].mxu0
  %7135 = vmatprep.mubr.f32.mxu0 0.0
  %7136 = vmatmul.mubr.f32.gmra.mrb[0].mxu0 %v6544
  %v7137 = vpop.f32.mrb[0].mxu0
  %v7138 = vadd.f32 %v6334, %v7137
  %v7139 = vpop.f32.mrb[0].mxu0
  %7140 = vmatprep.mubr.f32.mxu0 0.0
  %7141 = vmatmul.mubr.f32.gmra.mrb[0].mxu0 %v6547
  %v7142 = vpop.f32.mrb[0].mxu0
  %v7143 = vadd.f32 %v6334, %v7142
  %v7144 = vpop.f32.mrb[0].mxu0
  %7145 = vmatprep.mubr.f32.mxu0 0.0
  %7146 = vmatmul.mubr.f32.gmra.mrb[0].mxu0 %v6550
  %v7147 = vpop.f32.mrb[0].mxu0
  %v7148 = vadd.f32 %v6334, %v7147
  %v7149 = vpop.f32.mrb[0].mxu0
  %7150 = vmatprep.mubr.f32.mxu0 0.0
  %7151 = vmatmul.mubr.f32.gmra.mrb[0].mxu0 %v6553
  %v7152 = vpop.f32.mrb[0].mxu0
  %v7153 = vadd.f32 %v6334, %v7152
  %v7154 = vpop.f32.mrb[0].mxu0
  %7155 = vmatprep.mubr.f32.mxu0 0.0
  %7156 = vmatmul.mubr.f32.gmra.mrb[0].mxu0 %v6556
  %v7157 = vpop.f32.mrb[0].mxu0
  %v7158 = vadd.f32 %v6334, %v7157
  %v7159 = vpop.f32.mrb[0].mxu0
  %7160 = vmatprep.mubr.f32.mxu0 0.0
  %7161 = vmatmul.mubr.f32.gmra.mrb[0].mxu0 %v6559
  %v7162 = vpop.f32.mrb[0].mxu0
  %v7163 = vadd.f32 %v6334, %v7162
  %v7164 = vpop.f32.mrb[0].mxu0
  %7165 = vmatprep.mubr.f32.mxu0 0.0
  %7166 = vmatmul.mubr.f32.gmra.mrb[0].mxu0 %v6562
  %v7167 = vpop.f32.mrb[0].mxu0
  %v7168 = vadd.f32 %v6334, %v7167
  %v7169 = vpop.f32.mrb[0].mxu0
  %7170 = vmatprep.mubr.f32.mxu0 0.0
  %7171 = vmatmul.mubr.f32.gmra.mrb[0].mxu0 %v6565
  %v7172 = vpop.f32.mrb[0].mxu0
  %v7173 = vadd.f32 %v6334, %v7172
  %v7174 = vpop.f32.mrb[0].mxu0
  %7175 = vmatprep.mubr.f32.mxu0 0.0
  %7176 = vmatmul.mubr.f32.gmra.mrb[0].mxu0 %v6568
  %v7177 = vpop.f32.mrb[0].mxu0
  %v7178 = vadd.f32 %v6334, %v7177
  %v7179 = vpop.f32.mrb[0].mxu0
  %7180 = vmatprep.mubr.f32.mxu0 0.0
  %7181 = vmatmul.mubr.f32.gmra.mrb[0].mxu0 %v6571
  %v7182 = vpop.f32.mrb[0].mxu0
  %v7183 = vadd.f32 %v6334, %v7182
  %v7184 = vpop.f32.mrb[0].mxu0
  %7185 = vmatprep.mubr.f32.mxu0 0.0
  %7186 = vmatmul.mubr.f32.gmra.mrb[0].mxu0 %v6574
  %v7187 = vpop.f32.mrb[0].mxu0
  %v7188 = vadd.f32 %v6334, %v7187
  %v7189 = vpop.f32.mrb[0].mxu0
  %7190 = vmatprep.mubr.f32.mxu0 0.0
  %7191 = vmatmul.mubr.f32.gmra.mrb[0].mxu0 %v6577
  %v7192 = vpop.f32.mrb[0].mxu0
  %v7193 = vadd.f32 %v6334, %v7192
  %v7194 = vpop.f32.mrb[0].mxu0
  %7195 = vmatprep.mubr.f32.mxu0 0.0
  %7196 = vmatmul.mubr.f32.gmra.mrb[0].mxu0 %v6580
  %v7197 = vpop.f32.mrb[0].mxu0
  %v7198 = vadd.f32 %v6334, %v7197
  %v7199 = vpop.f32.mrb[0].mxu0
  %7200 = vmatprep.mubr.f32.mxu0 0.0
  %7201 = vmatmul.mubr.f32.gmra.mrb[0].mxu0 %v6583
  %v7202 = vpop.f32.mrb[0].mxu0
  %v7203 = vadd.f32 %v6334, %v7202
  %v7204 = vpop.f32.mrb[0].mxu0
  %7205 = vmatprep.mubr.f32.mxu0 0.0
  %7206 = vmatmul.mubr.f32.gmra.mrb[0].mxu0 %v6586
  %v7207 = vpop.f32.mrb[0].mxu0
  %v7208 = vadd.f32 %v6334, %v7207
  %v7209 = vpop.f32.mrb[0].mxu0
  %7210 = vmatprep.mubr.f32.mxu0 0.0
  %7211 = vmatmul.mubr.f32.gmra.mrb[0].mxu0 %v6589
  %v7212 = vpop.f32.mrb[0].mxu0
  %v7213 = vadd.f32 %v6334, %v7212
  %v7214 = vpop.f32.mrb[0].mxu0
  %7215 = vmatprep.mubr.f32.mxu0 0.0
  %7216 = vmatmul.mubr.f32.gmra.mrb[0].mxu0 %v6592
  %v7217 = vpop.f32.mrb[0].mxu0
  %v7218 = vadd.f32 %v6334, %v7217
  %v7219 = vpop.f32.mrb[0].mxu0
  %7220 = vmatprep.mubr.f32.mxu0 0.0
  %7221 = vmatmul.mubr.f32.gmra.mrb[0].mxu0 %v6595
  %v7222 = vpop.f32.mrb[0].mxu0
  %v7223 = vadd.f32 %v6334, %v7222
  %v7224 = vpop.f32.mrb[0].mxu0
  %7225 = vmatprep.mubr.f32.mxu0 0.0
  %7226 = vmatmul.mubr.f32.gmra.mrb[0].mxu0 %v6598
  %v7227 = vpop.f32.mrb[0].mxu0
  %v7228 = vadd.f32 %v6334, %v7227
  %v7229 = vpop.f32.mrb[0].mxu0
  %7230 = vmatprep.mubr.f32.mxu0 0.0
  %7231 = vmatmul.mubr.f32.gmra.mrb[0].mxu0 %v6601
  %v7232 = vpop.f32.mrb[0].mxu0
  %v7233 = vadd.f32 %v6334, %v7232
  %v7234 = vpop.f32.mrb[0].mxu0
  %7235 = vmatprep.mubr.f32.mxu0 0.0
  %7236 = vmatmul.mubr.f32.gmra.mrb[0].mxu0 %v6604
  %v7237 = vpop.f32.mrb[0].mxu0
  %v7238 = vadd.f32 %v6334, %v7237
  %v7239 = vpop.f32.mrb[0].mxu0
  %7240 = vmatprep.mubr.f32.mxu0 0.0
  %7241 = vmatmul.mubr.f32.gmra.mrb[0].mxu0 %v6607
  %v7242 = vpop.f32.mrb[0].mxu0
  %v7243 = vadd.f32 %v6334, %v7242
  %v7244 = vpop.f32.mrb[0].mxu0
  %7245 = vmatprep.mubr.f32.mxu0 0.0
  %7246 = vmatmul.mubr.f32.gmra.mrb[0].mxu0 %v6610
  %v7247 = vpop.f32.mrb[0].mxu0
  %v7248 = vadd.f32 %v6334, %v7247
  %v7249 = vpop.f32.mrb[0].mxu0
  %7250 = vmatprep.mubr.f32.mxu0 0.0
  %7251 = vmatmul.mubr.f32.gmra.mrb[0].mxu0 %v6613
  %v7252 = vpop.f32.mrb[0].mxu0
  %v7253 = vadd.f32 %v6334, %v7252
  %v7254 = vpop.f32.mrb[0].mxu0
  %7255 = vmatprep.mubr.f32.mxu0 0.0
  %7256 = vmatmul.mubr.f32.gmra.mrb[0].mxu0 %v6616
  %v7257 = vpop.f32.mrb[0].mxu0
  %v7258 = vadd.f32 %v6334, %v7257
  %v7259 = vpop.f32.mrb[0].mxu0
  %7260 = vmatprep.mubr.f32.mxu0 0.0
  %7261 = vmatmul.mubr.f32.gmra.mrb[0].mxu0 %v6619
  %v7262 = vpop.f32.mrb[0].mxu0
  %v7263 = vadd.f32 %v6334, %v7262
  %v7264 = vpop.f32.mrb[0].mxu0
  %7265 = vmatprep.mubr.f32.mxu0 0.0
  %7266 = vmatmul.mubr.f32.gmra.mrb[0].mxu0 %v6622
  %v7267 = vpop.f32.mrb[0].mxu0
  %v7268 = vadd.f32 %v6334, %v7267
  %v7269 = vpop.f32.mrb[0].mxu0
  %7270 = vmatprep.mubr.f32.mxu0 0.0
  %7271 = vmatmul.mubr.f32.gmra.mrb[0].mxu0 %v6625
  %v7272 = vpop.f32.mrb[0].mxu0
  %v7273 = vadd.f32 %v6334, %v7272
  %v7274 = vpop.f32.mrb[0].mxu0
  %7275 = vmatprep.mubr.f32.mxu0 0.0
  %7276 = vmatmul.mubr.f32.gmra.mrb[0].mxu0 %v6628
  %v7277 = vpop.f32.mrb[0].mxu0
  %v7278 = vadd.f32 %v6334, %v7277
  %v7279 = vpop.f32.mrb[0].mxu0
  %7280 = vmatprep.mubr.f32.mxu0 0.0
  %7281 = vmatmul.mubr.f32.gmra.mrb[0].mxu0 %v6631
  %v7282 = vpop.f32.mrb[0].mxu0
  %v7283 = vadd.f32 %v6334, %v7282
  %v7284 = vpop.f32.mrb[0].mxu0
  %7285 = vmatprep.mubr.f32.mxu0 0.0
  %7286 = vmatmul.mubr.f32.gmra.mrb[0].mxu0 %v6634
  %v7287 = vpop.f32.mrb[0].mxu0
  %v7288 = vadd.f32 %v6334, %v7287
  %v7289 = vpop.f32.mrb[0].mxu0
  %7290 = vmatprep.mubr.f32.mxu0 0.0
  %7291 = vmatmul.mubr.f32.gmra.mrb[0].mxu0 %v6637
  %v7292 = vpop.f32.mrb[0].mxu0
  %v7293 = vadd.f32 %v6334, %v7292
  %v7294 = vpop.f32.mrb[0].mxu0
  %7295 = vmatprep.mubr.f32.mxu0 0.0
  %7296 = vmatmul.mubr.f32.gmra.mrb[0].mxu0 %v6640
  %v7297 = vpop.f32.mrb[0].mxu0
  %v7298 = vadd.f32 %v6334, %v7297
  %v7299 = vpop.f32.mrb[0].mxu0
  %7300 = vmatprep.mubr.f32.mxu0 0.0
  %7301 = vmatmul.mubr.f32.gmra.mrb[0].mxu0 %v6643
  %v7302 = vpop.f32.mrb[0].mxu0
  %v7303 = vadd.f32 %v6334, %v7302
  %v7304 = vpop.f32.mrb[0].mxu0
  %7305 = vmatprep.mubr.f32.mxu0 0.0
  %7306 = vmatmul.mubr.f32.gmra.mrb[0].mxu0 %v6646
  %v7307 = vpop.f32.mrb[0].mxu0
  %v7308 = vadd.f32 %v6334, %v7307
  %v7309 = vpop.f32.mrb[0].mxu0
  %7310 = vmatprep.mubr.f32.mxu0 0.0
  %7311 = vmatmul.mubr.f32.gmra.mrb[0].mxu0 %v6649
  %v7312 = vpop.f32.mrb[0].mxu0
  %v7313 = vadd.f32 %v6334, %v7312
  %v7314 = vpop.f32.mrb[0].mxu0
  %7315 = vmatprep.mubr.f32.mxu0 0.0
  %7316 = vmatmul.mubr.f32.gmra.mrb[0].mxu0 %v6652
  %v7317 = vpop.f32.mrb[0].mxu0
  %v7318 = vadd.f32 %v6334, %v7317
  %v7319 = vpop.f32.mrb[0].mxu0
  %7320 = vmatprep.mubr.f32.mxu0 0.0
  %7321 = vmatmul.mubr.f32.gmra.mrb[0].mxu0 %v6655
  %v7322 = vpop.f32.mrb[0].mxu0
  %v7323 = vadd.f32 %v6334, %v7322
  %v7324 = vpop.f32.mrb[0].mxu0
  %7325 = vmatprep.mubr.f32.mxu0 0.0
  %7326 = vmatmul.mubr.f32.gmra.mrb[0].mxu0 %v6658
  %v7327 = vpop.f32.mrb[0].mxu0
  %v7328 = vadd.f32 %v6334, %v7327
  %v7329 = vpop.f32.mrb[0].mxu0
  %7330 = vmatprep.mubr.f32.mxu0 0.0
  %7331 = vmatmul.mubr.f32.gmra.mrb[0].mxu0 %v6661
  %v7332 = vpop.f32.mrb[0].mxu0
  %v7333 = vadd.f32 %v6334, %v7332
  %v7334 = vpop.f32.mrb[0].mxu0
  %7335 = vmatprep.mubr.f32.mxu0 0.0
  %7336 = vmatmul.mubr.f32.gmra.mrb[0].mxu0 %v6664
  %v7337 = vpop.f32.mrb[0].mxu0
  %v7338 = vadd.f32 %v6334, %v7337
  %v7339 = vpop.f32.mrb[0].mxu0
  %7340 = vmatprep.mubr.f32.mxu0 0.0
  %7341 = vmatmul.mubr.f32.gmra.mrb[0].mxu0 %v6667
  %v7342 = vpop.f32.mrb[0].mxu0
  %v7343 = vadd.f32 %v6334, %v7342
  %v7344 = vpop.f32.mrb[0].mxu0
  %7345 = vmatprep.mubr.f32.mxu0 0.0
  %7346 = vmatmul.mubr.f32.gmra.mrb[0].mxu0 %v6670
  %v7347 = vpop.f32.mrb[0].mxu0
  %v7348 = vadd.f32 %v6334, %v7347
  %v7349 = vpop.f32.mrb[0].mxu0
  %7350 = vmatprep.mubr.f32.mxu0 0.0
  %7351 = vmatmul.mubr.f32.gmra.mrb[0].mxu0 %v6673
  %v7352 = vpop.f32.mrb[0].mxu0
  %v7353 = vadd.f32 %v6334, %v7352
  %v7354 = vpop.f32.mrb[0].mxu0
  %7355 = vmatprep.mubr.f32.mxu0 0.0
  %7356 = vmatmul.mubr.f32.gmra.mrb[0].mxu0 %v6676
  %v7357 = vpop.f32.mrb[0].mxu0
  %v7358 = vadd.f32 %v6334, %v7357
  %v7359 = vpop.f32.mrb[0].mxu0
  %7360 = vmatprep.mubr.f32.mxu0 0.0
  %7361 = vmatmul.mubr.f32.gmra.mrb[0].mxu0 %v6679
  %v7362 = vpop.f32.mrb[0].mxu0
  %v7363 = vadd.f32 %v6334, %v7362
  %v7364 = vpop.f32.mrb[0].mxu0
  %7365 = vmatprep.mubr.f32.mxu0 0.0
  %7366 = vmatmul.mubr.f32.gmra.mrb[0].mxu0 %v6682
  %v7367 = vpop.f32.mrb[0].mxu0
  %v7368 = vadd.f32 %v6334, %v7367
  %v7369 = vpop.f32.mrb[0].mxu0
  %7370 = vmatprep.mubr.f32.mxu0 0.0
  %7371 = vmatmul.mubr.f32.gmra.mrb[0].mxu0 %v6685
  %v7372 = vpop.f32.mrb[0].mxu0
  %v7373 = vadd.f32 %v6334, %v7372
  %v7374 = vpop.f32.mrb[0].mxu0
  %7375 = vmatprep.mubr.f32.mxu0 0.0
  %7376 = vmatmul.mubr.f32.gmra.mrb[0].mxu0 %v6688
  %v7377 = vpop.f32.mrb[0].mxu0
  %v7378 = vadd.f32 %v6334, %v7377
  %v7379 = vpop.f32.mrb[0].mxu0
  %7380 = vmatprep.mubr.f32.mxu0 0.0
  %7381 = vmatmul.mubr.f32.gmra.mrb[0].mxu0 %v6691
  %v7382 = vpop.f32.mrb[0].mxu0
  %v7383 = vadd.f32 %v6334, %v7382
  %v7384 = vpop.f32.mrb[0].mxu0
  %7385 = vmatprep.mubr.f32.mxu0 0.0
  %7386 = vmatmul.mubr.f32.gmra.mrb[0].mxu0 %v6694
  %v7387 = vpop.f32.mrb[0].mxu0
  %v7388 = vadd.f32 %v6334, %v7387
  %v7389 = vpop.f32.mrb[0].mxu0
  %7390 = vmatprep.mubr.f32.mxu0 0.0
  %7391 = vmatmul.mubr.f32.gmra.mrb[0].mxu0 %v6697
  %v7392 = vpop.f32.mrb[0].mxu0
  %v7393 = vadd.f32 %v6334, %v7392
  %v7394 = vpop.f32.mrb[0].mxu0
  %7395 = vmatprep.mubr.f32.mxu0 0.0
  %7396 = vmatmul.mubr.f32.gmra.mrb[0].mxu0 %v6700
  %v7397 = vpop.f32.mrb[0].mxu0
  %v7398 = vadd.f32 %v6334, %v7397
  %v7399 = vpop.f32.mrb[0].mxu0
  %7400 = vmatprep.mubr.f32.mxu0 0.0
  %7401 = vmatmul.mubr.f32.gmra.mrb[0].mxu0 %v6703
  %v7402 = vpop.f32.mrb[0].mxu0
  %v7403 = vadd.f32 %v6334, %v7402
  %v7404 = vpop.f32.mrb[0].mxu0
  %7405 = vmatprep.mubr.f32.mxu0 0.0
  %7406 = vmatmul.mubr.f32.gmra.mrb[0].mxu0 %v6706
  %v7407 = vpop.f32.mrb[0].mxu0
  %v7408 = vadd.f32 %v6334, %v7407
  %v7409 = vpop.f32.mrb[0].mxu0
  %7410 = vmatprep.mubr.f32.mxu0 0.0
  %7411 = vmatmul.mubr.f32.gmra.mrb[0].mxu0 %v6709
  %v7412 = vpop.f32.mrb[0].mxu0
  %v7413 = vadd.f32 %v6334, %v7412
  %v7414 = vpop.f32.mrb[0].mxu0
  %7415 = vmatprep.mubr.f32.mxu0 0.0
  %7416 = vmatmul.mubr.f32.gmra.mrb[0].mxu0 %v6712
  %v7417 = vpop.f32.mrb[0].mxu0
  %v7418 = vadd.f32 %v6334, %v7417
  %v7419 = vpop.f32.mrb[0].mxu0
  %7420 = vmatprep.mubr.f32.mxu0 0.0
  %7421 = vmatmul.mubr.f32.gmra.mrb[0].mxu0 %v6715
  %v7422 = vpop.f32.mrb[0].mxu0
  %v7423 = vadd.f32 %v6334, %v7422
  %v7424 = vpop.f32.mrb[0].mxu0
  %7425 = vmatprep.mubr.f32.mxu0 0.0
  %7426 = vmatmul.mubr.f32.gmra.mrb[0].mxu0 %v6718
  %v7427 = vpop.f32.mrb[0].mxu0
  %v7428 = vadd.f32 %v6334, %v7427
  %v7429 = vpop.f32.mrb[0].mxu0
  %7430 = vdwg.mxu0
  %v7431 = vmul.f32 %v6793, 0.5
  %v7432 = vmul.f32 %v6798, 0.5
  %v7433 = vmul.f32 %v6803, 0.5
  %v7434 = vmul.f32 %v6808, 0.5
  %v7435 = vmul.f32 %v6813, 0.5
  %v7436 = vmul.f32 %v6818, 0.5
  %v7437 = vmul.f32 %v6823, 0.5
  %v7438 = vmul.f32 %v6828, 0.5
  %v7439 = vmul.f32 %v6833, 0.5
  %v7440 = vmul.f32 %v6838, 0.5
  %v7441 = vmul.f32 %v6843, 0.5
  %v7442 = vmul.f32 %v6848, 0.5
  %v7443 = vmul.f32 %v6853, 0.5
  %v7444 = vmul.f32 %v6858, 0.5
  %v7445 = vmul.f32 %v6863, 0.5
  %v7446 = vmul.f32 %v6868, 0.5
  %v7447 = vmul.f32 %v6873, 0.5
  %v7448 = vmul.f32 %v6878, 0.5
  %v7449 = vmul.f32 %v6883, 0.5
  %v7450 = vmul.f32 %v6888, 0.5
  %v7451 = vmul.f32 %v6893, 0.5
  %v7452 = vmul.f32 %v6898, 0.5
  %v7453 = vmul.f32 %v6903, 0.5
  %v7454 = vmul.f32 %v6908, 0.5
  %v7455 = vmul.f32 %v6913, 0.5
  %v7456 = vmul.f32 %v6918, 0.5
  %v7457 = vmul.f32 %v6923, 0.5
  %v7458 = vmul.f32 %v6928, 0.5
  %v7459 = vmul.f32 %v6933, 0.5
  %v7460 = vmul.f32 %v6938, 0.5
  %v7461 = vmul.f32 %v6943, 0.5
  %v7462 = vmul.f32 %v6948, 0.5
  %v7463 = vmul.f32 %v6953, 0.5
  %v7464 = vmul.f32 %v6958, 0.5
  %v7465 = vmul.f32 %v6963, 0.5
  %v7466 = vmul.f32 %v6968, 0.5
  %v7467 = vmul.f32 %v6973, 0.5
  %v7468 = vmul.f32 %v6978, 0.5
  %v7469 = vmul.f32 %v6983, 0.5
  %v7470 = vmul.f32 %v6988, 0.5
  %v7471 = vmul.f32 %v6993, 0.5
  %v7472 = vmul.f32 %v6998, 0.5
  %v7473 = vmul.f32 %v7003, 0.5
  %v7474 = vmul.f32 %v7008, 0.5
  %v7475 = vmul.f32 %v7013, 0.5
  %v7476 = vmul.f32 %v7018, 0.5
  %v7477 = vmul.f32 %v7023, 0.5
  %v7478 = vmul.f32 %v7028, 0.5
  %v7479 = vmul.f32 %v7033, 0.5
  %v7480 = vmul.f32 %v7038, 0.5
  %v7481 = vmul.f32 %v7043, 0.5
  %v7482 = vmul.f32 %v7048, 0.5
  %v7483 = vmul.f32 %v7053, 0.5
  %v7484 = vmul.f32 %v7058, 0.5
  %v7485 = vmul.f32 %v7063, 0.5
  %v7486 = vmul.f32 %v7068, 0.5
  %v7487 = vmul.f32 %v7073, 0.5
  %v7488 = vmul.f32 %v7078, 0.5
  %v7489 = vmul.f32 %v7083, 0.5
  %v7490 = vmul.f32 %v7088, 0.5
  %v7491 = vmul.f32 %v7093, 0.5
  %v7492 = vmul.f32 %v7098, 0.5
  %v7493 = vmul.f32 %v7103, 0.5
  %v7494 = vmul.f32 %v7108, 0.5
  %v7495 = vmul.f32 %v7113, 0.5
  %v7496 = vmul.f32 %v7118, 0.5
  %v7497 = vmul.f32 %v7123, 0.5
  %v7498 = vmul.f32 %v7128, 0.5
  %v7499 = vmul.f32 %v7133, 0.5
  %v7500 = vmul.f32 %v7138, 0.5
  %v7501 = vmul.f32 %v7143, 0.5
  %v7502 = vmul.f32 %v7148, 0.5
  %v7503 = vmul.f32 %v7153, 0.5
  %v7504 = vmul.f32 %v7158, 0.5
  %v7505 = vmul.f32 %v7163, 0.5
  %v7506 = vmul.f32 %v7168, 0.5
  %v7507 = vmul.f32 %v7173, 0.5
  %v7508 = vmul.f32 %v7178, 0.5
  %v7509 = vmul.f32 %v7183, 0.5
  %v7510 = vmul.f32 %v7188, 0.5
  %v7511 = vmul.f32 %v7193, 0.5
  %v7512 = vmul.f32 %v7198, 0.5
  %v7513 = vmul.f32 %v7203, 0.5
  %v7514 = vmul.f32 %v7208, 0.5
  %v7515 = vmul.f32 %v7213, 0.5
  %v7516 = vmul.f32 %v7218, 0.5
  %v7517 = vmul.f32 %v7223, 0.5
  %v7518 = vmul.f32 %v7228, 0.5
  %v7519 = vmul.f32 %v7233, 0.5
  %v7520 = vmul.f32 %v7238, 0.5
  %v7521 = vmul.f32 %v7243, 0.5
  %v7522 = vmul.f32 %v7248, 0.5
  %v7523 = vmul.f32 %v7253, 0.5
  %v7524 = vmul.f32 %v7258, 0.5
  %v7525 = vmul.f32 %v7263, 0.5
  %v7526 = vmul.f32 %v7268, 0.5
  %v7527 = vmul.f32 %v7273, 0.5
  %v7528 = vmul.f32 %v7278, 0.5
  %v7529 = vmul.f32 %v7283, 0.5
  %v7530 = vmul.f32 %v7288, 0.5
  %v7531 = vmul.f32 %v7293, 0.5
  %v7532 = vmul.f32 %v7298, 0.5
  %v7533 = vmul.f32 %v7303, 0.5
  %v7534 = vmul.f32 %v7308, 0.5
  %v7535 = vmul.f32 %v7313, 0.5
  %v7536 = vmul.f32 %v7318, 0.5
  %v7537 = vmul.f32 %v7323, 0.5
  %v7538 = vmul.f32 %v7328, 0.5
  %v7539 = vmul.f32 %v7333, 0.5
  %v7540 = vmul.f32 %v7338, 0.5
  %v7541 = vmul.f32 %v7343, 0.5
  %v7542 = vmul.f32 %v7348, 0.5
  %v7543 = vmul.f32 %v7353, 0.5
  %v7544 = vmul.f32 %v7358, 0.5
  %v7545 = vmul.f32 %v7363, 0.5
  %v7546 = vmul.f32 %v7368, 0.5
  %v7547 = vmul.f32 %v7373, 0.5
  %v7548 = vmul.f32 %v7378, 0.5
  %v7549 = vmul.f32 %v7383, 0.5
  %v7550 = vmul.f32 %v7388, 0.5
  %v7551 = vmul.f32 %v7393, 0.5
  %v7552 = vmul.f32 %v7398, 0.5
  %v7553 = vmul.f32 %v7403, 0.5
  %v7554 = vmul.f32 %v7408, 0.5
  %v7555 = vmul.f32 %v7413, 0.5
  %v7556 = vmul.f32 %v7418, 0.5
  %v7557 = vmul.f32 %v7423, 0.5
  %v7558 = vmul.f32 %v7428, 0.5
  %v7559 = vtanh.pop %v7431
  %v7560 = vtanh.pop %v7432
  %v7561 = vtanh.pop %v7433
  %v7562 = vtanh.pop %v7434
  %v7563 = vtanh.pop %v7435
  %v7564 = vtanh.pop %v7436
  %v7565 = vtanh.pop %v7437
  %v7566 = vtanh.pop %v7438
  %v7567 = vtanh.pop %v7439
  %v7568 = vtanh.pop %v7440
  %v7569 = vtanh.pop %v7441
  %v7570 = vtanh.pop %v7442
  %v7571 = vtanh.pop %v7443
  %v7572 = vtanh.pop %v7444
  %v7573 = vtanh.pop %v7445
  %v7574 = vtanh.pop %v7446
  %v7575 = vtanh.pop %v7447
  %v7576 = vtanh.pop %v7448
  %v7577 = vtanh.pop %v7449
  %v7578 = vtanh.pop %v7450
  %v7579 = vtanh.pop %v7451
  %v7580 = vtanh.pop %v7452
  %v7581 = vtanh.pop %v7453
  %v7582 = vtanh.pop %v7454
  %v7583 = vtanh.pop %v7455
  %v7584 = vtanh.pop %v7456
  %v7585 = vtanh.pop %v7457
  %v7586 = vtanh.pop %v7458
  %v7587 = vtanh.pop %v7459
  %v7588 = vtanh.pop %v7460
  %v7589 = vtanh.pop %v7461
  %v7590 = vtanh.pop %v7462
  %v7591 = vtanh.pop %v7463
  %v7592 = vtanh.pop %v7464
  %v7593 = vtanh.pop %v7465
  %v7594 = vtanh.pop %v7466
  %v7595 = vtanh.pop %v7467
  %v7596 = vtanh.pop %v7468
  %v7597 = vtanh.pop %v7469
  %v7598 = vtanh.pop %v7470
  %v7599 = vtanh.pop %v7471
  %v7600 = vtanh.pop %v7472
  %v7601 = vtanh.pop %v7473
  %v7602 = vtanh.pop %v7474
  %v7603 = vtanh.pop %v7475
  %v7604 = vtanh.pop %v7476
  %v7605 = vtanh.pop %v7477
  %v7606 = vtanh.pop %v7478
  %v7607 = vtanh.pop %v7479
  %v7608 = vtanh.pop %v7480
  %v7609 = vtanh.pop %v7481
  %v7610 = vtanh.pop %v7482
  %v7611 = vtanh.pop %v7483
  %v7612 = vtanh.pop %v7484
  %v7613 = vtanh.pop %v7485
  %v7614 = vtanh.pop %v7486
  %v7615 = vtanh.pop %v7487
  %v7616 = vtanh.pop %v7488
  %v7617 = vtanh.pop %v7489
  %v7618 = vtanh.pop %v7490
  %v7619 = vtanh.pop %v7491
  %v7620 = vtanh.pop %v7492
  %v7621 = vtanh.pop %v7493
  %v7622 = vtanh.pop %v7494
  %v7623 = vtanh.pop %v7495
  %v7624 = vtanh.pop %v7496
  %v7625 = vtanh.pop %v7497
  %v7626 = vtanh.pop %v7498
  %v7627 = vtanh.pop %v7499
  %v7628 = vtanh.pop %v7500
  %v7629 = vtanh.pop %v7501
  %v7630 = vtanh.pop %v7502
  %v7631 = vtanh.pop %v7503
  %v7632 = vtanh.pop %v7504
  %v7633 = vtanh.pop %v7505
  %v7634 = vtanh.pop %v7506
  %v7635 = vtanh.pop %v7507
  %v7636 = vtanh.pop %v7508
  %v7637 = vtanh.pop %v7509
  %v7638 = vtanh.pop %v7510
  %v7639 = vtanh.pop %v7511
  %v7640 = vtanh.pop %v7512
  %v7641 = vtanh.pop %v7513
  %v7642 = vtanh.pop %v7514
  %v7643 = vtanh.pop %v7515
  %v7644 = vtanh.pop %v7516
  %v7645 = vtanh.pop %v7517
  %v7646 = vtanh.pop %v7518
  %v7647 = vtanh.pop %v7519
  %v7648 = vtanh.pop %v7520
  %v7649 = vtanh.pop %v7521
  %v7650 = vtanh.pop %v7522
  %v7651 = vtanh.pop %v7523
  %v7652 = vtanh.pop %v7524
  %v7653 = vtanh.pop %v7525
  %v7654 = vtanh.pop %v7526
  %v7655 = vtanh.pop %v7527
  %v7656 = vtanh.pop %v7528
  %v7657 = vtanh.pop %v7529
  %v7658 = vtanh.pop %v7530
  %v7659 = vtanh.pop %v7531
  %v7660 = vtanh.pop %v7532
  %v7661 = vtanh.pop %v7533
  %v7662 = vtanh.pop %v7534
  %v7663 = vtanh.pop %v7535
  %v7664 = vtanh.pop %v7536
  %v7665 = vtanh.pop %v7537
  %v7666 = vtanh.pop %v7538
  %v7667 = vtanh.pop %v7539
  %v7668 = vtanh.pop %v7540
  %v7669 = vtanh.pop %v7541
  %v7670 = vtanh.pop %v7542
  %v7671 = vtanh.pop %v7543
  %v7672 = vtanh.pop %v7544
  %v7673 = vtanh.pop %v7545
  %v7674 = vtanh.pop %v7546
  %v7675 = vtanh.pop %v7547
  %v7676 = vtanh.pop %v7548
  %v7677 = vtanh.pop %v7549
  %v7678 = vtanh.pop %v7550
  %v7679 = vtanh.pop %v7551
  %v7680 = vtanh.pop %v7552
  %v7681 = vtanh.pop %v7553
  %v7682 = vtanh.pop %v7554
  %v7683 = vtanh.pop %v7555
  %v7684 = vtanh.pop %v7556
  %v7685 = vtanh.pop %v7557
  %v7686 = vtanh.pop %v7558
  %v7687 = vmul.f32 %v7559, 0.5
  %v7688 = vmul.f32 %v7560, 0.5
  %v7689 = vmul.f32 %v7561, 0.5
  %v7690 = vmul.f32 %v7562, 0.5
  %v7691 = vmul.f32 %v7563, 0.5
  %v7692 = vmul.f32 %v7564, 0.5
  %v7693 = vmul.f32 %v7565, 0.5
  %v7694 = vmul.f32 %v7566, 0.5
  %v7695 = vmul.f32 %v7567, 0.5
  %v7696 = vmul.f32 %v7568, 0.5
  %v7697 = vmul.f32 %v7569, 0.5
  %v7698 = vmul.f32 %v7570, 0.5
  %v7699 = vmul.f32 %v7571, 0.5
  %v7700 = vmul.f32 %v7572, 0.5
  %v7701 = vmul.f32 %v7573, 0.5
  %v7702 = vmul.f32 %v7574, 0.5
  %v7703 = vmul.f32 %v7575, 0.5
  %v7704 = vmul.f32 %v7576, 0.5
  %v7705 = vmul.f32 %v7577, 0.5
  %v7706 = vmul.f32 %v7578, 0.5
  %v7707 = vmul.f32 %v7579, 0.5
  %v7708 = vmul.f32 %v7580, 0.5
  %v7709 = vmul.f32 %v7581, 0.5
  %v7710 = vmul.f32 %v7582, 0.5
  %v7711 = vmul.f32 %v7583, 0.5
  %v7712 = vmul.f32 %v7584, 0.5
  %v7713 = vmul.f32 %v7585, 0.5
  %v7714 = vmul.f32 %v7586, 0.5
  %v7715 = vmul.f32 %v7587, 0.5
  %v7716 = vmul.f32 %v7588, 0.5
  %v7717 = vmul.f32 %v7589, 0.5
  %v7718 = vmul.f32 %v7590, 0.5
  %v7719 = vmul.f32 %v7591, 0.5
  %v7720 = vmul.f32 %v7592, 0.5
  %v7721 = vmul.f32 %v7593, 0.5
  %v7722 = vmul.f32 %v7594, 0.5
  %v7723 = vmul.f32 %v7595, 0.5
  %v7724 = vmul.f32 %v7596, 0.5
  %v7725 = vmul.f32 %v7597, 0.5
  %v7726 = vmul.f32 %v7598, 0.5
  %v7727 = vmul.f32 %v7599, 0.5
  %v7728 = vmul.f32 %v7600, 0.5
  %v7729 = vmul.f32 %v7601, 0.5
  %v7730 = vmul.f32 %v7602, 0.5
  %v7731 = vmul.f32 %v7603, 0.5
  %v7732 = vmul.f32 %v7604, 0.5
  %v7733 = vmul.f32 %v7605, 0.5
  %v7734 = vmul.f32 %v7606, 0.5
  %v7735 = vmul.f32 %v7607, 0.5
  %v7736 = vmul.f32 %v7608, 0.5
  %v7737 = vmul.f32 %v7609, 0.5
  %v7738 = vmul.f32 %v7610, 0.5
  %v7739 = vmul.f32 %v7611, 0.5
  %v7740 = vmul.f32 %v7612, 0.5
  %v7741 = vmul.f32 %v7613, 0.5
  %v7742 = vmul.f32 %v7614, 0.5
  %v7743 = vmul.f32 %v7615, 0.5
  %v7744 = vmul.f32 %v7616, 0.5
  %v7745 = vmul.f32 %v7617, 0.5
  %v7746 = vmul.f32 %v7618, 0.5
  %v7747 = vmul.f32 %v7619, 0.5
  %v7748 = vmul.f32 %v7620, 0.5
  %v7749 = vmul.f32 %v7621, 0.5
  %v7750 = vmul.f32 %v7622, 0.5
  %v7751 = vmul.f32 %v7623, 0.5
  %v7752 = vmul.f32 %v7624, 0.5
  %v7753 = vmul.f32 %v7625, 0.5
  %v7754 = vmul.f32 %v7626, 0.5
  %v7755 = vmul.f32 %v7627, 0.5
  %v7756 = vmul.f32 %v7628, 0.5
  %v7757 = vmul.f32 %v7629, 0.5
  %v7758 = vmul.f32 %v7630, 0.5
  %v7759 = vmul.f32 %v7631, 0.5
  %v7760 = vmul.f32 %v7632, 0.5
  %v7761 = vmul.f32 %v7633, 0.5
  %v7762 = vmul.f32 %v7634, 0.5
  %v7763 = vmul.f32 %v7635, 0.5
  %v7764 = vmul.f32 %v7636, 0.5
  %v7765 = vmul.f32 %v7637, 0.5
  %v7766 = vmul.f32 %v7638, 0.5
  %v7767 = vmul.f32 %v7639, 0.5
  %v7768 = vmul.f32 %v7640, 0.5
  %v7769 = vmul.f32 %v7641, 0.5
  %v7770 = vmul.f32 %v7642, 0.5
  %v7771 = vmul.f32 %v7643, 0.5
  %v7772 = vmul.f32 %v7644, 0.5
  %v7773 = vmul.f32 %v7645, 0.5
  %v7774 = vmul.f32 %v7646, 0.5
  %v7775 = vmul.f32 %v7647, 0.5
  %v7776 = vmul.f32 %v7648, 0.5
  %v7777 = vmul.f32 %v7649, 0.5
  %v7778 = vmul.f32 %v7650, 0.5
  %v7779 = vmul.f32 %v7651, 0.5
  %v7780 = vmul.f32 %v7652, 0.5
  %v7781 = vmul.f32 %v7653, 0.5
  %v7782 = vmul.f32 %v7654, 0.5
  %v7783 = vmul.f32 %v7655, 0.5
  %v7784 = vmul.f32 %v7656, 0.5
  %v7785 = vmul.f32 %v7657, 0.5
  %v7786 = vmul.f32 %v7658, 0.5
  %v7787 = vmul.f32 %v7659, 0.5
  %v7788 = vmul.f32 %v7660, 0.5
  %v7789 = vmul.f32 %v7661, 0.5
  %v7790 = vmul.f32 %v7662, 0.5
  %v7791 = vmul.f32 %v7663, 0.5
  %v7792 = vmul.f32 %v7664, 0.5
  %v7793 = vmul.f32 %v7665, 0.5
  %v7794 = vmul.f32 %v7666, 0.5
  %v7795 = vmul.f32 %v7667, 0.5
  %v7796 = vmul.f32 %v7668, 0.5
  %v7797 = vmul.f32 %v7669, 0.5
  %v7798 = vmul.f32 %v7670, 0.5
  %v7799 = vmul.f32 %v7671, 0.5
  %v7800 = vmul.f32 %v7672, 0.5
  %v7801 = vmul.f32 %v7673, 0.5
  %v7802 = vmul.f32 %v7674, 0.5
  %v7803 = vmul.f32 %v7675, 0.5
  %v7804 = vmul.f32 %v7676, 0.5
  %v7805 = vmul.f32 %v7677, 0.5
  %v7806 = vmul.f32 %v7678, 0.5
  %v7807 = vmul.f32 %v7679, 0.5
  %v7808 = vmul.f32 %v7680, 0.5
  %v7809 = vmul.f32 %v7681, 0.5
  %v7810 = vmul.f32 %v7682, 0.5
  %v7811 = vmul.f32 %v7683, 0.5
  %v7812 = vmul.f32 %v7684, 0.5
  %v7813 = vmul.f32 %v7685, 0.5
  %v7814 = vmul.f32 %v7686, 0.5
  %v7815 = vadd.f32 %v7687, 0.5
  %v7816 = vadd.f32 %v7688, 0.5
  %v7817 = vadd.f32 %v7689, 0.5
  %v7818 = vadd.f32 %v7690, 0.5
  %v7819 = vadd.f32 %v7691, 0.5
  %v7820 = vadd.f32 %v7692, 0.5
  %v7821 = vadd.f32 %v7693, 0.5
  %v7822 = vadd.f32 %v7694, 0.5
  %v7823 = vadd.f32 %v7695, 0.5
  %v7824 = vadd.f32 %v7696, 0.5
  %v7825 = vadd.f32 %v7697, 0.5
  %v7826 = vadd.f32 %v7698, 0.5
  %v7827 = vadd.f32 %v7699, 0.5
  %v7828 = vadd.f32 %v7700, 0.5
  %v7829 = vadd.f32 %v7701, 0.5
  %v7830 = vadd.f32 %v7702, 0.5
  %v7831 = vadd.f32 %v7703, 0.5
  %v7832 = vadd.f32 %v7704, 0.5
  %v7833 = vadd.f32 %v7705, 0.5
  %v7834 = vadd.f32 %v7706, 0.5
  %v7835 = vadd.f32 %v7707, 0.5
  %v7836 = vadd.f32 %v7708, 0.5
  %v7837 = vadd.f32 %v7709, 0.5
  %v7838 = vadd.f32 %v7710, 0.5
  %v7839 = vadd.f32 %v7711, 0.5
  %v7840 = vadd.f32 %v7712, 0.5
  %v7841 = vadd.f32 %v7713, 0.5
  %v7842 = vadd.f32 %v7714, 0.5
  %v7843 = vadd.f32 %v7715, 0.5
  %v7844 = vadd.f32 %v7716, 0.5
  %v7845 = vadd.f32 %v7717, 0.5
  %v7846 = vadd.f32 %v7718, 0.5
  %v7847 = vadd.f32 %v7719, 0.5
  %v7848 = vadd.f32 %v7720, 0.5
  %v7849 = vadd.f32 %v7721, 0.5
  %v7850 = vadd.f32 %v7722, 0.5
  %v7851 = vadd.f32 %v7723, 0.5
  %v7852 = vadd.f32 %v7724, 0.5
  %v7853 = vadd.f32 %v7725, 0.5
  %v7854 = vadd.f32 %v7726, 0.5
  %v7855 = vadd.f32 %v7727, 0.5
  %v7856 = vadd.f32 %v7728, 0.5
  %v7857 = vadd.f32 %v7729, 0.5
  %v7858 = vadd.f32 %v7730, 0.5
  %v7859 = vadd.f32 %v7731, 0.5
  %v7860 = vadd.f32 %v7732, 0.5
  %v7861 = vadd.f32 %v7733, 0.5
  %v7862 = vadd.f32 %v7734, 0.5
  %v7863 = vadd.f32 %v7735, 0.5
  %v7864 = vadd.f32 %v7736, 0.5
  %v7865 = vadd.f32 %v7737, 0.5
  %v7866 = vadd.f32 %v7738, 0.5
  %v7867 = vadd.f32 %v7739, 0.5
  %v7868 = vadd.f32 %v7740, 0.5
  %v7869 = vadd.f32 %v7741, 0.5
  %v7870 = vadd.f32 %v7742, 0.5
  %v7871 = vadd.f32 %v7743, 0.5
  %v7872 = vadd.f32 %v7744, 0.5
  %v7873 = vadd.f32 %v7745, 0.5
  %v7874 = vadd.f32 %v7746, 0.5
  %v7875 = vadd.f32 %v7747, 0.5
  %v7876 = vadd.f32 %v7748, 0.5
  %v7877 = vadd.f32 %v7749, 0.5
  %v7878 = vadd.f32 %v7750, 0.5
  %v7879 = vadd.f32 %v7751, 0.5
  %v7880 = vadd.f32 %v7752, 0.5
  %v7881 = vadd.f32 %v7753, 0.5
  %v7882 = vadd.f32 %v7754, 0.5
  %v7883 = vadd.f32 %v7755, 0.5
  %v7884 = vadd.f32 %v7756, 0.5
  %v7885 = vadd.f32 %v7757, 0.5
  %v7886 = vadd.f32 %v7758, 0.5
  %v7887 = vadd.f32 %v7759, 0.5
  %v7888 = vadd.f32 %v7760, 0.5
  %v7889 = vadd.f32 %v7761, 0.5
  %v7890 = vadd.f32 %v7762, 0.5
  %v7891 = vadd.f32 %v7763, 0.5
  %v7892 = vadd.f32 %v7764, 0.5
  %v7893 = vadd.f32 %v7765, 0.5
  %v7894 = vadd.f32 %v7766, 0.5
  %v7895 = vadd.f32 %v7767, 0.5
  %v7896 = vadd.f32 %v7768, 0.5
  %v7897 = vadd.f32 %v7769, 0.5
  %v7898 = vadd.f32 %v7770, 0.5
  %v7899 = vadd.f32 %v7771, 0.5
  %v7900 = vadd.f32 %v7772, 0.5
  %v7901 = vadd.f32 %v7773, 0.5
  %v7902 = vadd.f32 %v7774, 0.5
  %v7903 = vadd.f32 %v7775, 0.5
  %v7904 = vadd.f32 %v7776, 0.5
  %v7905 = vadd.f32 %v7777, 0.5
  %v7906 = vadd.f32 %v7778, 0.5
  %v7907 = vadd.f32 %v7779, 0.5
  %v7908 = vadd.f32 %v7780, 0.5
  %v7909 = vadd.f32 %v7781, 0.5
  %v7910 = vadd.f32 %v7782, 0.5
  %v7911 = vadd.f32 %v7783, 0.5
  %v7912 = vadd.f32 %v7784, 0.5
  %v7913 = vadd.f32 %v7785, 0.5
  %v7914 = vadd.f32 %v7786, 0.5
  %v7915 = vadd.f32 %v7787, 0.5
  %v7916 = vadd.f32 %v7788, 0.5
  %v7917 = vadd.f32 %v7789, 0.5
  %v7918 = vadd.f32 %v7790, 0.5
  %v7919 = vadd.f32 %v7791, 0.5
  %v7920 = vadd.f32 %v7792, 0.5
  %v7921 = vadd.f32 %v7793, 0.5
  %v7922 = vadd.f32 %v7794, 0.5
  %v7923 = vadd.f32 %v7795, 0.5
  %v7924 = vadd.f32 %v7796, 0.5
  %v7925 = vadd.f32 %v7797, 0.5
  %v7926 = vadd.f32 %v7798, 0.5
  %v7927 = vadd.f32 %v7799, 0.5
  %v7928 = vadd.f32 %v7800, 0.5
  %v7929 = vadd.f32 %v7801, 0.5
  %v7930 = vadd.f32 %v7802, 0.5
  %v7931 = vadd.f32 %v7803, 0.5
  %v7932 = vadd.f32 %v7804, 0.5
  %v7933 = vadd.f32 %v7805, 0.5
  %v7934 = vadd.f32 %v7806, 0.5
  %v7935 = vadd.f32 %v7807, 0.5
  %v7936 = vadd.f32 %v7808, 0.5
  %v7937 = vadd.f32 %v7809, 0.5
  %v7938 = vadd.f32 %v7810, 0.5
  %v7939 = vadd.f32 %v7811, 0.5
  %v7940 = vadd.f32 %v7812, 0.5
  %v7941 = vadd.f32 %v7813, 0.5
  %v7942 = vadd.f32 %v7814, 0.5
  %7943 = vst.msk [vmem:[%s3] sm:$0xff] %vm153, %v7815
  %7944 = vst.msk [vmem:[%s3 + $0x8] sm:$0xff] %vm153, %v7816
  %7945 = vst.msk [vmem:[%s3 + $0x10] sm:$0xff] %vm153, %v7817
  %7946 = vst.msk [vmem:[%s3 + $0x18] sm:$0xff] %vm153, %v7818
  %7947 = vst.msk [vmem:[%s3 + $0x20] sm:$0xff] %vm153, %v7819
  %7948 = vst.msk [vmem:[%s3 + $0x28] sm:$0xff] %vm153, %v7820
  %7949 = vst.msk [vmem:[%s3 + $0x30] sm:$0xff] %vm153, %v7821
  %7950 = vst.msk [vmem:[%s3 + $0x38] sm:$0xff] %vm153, %v7822
  %7951 = vst.msk [vmem:[%s3 + $0x40] sm:$0xff] %vm153, %v7823
  %7952 = vst.msk [vmem:[%s3 + $0x48] sm:$0xff] %vm153, %v7824
  %7953 = vst.msk [vmem:[%s3 + $0x50] sm:$0xff] %vm153, %v7825
  %7954 = vst.msk [vmem:[%s3 + $0x58] sm:$0xff] %vm153, %v7826
  %7955 = vst.msk [vmem:[%s3 + $0x60] sm:$0xff] %vm153, %v7827
  %7956 = vst.msk [vmem:[%s3 + $0x68] sm:$0xff] %vm153, %v7828
  %7957 = vst.msk [vmem:[%s3 + $0x70] sm:$0xff] %vm153, %v7829
  %7958 = vst.msk [vmem:[%s3 + $0x78] sm:$0xff] %vm153, %v7830
  %7959 = vst.msk [vmem:[%s3 + $0x80] sm:$0xff] %vm153, %v7831
  %7960 = vst.msk [vmem:[%s3 + $0x88] sm:$0xff] %vm153, %v7832
  %7961 = vst.msk [vmem:[%s3 + $0x90] sm:$0xff] %vm153, %v7833
  %7962 = vst.msk [vmem:[%s3 + $0x98] sm:$0xff] %vm153, %v7834
  %7963 = vst.msk [vmem:[%s3 + $0xa0] sm:$0xff] %vm153, %v7835
  %7964 = vst.msk [vmem:[%s3 + $0xa8] sm:$0xff] %vm153, %v7836
  %7965 = vst.msk [vmem:[%s3 + $0xb0] sm:$0xff] %vm153, %v7837
  %7966 = vst.msk [vmem:[%s3 + $0xb8] sm:$0xff] %vm153, %v7838
  %7967 = vst.msk [vmem:[%s3 + $0xc0] sm:$0xff] %vm153, %v7839
  %7968 = vst.msk [vmem:[%s3 + $0xc8] sm:$0xff] %vm153, %v7840
  %7969 = vst.msk [vmem:[%s3 + $0xd0] sm:$0xff] %vm153, %v7841
  %7970 = vst.msk [vmem:[%s3 + $0xd8] sm:$0xff] %vm153, %v7842
  %7971 = vst.msk [vmem:[%s3 + $0xe0] sm:$0xff] %vm153, %v7843
  %7972 = vst.msk [vmem:[%s3 + $0xe8] sm:$0xff] %vm153, %v7844
  %7973 = vst.msk [vmem:[%s3 + $0xf0] sm:$0xff] %vm153, %v7845
  %7974 = vst.msk [vmem:[%s3 + $0xf8] sm:$0xff] %vm153, %v7846
  %7975 = vst.msk [vmem:[%s3 + $0x100] sm:$0xff] %vm153, %v7847
  %7976 = vst.msk [vmem:[%s3 + $0x108] sm:$0xff] %vm153, %v7848
  %7977 = vst.msk [vmem:[%s3 + $0x110] sm:$0xff] %vm153, %v7849
  %7978 = vst.msk [vmem:[%s3 + $0x118] sm:$0xff] %vm153, %v7850
  %7979 = vst.msk [vmem:[%s3 + $0x120] sm:$0xff] %vm153, %v7851
  %7980 = vst.msk [vmem:[%s3 + $0x128] sm:$0xff] %vm153, %v7852
  %7981 = vst.msk [vmem:[%s3 + $0x130] sm:$0xff] %vm153, %v7853
  %7982 = vst.msk [vmem:[%s3 + $0x138] sm:$0xff] %vm153, %v7854
  %7983 = vst.msk [vmem:[%s3 + $0x140] sm:$0xff] %vm153, %v7855
  %7984 = vst.msk [vmem:[%s3 + $0x148] sm:$0xff] %vm153, %v7856
  %7985 = vst.msk [vmem:[%s3 + $0x150] sm:$0xff] %vm153, %v7857
  %7986 = vst.msk [vmem:[%s3 + $0x158] sm:$0xff] %vm153, %v7858
  %7987 = vst.msk [vmem:[%s3 + $0x160] sm:$0xff] %vm153, %v7859
  %7988 = vst.msk [vmem:[%s3 + $0x168] sm:$0xff] %vm153, %v7860
  %7989 = vst.msk [vmem:[%s3 + $0x170] sm:$0xff] %vm153, %v7861
  %7990 = vst.msk [vmem:[%s3 + $0x178] sm:$0xff] %vm153, %v7862
  %7991 = vst.msk [vmem:[%s3 + $0x180] sm:$0xff] %vm153, %v7863
  %7992 = vst.msk [vmem:[%s3 + $0x188] sm:$0xff] %vm153, %v7864
  %7993 = vst.msk [vmem:[%s3 + $0x190] sm:$0xff] %vm153, %v7865
  %7994 = vst.msk [vmem:[%s3 + $0x198] sm:$0xff] %vm153, %v7866
  %7995 = vst.msk [vmem:[%s3 + $0x1a0] sm:$0xff] %vm153, %v7867
  %7996 = vst.msk [vmem:[%s3 + $0x1a8] sm:$0xff] %vm153, %v7868
  %7997 = vst.msk [vmem:[%s3 + $0x1b0] sm:$0xff] %vm153, %v7869
  %7998 = vst.msk [vmem:[%s3 + $0x1b8] sm:$0xff] %vm153, %v7870
  %7999 = vst.msk [vmem:[%s3 + $0x1c0] sm:$0xff] %vm153, %v7871
  %8000 = vst.msk [vmem:[%s3 + $0x1c8] sm:$0xff] %vm153, %v7872
  %8001 = vst.msk [vmem:[%s3 + $0x1d0] sm:$0xff] %vm153, %v7873
  %8002 = vst.msk [vmem:[%s3 + $0x1d8] sm:$0xff] %vm153, %v7874
  %8003 = vst.msk [vmem:[%s3 + $0x1e0] sm:$0xff] %vm153, %v7875
  %8004 = vst.msk [vmem:[%s3 + $0x1e8] sm:$0xff] %vm153, %v7876
  %8005 = vst.msk [vmem:[%s3 + $0x1f0] sm:$0xff] %vm153, %v7877
  %8006 = vst.msk [vmem:[%s3 + $0x1f8] sm:$0xff] %vm153, %v7878
  %8007 = vst.msk [vmem:[%s3 + $0x200] sm:$0xff] %vm153, %v7879
  %8008 = vst.msk [vmem:[%s3 + $0x208] sm:$0xff] %vm153, %v7880
  %8009 = vst.msk [vmem:[%s3 + $0x210] sm:$0xff] %vm153, %v7881
  %8010 = vst.msk [vmem:[%s3 + $0x218] sm:$0xff] %vm153, %v7882
  %8011 = vst.msk [vmem:[%s3 + $0x220] sm:$0xff] %vm153, %v7883
  %8012 = vst.msk [vmem:[%s3 + $0x228] sm:$0xff] %vm153, %v7884
  %8013 = vst.msk [vmem:[%s3 + $0x230] sm:$0xff] %vm153, %v7885
  %8014 = vst.msk [vmem:[%s3 + $0x238] sm:$0xff] %vm153, %v7886
  %8015 = vst.msk [vmem:[%s3 + $0x240] sm:$0xff] %vm153, %v7887
  %8016 = vst.msk [vmem:[%s3 + $0x248] sm:$0xff] %vm153, %v7888
  %8017 = vst.msk [vmem:[%s3 + $0x250] sm:$0xff] %vm153, %v7889
  %8018 = vst.msk [vmem:[%s3 + $0x258] sm:$0xff] %vm153, %v7890
  %8019 = vst.msk [vmem:[%s3 + $0x260] sm:$0xff] %vm153, %v7891
  %8020 = vst.msk [vmem:[%s3 + $0x268] sm:$0xff] %vm153, %v7892
  %8021 = vst.msk [vmem:[%s3 + $0x270] sm:$0xff] %vm153, %v7893
  %8022 = vst.msk [vmem:[%s3 + $0x278] sm:$0xff] %vm153, %v7894
  %8023 = vst.msk [vmem:[%s3 + $0x280] sm:$0xff] %vm153, %v7895
  %8024 = vst.msk [vmem:[%s3 + $0x288] sm:$0xff] %vm153, %v7896
  %8025 = vst.msk [vmem:[%s3 + $0x290] sm:$0xff] %vm153, %v7897
  %8026 = vst.msk [vmem:[%s3 + $0x298] sm:$0xff] %vm153, %v7898
  %8027 = vst.msk [vmem:[%s3 + $0x2a0] sm:$0xff] %vm153, %v7899
  %8028 = vst.msk [vmem:[%s3 + $0x2a8] sm:$0xff] %vm153, %v7900
  %8029 = vst.msk [vmem:[%s3 + $0x2b0] sm:$0xff] %vm153, %v7901
  %8030 = vst.msk [vmem:[%s3 + $0x2b8] sm:$0xff] %vm153, %v7902
  %8031 = vst.msk [vmem:[%s3 + $0x2c0] sm:$0xff] %vm153, %v7903
  %8032 = vst.msk [vmem:[%s3 + $0x2c8] sm:$0xff] %vm153, %v7904
  %8033 = vst.msk [vmem:[%s3 + $0x2d0] sm:$0xff] %vm153, %v7905
  %8034 = vst.msk [vmem:[%s3 + $0x2d8] sm:$0xff] %vm153, %v7906
  %8035 = vst.msk [vmem:[%s3 + $0x2e0] sm:$0xff] %vm153, %v7907
  %8036 = vst.msk [vmem:[%s3 + $0x2e8] sm:$0xff] %vm153, %v7908
  %8037 = vst.msk [vmem:[%s3 + $0x2f0] sm:$0xff] %vm153, %v7909
  %8038 = vst.msk [vmem:[%s3 + $0x2f8] sm:$0xff] %vm153, %v7910
  %8039 = vst.msk [vmem:[%s3 + $0x300] sm:$0xff] %vm153, %v7911
  %8040 = vst.msk [vmem:[%s3 + $0x308] sm:$0xff] %vm153, %v7912
  %8041 = vst.msk [vmem:[%s3 + $0x310] sm:$0xff] %vm153, %v7913
  %8042 = vst.msk [vmem:[%s3 + $0x318] sm:$0xff] %vm153, %v7914
  %8043 = vst.msk [vmem:[%s3 + $0x320] sm:$0xff] %vm153, %v7915
  %8044 = vst.msk [vmem:[%s3 + $0x328] sm:$0xff] %vm153, %v7916
  %8045 = vst.msk [vmem:[%s3 + $0x330] sm:$0xff] %vm153, %v7917
  %8046 = vst.msk [vmem:[%s3 + $0x338] sm:$0xff] %vm153, %v7918
  %8047 = vst.msk [vmem:[%s3 + $0x340] sm:$0xff] %vm153, %v7919
  %8048 = vst.msk [vmem:[%s3 + $0x348] sm:$0xff] %vm153, %v7920
  %8049 = vst.msk [vmem:[%s3 + $0x350] sm:$0xff] %vm153, %v7921
  %8050 = vst.msk [vmem:[%s3 + $0x358] sm:$0xff] %vm153, %v7922
  %8051 = vst.msk [vmem:[%s3 + $0x360] sm:$0xff] %vm153, %v7923
  %8052 = vst.msk [vmem:[%s3 + $0x368] sm:$0xff] %vm153, %v7924
  %8053 = vst.msk [vmem:[%s3 + $0x370] sm:$0xff] %vm153, %v7925
  %8054 = vst.msk [vmem:[%s3 + $0x378] sm:$0xff] %vm153, %v7926
  %8055 = vst.msk [vmem:[%s3 + $0x380] sm:$0xff] %vm153, %v7927
  %8056 = vst.msk [vmem:[%s3 + $0x388] sm:$0xff] %vm153, %v7928
  %8057 = vst.msk [vmem:[%s3 + $0x390] sm:$0xff] %vm153, %v7929
  %8058 = vst.msk [vmem:[%s3 + $0x398] sm:$0xff] %vm153, %v7930
  %8059 = vst.msk [vmem:[%s3 + $0x3a0] sm:$0xff] %vm153, %v7931
  %8060 = vst.msk [vmem:[%s3 + $0x3a8] sm:$0xff] %vm153, %v7932
  %8061 = vst.msk [vmem:[%s3 + $0x3b0] sm:$0xff] %vm153, %v7933
  %8062 = vst.msk [vmem:[%s3 + $0x3b8] sm:$0xff] %vm153, %v7934
  %8063 = vst.msk [vmem:[%s3 + $0x3c0] sm:$0xff] %vm153, %v7935
  %8064 = vst.msk [vmem:[%s3 + $0x3c8] sm:$0xff] %vm153, %v7936
  %8065 = vst.msk [vmem:[%s3 + $0x3d0] sm:$0xff] %vm153, %v7937
  %8066 = vst.msk [vmem:[%s3 + $0x3d8] sm:$0xff] %vm153, %v7938
  %8067 = vst.msk [vmem:[%s3 + $0x3e0] sm:$0xff] %vm153, %v7939
  %8068 = vst.msk [vmem:[%s3 + $0x3e8] sm:$0xff] %vm153, %v7940
  %8069 = vst.msk [vmem:[%s3 + $0x3f0] sm:$0xff] %vm153, %v7941
  %8070 = vst.msk [vmem:[%s3 + $0x3f8] sm:$0xff] %vm153, %v7942
  // Predicated region
  $region14: #{tpu_custom_call.1} parent=0 // pred_check
    _
  $region15: #{tpu_custom_call.1} parent=0 // pred_check_branch
    %8072 = sbr.rel (0) target = $region17
  $region16: #{tpu_custom_call.1} parent=0 // pred_region
    _
  $region17: #{tpu_custom_call.1} parent=0 // pred_fallthru
    _
  // Predicated region
  $region18: #{tpu_custom_call.1} parent=0 // pred_check
    _
  $region19: #{tpu_custom_call.1} parent=0 // pred_check_branch
    %8074 = sbr.rel (0) target = $region21
  $region20: #{tpu_custom_call.1} parent=0 // pred_region
    _
  $region21: #{tpu_custom_call.1} parent=0 // pred_fallthru
    _

</llo_original>
